<compile_context>
chip_gen: v6e
topology: v6e:2x2x1
jax: 0.10.0
libtpu: 0.0.40
codegen_flags: <defaults>
</compile_context>

<pallas_src>
import functools

import numpy as np

import jax
import jax.numpy as jnp
from jax.experimental import pallas as pl
from jax.experimental.pallas import tpu as pltpu


# ---------------------------------------------------------------------------
# Static network description:
#   (kind, C_in, C_out, K, stride, pad, output_pad, activation, batchnorm)
# Sequential order inside a block is Conv -> ReLU -> BatchNorm1d (as in spec).
# ---------------------------------------------------------------------------
_LAYERS = (
    ("conv",    1,  16, 4, 2, 1, 0, "relu",    True),   # encoder
    ("conv",   16,  32, 4, 2, 1, 0, "relu",    True),
    ("conv",   32,  64, 4, 2, 1, 0, "relu",    True),
    ("conv",   64, 128, 4, 2, 1, 0, "relu",    True),
    ("convT", 128,  64, 4, 2, 1, 0, "relu",    True),   # decoder
    ("convT",  64,  32, 4, 2, 1, 1, "relu",    True),
    ("convT",  32,  16, 4, 2, 1, 0, "relu",    True),
    ("convT",  16,   1, 4, 2, 1, 1, None,      False),
    ("conv",    1,   1, 3, 1, 1, 0, "sigmoid", False),  # final conv + sigmoid
)
_BN_EPS = 1e-5


def _round_up(x, m):
    return (x + m - 1) // m * m


# ---------------------------------------------------------------------------
# Constant 0/1 tap-selection matrices (per sample, (L_in, L_out) per tap):
#   conv :  input index  i = stride*j + t - pad     (j = output position)
#   convT:  output index j = stride*i + t - pad     (i = input  position)
# ---------------------------------------------------------------------------
def _tap_matrix(kind, l_in, k, stride, pad, out_pad):
    if kind == "conv":
        l_out = (l_in + 2 * pad - k) // stride + 1
        g = np.zeros((k, l_in, l_out), np.float32)
        for t in range(k):
            for j in range(l_out):
                i = stride * j + t - pad
                if 0 <= i < l_in:
                    g[t, i, j] = 1.0
    else:
        l_out = (l_in - 1) * stride - 2 * pad + k + out_pad
        g = np.zeros((k, l_in, l_out), np.float32)
        for t in range(k):
            for i in range(l_in):
                j = stride * i + t - pad
                if 0 <= j < l_out:
                    g[t, i, j] = 1.0
    return g, l_out


# ---------------------------------------------------------------------------
# Host-side packing of all parameters / constants into 3 slabs.
# Every block starts at a tile-aligned row offset (16 for bf16, 8 for f32) so
# the in-kernel static ref slices never hit unaligned sublane offsets.
# ---------------------------------------------------------------------------
def _pack_operands(params, l0):
    cfg = []
    l = l0
    w_rows = g_rows = p_rows = 0
    g_nps = []
    for li, (kind, ci, co, k, s, p, op, act, bn) in enumerate(_LAYERS):
        g_np, l_out = _tap_matrix(kind, l, k, s, p, op)
        g_nps.append(g_np)
        fused = (ci % 16 == 0)            # wide-matmul path (all but C_in==1)
        g_blk = _round_up(l, 16)
        g_row = g_rows
        g_rows += k * g_blk
        if fused:
            w_row = w_rows
            w_rows += _round_up(co, 16)
        else:
            w_row = -1
        co8 = _round_up(co, 8)
        bias_row = p_rows; p_rows += co8
        if bn:
            gamma_row = p_rows; p_rows += co8
            beta_row = p_rows; p_rows += co8
        else:
            gamma_row = beta_row = -1
        if fused:
            wtap_row = -1
        else:
            wtap_row = p_rows; p_rows += k * co8
        cfg.append(dict(kind=kind, k=k, c_in=ci, c_out=co, l_in=l, l_out=l_out,
                        fused=fused, w_row=w_row, g_row=g_row, g_blk=g_blk,
                        bias_row=bias_row, gamma_row=gamma_row,
                        beta_row=beta_row, wtap_row=wtap_row, act=act, bn=bn))
        l = l_out

    w_cols = max(c["k"] * c["c_in"] for c in cfg if c["fused"])     # 512
    g_cols = max(c["l_out"] for c in cfg)

    # Tap-selection slab: pure constants, exact in bf16.
    g_slab = np.zeros((g_rows, g_cols), np.float32)
    for c, g_np in zip(cfg, g_nps):
        for t in range(c["k"]):
            r = c["g_row"] + t * c["g_blk"]
            g_slab[r:r + c["l_in"], :c["l_out"]] = g_np[t]
    g_slab = jnp.asarray(g_slab, jnp.bfloat16)

    w_slab = jnp.zeros((w_rows, w_cols), jnp.float32)
    p_slab = jnp.zeros((p_rows, 1), jnp.float32)

    def put(slab, row, mat):
        return jax.lax.dynamic_update_slice(slab, mat.astype(jnp.float32),
                                            (row, 0))

    for li, c in enumerate(cfg):
        w = params[f"w{li}"]
        if c["fused"]:
            if c["kind"] == "conv":   # (C_out, C_in, K) -> (C_out, K*C_in)
                wf = jnp.transpose(w, (0, 2, 1))
            else:                     # (C_in, C_out, K) -> (C_out, K*C_in)
                wf = jnp.transpose(w, (1, 2, 0))
            wf = wf.reshape(c["c_out"], c["k"] * c["c_in"])
            w_slab = put(w_slab, c["w_row"], wf)
        else:
            co8 = _round_up(c["c_out"], 8)
            for t in range(c["k"]):
                wt = w[:, 0, t] if c["kind"] == "conv" else w[0, :, t]
                p_slab = put(p_slab, c["wtap_row"] + t * co8, wt.reshape(-1, 1))
        p_slab = put(p_slab, c["bias_row"], params[f"b{li}"].reshape(-1, 1))
        if c["bn"]:
            p_slab = put(p_slab, c["gamma_row"],
                         params[f"gamma{li}"].reshape(-1, 1))
            p_slab = put(p_slab, c["beta_row"],
                         params[f"beta{li}"].reshape(-1, 1))
    w_slab = w_slab.astype(jnp.bfloat16)
    return w_slab, g_slab, p_slab, tuple(cfg), l


# ---------------------------------------------------------------------------
# Fused Pallas kernel: whole forward pass, all activations VMEM/vreg resident.
# ---------------------------------------------------------------------------
def _fused_kernel(x_ref, w_ref, g_ref, p_ref, o_ref, *, cfg, n_batch):
    # Per-sample activations, (C, L) each; input is PyTorch (N, 1, L0).
    hs = [x_ref[n] for n in range(n_batch)]          # (1, L0) f32

    for c in cfg:
        k, ci, co = c["k"], c["c_in"], c["c_out"]
        l_in, l_out = c["l_in"], c["l_out"]
        co8 = _round_up(co, 8)

        bias = p_ref[c["bias_row"]:c["bias_row"] + co, 0:1]          # (co,1) f32

        # Hoisted, reused across the batch loop.
        gts = []
        for t in range(k):
            r = c["g_row"] + t * c["g_blk"]
            gt = g_ref[r:r + l_in, 0:l_out]                          # bf16
            gts.append(gt if c["fused"] else gt.astype(jnp.float32))
        if c["fused"]:
            w = w_ref[c["w_row"]:c["w_row"] + co, 0:k * ci]          # bf16
        else:
            wts = [p_ref[c["wtap_row"] + t * co8:
                         c["wtap_row"] + t * co8 + co, 0:1]          # (co,1) f32
                   for t in range(k)]

        outs = []
        for n in range(n_batch):
            hn = hs[n]                                               # (ci, l_in) f32
            if c["fused"]:
                hn16 = hn.astype(jnp.bfloat16)
                taps = []
                for t in range(k):
                    tap = jnp.dot(hn16, gts[t],
                                  preferred_element_type=jnp.float32)
                    taps.append(tap.astype(jnp.bfloat16))            # (ci, l_out)
                h_taps = jnp.concatenate(taps, axis=0)               # (k*ci, l_out)
                acc = jnp.dot(w, h_taps,
                              preferred_element_type=jnp.float32)    # (co, l_out)
            else:  # C_in == 1 layers: K tiny outer products, all f32.
                acc = None
                for t in range(k):
                    tap = jnp.dot(hn, gts[t],
                                  preferred_element_type=jnp.float32)  # (1, l_out)
                    term = wts[t] * tap                              # (co, l_out)
                    acc = term if acc is None else acc + term

            acc = acc + bias
            if c["act"] == "relu":
                acc = jnp.maximum(acc, 0.0)
            elif c["act"] == "sigmoid":
                acc = jax.nn.sigmoid(acc)
            outs.append(acc)

        if c["bn"]:
            # Training-mode BatchNorm1d over (N, L), biased variance,
            # two-pass (centered) statistics.
            # TODO(synk): running_mean/running_var updates and eval-mode
            # normalization are not implemented (training-mode stats only).
            gamma = p_ref[c["gamma_row"]:c["gamma_row"] + co, 0:1]
            beta = p_ref[c["beta_row"]:c["beta_row"] + co, 0:1]
            inv_m = 1.0 / float(n_batch * l_out)
            mean = sum(jnp.sum(o, axis=1, keepdims=True) for o in outs) * inv_m
            cen = [o - mean for o in outs]
            var = sum(jnp.sum(z * z, axis=1, keepdims=True) for z in cen) * inv_m
            scale = jax.lax.rsqrt(var + _BN_EPS) * gamma
            outs = [z * scale + beta for z in cen]

        hs = outs

    for n in range(n_batch):
        o_ref[n] = hs[n]                                             # (1, L_out)


# ---------------------------------------------------------------------------
# Wrapper
# ---------------------------------------------------------------------------
def conv_autoencoder_forward(x, params):
    """x: (N, 1, L) float32  ->  (N, 1, L_out) float32, PyTorch semantics."""
    n, c0, l0 = x.shape
    assert c0 == 1, "model expects a single input channel"
    w_slab, g_slab, p_slab, cfg, l_out = _pack_operands(params, l0)
    kernel = functools.partial(_fused_kernel, cfg=cfg, n_batch=n)
    vmem = pl.BlockSpec(memory_space=pltpu.MemorySpace.VMEM)
    return pl.pallas_call(
        kernel,
        in_specs=[vmem, vmem, vmem, vmem],
        out_specs=vmem,
        out_shape=jax.ShapeDtypeStruct((n, 1, l_out), jnp.float32),
    )(x, w_slab, g_slab, p_slab)


# ---------------------------------------------------------------------------
# Parameter init (PyTorch default Conv1d/ConvTranspose1d init; BatchNorm with
# gamma=1, beta=0, like a freshly constructed nn.Module in training mode).
# ---------------------------------------------------------------------------
def init_params(key):
    params = {}
    keys = jax.random.split(key, 2 * len(_LAYERS))
    for li, (kind, ci, co, k, s, p, op, act, bn) in enumerate(_LAYERS):
        fan_in = (ci if kind == "conv" else co) * k
        bound = 1.0 / float(fan_in) ** 0.5
        wshape = (co, ci, k) if kind == "conv" else (ci, co, k)
        params[f"w{li}"] = jax.random.uniform(
            keys[2 * li], wshape, jnp.float32, -bound, bound)
        params[f"b{li}"] = jax.random.uniform(
            keys[2 * li + 1], (co,), jnp.float32, -bound, bound)
        if bn:
            params[f"gamma{li}"] = jnp.ones((co,), jnp.float32)
            params[f"beta{li}"] = jnp.zeros((co,), jnp.float32)
    return params


# ---------------------------------- main ------------------------------------
if __name__ == "__main__":
    key = jax.random.PRNGKey(0)
    k_x, k_p = jax.random.split(key)
    N, L = 2, 64                        # input (N, C=1, L), PyTorch NCL layout
    x = jax.random.normal(k_x, (N, 1, L), jnp.float32)
    params = init_params(k_p)

    fwd = jax.jit(conv_autoencoder_forward)
    out = fwd(x, params)
    jax.block_until_ready(out)

    # sanity: PyTorch shape semantics (output_padding grows L: 64 -> 69)
    assert out.shape == (N, 1, L + 5), out.shape
    assert out.dtype == jnp.float32
    assert bool(jnp.all((out >= 0.0) & (out <= 1.0)))   # sigmoid range
    print("KERNEL_OK")
</pallas_src>

<mosaic_0001>
module attributes {stable_mosaic.version = 11 : i64} {
  func.func @_fused_kernel(%arg0: memref<2x1x64xf32, #tpu.memory_space<vmem>>, %arg1: memref<352x512xbf16, #tpu.memory_space<vmem>>, %arg2: memref<1200x69xbf16, #tpu.memory_space<vmem>>, %arg3: memref<1160x1xf32, #tpu.memory_space<vmem>>, %arg4: memref<2x1x69xf32, #tpu.memory_space<vmem>>) attributes {dimension_semantics = [], scalar_prefetch = 0 : i64, scratch_operands = 0 : i64, tpu.core_type = #tpu.core_type<tc>} {
    %c0 = arith.constant 0 : index
    %c0_0 = arith.constant 0 : index
    %c0_1 = arith.constant 0 : index
    %0 = vector.load %arg0[%c0, %c0_0, %c0_1] : memref<2x1x64xf32, #tpu.memory_space<vmem>>, vector<1x1x64xf32>
    %1 = vector.shape_cast %0 : vector<1x1x64xf32> to vector<1x64xf32>
    %c1 = arith.constant 1 : index
    %c0_2 = arith.constant 0 : index
    %c0_3 = arith.constant 0 : index
    %2 = vector.load %arg0[%c1, %c0_2, %c0_3] : memref<2x1x64xf32, #tpu.memory_space<vmem>>, vector<1x1x64xf32>
    %3 = vector.shape_cast %2 : vector<1x1x64xf32> to vector<1x64xf32>
    %c0_4 = arith.constant 0 : index
    %c0_5 = arith.constant 0 : index
    %4 = vector.load %arg3[%c0_4, %c0_5] : memref<1160x1xf32, #tpu.memory_space<vmem>>, vector<16x1xf32>
    %c0_6 = arith.constant 0 : index
    %c0_7 = arith.constant 0 : index
    %5 = vector.load %arg2[%c0_6, %c0_7] : memref<1200x69xbf16, #tpu.memory_space<vmem>>, vector<64x32xbf16>
    %6 = arith.extf %5 : vector<64x32xbf16> to vector<64x32xf32>
    %c64 = arith.constant 64 : index
    %c0_8 = arith.constant 0 : index
    %7 = vector.load %arg2[%c64, %c0_8] : memref<1200x69xbf16, #tpu.memory_space<vmem>>, vector<64x32xbf16>
    %8 = arith.extf %7 : vector<64x32xbf16> to vector<64x32xf32>
    %c128 = arith.constant 128 : index
    %c0_9 = arith.constant 0 : index
    %9 = vector.load %arg2[%c128, %c0_9] : memref<1200x69xbf16, #tpu.memory_space<vmem>>, vector<64x32xbf16>
    %10 = arith.extf %9 : vector<64x32xbf16> to vector<64x32xf32>
    %c192 = arith.constant 192 : index
    %c0_10 = arith.constant 0 : index
    %11 = vector.load %arg2[%c192, %c0_10] : memref<1200x69xbf16, #tpu.memory_space<vmem>>, vector<64x32xbf16>
    %12 = arith.extf %11 : vector<64x32xbf16> to vector<64x32xf32>
    %c48 = arith.constant 48 : index
    %c0_11 = arith.constant 0 : index
    %13 = vector.load %arg3[%c48, %c0_11] : memref<1160x1xf32, #tpu.memory_space<vmem>>, vector<16x1xf32>
    %c64_12 = arith.constant 64 : index
    %c0_13 = arith.constant 0 : index
    %14 = vector.load %arg3[%c64_12, %c0_13] : memref<1160x1xf32, #tpu.memory_space<vmem>>, vector<16x1xf32>
    %c80 = arith.constant 80 : index
    %c0_14 = arith.constant 0 : index
    %15 = vector.load %arg3[%c80, %c0_14] : memref<1160x1xf32, #tpu.memory_space<vmem>>, vector<16x1xf32>
    %c96 = arith.constant 96 : index
    %c0_15 = arith.constant 0 : index
    %16 = vector.load %arg3[%c96, %c0_15] : memref<1160x1xf32, #tpu.memory_space<vmem>>, vector<16x1xf32>
    %cst = arith.constant dense<0.000000e+00> : vector<1x32xf32>
    %17 = tpu.matmul %1, %6, %cst {dimension_numbers = #tpu.dot_dimension_numbers<[1], [0], [0], [1], [0, 0, 1, 1], [], []>} : vector<1x64xf32>, vector<64x32xf32>, vector<1x32xf32> -> vector<1x32xf32>
    %18 = vector.broadcast %13 : vector<16x1xf32> to vector<16x32xf32>
    %19 = vector.broadcast %17 : vector<1x32xf32> to vector<16x32xf32>
    %20 = arith.mulf %18, %19 : vector<16x32xf32>
    %cst_16 = arith.constant dense<0.000000e+00> : vector<1x32xf32>
    %21 = tpu.matmul %1, %8, %cst_16 {dimension_numbers = #tpu.dot_dimension_numbers<[1], [0], [0], [1], [0, 0, 1, 1], [], []>} : vector<1x64xf32>, vector<64x32xf32>, vector<1x32xf32> -> vector<1x32xf32>
    %22 = vector.broadcast %14 : vector<16x1xf32> to vector<16x32xf32>
    %23 = vector.broadcast %21 : vector<1x32xf32> to vector<16x32xf32>
    %24 = arith.mulf %22, %23 : vector<16x32xf32>
    %25 = arith.addf %20, %24 : vector<16x32xf32>
    %cst_17 = arith.constant dense<0.000000e+00> : vector<1x32xf32>
    %26 = tpu.matmul %1, %10, %cst_17 {dimension_numbers = #tpu.dot_dimension_numbers<[1], [0], [0], [1], [0, 0, 1, 1], [], []>} : vector<1x64xf32>, vector<64x32xf32>, vector<1x32xf32> -> vector<1x32xf32>
    %27 = vector.broadcast %15 : vector<16x1xf32> to vector<16x32xf32>
    %28 = vector.broadcast %26 : vector<1x32xf32> to vector<16x32xf32>
    %29 = arith.mulf %27, %28 : vector<16x32xf32>
    %30 = arith.addf %25, %29 : vector<16x32xf32>
    %cst_18 = arith.constant dense<0.000000e+00> : vector<1x32xf32>
    %31 = tpu.matmul %1, %12, %cst_18 {dimension_numbers = #tpu.dot_dimension_numbers<[1], [0], [0], [1], [0, 0, 1, 1], [], []>} : vector<1x64xf32>, vector<64x32xf32>, vector<1x32xf32> -> vector<1x32xf32>
    %32 = vector.broadcast %16 : vector<16x1xf32> to vector<16x32xf32>
    %33 = vector.broadcast %31 : vector<1x32xf32> to vector<16x32xf32>
    %34 = arith.mulf %32, %33 : vector<16x32xf32>
    %35 = arith.addf %30, %34 : vector<16x32xf32>
    %36 = vector.broadcast %4 : vector<16x1xf32> to vector<16x32xf32>
    %37 = arith.addf %35, %36 : vector<16x32xf32>
    %cst_19 = arith.constant 0.000000e+00 : f32
    %38 = vector.broadcast %cst_19 : f32 to vector<16x32xf32>
    %39 = arith.maximumf %37, %38 : vector<16x32xf32>
    %cst_20 = arith.constant dense<0.000000e+00> : vector<1x32xf32>
    %40 = tpu.matmul %3, %6, %cst_20 {dimension_numbers = #tpu.dot_dimension_numbers<[1], [0], [0], [1], [0, 0, 1, 1], [], []>} : vector<1x64xf32>, vector<64x32xf32>, vector<1x32xf32> -> vector<1x32xf32>
    %41 = vector.broadcast %13 : vector<16x1xf32> to vector<16x32xf32>
    %42 = vector.broadcast %40 : vector<1x32xf32> to vector<16x32xf32>
    %43 = arith.mulf %41, %42 : vector<16x32xf32>
    %cst_21 = arith.constant dense<0.000000e+00> : vector<1x32xf32>
    %44 = tpu.matmul %3, %8, %cst_21 {dimension_numbers = #tpu.dot_dimension_numbers<[1], [0], [0], [1], [0, 0, 1, 1], [], []>} : vector<1x64xf32>, vector<64x32xf32>, vector<1x32xf32> -> vector<1x32xf32>
    %45 = vector.broadcast %14 : vector<16x1xf32> to vector<16x32xf32>
    %46 = vector.broadcast %44 : vector<1x32xf32> to vector<16x32xf32>
    %47 = arith.mulf %45, %46 : vector<16x32xf32>
    %48 = arith.addf %43, %47 : vector<16x32xf32>
    %cst_22 = arith.constant dense<0.000000e+00> : vector<1x32xf32>
    %49 = tpu.matmul %3, %10, %cst_22 {dimension_numbers = #tpu.dot_dimension_numbers<[1], [0], [0], [1], [0, 0, 1, 1], [], []>} : vector<1x64xf32>, vector<64x32xf32>, vector<1x32xf32> -> vector<1x32xf32>
    %50 = vector.broadcast %15 : vector<16x1xf32> to vector<16x32xf32>
    %51 = vector.broadcast %49 : vector<1x32xf32> to vector<16x32xf32>
    %52 = arith.mulf %50, %51 : vector<16x32xf32>
    %53 = arith.addf %48, %52 : vector<16x32xf32>
    %cst_23 = arith.constant dense<0.000000e+00> : vector<1x32xf32>
    %54 = tpu.matmul %3, %12, %cst_23 {dimension_numbers = #tpu.dot_dimension_numbers<[1], [0], [0], [1], [0, 0, 1, 1], [], []>} : vector<1x64xf32>, vector<64x32xf32>, vector<1x32xf32> -> vector<1x32xf32>
    %55 = vector.broadcast %16 : vector<16x1xf32> to vector<16x32xf32>
    %56 = vector.broadcast %54 : vector<1x32xf32> to vector<16x32xf32>
    %57 = arith.mulf %55, %56 : vector<16x32xf32>
    %58 = arith.addf %53, %57 : vector<16x32xf32>
    %59 = vector.broadcast %4 : vector<16x1xf32> to vector<16x32xf32>
    %60 = arith.addf %58, %59 : vector<16x32xf32>
    %cst_24 = arith.constant 0.000000e+00 : f32
    %61 = vector.broadcast %cst_24 : f32 to vector<16x32xf32>
    %62 = arith.maximumf %60, %61 : vector<16x32xf32>
    %c16 = arith.constant 16 : index
    %c0_25 = arith.constant 0 : index
    %63 = vector.load %arg3[%c16, %c0_25] : memref<1160x1xf32, #tpu.memory_space<vmem>>, vector<16x1xf32>
    %c32 = arith.constant 32 : index
    %c0_26 = arith.constant 0 : index
    %64 = vector.load %arg3[%c32, %c0_26] : memref<1160x1xf32, #tpu.memory_space<vmem>>, vector<16x1xf32>
    %cst_27 = arith.constant dense<0.000000e+00> : vector<16xf32>
    %65 = vector.multi_reduction <add>, %39, %cst_27 [1] : vector<16x32xf32> to vector<16xf32>
    %66 = vector.shape_cast %65 : vector<16xf32> to vector<16x1xf32>
    %cst_28 = arith.constant 0.000000e+00 : f32
    %67 = vector.broadcast %cst_28 : f32 to vector<16x1xf32>
    %68 = arith.addf %67, %66 : vector<16x1xf32>
    %cst_29 = arith.constant dense<0.000000e+00> : vector<16xf32>
    %69 = vector.multi_reduction <add>, %62, %cst_29 [1] : vector<16x32xf32> to vector<16xf32>
    %70 = vector.shape_cast %69 : vector<16xf32> to vector<16x1xf32>
    %71 = arith.addf %68, %70 : vector<16x1xf32>
    %cst_30 = arith.constant 1.562500e-02 : f32
    %72 = vector.broadcast %cst_30 : f32 to vector<16x1xf32>
    %73 = arith.mulf %71, %72 : vector<16x1xf32>
    %74 = vector.broadcast %73 : vector<16x1xf32> to vector<16x32xf32>
    %75 = arith.subf %39, %74 : vector<16x32xf32>
    %76 = vector.broadcast %73 : vector<16x1xf32> to vector<16x32xf32>
    %77 = arith.subf %62, %76 : vector<16x32xf32>
    %78 = arith.mulf %75, %75 : vector<16x32xf32>
    %cst_31 = arith.constant dense<0.000000e+00> : vector<16xf32>
    %79 = vector.multi_reduction <add>, %78, %cst_31 [1] : vector<16x32xf32> to vector<16xf32>
    %80 = vector.shape_cast %79 : vector<16xf32> to vector<16x1xf32>
    %cst_32 = arith.constant 0.000000e+00 : f32
    %81 = vector.broadcast %cst_32 : f32 to vector<16x1xf32>
    %82 = arith.addf %81, %80 : vector<16x1xf32>
    %83 = arith.mulf %77, %77 : vector<16x32xf32>
    %cst_33 = arith.constant dense<0.000000e+00> : vector<16xf32>
    %84 = vector.multi_reduction <add>, %83, %cst_33 [1] : vector<16x32xf32> to vector<16xf32>
    %85 = vector.shape_cast %84 : vector<16xf32> to vector<16x1xf32>
    %86 = arith.addf %82, %85 : vector<16x1xf32>
    %cst_34 = arith.constant 1.562500e-02 : f32
    %87 = vector.broadcast %cst_34 : f32 to vector<16x1xf32>
    %88 = arith.mulf %86, %87 : vector<16x1xf32>
    %cst_35 = arith.constant 9.99999974E-6 : f32
    %89 = vector.broadcast %cst_35 : f32 to vector<16x1xf32>
    %90 = arith.addf %88, %89 : vector<16x1xf32>
    %91 = math.rsqrt %90 : vector<16x1xf32>
    %92 = arith.mulf %91, %63 : vector<16x1xf32>
    %93 = vector.broadcast %92 : vector<16x1xf32> to vector<16x32xf32>
    %94 = arith.mulf %75, %93 : vector<16x32xf32>
    %95 = vector.broadcast %64 : vector<16x1xf32> to vector<16x32xf32>
    %96 = arith.addf %94, %95 : vector<16x32xf32>
    %97 = vector.broadcast %92 : vector<16x1xf32> to vector<16x32xf32>
    %98 = arith.mulf %77, %97 : vector<16x32xf32>
    %99 = vector.broadcast %64 : vector<16x1xf32> to vector<16x32xf32>
    %100 = arith.addf %98, %99 : vector<16x32xf32>
    %c112 = arith.constant 112 : index
    %c0_36 = arith.constant 0 : index
    %101 = vector.load %arg3[%c112, %c0_36] : memref<1160x1xf32, #tpu.memory_space<vmem>>, vector<32x1xf32>
    %c256 = arith.constant 256 : index
    %c0_37 = arith.constant 0 : index
    %102 = vector.load %arg2[%c256, %c0_37] : memref<1200x69xbf16, #tpu.memory_space<vmem>>, vector<32x16xbf16>
    %c288 = arith.constant 288 : index
    %c0_38 = arith.constant 0 : index
    %103 = vector.load %arg2[%c288, %c0_38] : memref<1200x69xbf16, #tpu.memory_space<vmem>>, vector<32x16xbf16>
    %c320 = arith.constant 320 : index
    %c0_39 = arith.constant 0 : index
    %104 = vector.load %arg2[%c320, %c0_39] : memref<1200x69xbf16, #tpu.memory_space<vmem>>, vector<32x16xbf16>
    %c352 = arith.constant 352 : index
    %c0_40 = arith.constant 0 : index
    %105 = vector.load %arg2[%c352, %c0_40] : memref<1200x69xbf16, #tpu.memory_space<vmem>>, vector<32x16xbf16>
    %c0_41 = arith.constant 0 : index
    %c0_42 = arith.constant 0 : index
    %106 = vector.load %arg1[%c0_41, %c0_42] : memref<352x512xbf16, #tpu.memory_space<vmem>>, vector<32x64xbf16>
    %107 = arith.truncf %96 : vector<16x32xf32> to vector<16x32xbf16>
    %cst_43 = arith.constant dense<0.000000e+00> : vector<16x16xf32>
    %108 = tpu.matmul %107, %102, %cst_43 {dimension_numbers = #tpu.dot_dimension_numbers<[1], [0], [0], [1], [0, 0, 1, 1], [], []>} : vector<16x32xbf16>, vector<32x16xbf16>, vector<16x16xf32> -> vector<16x16xf32>
    %109 = arith.truncf %108 : vector<16x16xf32> to vector<16x16xbf16>
    %cst_44 = arith.constant dense<0.000000e+00> : vector<16x16xf32>
    %110 = tpu.matmul %107, %103, %cst_44 {dimension_numbers = #tpu.dot_dimension_numbers<[1], [0], [0], [1], [0, 0, 1, 1], [], []>} : vector<16x32xbf16>, vector<32x16xbf16>, vector<16x16xf32> -> vector<16x16xf32>
    %111 = arith.truncf %110 : vector<16x16xf32> to vector<16x16xbf16>
    %cst_45 = arith.constant dense<0.000000e+00> : vector<16x16xf32>
    %112 = tpu.matmul %107, %104, %cst_45 {dimension_numbers = #tpu.dot_dimension_numbers<[1], [0], [0], [1], [0, 0, 1, 1], [], []>} : vector<16x32xbf16>, vector<32x16xbf16>, vector<16x16xf32> -> vector<16x16xf32>
    %113 = arith.truncf %112 : vector<16x16xf32> to vector<16x16xbf16>
    %cst_46 = arith.constant dense<0.000000e+00> : vector<16x16xf32>
    %114 = tpu.matmul %107, %105, %cst_46 {dimension_numbers = #tpu.dot_dimension_numbers<[1], [0], [0], [1], [0, 0, 1, 1], [], []>} : vector<16x32xbf16>, vector<32x16xbf16>, vector<16x16xf32> -> vector<16x16xf32>
    %115 = arith.truncf %114 : vector<16x16xf32> to vector<16x16xbf16>
    %116 = tpu.concatenate %109, %111, %113, %115 in 0 : vector<16x16xbf16>, vector<16x16xbf16>, vector<16x16xbf16>, vector<16x16xbf16> -> vector<64x16xbf16>
    %cst_47 = arith.constant dense<0.000000e+00> : vector<32x16xf32>
    %117 = tpu.matmul %106, %116, %cst_47 {dimension_numbers = #tpu.dot_dimension_numbers<[1], [0], [0], [1], [0, 0, 1, 1], [], []>} : vector<32x64xbf16>, vector<64x16xbf16>, vector<32x16xf32> -> vector<32x16xf32>
    %118 = vector.broadcast %101 : vector<32x1xf32> to vector<32x16xf32>
    %119 = arith.addf %117, %118 : vector<32x16xf32>
    %cst_48 = arith.constant 0.000000e+00 : f32
    %120 = vector.broadcast %cst_48 : f32 to vector<32x16xf32>
    %121 = arith.maximumf %119, %120 : vector<32x16xf32>
    %122 = arith.truncf %100 : vector<16x32xf32> to vector<16x32xbf16>
    %cst_49 = arith.constant dense<0.000000e+00> : vector<16x16xf32>
    %123 = tpu.matmul %122, %102, %cst_49 {dimension_numbers = #tpu.dot_dimension_numbers<[1], [0], [0], [1], [0, 0, 1, 1], [], []>} : vector<16x32xbf16>, vector<32x16xbf16>, vector<16x16xf32> -> vector<16x16xf32>
    %124 = arith.truncf %123 : vector<16x16xf32> to vector<16x16xbf16>
    %cst_50 = arith.constant dense<0.000000e+00> : vector<16x16xf32>
    %125 = tpu.matmul %122, %103, %cst_50 {dimension_numbers = #tpu.dot_dimension_numbers<[1], [0], [0], [1], [0, 0, 1, 1], [], []>} : vector<16x32xbf16>, vector<32x16xbf16>, vector<16x16xf32> -> vector<16x16xf32>
    %126 = arith.truncf %125 : vector<16x16xf32> to vector<16x16xbf16>
    %cst_51 = arith.constant dense<0.000000e+00> : vector<16x16xf32>
    %127 = tpu.matmul %122, %104, %cst_51 {dimension_numbers = #tpu.dot_dimension_numbers<[1], [0], [0], [1], [0, 0, 1, 1], [], []>} : vector<16x32xbf16>, vector<32x16xbf16>, vector<16x16xf32> -> vector<16x16xf32>
    %128 = arith.truncf %127 : vector<16x16xf32> to vector<16x16xbf16>
    %cst_52 = arith.constant dense<0.000000e+00> : vector<16x16xf32>
    %129 = tpu.matmul %122, %105, %cst_52 {dimension_numbers = #tpu.dot_dimension_numbers<[1], [0], [0], [1], [0, 0, 1, 1], [], []>} : vector<16x32xbf16>, vector<32x16xbf16>, vector<16x16xf32> -> vector<16x16xf32>
    %130 = arith.truncf %129 : vector<16x16xf32> to vector<16x16xbf16>
    %131 = tpu.concatenate %124, %126, %128, %130 in 0 : vector<16x16xbf16>, vector<16x16xbf16>, vector<16x16xbf16>, vector<16x16xbf16> -> vector<64x16xbf16>
    %cst_53 = arith.constant dense<0.000000e+00> : vector<32x16xf32>
    %132 = tpu.matmul %106, %131, %cst_53 {dimension_numbers = #tpu.dot_dimension_numbers<[1], [0], [0], [1], [0, 0, 1, 1], [], []>} : vector<32x64xbf16>, vector<64x16xbf16>, vector<32x16xf32> -> vector<32x16xf32>
    %133 = vector.broadcast %101 : vector<32x1xf32> to vector<32x16xf32>
    %134 = arith.addf %132, %133 : vector<32x16xf32>
    %cst_54 = arith.constant 0.000000e+00 : f32
    %135 = vector.broadcast %cst_54 : f32 to vector<32x16xf32>
    %136 = arith.maximumf %134, %135 : vector<32x16xf32>
    %c144 = arith.constant 144 : index
    %c0_55 = arith.constant 0 : index
    %137 = vector.load %arg3[%c144, %c0_55] : memref<1160x1xf32, #tpu.memory_space<vmem>>, vector<32x1xf32>
    %c176 = arith.constant 176 : index
    %c0_56 = arith.constant 0 : index
    %138 = vector.load %arg3[%c176, %c0_56] : memref<1160x1xf32, #tpu.memory_space<vmem>>, vector<32x1xf32>
    %cst_57 = arith.constant dense<0.000000e+00> : vector<32xf32>
    %139 = vector.multi_reduction <add>, %121, %cst_57 [1] : vector<32x16xf32> to vector<32xf32>
    %140 = vector.shape_cast %139 : vector<32xf32> to vector<32x1xf32>
    %cst_58 = arith.constant 0.000000e+00 : f32
    %141 = vector.broadcast %cst_58 : f32 to vector<32x1xf32>
    %142 = arith.addf %141, %140 : vector<32x1xf32>
    %cst_59 = arith.constant dense<0.000000e+00> : vector<32xf32>
    %143 = vector.multi_reduction <add>, %136, %cst_59 [1] : vector<32x16xf32> to vector<32xf32>
    %144 = vector.shape_cast %143 : vector<32xf32> to vector<32x1xf32>
    %145 = arith.addf %142, %144 : vector<32x1xf32>
    %cst_60 = arith.constant 3.125000e-02 : f32
    %146 = vector.broadcast %cst_60 : f32 to vector<32x1xf32>
    %147 = arith.mulf %145, %146 : vector<32x1xf32>
    %148 = vector.broadcast %147 : vector<32x1xf32> to vector<32x16xf32>
    %149 = arith.subf %121, %148 : vector<32x16xf32>
    %150 = vector.broadcast %147 : vector<32x1xf32> to vector<32x16xf32>
    %151 = arith.subf %136, %150 : vector<32x16xf32>
    %152 = arith.mulf %149, %149 : vector<32x16xf32>
    %cst_61 = arith.constant dense<0.000000e+00> : vector<32xf32>
    %153 = vector.multi_reduction <add>, %152, %cst_61 [1] : vector<32x16xf32> to vector<32xf32>
    %154 = vector.shape_cast %153 : vector<32xf32> to vector<32x1xf32>
    %cst_62 = arith.constant 0.000000e+00 : f32
    %155 = vector.broadcast %cst_62 : f32 to vector<32x1xf32>
    %156 = arith.addf %155, %154 : vector<32x1xf32>
    %157 = arith.mulf %151, %151 : vector<32x16xf32>
    %cst_63 = arith.constant dense<0.000000e+00> : vector<32xf32>
    %158 = vector.multi_reduction <add>, %157, %cst_63 [1] : vector<32x16xf32> to vector<32xf32>
    %159 = vector.shape_cast %158 : vector<32xf32> to vector<32x1xf32>
    %160 = arith.addf %156, %159 : vector<32x1xf32>
    %cst_64 = arith.constant 3.125000e-02 : f32
    %161 = vector.broadcast %cst_64 : f32 to vector<32x1xf32>
    %162 = arith.mulf %160, %161 : vector<32x1xf32>
    %cst_65 = arith.constant 9.99999974E-6 : f32
    %163 = vector.broadcast %cst_65 : f32 to vector<32x1xf32>
    %164 = arith.addf %162, %163 : vector<32x1xf32>
    %165 = math.rsqrt %164 : vector<32x1xf32>
    %166 = arith.mulf %165, %137 : vector<32x1xf32>
    %167 = vector.broadcast %166 : vector<32x1xf32> to vector<32x16xf32>
    %168 = arith.mulf %149, %167 : vector<32x16xf32>
    %169 = vector.broadcast %138 : vector<32x1xf32> to vector<32x16xf32>
    %170 = arith.addf %168, %169 : vector<32x16xf32>
    %171 = vector.broadcast %166 : vector<32x1xf32> to vector<32x16xf32>
    %172 = arith.mulf %151, %171 : vector<32x16xf32>
    %173 = vector.broadcast %138 : vector<32x1xf32> to vector<32x16xf32>
    %174 = arith.addf %172, %173 : vector<32x16xf32>
    %c208 = arith.constant 208 : index
    %c0_66 = arith.constant 0 : index
    %175 = vector.load %arg3[%c208, %c0_66] : memref<1160x1xf32, #tpu.memory_space<vmem>>, vector<64x1xf32>
    %c384 = arith.constant 384 : index
    %c0_67 = arith.constant 0 : index
    %176 = vector.load %arg2[%c384, %c0_67] : memref<1200x69xbf16, #tpu.memory_space<vmem>>, vector<16x8xbf16>
    %c400 = arith.constant 400 : index
    %c0_68 = arith.constant 0 : index
    %177 = vector.load %arg2[%c400, %c0_68] : memref<1200x69xbf16, #tpu.memory_space<vmem>>, vector<16x8xbf16>
    %c416 = arith.constant 416 : index
    %c0_69 = arith.constant 0 : index
    %178 = vector.load %arg2[%c416, %c0_69] : memref<1200x69xbf16, #tpu.memory_space<vmem>>, vector<16x8xbf16>
    %c432 = arith.constant 432 : index
    %c0_70 = arith.constant 0 : index
    %179 = vector.load %arg2[%c432, %c0_70] : memref<1200x69xbf16, #tpu.memory_space<vmem>>, vector<16x8xbf16>
    %c32_71 = arith.constant 32 : index
    %c0_72 = arith.constant 0 : index
    %180 = vector.load %arg1[%c32_71, %c0_72] : memref<352x512xbf16, #tpu.memory_space<vmem>>, vector<64x128xbf16>
    %181 = arith.truncf %170 : vector<32x16xf32> to vector<32x16xbf16>
    %cst_73 = arith.constant dense<0.000000e+00> : vector<32x8xf32>
    %182 = tpu.matmul %181, %176, %cst_73 {dimension_numbers = #tpu.dot_dimension_numbers<[1], [0], [0], [1], [0, 0, 1, 1], [], []>} : vector<32x16xbf16>, vector<16x8xbf16>, vector<32x8xf32> -> vector<32x8xf32>
    %183 = arith.truncf %182 : vector<32x8xf32> to vector<32x8xbf16>
    %cst_74 = arith.constant dense<0.000000e+00> : vector<32x8xf32>
    %184 = tpu.matmul %181, %177, %cst_74 {dimension_numbers = #tpu.dot_dimension_numbers<[1], [0], [0], [1], [0, 0, 1, 1], [], []>} : vector<32x16xbf16>, vector<16x8xbf16>, vector<32x8xf32> -> vector<32x8xf32>
    %185 = arith.truncf %184 : vector<32x8xf32> to vector<32x8xbf16>
    %cst_75 = arith.constant dense<0.000000e+00> : vector<32x8xf32>
    %186 = tpu.matmul %181, %178, %cst_75 {dimension_numbers = #tpu.dot_dimension_numbers<[1], [0], [0], [1], [0, 0, 1, 1], [], []>} : vector<32x16xbf16>, vector<16x8xbf16>, vector<32x8xf32> -> vector<32x8xf32>
    %187 = arith.truncf %186 : vector<32x8xf32> to vector<32x8xbf16>
    %cst_76 = arith.constant dense<0.000000e+00> : vector<32x8xf32>
    %188 = tpu.matmul %181, %179, %cst_76 {dimension_numbers = #tpu.dot_dimension_numbers<[1], [0], [0], [1], [0, 0, 1, 1], [], []>} : vector<32x16xbf16>, vector<16x8xbf16>, vector<32x8xf32> -> vector<32x8xf32>
    %189 = arith.truncf %188 : vector<32x8xf32> to vector<32x8xbf16>
    %190 = tpu.concatenate %183, %185, %187, %189 in 0 : vector<32x8xbf16>, vector<32x8xbf16>, vector<32x8xbf16>, vector<32x8xbf16> -> vector<128x8xbf16>
    %cst_77 = arith.constant dense<0.000000e+00> : vector<64x8xf32>
    %191 = tpu.matmul %180, %190, %cst_77 {dimension_numbers = #tpu.dot_dimension_numbers<[1], [0], [0], [1], [0, 0, 1, 1], [], []>} : vector<64x128xbf16>, vector<128x8xbf16>, vector<64x8xf32> -> vector<64x8xf32>
    %192 = vector.broadcast %175 : vector<64x1xf32> to vector<64x8xf32>
    %193 = arith.addf %191, %192 : vector<64x8xf32>
    %cst_78 = arith.constant 0.000000e+00 : f32
    %194 = vector.broadcast %cst_78 : f32 to vector<64x8xf32>
    %195 = arith.maximumf %193, %194 : vector<64x8xf32>
    %196 = arith.truncf %174 : vector<32x16xf32> to vector<32x16xbf16>
    %cst_79 = arith.constant dense<0.000000e+00> : vector<32x8xf32>
    %197 = tpu.matmul %196, %176, %cst_79 {dimension_numbers = #tpu.dot_dimension_numbers<[1], [0], [0], [1], [0, 0, 1, 1], [], []>} : vector<32x16xbf16>, vector<16x8xbf16>, vector<32x8xf32> -> vector<32x8xf32>
    %198 = arith.truncf %197 : vector<32x8xf32> to vector<32x8xbf16>
    %cst_80 = arith.constant dense<0.000000e+00> : vector<32x8xf32>
    %199 = tpu.matmul %196, %177, %cst_80 {dimension_numbers = #tpu.dot_dimension_numbers<[1], [0], [0], [1], [0, 0, 1, 1], [], []>} : vector<32x16xbf16>, vector<16x8xbf16>, vector<32x8xf32> -> vector<32x8xf32>
    %200 = arith.truncf %199 : vector<32x8xf32> to vector<32x8xbf16>
    %cst_81 = arith.constant dense<0.000000e+00> : vector<32x8xf32>
    %201 = tpu.matmul %196, %178, %cst_81 {dimension_numbers = #tpu.dot_dimension_numbers<[1], [0], [0], [1], [0, 0, 1, 1], [], []>} : vector<32x16xbf16>, vector<16x8xbf16>, vector<32x8xf32> -> vector<32x8xf32>
    %202 = arith.truncf %201 : vector<32x8xf32> to vector<32x8xbf16>
    %cst_82 = arith.constant dense<0.000000e+00> : vector<32x8xf32>
    %203 = tpu.matmul %196, %179, %cst_82 {dimension_numbers = #tpu.dot_dimension_numbers<[1], [0], [0], [1], [0, 0, 1, 1], [], []>} : vector<32x16xbf16>, vector<16x8xbf16>, vector<32x8xf32> -> vector<32x8xf32>
    %204 = arith.truncf %203 : vector<32x8xf32> to vector<32x8xbf16>
    %205 = tpu.concatenate %198, %200, %202, %204 in 0 : vector<32x8xbf16>, vector<32x8xbf16>, vector<32x8xbf16>, vector<32x8xbf16> -> vector<128x8xbf16>
    %cst_83 = arith.constant dense<0.000000e+00> : vector<64x8xf32>
    %206 = tpu.matmul %180, %205, %cst_83 {dimension_numbers = #tpu.dot_dimension_numbers<[1], [0], [0], [1], [0, 0, 1, 1], [], []>} : vector<64x128xbf16>, vector<128x8xbf16>, vector<64x8xf32> -> vector<64x8xf32>
    %207 = vector.broadcast %175 : vector<64x1xf32> to vector<64x8xf32>
    %208 = arith.addf %206, %207 : vector<64x8xf32>
    %cst_84 = arith.constant 0.000000e+00 : f32
    %209 = vector.broadcast %cst_84 : f32 to vector<64x8xf32>
    %210 = arith.maximumf %208, %209 : vector<64x8xf32>
    %c272 = arith.constant 272 : index
    %c0_85 = arith.constant 0 : index
    %211 = vector.load %arg3[%c272, %c0_85] : memref<1160x1xf32, #tpu.memory_space<vmem>>, vector<64x1xf32>
    %c336 = arith.constant 336 : index
    %c0_86 = arith.constant 0 : index
    %212 = vector.load %arg3[%c336, %c0_86] : memref<1160x1xf32, #tpu.memory_space<vmem>>, vector<64x1xf32>
    %cst_87 = arith.constant dense<0.000000e+00> : vector<64xf32>
    %213 = vector.multi_reduction <add>, %195, %cst_87 [1] : vector<64x8xf32> to vector<64xf32>
    %214 = vector.shape_cast %213 : vector<64xf32> to vector<64x1xf32>
    %cst_88 = arith.constant 0.000000e+00 : f32
    %215 = vector.broadcast %cst_88 : f32 to vector<64x1xf32>
    %216 = arith.addf %215, %214 : vector<64x1xf32>
    %cst_89 = arith.constant dense<0.000000e+00> : vector<64xf32>
    %217 = vector.multi_reduction <add>, %210, %cst_89 [1] : vector<64x8xf32> to vector<64xf32>
    %218 = vector.shape_cast %217 : vector<64xf32> to vector<64x1xf32>
    %219 = arith.addf %216, %218 : vector<64x1xf32>
    %cst_90 = arith.constant 6.250000e-02 : f32
    %220 = vector.broadcast %cst_90 : f32 to vector<64x1xf32>
    %221 = arith.mulf %219, %220 : vector<64x1xf32>
    %222 = vector.broadcast %221 : vector<64x1xf32> to vector<64x8xf32>
    %223 = arith.subf %195, %222 : vector<64x8xf32>
    %224 = vector.broadcast %221 : vector<64x1xf32> to vector<64x8xf32>
    %225 = arith.subf %210, %224 : vector<64x8xf32>
    %226 = arith.mulf %223, %223 : vector<64x8xf32>
    %cst_91 = arith.constant dense<0.000000e+00> : vector<64xf32>
    %227 = vector.multi_reduction <add>, %226, %cst_91 [1] : vector<64x8xf32> to vector<64xf32>
    %228 = vector.shape_cast %227 : vector<64xf32> to vector<64x1xf32>
    %cst_92 = arith.constant 0.000000e+00 : f32
    %229 = vector.broadcast %cst_92 : f32 to vector<64x1xf32>
    %230 = arith.addf %229, %228 : vector<64x1xf32>
    %231 = arith.mulf %225, %225 : vector<64x8xf32>
    %cst_93 = arith.constant dense<0.000000e+00> : vector<64xf32>
    %232 = vector.multi_reduction <add>, %231, %cst_93 [1] : vector<64x8xf32> to vector<64xf32>
    %233 = vector.shape_cast %232 : vector<64xf32> to vector<64x1xf32>
    %234 = arith.addf %230, %233 : vector<64x1xf32>
    %cst_94 = arith.constant 6.250000e-02 : f32
    %235 = vector.broadcast %cst_94 : f32 to vector<64x1xf32>
    %236 = arith.mulf %234, %235 : vector<64x1xf32>
    %cst_95 = arith.constant 9.99999974E-6 : f32
    %237 = vector.broadcast %cst_95 : f32 to vector<64x1xf32>
    %238 = arith.addf %236, %237 : vector<64x1xf32>
    %239 = math.rsqrt %238 : vector<64x1xf32>
    %240 = arith.mulf %239, %211 : vector<64x1xf32>
    %241 = vector.broadcast %240 : vector<64x1xf32> to vector<64x8xf32>
    %242 = arith.mulf %223, %241 : vector<64x8xf32>
    %243 = vector.broadcast %212 : vector<64x1xf32> to vector<64x8xf32>
    %244 = arith.addf %242, %243 : vector<64x8xf32>
    %245 = vector.broadcast %240 : vector<64x1xf32> to vector<64x8xf32>
    %246 = arith.mulf %225, %245 : vector<64x8xf32>
    %247 = vector.broadcast %212 : vector<64x1xf32> to vector<64x8xf32>
    %248 = arith.addf %246, %247 : vector<64x8xf32>
    %c400_96 = arith.constant 400 : index
    %c0_97 = arith.constant 0 : index
    %249 = vector.load %arg3[%c400_96, %c0_97] : memref<1160x1xf32, #tpu.memory_space<vmem>>, vector<128x1xf32>
    %c448 = arith.constant 448 : index
    %c0_98 = arith.constant 0 : index
    %250 = vector.load %arg2[%c448, %c0_98] : memref<1200x69xbf16, #tpu.memory_space<vmem>>, vector<8x4xbf16>
    %c464 = arith.constant 464 : index
    %c0_99 = arith.constant 0 : index
    %251 = vector.load %arg2[%c464, %c0_99] : memref<1200x69xbf16, #tpu.memory_space<vmem>>, vector<8x4xbf16>
    %c480 = arith.constant 480 : index
    %c0_100 = arith.constant 0 : index
    %252 = vector.load %arg2[%c480, %c0_100] : memref<1200x69xbf16, #tpu.memory_space<vmem>>, vector<8x4xbf16>
    %c496 = arith.constant 496 : index
    %c0_101 = arith.constant 0 : index
    %253 = vector.load %arg2[%c496, %c0_101] : memref<1200x69xbf16, #tpu.memory_space<vmem>>, vector<8x4xbf16>
    %c96_102 = arith.constant 96 : index
    %c0_103 = arith.constant 0 : index
    %254 = vector.load %arg1[%c96_102, %c0_103] : memref<352x512xbf16, #tpu.memory_space<vmem>>, vector<128x256xbf16>
    %255 = arith.truncf %244 : vector<64x8xf32> to vector<64x8xbf16>
    %cst_104 = arith.constant dense<0.000000e+00> : vector<64x4xf32>
    %256 = tpu.matmul %255, %250, %cst_104 {dimension_numbers = #tpu.dot_dimension_numbers<[1], [0], [0], [1], [0, 0, 1, 1], [], []>} : vector<64x8xbf16>, vector<8x4xbf16>, vector<64x4xf32> -> vector<64x4xf32>
    %257 = arith.truncf %256 : vector<64x4xf32> to vector<64x4xbf16>
    %cst_105 = arith.constant dense<0.000000e+00> : vector<64x4xf32>
    %258 = tpu.matmul %255, %251, %cst_105 {dimension_numbers = #tpu.dot_dimension_numbers<[1], [0], [0], [1], [0, 0, 1, 1], [], []>} : vector<64x8xbf16>, vector<8x4xbf16>, vector<64x4xf32> -> vector<64x4xf32>
    %259 = arith.truncf %258 : vector<64x4xf32> to vector<64x4xbf16>
    %cst_106 = arith.constant dense<0.000000e+00> : vector<64x4xf32>
    %260 = tpu.matmul %255, %252, %cst_106 {dimension_numbers = #tpu.dot_dimension_numbers<[1], [0], [0], [1], [0, 0, 1, 1], [], []>} : vector<64x8xbf16>, vector<8x4xbf16>, vector<64x4xf32> -> vector<64x4xf32>
    %261 = arith.truncf %260 : vector<64x4xf32> to vector<64x4xbf16>
    %cst_107 = arith.constant dense<0.000000e+00> : vector<64x4xf32>
    %262 = tpu.matmul %255, %253, %cst_107 {dimension_numbers = #tpu.dot_dimension_numbers<[1], [0], [0], [1], [0, 0, 1, 1], [], []>} : vector<64x8xbf16>, vector<8x4xbf16>, vector<64x4xf32> -> vector<64x4xf32>
    %263 = arith.truncf %262 : vector<64x4xf32> to vector<64x4xbf16>
    %264 = tpu.concatenate %257, %259, %261, %263 in 0 : vector<64x4xbf16>, vector<64x4xbf16>, vector<64x4xbf16>, vector<64x4xbf16> -> vector<256x4xbf16>
    %cst_108 = arith.constant dense<0.000000e+00> : vector<128x4xf32>
    %265 = tpu.matmul %254, %264, %cst_108 {dimension_numbers = #tpu.dot_dimension_numbers<[1], [0], [0], [1], [0, 0, 1, 1], [], []>} : vector<128x256xbf16>, vector<256x4xbf16>, vector<128x4xf32> -> vector<128x4xf32>
    %266 = vector.broadcast %249 : vector<128x1xf32> to vector<128x4xf32>
    %267 = arith.addf %265, %266 : vector<128x4xf32>
    %cst_109 = arith.constant 0.000000e+00 : f32
    %268 = vector.broadcast %cst_109 : f32 to vector<128x4xf32>
    %269 = arith.maximumf %267, %268 : vector<128x4xf32>
    %270 = arith.truncf %248 : vector<64x8xf32> to vector<64x8xbf16>
    %cst_110 = arith.constant dense<0.000000e+00> : vector<64x4xf32>
    %271 = tpu.matmul %270, %250, %cst_110 {dimension_numbers = #tpu.dot_dimension_numbers<[1], [0], [0], [1], [0, 0, 1, 1], [], []>} : vector<64x8xbf16>, vector<8x4xbf16>, vector<64x4xf32> -> vector<64x4xf32>
    %272 = arith.truncf %271 : vector<64x4xf32> to vector<64x4xbf16>
    %cst_111 = arith.constant dense<0.000000e+00> : vector<64x4xf32>
    %273 = tpu.matmul %270, %251, %cst_111 {dimension_numbers = #tpu.dot_dimension_numbers<[1], [0], [0], [1], [0, 0, 1, 1], [], []>} : vector<64x8xbf16>, vector<8x4xbf16>, vector<64x4xf32> -> vector<64x4xf32>
    %274 = arith.truncf %273 : vector<64x4xf32> to vector<64x4xbf16>
    %cst_112 = arith.constant dense<0.000000e+00> : vector<64x4xf32>
    %275 = tpu.matmul %270, %252, %cst_112 {dimension_numbers = #tpu.dot_dimension_numbers<[1], [0], [0], [1], [0, 0, 1, 1], [], []>} : vector<64x8xbf16>, vector<8x4xbf16>, vector<64x4xf32> -> vector<64x4xf32>
    %276 = arith.truncf %275 : vector<64x4xf32> to vector<64x4xbf16>
    %cst_113 = arith.constant dense<0.000000e+00> : vector<64x4xf32>
    %277 = tpu.matmul %270, %253, %cst_113 {dimension_numbers = #tpu.dot_dimension_numbers<[1], [0], [0], [1], [0, 0, 1, 1], [], []>} : vector<64x8xbf16>, vector<8x4xbf16>, vector<64x4xf32> -> vector<64x4xf32>
    %278 = arith.truncf %277 : vector<64x4xf32> to vector<64x4xbf16>
    %279 = tpu.concatenate %272, %274, %276, %278 in 0 : vector<64x4xbf16>, vector<64x4xbf16>, vector<64x4xbf16>, vector<64x4xbf16> -> vector<256x4xbf16>
    %cst_114 = arith.constant dense<0.000000e+00> : vector<128x4xf32>
    %280 = tpu.matmul %254, %279, %cst_114 {dimension_numbers = #tpu.dot_dimension_numbers<[1], [0], [0], [1], [0, 0, 1, 1], [], []>} : vector<128x256xbf16>, vector<256x4xbf16>, vector<128x4xf32> -> vector<128x4xf32>
    %281 = vector.broadcast %249 : vector<128x1xf32> to vector<128x4xf32>
    %282 = arith.addf %280, %281 : vector<128x4xf32>
    %cst_115 = arith.constant 0.000000e+00 : f32
    %283 = vector.broadcast %cst_115 : f32 to vector<128x4xf32>
    %284 = arith.maximumf %282, %283 : vector<128x4xf32>
    %c528 = arith.constant 528 : index
    %c0_116 = arith.constant 0 : index
    %285 = vector.load %arg3[%c528, %c0_116] : memref<1160x1xf32, #tpu.memory_space<vmem>>, vector<128x1xf32>
    %c656 = arith.constant 656 : index
    %c0_117 = arith.constant 0 : index
    %286 = vector.load %arg3[%c656, %c0_117] : memref<1160x1xf32, #tpu.memory_space<vmem>>, vector<128x1xf32>
    %cst_118 = arith.constant dense<0.000000e+00> : vector<128xf32>
    %287 = vector.multi_reduction <add>, %269, %cst_118 [1] : vector<128x4xf32> to vector<128xf32>
    %288 = vector.shape_cast %287 : vector<128xf32> to vector<128x1xf32>
    %cst_119 = arith.constant 0.000000e+00 : f32
    %289 = vector.broadcast %cst_119 : f32 to vector<128x1xf32>
    %290 = arith.addf %289, %288 : vector<128x1xf32>
    %cst_120 = arith.constant dense<0.000000e+00> : vector<128xf32>
    %291 = vector.multi_reduction <add>, %284, %cst_120 [1] : vector<128x4xf32> to vector<128xf32>
    %292 = vector.shape_cast %291 : vector<128xf32> to vector<128x1xf32>
    %293 = arith.addf %290, %292 : vector<128x1xf32>
    %cst_121 = arith.constant 1.250000e-01 : f32
    %294 = vector.broadcast %cst_121 : f32 to vector<128x1xf32>
    %295 = arith.mulf %293, %294 : vector<128x1xf32>
    %296 = vector.broadcast %295 : vector<128x1xf32> to vector<128x4xf32>
    %297 = arith.subf %269, %296 : vector<128x4xf32>
    %298 = vector.broadcast %295 : vector<128x1xf32> to vector<128x4xf32>
    %299 = arith.subf %284, %298 : vector<128x4xf32>
    %300 = arith.mulf %297, %297 : vector<128x4xf32>
    %cst_122 = arith.constant dense<0.000000e+00> : vector<128xf32>
    %301 = vector.multi_reduction <add>, %300, %cst_122 [1] : vector<128x4xf32> to vector<128xf32>
    %302 = vector.shape_cast %301 : vector<128xf32> to vector<128x1xf32>
    %cst_123 = arith.constant 0.000000e+00 : f32
    %303 = vector.broadcast %cst_123 : f32 to vector<128x1xf32>
    %304 = arith.addf %303, %302 : vector<128x1xf32>
    %305 = arith.mulf %299, %299 : vector<128x4xf32>
    %cst_124 = arith.constant dense<0.000000e+00> : vector<128xf32>
    %306 = vector.multi_reduction <add>, %305, %cst_124 [1] : vector<128x4xf32> to vector<128xf32>
    %307 = vector.shape_cast %306 : vector<128xf32> to vector<128x1xf32>
    %308 = arith.addf %304, %307 : vector<128x1xf32>
    %cst_125 = arith.constant 1.250000e-01 : f32
    %309 = vector.broadcast %cst_125 : f32 to vector<128x1xf32>
    %310 = arith.mulf %308, %309 : vector<128x1xf32>
    %cst_126 = arith.constant 9.99999974E-6 : f32
    %311 = vector.broadcast %cst_126 : f32 to vector<128x1xf32>
    %312 = arith.addf %310, %311 : vector<128x1xf32>
    %313 = math.rsqrt %312 : vector<128x1xf32>
    %314 = arith.mulf %313, %285 : vector<128x1xf32>
    %315 = vector.broadcast %314 : vector<128x1xf32> to vector<128x4xf32>
    %316 = arith.mulf %297, %315 : vector<128x4xf32>
    %317 = vector.broadcast %286 : vector<128x1xf32> to vector<128x4xf32>
    %318 = arith.addf %316, %317 : vector<128x4xf32>
    %319 = vector.broadcast %314 : vector<128x1xf32> to vector<128x4xf32>
    %320 = arith.mulf %299, %319 : vector<128x4xf32>
    %321 = vector.broadcast %286 : vector<128x1xf32> to vector<128x4xf32>
    %322 = arith.addf %320, %321 : vector<128x4xf32>
    %c784 = arith.constant 784 : index
    %c0_127 = arith.constant 0 : index
    %323 = vector.load %arg3[%c784, %c0_127] : memref<1160x1xf32, #tpu.memory_space<vmem>>, vector<64x1xf32>
    %c512 = arith.constant 512 : index
    %c0_128 = arith.constant 0 : index
    %324 = vector.load %arg2[%c512, %c0_128] : memref<1200x69xbf16, #tpu.memory_space<vmem>>, vector<4x8xbf16>
    %c528_129 = arith.constant 528 : index
    %c0_130 = arith.constant 0 : index
    %325 = vector.load %arg2[%c528_129, %c0_130] : memref<1200x69xbf16, #tpu.memory_space<vmem>>, vector<4x8xbf16>
    %c544 = arith.constant 544 : index
    %c0_131 = arith.constant 0 : index
    %326 = vector.load %arg2[%c544, %c0_131] : memref<1200x69xbf16, #tpu.memory_space<vmem>>, vector<4x8xbf16>
    %c560 = arith.constant 560 : index
    %c0_132 = arith.constant 0 : index
    %327 = vector.load %arg2[%c560, %c0_132] : memref<1200x69xbf16, #tpu.memory_space<vmem>>, vector<4x8xbf16>
    %c224 = arith.constant 224 : index
    %c0_133 = arith.constant 0 : index
    %328 = vector.load %arg1[%c224, %c0_133] : memref<352x512xbf16, #tpu.memory_space<vmem>>, vector<64x512xbf16>
    %329 = arith.truncf %318 : vector<128x4xf32> to vector<128x4xbf16>
    %cst_134 = arith.constant dense<0.000000e+00> : vector<128x8xf32>
    %330 = tpu.matmul %329, %324, %cst_134 {dimension_numbers = #tpu.dot_dimension_numbers<[1], [0], [0], [1], [0, 0, 1, 1], [], []>} : vector<128x4xbf16>, vector<4x8xbf16>, vector<128x8xf32> -> vector<128x8xf32>
    %331 = arith.truncf %330 : vector<128x8xf32> to vector<128x8xbf16>
    %cst_135 = arith.constant dense<0.000000e+00> : vector<128x8xf32>
    %332 = tpu.matmul %329, %325, %cst_135 {dimension_numbers = #tpu.dot_dimension_numbers<[1], [0], [0], [1], [0, 0, 1, 1], [], []>} : vector<128x4xbf16>, vector<4x8xbf16>, vector<128x8xf32> -> vector<128x8xf32>
    %333 = arith.truncf %332 : vector<128x8xf32> to vector<128x8xbf16>
    %cst_136 = arith.constant dense<0.000000e+00> : vector<128x8xf32>
    %334 = tpu.matmul %329, %326, %cst_136 {dimension_numbers = #tpu.dot_dimension_numbers<[1], [0], [0], [1], [0, 0, 1, 1], [], []>} : vector<128x4xbf16>, vector<4x8xbf16>, vector<128x8xf32> -> vector<128x8xf32>
    %335 = arith.truncf %334 : vector<128x8xf32> to vector<128x8xbf16>
    %cst_137 = arith.constant dense<0.000000e+00> : vector<128x8xf32>
    %336 = tpu.matmul %329, %327, %cst_137 {dimension_numbers = #tpu.dot_dimension_numbers<[1], [0], [0], [1], [0, 0, 1, 1], [], []>} : vector<128x4xbf16>, vector<4x8xbf16>, vector<128x8xf32> -> vector<128x8xf32>
    %337 = arith.truncf %336 : vector<128x8xf32> to vector<128x8xbf16>
    %338 = tpu.concatenate %331, %333, %335, %337 in 0 : vector<128x8xbf16>, vector<128x8xbf16>, vector<128x8xbf16>, vector<128x8xbf16> -> vector<512x8xbf16>
    %cst_138 = arith.constant dense<0.000000e+00> : vector<64x8xf32>
    %339 = tpu.matmul %328, %338, %cst_138 {dimension_numbers = #tpu.dot_dimension_numbers<[1], [0], [0], [1], [0, 0, 1, 1], [], []>} : vector<64x512xbf16>, vector<512x8xbf16>, vector<64x8xf32> -> vector<64x8xf32>
    %340 = vector.broadcast %323 : vector<64x1xf32> to vector<64x8xf32>
    %341 = arith.addf %339, %340 : vector<64x8xf32>
    %cst_139 = arith.constant 0.000000e+00 : f32
    %342 = vector.broadcast %cst_139 : f32 to vector<64x8xf32>
    %343 = arith.maximumf %341, %342 : vector<64x8xf32>
    %344 = arith.truncf %322 : vector<128x4xf32> to vector<128x4xbf16>
    %cst_140 = arith.constant dense<0.000000e+00> : vector<128x8xf32>
    %345 = tpu.matmul %344, %324, %cst_140 {dimension_numbers = #tpu.dot_dimension_numbers<[1], [0], [0], [1], [0, 0, 1, 1], [], []>} : vector<128x4xbf16>, vector<4x8xbf16>, vector<128x8xf32> -> vector<128x8xf32>
    %346 = arith.truncf %345 : vector<128x8xf32> to vector<128x8xbf16>
    %cst_141 = arith.constant dense<0.000000e+00> : vector<128x8xf32>
    %347 = tpu.matmul %344, %325, %cst_141 {dimension_numbers = #tpu.dot_dimension_numbers<[1], [0], [0], [1], [0, 0, 1, 1], [], []>} : vector<128x4xbf16>, vector<4x8xbf16>, vector<128x8xf32> -> vector<128x8xf32>
    %348 = arith.truncf %347 : vector<128x8xf32> to vector<128x8xbf16>
    %cst_142 = arith.constant dense<0.000000e+00> : vector<128x8xf32>
    %349 = tpu.matmul %344, %326, %cst_142 {dimension_numbers = #tpu.dot_dimension_numbers<[1], [0], [0], [1], [0, 0, 1, 1], [], []>} : vector<128x4xbf16>, vector<4x8xbf16>, vector<128x8xf32> -> vector<128x8xf32>
    %350 = arith.truncf %349 : vector<128x8xf32> to vector<128x8xbf16>
    %cst_143 = arith.constant dense<0.000000e+00> : vector<128x8xf32>
    %351 = tpu.matmul %344, %327, %cst_143 {dimension_numbers = #tpu.dot_dimension_numbers<[1], [0], [0], [1], [0, 0, 1, 1], [], []>} : vector<128x4xbf16>, vector<4x8xbf16>, vector<128x8xf32> -> vector<128x8xf32>
    %352 = arith.truncf %351 : vector<128x8xf32> to vector<128x8xbf16>
    %353 = tpu.concatenate %346, %348, %350, %352 in 0 : vector<128x8xbf16>, vector<128x8xbf16>, vector<128x8xbf16>, vector<128x8xbf16> -> vector<512x8xbf16>
    %cst_144 = arith.constant dense<0.000000e+00> : vector<64x8xf32>
    %354 = tpu.matmul %328, %353, %cst_144 {dimension_numbers = #tpu.dot_dimension_numbers<[1], [0], [0], [1], [0, 0, 1, 1], [], []>} : vector<64x512xbf16>, vector<512x8xbf16>, vector<64x8xf32> -> vector<64x8xf32>
    %355 = vector.broadcast %323 : vector<64x1xf32> to vector<64x8xf32>
    %356 = arith.addf %354, %355 : vector<64x8xf32>
    %cst_145 = arith.constant 0.000000e+00 : f32
    %357 = vector.broadcast %cst_145 : f32 to vector<64x8xf32>
    %358 = arith.maximumf %356, %357 : vector<64x8xf32>
    %c848 = arith.constant 848 : index
    %c0_146 = arith.constant 0 : index
    %359 = vector.load %arg3[%c848, %c0_146] : memref<1160x1xf32, #tpu.memory_space<vmem>>, vector<64x1xf32>
    %c912 = arith.constant 912 : index
    %c0_147 = arith.constant 0 : index
    %360 = vector.load %arg3[%c912, %c0_147] : memref<1160x1xf32, #tpu.memory_space<vmem>>, vector<64x1xf32>
    %cst_148 = arith.constant dense<0.000000e+00> : vector<64xf32>
    %361 = vector.multi_reduction <add>, %343, %cst_148 [1] : vector<64x8xf32> to vector<64xf32>
    %362 = vector.shape_cast %361 : vector<64xf32> to vector<64x1xf32>
    %cst_149 = arith.constant 0.000000e+00 : f32
    %363 = vector.broadcast %cst_149 : f32 to vector<64x1xf32>
    %364 = arith.addf %363, %362 : vector<64x1xf32>
    %cst_150 = arith.constant dense<0.000000e+00> : vector<64xf32>
    %365 = vector.multi_reduction <add>, %358, %cst_150 [1] : vector<64x8xf32> to vector<64xf32>
    %366 = vector.shape_cast %365 : vector<64xf32> to vector<64x1xf32>
    %367 = arith.addf %364, %366 : vector<64x1xf32>
    %cst_151 = arith.constant 6.250000e-02 : f32
    %368 = vector.broadcast %cst_151 : f32 to vector<64x1xf32>
    %369 = arith.mulf %367, %368 : vector<64x1xf32>
    %370 = vector.broadcast %369 : vector<64x1xf32> to vector<64x8xf32>
    %371 = arith.subf %343, %370 : vector<64x8xf32>
    %372 = vector.broadcast %369 : vector<64x1xf32> to vector<64x8xf32>
    %373 = arith.subf %358, %372 : vector<64x8xf32>
    %374 = arith.mulf %371, %371 : vector<64x8xf32>
    %cst_152 = arith.constant dense<0.000000e+00> : vector<64xf32>
    %375 = vector.multi_reduction <add>, %374, %cst_152 [1] : vector<64x8xf32> to vector<64xf32>
    %376 = vector.shape_cast %375 : vector<64xf32> to vector<64x1xf32>
    %cst_153 = arith.constant 0.000000e+00 : f32
    %377 = vector.broadcast %cst_153 : f32 to vector<64x1xf32>
    %378 = arith.addf %377, %376 : vector<64x1xf32>
    %379 = arith.mulf %373, %373 : vector<64x8xf32>
    %cst_154 = arith.constant dense<0.000000e+00> : vector<64xf32>
    %380 = vector.multi_reduction <add>, %379, %cst_154 [1] : vector<64x8xf32> to vector<64xf32>
    %381 = vector.shape_cast %380 : vector<64xf32> to vector<64x1xf32>
    %382 = arith.addf %378, %381 : vector<64x1xf32>
    %cst_155 = arith.constant 6.250000e-02 : f32
    %383 = vector.broadcast %cst_155 : f32 to vector<64x1xf32>
    %384 = arith.mulf %382, %383 : vector<64x1xf32>
    %cst_156 = arith.constant 9.99999974E-6 : f32
    %385 = vector.broadcast %cst_156 : f32 to vector<64x1xf32>
    %386 = arith.addf %384, %385 : vector<64x1xf32>
    %387 = math.rsqrt %386 : vector<64x1xf32>
    %388 = arith.mulf %387, %359 : vector<64x1xf32>
    %389 = vector.broadcast %388 : vector<64x1xf32> to vector<64x8xf32>
    %390 = arith.mulf %371, %389 : vector<64x8xf32>
    %391 = vector.broadcast %360 : vector<64x1xf32> to vector<64x8xf32>
    %392 = arith.addf %390, %391 : vector<64x8xf32>
    %393 = vector.broadcast %388 : vector<64x1xf32> to vector<64x8xf32>
    %394 = arith.mulf %373, %393 : vector<64x8xf32>
    %395 = vector.broadcast %360 : vector<64x1xf32> to vector<64x8xf32>
    %396 = arith.addf %394, %395 : vector<64x8xf32>
    %c976 = arith.constant 976 : index
    %c0_157 = arith.constant 0 : index
    %397 = vector.load %arg3[%c976, %c0_157] : memref<1160x1xf32, #tpu.memory_space<vmem>>, vector<32x1xf32>
    %c576 = arith.constant 576 : index
    %c0_158 = arith.constant 0 : index
    %398 = vector.load %arg2[%c576, %c0_158] : memref<1200x69xbf16, #tpu.memory_space<vmem>>, vector<8x17xbf16>
    %c592 = arith.constant 592 : index
    %c0_159 = arith.constant 0 : index
    %399 = vector.load %arg2[%c592, %c0_159] : memref<1200x69xbf16, #tpu.memory_space<vmem>>, vector<8x17xbf16>
    %c608 = arith.constant 608 : index
    %c0_160 = arith.constant 0 : index
    %400 = vector.load %arg2[%c608, %c0_160] : memref<1200x69xbf16, #tpu.memory_space<vmem>>, vector<8x17xbf16>
    %c624 = arith.constant 624 : index
    %c0_161 = arith.constant 0 : index
    %401 = vector.load %arg2[%c624, %c0_161] : memref<1200x69xbf16, #tpu.memory_space<vmem>>, vector<8x17xbf16>
    %c288_162 = arith.constant 288 : index
    %c0_163 = arith.constant 0 : index
    %402 = vector.load %arg1[%c288_162, %c0_163] : memref<352x512xbf16, #tpu.memory_space<vmem>>, vector<32x256xbf16>
    %403 = arith.truncf %392 : vector<64x8xf32> to vector<64x8xbf16>
    %cst_164 = arith.constant dense<0.000000e+00> : vector<64x17xf32>
    %404 = tpu.matmul %403, %398, %cst_164 {dimension_numbers = #tpu.dot_dimension_numbers<[1], [0], [0], [1], [0, 0, 1, 1], [], []>} : vector<64x8xbf16>, vector<8x17xbf16>, vector<64x17xf32> -> vector<64x17xf32>
    %405 = arith.truncf %404 : vector<64x17xf32> to vector<64x17xbf16>
    %cst_165 = arith.constant dense<0.000000e+00> : vector<64x17xf32>
    %406 = tpu.matmul %403, %399, %cst_165 {dimension_numbers = #tpu.dot_dimension_numbers<[1], [0], [0], [1], [0, 0, 1, 1], [], []>} : vector<64x8xbf16>, vector<8x17xbf16>, vector<64x17xf32> -> vector<64x17xf32>
    %407 = arith.truncf %406 : vector<64x17xf32> to vector<64x17xbf16>
    %cst_166 = arith.constant dense<0.000000e+00> : vector<64x17xf32>
    %408 = tpu.matmul %403, %400, %cst_166 {dimension_numbers = #tpu.dot_dimension_numbers<[1], [0], [0], [1], [0, 0, 1, 1], [], []>} : vector<64x8xbf16>, vector<8x17xbf16>, vector<64x17xf32> -> vector<64x17xf32>
    %409 = arith.truncf %408 : vector<64x17xf32> to vector<64x17xbf16>
    %cst_167 = arith.constant dense<0.000000e+00> : vector<64x17xf32>
    %410 = tpu.matmul %403, %401, %cst_167 {dimension_numbers = #tpu.dot_dimension_numbers<[1], [0], [0], [1], [0, 0, 1, 1], [], []>} : vector<64x8xbf16>, vector<8x17xbf16>, vector<64x17xf32> -> vector<64x17xf32>
    %411 = arith.truncf %410 : vector<64x17xf32> to vector<64x17xbf16>
    %412 = tpu.concatenate %405, %407, %409, %411 in 0 : vector<64x17xbf16>, vector<64x17xbf16>, vector<64x17xbf16>, vector<64x17xbf16> -> vector<256x17xbf16>
    %cst_168 = arith.constant dense<0.000000e+00> : vector<32x17xf32>
    %413 = tpu.matmul %402, %412, %cst_168 {dimension_numbers = #tpu.dot_dimension_numbers<[1], [0], [0], [1], [0, 0, 1, 1], [], []>} : vector<32x256xbf16>, vector<256x17xbf16>, vector<32x17xf32> -> vector<32x17xf32>
    %414 = vector.broadcast %397 : vector<32x1xf32> to vector<32x17xf32>
    %415 = arith.addf %413, %414 : vector<32x17xf32>
    %cst_169 = arith.constant 0.000000e+00 : f32
    %416 = vector.broadcast %cst_169 : f32 to vector<32x17xf32>
    %417 = arith.maximumf %415, %416 : vector<32x17xf32>
    %418 = arith.truncf %396 : vector<64x8xf32> to vector<64x8xbf16>
    %cst_170 = arith.constant dense<0.000000e+00> : vector<64x17xf32>
    %419 = tpu.matmul %418, %398, %cst_170 {dimension_numbers = #tpu.dot_dimension_numbers<[1], [0], [0], [1], [0, 0, 1, 1], [], []>} : vector<64x8xbf16>, vector<8x17xbf16>, vector<64x17xf32> -> vector<64x17xf32>
    %420 = arith.truncf %419 : vector<64x17xf32> to vector<64x17xbf16>
    %cst_171 = arith.constant dense<0.000000e+00> : vector<64x17xf32>
    %421 = tpu.matmul %418, %399, %cst_171 {dimension_numbers = #tpu.dot_dimension_numbers<[1], [0], [0], [1], [0, 0, 1, 1], [], []>} : vector<64x8xbf16>, vector<8x17xbf16>, vector<64x17xf32> -> vector<64x17xf32>
    %422 = arith.truncf %421 : vector<64x17xf32> to vector<64x17xbf16>
    %cst_172 = arith.constant dense<0.000000e+00> : vector<64x17xf32>
    %423 = tpu.matmul %418, %400, %cst_172 {dimension_numbers = #tpu.dot_dimension_numbers<[1], [0], [0], [1], [0, 0, 1, 1], [], []>} : vector<64x8xbf16>, vector<8x17xbf16>, vector<64x17xf32> -> vector<64x17xf32>
    %424 = arith.truncf %423 : vector<64x17xf32> to vector<64x17xbf16>
    %cst_173 = arith.constant dense<0.000000e+00> : vector<64x17xf32>
    %425 = tpu.matmul %418, %401, %cst_173 {dimension_numbers = #tpu.dot_dimension_numbers<[1], [0], [0], [1], [0, 0, 1, 1], [], []>} : vector<64x8xbf16>, vector<8x17xbf16>, vector<64x17xf32> -> vector<64x17xf32>
    %426 = arith.truncf %425 : vector<64x17xf32> to vector<64x17xbf16>
    %427 = tpu.concatenate %420, %422, %424, %426 in 0 : vector<64x17xbf16>, vector<64x17xbf16>, vector<64x17xbf16>, vector<64x17xbf16> -> vector<256x17xbf16>
    %cst_174 = arith.constant dense<0.000000e+00> : vector<32x17xf32>
    %428 = tpu.matmul %402, %427, %cst_174 {dimension_numbers = #tpu.dot_dimension_numbers<[1], [0], [0], [1], [0, 0, 1, 1], [], []>} : vector<32x256xbf16>, vector<256x17xbf16>, vector<32x17xf32> -> vector<32x17xf32>
    %429 = vector.broadcast %397 : vector<32x1xf32> to vector<32x17xf32>
    %430 = arith.addf %428, %429 : vector<32x17xf32>
    %cst_175 = arith.constant 0.000000e+00 : f32
    %431 = vector.broadcast %cst_175 : f32 to vector<32x17xf32>
    %432 = arith.maximumf %430, %431 : vector<32x17xf32>
    %c1008 = arith.constant 1008 : index
    %c0_176 = arith.constant 0 : index
    %433 = vector.load %arg3[%c1008, %c0_176] : memref<1160x1xf32, #tpu.memory_space<vmem>>, vector<32x1xf32>
    %c1040 = arith.constant 1040 : index
    %c0_177 = arith.constant 0 : index
    %434 = vector.load %arg3[%c1040, %c0_177] : memref<1160x1xf32, #tpu.memory_space<vmem>>, vector<32x1xf32>
    %cst_178 = arith.constant dense<0.000000e+00> : vector<32xf32>
    %435 = vector.multi_reduction <add>, %417, %cst_178 [1] : vector<32x17xf32> to vector<32xf32>
    %436 = vector.shape_cast %435 : vector<32xf32> to vector<32x1xf32>
    %cst_179 = arith.constant 0.000000e+00 : f32
    %437 = vector.broadcast %cst_179 : f32 to vector<32x1xf32>
    %438 = arith.addf %437, %436 : vector<32x1xf32>
    %cst_180 = arith.constant dense<0.000000e+00> : vector<32xf32>
    %439 = vector.multi_reduction <add>, %432, %cst_180 [1] : vector<32x17xf32> to vector<32xf32>
    %440 = vector.shape_cast %439 : vector<32xf32> to vector<32x1xf32>
    %441 = arith.addf %438, %440 : vector<32x1xf32>
    %cst_181 = arith.constant 0.0294117648 : f32
    %442 = vector.broadcast %cst_181 : f32 to vector<32x1xf32>
    %443 = arith.mulf %441, %442 : vector<32x1xf32>
    %444 = vector.broadcast %443 : vector<32x1xf32> to vector<32x17xf32>
    %445 = arith.subf %417, %444 : vector<32x17xf32>
    %446 = vector.broadcast %443 : vector<32x1xf32> to vector<32x17xf32>
    %447 = arith.subf %432, %446 : vector<32x17xf32>
    %448 = arith.mulf %445, %445 : vector<32x17xf32>
    %cst_182 = arith.constant dense<0.000000e+00> : vector<32xf32>
    %449 = vector.multi_reduction <add>, %448, %cst_182 [1] : vector<32x17xf32> to vector<32xf32>
    %450 = vector.shape_cast %449 : vector<32xf32> to vector<32x1xf32>
    %cst_183 = arith.constant 0.000000e+00 : f32
    %451 = vector.broadcast %cst_183 : f32 to vector<32x1xf32>
    %452 = arith.addf %451, %450 : vector<32x1xf32>
    %453 = arith.mulf %447, %447 : vector<32x17xf32>
    %cst_184 = arith.constant dense<0.000000e+00> : vector<32xf32>
    %454 = vector.multi_reduction <add>, %453, %cst_184 [1] : vector<32x17xf32> to vector<32xf32>
    %455 = vector.shape_cast %454 : vector<32xf32> to vector<32x1xf32>
    %456 = arith.addf %452, %455 : vector<32x1xf32>
    %cst_185 = arith.constant 0.0294117648 : f32
    %457 = vector.broadcast %cst_185 : f32 to vector<32x1xf32>
    %458 = arith.mulf %456, %457 : vector<32x1xf32>
    %cst_186 = arith.constant 9.99999974E-6 : f32
    %459 = vector.broadcast %cst_186 : f32 to vector<32x1xf32>
    %460 = arith.addf %458, %459 : vector<32x1xf32>
    %461 = math.rsqrt %460 : vector<32x1xf32>
    %462 = arith.mulf %461, %433 : vector<32x1xf32>
    %463 = vector.broadcast %462 : vector<32x1xf32> to vector<32x17xf32>
    %464 = arith.mulf %445, %463 : vector<32x17xf32>
    %465 = vector.broadcast %434 : vector<32x1xf32> to vector<32x17xf32>
    %466 = arith.addf %464, %465 : vector<32x17xf32>
    %467 = vector.broadcast %462 : vector<32x1xf32> to vector<32x17xf32>
    %468 = arith.mulf %447, %467 : vector<32x17xf32>
    %469 = vector.broadcast %434 : vector<32x1xf32> to vector<32x17xf32>
    %470 = arith.addf %468, %469 : vector<32x17xf32>
    %c1072 = arith.constant 1072 : index
    %c0_187 = arith.constant 0 : index
    %471 = vector.load %arg3[%c1072, %c0_187] : memref<1160x1xf32, #tpu.memory_space<vmem>>, vector<16x1xf32>
    %c640 = arith.constant 640 : index
    %c0_188 = arith.constant 0 : index
    %472 = vector.load %arg2[%c640, %c0_188] : memref<1200x69xbf16, #tpu.memory_space<vmem>>, vector<17x34xbf16>
    %c672 = arith.constant 672 : index
    %c0_189 = arith.constant 0 : index
    %473 = vector.load %arg2[%c672, %c0_189] : memref<1200x69xbf16, #tpu.memory_space<vmem>>, vector<17x34xbf16>
    %c704 = arith.constant 704 : index
    %c0_190 = arith.constant 0 : index
    %474 = vector.load %arg2[%c704, %c0_190] : memref<1200x69xbf16, #tpu.memory_space<vmem>>, vector<17x34xbf16>
    %c736 = arith.constant 736 : index
    %c0_191 = arith.constant 0 : index
    %475 = vector.load %arg2[%c736, %c0_191] : memref<1200x69xbf16, #tpu.memory_space<vmem>>, vector<17x34xbf16>
    %c320_192 = arith.constant 320 : index
    %c0_193 = arith.constant 0 : index
    %476 = vector.load %arg1[%c320_192, %c0_193] : memref<352x512xbf16, #tpu.memory_space<vmem>>, vector<16x128xbf16>
    %477 = arith.truncf %466 : vector<32x17xf32> to vector<32x17xbf16>
    %cst_194 = arith.constant dense<0.000000e+00> : vector<32x34xf32>
    %478 = tpu.matmul %477, %472, %cst_194 {dimension_numbers = #tpu.dot_dimension_numbers<[1], [0], [0], [1], [0, 0, 1, 1], [], []>} : vector<32x17xbf16>, vector<17x34xbf16>, vector<32x34xf32> -> vector<32x34xf32>
    %479 = arith.truncf %478 : vector<32x34xf32> to vector<32x34xbf16>
    %cst_195 = arith.constant dense<0.000000e+00> : vector<32x34xf32>
    %480 = tpu.matmul %477, %473, %cst_195 {dimension_numbers = #tpu.dot_dimension_numbers<[1], [0], [0], [1], [0, 0, 1, 1], [], []>} : vector<32x17xbf16>, vector<17x34xbf16>, vector<32x34xf32> -> vector<32x34xf32>
    %481 = arith.truncf %480 : vector<32x34xf32> to vector<32x34xbf16>
    %cst_196 = arith.constant dense<0.000000e+00> : vector<32x34xf32>
    %482 = tpu.matmul %477, %474, %cst_196 {dimension_numbers = #tpu.dot_dimension_numbers<[1], [0], [0], [1], [0, 0, 1, 1], [], []>} : vector<32x17xbf16>, vector<17x34xbf16>, vector<32x34xf32> -> vector<32x34xf32>
    %483 = arith.truncf %482 : vector<32x34xf32> to vector<32x34xbf16>
    %cst_197 = arith.constant dense<0.000000e+00> : vector<32x34xf32>
    %484 = tpu.matmul %477, %475, %cst_197 {dimension_numbers = #tpu.dot_dimension_numbers<[1], [0], [0], [1], [0, 0, 1, 1], [], []>} : vector<32x17xbf16>, vector<17x34xbf16>, vector<32x34xf32> -> vector<32x34xf32>
    %485 = arith.truncf %484 : vector<32x34xf32> to vector<32x34xbf16>
    %486 = tpu.concatenate %479, %481, %483, %485 in 0 : vector<32x34xbf16>, vector<32x34xbf16>, vector<32x34xbf16>, vector<32x34xbf16> -> vector<128x34xbf16>
    %cst_198 = arith.constant dense<0.000000e+00> : vector<16x34xf32>
    %487 = tpu.matmul %476, %486, %cst_198 {dimension_numbers = #tpu.dot_dimension_numbers<[1], [0], [0], [1], [0, 0, 1, 1], [], []>} : vector<16x128xbf16>, vector<128x34xbf16>, vector<16x34xf32> -> vector<16x34xf32>
    %488 = vector.broadcast %471 : vector<16x1xf32> to vector<16x34xf32>
    %489 = arith.addf %487, %488 : vector<16x34xf32>
    %cst_199 = arith.constant 0.000000e+00 : f32
    %490 = vector.broadcast %cst_199 : f32 to vector<16x34xf32>
    %491 = arith.maximumf %489, %490 : vector<16x34xf32>
    %492 = arith.truncf %470 : vector<32x17xf32> to vector<32x17xbf16>
    %cst_200 = arith.constant dense<0.000000e+00> : vector<32x34xf32>
    %493 = tpu.matmul %492, %472, %cst_200 {dimension_numbers = #tpu.dot_dimension_numbers<[1], [0], [0], [1], [0, 0, 1, 1], [], []>} : vector<32x17xbf16>, vector<17x34xbf16>, vector<32x34xf32> -> vector<32x34xf32>
    %494 = arith.truncf %493 : vector<32x34xf32> to vector<32x34xbf16>
    %cst_201 = arith.constant dense<0.000000e+00> : vector<32x34xf32>
    %495 = tpu.matmul %492, %473, %cst_201 {dimension_numbers = #tpu.dot_dimension_numbers<[1], [0], [0], [1], [0, 0, 1, 1], [], []>} : vector<32x17xbf16>, vector<17x34xbf16>, vector<32x34xf32> -> vector<32x34xf32>
    %496 = arith.truncf %495 : vector<32x34xf32> to vector<32x34xbf16>
    %cst_202 = arith.constant dense<0.000000e+00> : vector<32x34xf32>
    %497 = tpu.matmul %492, %474, %cst_202 {dimension_numbers = #tpu.dot_dimension_numbers<[1], [0], [0], [1], [0, 0, 1, 1], [], []>} : vector<32x17xbf16>, vector<17x34xbf16>, vector<32x34xf32> -> vector<32x34xf32>
    %498 = arith.truncf %497 : vector<32x34xf32> to vector<32x34xbf16>
    %cst_203 = arith.constant dense<0.000000e+00> : vector<32x34xf32>
    %499 = tpu.matmul %492, %475, %cst_203 {dimension_numbers = #tpu.dot_dimension_numbers<[1], [0], [0], [1], [0, 0, 1, 1], [], []>} : vector<32x17xbf16>, vector<17x34xbf16>, vector<32x34xf32> -> vector<32x34xf32>
    %500 = arith.truncf %499 : vector<32x34xf32> to vector<32x34xbf16>
    %501 = tpu.concatenate %494, %496, %498, %500 in 0 : vector<32x34xbf16>, vector<32x34xbf16>, vector<32x34xbf16>, vector<32x34xbf16> -> vector<128x34xbf16>
    %cst_204 = arith.constant dense<0.000000e+00> : vector<16x34xf32>
    %502 = tpu.matmul %476, %501, %cst_204 {dimension_numbers = #tpu.dot_dimension_numbers<[1], [0], [0], [1], [0, 0, 1, 1], [], []>} : vector<16x128xbf16>, vector<128x34xbf16>, vector<16x34xf32> -> vector<16x34xf32>
    %503 = vector.broadcast %471 : vector<16x1xf32> to vector<16x34xf32>
    %504 = arith.addf %502, %503 : vector<16x34xf32>
    %cst_205 = arith.constant 0.000000e+00 : f32
    %505 = vector.broadcast %cst_205 : f32 to vector<16x34xf32>
    %506 = arith.maximumf %504, %505 : vector<16x34xf32>
    %c1088 = arith.constant 1088 : index
    %c0_206 = arith.constant 0 : index
    %507 = vector.load %arg3[%c1088, %c0_206] : memref<1160x1xf32, #tpu.memory_space<vmem>>, vector<16x1xf32>
    %c1104 = arith.constant 1104 : index
    %c0_207 = arith.constant 0 : index
    %508 = vector.load %arg3[%c1104, %c0_207] : memref<1160x1xf32, #tpu.memory_space<vmem>>, vector<16x1xf32>
    %cst_208 = arith.constant dense<0.000000e+00> : vector<16xf32>
    %509 = vector.multi_reduction <add>, %491, %cst_208 [1] : vector<16x34xf32> to vector<16xf32>
    %510 = vector.shape_cast %509 : vector<16xf32> to vector<16x1xf32>
    %cst_209 = arith.constant 0.000000e+00 : f32
    %511 = vector.broadcast %cst_209 : f32 to vector<16x1xf32>
    %512 = arith.addf %511, %510 : vector<16x1xf32>
    %cst_210 = arith.constant dense<0.000000e+00> : vector<16xf32>
    %513 = vector.multi_reduction <add>, %506, %cst_210 [1] : vector<16x34xf32> to vector<16xf32>
    %514 = vector.shape_cast %513 : vector<16xf32> to vector<16x1xf32>
    %515 = arith.addf %512, %514 : vector<16x1xf32>
    %cst_211 = arith.constant 0.0147058824 : f32
    %516 = vector.broadcast %cst_211 : f32 to vector<16x1xf32>
    %517 = arith.mulf %515, %516 : vector<16x1xf32>
    %518 = vector.broadcast %517 : vector<16x1xf32> to vector<16x34xf32>
    %519 = arith.subf %491, %518 : vector<16x34xf32>
    %520 = vector.broadcast %517 : vector<16x1xf32> to vector<16x34xf32>
    %521 = arith.subf %506, %520 : vector<16x34xf32>
    %522 = arith.mulf %519, %519 : vector<16x34xf32>
    %cst_212 = arith.constant dense<0.000000e+00> : vector<16xf32>
    %523 = vector.multi_reduction <add>, %522, %cst_212 [1] : vector<16x34xf32> to vector<16xf32>
    %524 = vector.shape_cast %523 : vector<16xf32> to vector<16x1xf32>
    %cst_213 = arith.constant 0.000000e+00 : f32
    %525 = vector.broadcast %cst_213 : f32 to vector<16x1xf32>
    %526 = arith.addf %525, %524 : vector<16x1xf32>
    %527 = arith.mulf %521, %521 : vector<16x34xf32>
    %cst_214 = arith.constant dense<0.000000e+00> : vector<16xf32>
    %528 = vector.multi_reduction <add>, %527, %cst_214 [1] : vector<16x34xf32> to vector<16xf32>
    %529 = vector.shape_cast %528 : vector<16xf32> to vector<16x1xf32>
    %530 = arith.addf %526, %529 : vector<16x1xf32>
    %cst_215 = arith.constant 0.0147058824 : f32
    %531 = vector.broadcast %cst_215 : f32 to vector<16x1xf32>
    %532 = arith.mulf %530, %531 : vector<16x1xf32>
    %cst_216 = arith.constant 9.99999974E-6 : f32
    %533 = vector.broadcast %cst_216 : f32 to vector<16x1xf32>
    %534 = arith.addf %532, %533 : vector<16x1xf32>
    %535 = math.rsqrt %534 : vector<16x1xf32>
    %536 = arith.mulf %535, %507 : vector<16x1xf32>
    %537 = vector.broadcast %536 : vector<16x1xf32> to vector<16x34xf32>
    %538 = arith.mulf %519, %537 : vector<16x34xf32>
    %539 = vector.broadcast %508 : vector<16x1xf32> to vector<16x34xf32>
    %540 = arith.addf %538, %539 : vector<16x34xf32>
    %541 = vector.broadcast %536 : vector<16x1xf32> to vector<16x34xf32>
    %542 = arith.mulf %521, %541 : vector<16x34xf32>
    %543 = vector.broadcast %508 : vector<16x1xf32> to vector<16x34xf32>
    %544 = arith.addf %542, %543 : vector<16x34xf32>
    %c1120 = arith.constant 1120 : index
    %c0_217 = arith.constant 0 : index
    %545 = vector.load %arg3[%c1120, %c0_217] : memref<1160x1xf32, #tpu.memory_space<vmem>>, vector<1x1xf32>
    %c768 = arith.constant 768 : index
    %c0_218 = arith.constant 0 : index
    %546 = vector.load %arg2[%c768, %c0_218] : memref<1200x69xbf16, #tpu.memory_space<vmem>>, vector<34x69xbf16>
    %c816 = arith.constant 816 : index
    %c0_219 = arith.constant 0 : index
    %547 = vector.load %arg2[%c816, %c0_219] : memref<1200x69xbf16, #tpu.memory_space<vmem>>, vector<34x69xbf16>
    %c864 = arith.constant 864 : index
    %c0_220 = arith.constant 0 : index
    %548 = vector.load %arg2[%c864, %c0_220] : memref<1200x69xbf16, #tpu.memory_space<vmem>>, vector<34x69xbf16>
    %c912_221 = arith.constant 912 : index
    %c0_222 = arith.constant 0 : index
    %549 = vector.load %arg2[%c912_221, %c0_222] : memref<1200x69xbf16, #tpu.memory_space<vmem>>, vector<34x69xbf16>
    %c336_223 = arith.constant 336 : index
    %c0_224 = arith.constant 0 : index
    %550 = vector.load %arg1[%c336_223, %c0_224] : memref<352x512xbf16, #tpu.memory_space<vmem>>, vector<1x64xbf16>
    %551 = arith.truncf %540 : vector<16x34xf32> to vector<16x34xbf16>
    %cst_225 = arith.constant dense<0.000000e+00> : vector<16x69xf32>
    %552 = tpu.matmul %551, %546, %cst_225 {dimension_numbers = #tpu.dot_dimension_numbers<[1], [0], [0], [1], [0, 0, 1, 1], [], []>} : vector<16x34xbf16>, vector<34x69xbf16>, vector<16x69xf32> -> vector<16x69xf32>
    %553 = arith.truncf %552 : vector<16x69xf32> to vector<16x69xbf16>
    %cst_226 = arith.constant dense<0.000000e+00> : vector<16x69xf32>
    %554 = tpu.matmul %551, %547, %cst_226 {dimension_numbers = #tpu.dot_dimension_numbers<[1], [0], [0], [1], [0, 0, 1, 1], [], []>} : vector<16x34xbf16>, vector<34x69xbf16>, vector<16x69xf32> -> vector<16x69xf32>
    %555 = arith.truncf %554 : vector<16x69xf32> to vector<16x69xbf16>
    %cst_227 = arith.constant dense<0.000000e+00> : vector<16x69xf32>
    %556 = tpu.matmul %551, %548, %cst_227 {dimension_numbers = #tpu.dot_dimension_numbers<[1], [0], [0], [1], [0, 0, 1, 1], [], []>} : vector<16x34xbf16>, vector<34x69xbf16>, vector<16x69xf32> -> vector<16x69xf32>
    %557 = arith.truncf %556 : vector<16x69xf32> to vector<16x69xbf16>
    %cst_228 = arith.constant dense<0.000000e+00> : vector<16x69xf32>
    %558 = tpu.matmul %551, %549, %cst_228 {dimension_numbers = #tpu.dot_dimension_numbers<[1], [0], [0], [1], [0, 0, 1, 1], [], []>} : vector<16x34xbf16>, vector<34x69xbf16>, vector<16x69xf32> -> vector<16x69xf32>
    %559 = arith.truncf %558 : vector<16x69xf32> to vector<16x69xbf16>
    %560 = tpu.concatenate %553, %555, %557, %559 in 0 : vector<16x69xbf16>, vector<16x69xbf16>, vector<16x69xbf16>, vector<16x69xbf16> -> vector<64x69xbf16>
    %cst_229 = arith.constant dense<0.000000e+00> : vector<1x69xf32>
    %561 = tpu.matmul %550, %560, %cst_229 {dimension_numbers = #tpu.dot_dimension_numbers<[1], [0], [0], [1], [0, 0, 1, 1], [], []>} : vector<1x64xbf16>, vector<64x69xbf16>, vector<1x69xf32> -> vector<1x69xf32>
    %562 = vector.broadcast %545 : vector<1x1xf32> to vector<1x69xf32>
    %563 = arith.addf %561, %562 : vector<1x69xf32>
    %564 = arith.truncf %544 : vector<16x34xf32> to vector<16x34xbf16>
    %cst_230 = arith.constant dense<0.000000e+00> : vector<16x69xf32>
    %565 = tpu.matmul %564, %546, %cst_230 {dimension_numbers = #tpu.dot_dimension_numbers<[1], [0], [0], [1], [0, 0, 1, 1], [], []>} : vector<16x34xbf16>, vector<34x69xbf16>, vector<16x69xf32> -> vector<16x69xf32>
    %566 = arith.truncf %565 : vector<16x69xf32> to vector<16x69xbf16>
    %cst_231 = arith.constant dense<0.000000e+00> : vector<16x69xf32>
    %567 = tpu.matmul %564, %547, %cst_231 {dimension_numbers = #tpu.dot_dimension_numbers<[1], [0], [0], [1], [0, 0, 1, 1], [], []>} : vector<16x34xbf16>, vector<34x69xbf16>, vector<16x69xf32> -> vector<16x69xf32>
    %568 = arith.truncf %567 : vector<16x69xf32> to vector<16x69xbf16>
    %cst_232 = arith.constant dense<0.000000e+00> : vector<16x69xf32>
    %569 = tpu.matmul %564, %548, %cst_232 {dimension_numbers = #tpu.dot_dimension_numbers<[1], [0], [0], [1], [0, 0, 1, 1], [], []>} : vector<16x34xbf16>, vector<34x69xbf16>, vector<16x69xf32> -> vector<16x69xf32>
    %570 = arith.truncf %569 : vector<16x69xf32> to vector<16x69xbf16>
    %cst_233 = arith.constant dense<0.000000e+00> : vector<16x69xf32>
    %571 = tpu.matmul %564, %549, %cst_233 {dimension_numbers = #tpu.dot_dimension_numbers<[1], [0], [0], [1], [0, 0, 1, 1], [], []>} : vector<16x34xbf16>, vector<34x69xbf16>, vector<16x69xf32> -> vector<16x69xf32>
    %572 = arith.truncf %571 : vector<16x69xf32> to vector<16x69xbf16>
    %573 = tpu.concatenate %566, %568, %570, %572 in 0 : vector<16x69xbf16>, vector<16x69xbf16>, vector<16x69xbf16>, vector<16x69xbf16> -> vector<64x69xbf16>
    %cst_234 = arith.constant dense<0.000000e+00> : vector<1x69xf32>
    %574 = tpu.matmul %550, %573, %cst_234 {dimension_numbers = #tpu.dot_dimension_numbers<[1], [0], [0], [1], [0, 0, 1, 1], [], []>} : vector<1x64xbf16>, vector<64x69xbf16>, vector<1x69xf32> -> vector<1x69xf32>
    %575 = vector.broadcast %545 : vector<1x1xf32> to vector<1x69xf32>
    %576 = arith.addf %574, %575 : vector<1x69xf32>
    %c1128 = arith.constant 1128 : index
    %c0_235 = arith.constant 0 : index
    %577 = vector.load %arg3[%c1128, %c0_235] : memref<1160x1xf32, #tpu.memory_space<vmem>>, vector<1x1xf32>
    %c960 = arith.constant 960 : index
    %c0_236 = arith.constant 0 : index
    %578 = vector.load %arg2[%c960, %c0_236] : memref<1200x69xbf16, #tpu.memory_space<vmem>>, vector<69x69xbf16>
    %579 = arith.extf %578 : vector<69x69xbf16> to vector<69x69xf32>
    %c1040_237 = arith.constant 1040 : index
    %c0_238 = arith.constant 0 : index
    %580 = vector.load %arg2[%c1040_237, %c0_238] : memref<1200x69xbf16, #tpu.memory_space<vmem>>, vector<69x69xbf16>
    %581 = arith.extf %580 : vector<69x69xbf16> to vector<69x69xf32>
    %c1120_239 = arith.constant 1120 : index
    %c0_240 = arith.constant 0 : index
    %582 = vector.load %arg2[%c1120_239, %c0_240] : memref<1200x69xbf16, #tpu.memory_space<vmem>>, vector<69x69xbf16>
    %583 = arith.extf %582 : vector<69x69xbf16> to vector<69x69xf32>
    %c1136 = arith.constant 1136 : index
    %c0_241 = arith.constant 0 : index
    %584 = vector.load %arg3[%c1136, %c0_241] : memref<1160x1xf32, #tpu.memory_space<vmem>>, vector<1x1xf32>
    %c1144 = arith.constant 1144 : index
    %c0_242 = arith.constant 0 : index
    %585 = vector.load %arg3[%c1144, %c0_242] : memref<1160x1xf32, #tpu.memory_space<vmem>>, vector<1x1xf32>
    %c1152 = arith.constant 1152 : index
    %c0_243 = arith.constant 0 : index
    %586 = vector.load %arg3[%c1152, %c0_243] : memref<1160x1xf32, #tpu.memory_space<vmem>>, vector<1x1xf32>
    %cst_244 = arith.constant dense<0.000000e+00> : vector<1x69xf32>
    %587 = tpu.matmul %563, %579, %cst_244 {dimension_numbers = #tpu.dot_dimension_numbers<[1], [0], [0], [1], [0, 0, 1, 1], [], []>} : vector<1x69xf32>, vector<69x69xf32>, vector<1x69xf32> -> vector<1x69xf32>
    %588 = vector.broadcast %584 : vector<1x1xf32> to vector<1x69xf32>
    %589 = arith.mulf %588, %587 : vector<1x69xf32>
    %cst_245 = arith.constant dense<0.000000e+00> : vector<1x69xf32>
    %590 = tpu.matmul %563, %581, %cst_245 {dimension_numbers = #tpu.dot_dimension_numbers<[1], [0], [0], [1], [0, 0, 1, 1], [], []>} : vector<1x69xf32>, vector<69x69xf32>, vector<1x69xf32> -> vector<1x69xf32>
    %591 = vector.broadcast %585 : vector<1x1xf32> to vector<1x69xf32>
    %592 = arith.mulf %591, %590 : vector<1x69xf32>
    %593 = arith.addf %589, %592 : vector<1x69xf32>
    %cst_246 = arith.constant dense<0.000000e+00> : vector<1x69xf32>
    %594 = tpu.matmul %563, %583, %cst_246 {dimension_numbers = #tpu.dot_dimension_numbers<[1], [0], [0], [1], [0, 0, 1, 1], [], []>} : vector<1x69xf32>, vector<69x69xf32>, vector<1x69xf32> -> vector<1x69xf32>
    %595 = vector.broadcast %586 : vector<1x1xf32> to vector<1x69xf32>
    %596 = arith.mulf %595, %594 : vector<1x69xf32>
    %597 = arith.addf %593, %596 : vector<1x69xf32>
    %598 = vector.broadcast %577 : vector<1x1xf32> to vector<1x69xf32>
    %599 = arith.addf %597, %598 : vector<1x69xf32>
    %600 = arith.negf %599 : vector<1x69xf32>
    %601 = math.exp %600 : vector<1x69xf32>
    %cst_247 = arith.constant 1.000000e+00 : f32
    %602 = vector.broadcast %cst_247 : f32 to vector<1x69xf32>
    %603 = arith.addf %602, %601 : vector<1x69xf32>
    %604 = arith.divf %602, %603 : vector<1x69xf32>
    %cst_248 = arith.constant dense<0.000000e+00> : vector<1x69xf32>
    %605 = tpu.matmul %576, %579, %cst_248 {dimension_numbers = #tpu.dot_dimension_numbers<[1], [0], [0], [1], [0, 0, 1, 1], [], []>} : vector<1x69xf32>, vector<69x69xf32>, vector<1x69xf32> -> vector<1x69xf32>
    %606 = vector.broadcast %584 : vector<1x1xf32> to vector<1x69xf32>
    %607 = arith.mulf %606, %605 : vector<1x69xf32>
    %cst_249 = arith.constant dense<0.000000e+00> : vector<1x69xf32>
    %608 = tpu.matmul %576, %581, %cst_249 {dimension_numbers = #tpu.dot_dimension_numbers<[1], [0], [0], [1], [0, 0, 1, 1], [], []>} : vector<1x69xf32>, vector<69x69xf32>, vector<1x69xf32> -> vector<1x69xf32>
    %609 = vector.broadcast %585 : vector<1x1xf32> to vector<1x69xf32>
    %610 = arith.mulf %609, %608 : vector<1x69xf32>
    %611 = arith.addf %607, %610 : vector<1x69xf32>
    %cst_250 = arith.constant dense<0.000000e+00> : vector<1x69xf32>
    %612 = tpu.matmul %576, %583, %cst_250 {dimension_numbers = #tpu.dot_dimension_numbers<[1], [0], [0], [1], [0, 0, 1, 1], [], []>} : vector<1x69xf32>, vector<69x69xf32>, vector<1x69xf32> -> vector<1x69xf32>
    %613 = vector.broadcast %586 : vector<1x1xf32> to vector<1x69xf32>
    %614 = arith.mulf %613, %612 : vector<1x69xf32>
    %615 = arith.addf %611, %614 : vector<1x69xf32>
    %616 = vector.broadcast %577 : vector<1x1xf32> to vector<1x69xf32>
    %617 = arith.addf %615, %616 : vector<1x69xf32>
    %618 = arith.negf %617 : vector<1x69xf32>
    %619 = math.exp %618 : vector<1x69xf32>
    %cst_251 = arith.constant 1.000000e+00 : f32
    %620 = vector.broadcast %cst_251 : f32 to vector<1x69xf32>
    %621 = arith.addf %620, %619 : vector<1x69xf32>
    %622 = arith.divf %620, %621 : vector<1x69xf32>
    %c0_252 = arith.constant 0 : index
    %c0_253 = arith.constant 0 : index
    %c0_254 = arith.constant 0 : index
    %623 = vector.load %arg4[%c0_252, %c0_253, %c0_254] : memref<2x1x69xf32, #tpu.memory_space<vmem>>, vector<1x1x69xf32>
    %624 = vector.shape_cast %623 : vector<1x1x69xf32> to vector<1x69xf32>
    %625 = vector.shape_cast %604 : vector<1x69xf32> to vector<1x1x69xf32>
    tpu.vector_store %arg4[%c0_252, %c0_253, %c0_254], %625 {strides = array<i32>} : memref<2x1x69xf32, #tpu.memory_space<vmem>>, vector<1x1x69xf32>,
    %c1_255 = arith.constant 1 : index
    %c0_256 = arith.constant 0 : index
    %c0_257 = arith.constant 0 : index
    %626 = vector.load %arg4[%c1_255, %c0_256, %c0_257] : memref<2x1x69xf32, #tpu.memory_space<vmem>>, vector<1x1x69xf32>
    %627 = vector.shape_cast %626 : vector<1x1x69xf32> to vector<1x69xf32>
    %628 = vector.shape_cast %622 : vector<1x69xf32> to vector<1x1x69xf32>
    tpu.vector_store %arg4[%c1_255, %c0_256, %c0_257], %628 {strides = array<i32>} : memref<2x1x69xf32, #tpu.memory_space<vmem>>, vector<1x1x69xf32>,
    return
  }
}

</mosaic_0001>

<llo_original>
// kernel: conv_autoencoder_forward.1
$region0: #{conv_autoencoder_forward.1}
  #allocation0 [shape = 'u32[]', space=smem, size = 0x4, offset = 0x4, fixed_abs, tag = 'smem constant byte address 0x4 - core index']
  #allocation1 [shape = 'u32[144,128]{1,0:T(1,128)}', space=vmem, size = 0x12000, scoped, tag = 'internal scratch']
  %s0 = inlined_call_operand.vmem [shape: f32[2,1,64], index: 0, kind: input, shape index: {}]
  %s1 = inlined_call_operand.vmem [shape: bf16[352,512], index: 1, kind: input, shape index: {}]
  %s2 = inlined_call_operand.vmem [shape: bf16[1200,69], index: 2, kind: input, shape index: {}]
  %s3 = inlined_call_operand.vmem [shape: f32[1160,1], index: 3, kind: input, shape index: {}]
  %s4 = inlined_call_operand.hbm [shape: f32[2,1,69], index: 4, kind: output, shape index: {}]
  %s5 = sld [smem:[#allocation0]]
  $region26: #{conv_autoencoder_forward.1} parent=0
    _
  %s7 = ssub.s32 1, %s5
  %s8 = scalar_select 0, %s7, %s5
  $region1: #{conv_autoencoder_forward.1} parent=0
    #allocation2 [shape = 'u8[1024]{0}', space=vmem, size = 0x400, scoped, tag = 'output window, operand 0, single buffered']
    #allocation3 [shape = 's32[1]{0}', space=sflag, size = 0x4, scoped, tag = 'scoped memory for conv_autoencoder_forward.1']
    %9 = vsyncpa [#allocation3], 0
    // Predicated region
    $region2: #{conv_autoencoder_forward.1} parent=1 // pred_check
      _
    $region3: #{conv_autoencoder_forward.1} parent=1 // pred_check_branch
      %11 = sbr.rel (0) target = $region5
    $region4: #{conv_autoencoder_forward.1} parent=1 // pred_region
      _
    $region5: #{conv_autoencoder_forward.1} parent=1 // pred_fallthru
      _
    // Predicated region
    $region6: #{conv_autoencoder_forward.1} parent=1 // pred_check
      _
    $region7: #{conv_autoencoder_forward.1} parent=1 // pred_check_branch
      %13 = sbr.rel (0) target = $region9
    $region8: #{conv_autoencoder_forward.1} parent=1 // pred_region
      _
    $region9: #{conv_autoencoder_forward.1} parent=1 // pred_fallthru
      _
    // Predicated region
    $region10: #{conv_autoencoder_forward.1} parent=1 // pred_check
      _
    $region11: #{conv_autoencoder_forward.1} parent=1 // pred_check_branch
      %15 = sbr.rel (0) target = $region13
    $region12: #{conv_autoencoder_forward.1} parent=1 // pred_region
      _
    $region13: #{conv_autoencoder_forward.1} parent=1 // pred_fallthru
      _
    // Predicated region
    $region14: #{conv_autoencoder_forward.1} parent=1 // pred_check
      _
    $region15: #{conv_autoencoder_forward.1} parent=1 // pred_check_branch
      %17 = sbr.rel (0) target = $region17
    $region16: #{conv_autoencoder_forward.1} parent=1 // pred_region
      _
    $region17: #{conv_autoencoder_forward.1} parent=1 // pred_fallthru
      _
    %v19 = vld [vmem:[%s0] sm:$0x1]
    %s20 = scalar_lea.vmem %s0, 1
    %v21 = vld [vmem:[%s20] sm:$0x1]
    %v22 = vld [vmem:[%s3] sm:$0xff]
    %v23 = vld [vmem:[%s3 + $0x8] sm:$0xff]
    %v24 = vld [vmem:[%s2] sm:$0xf]
    %v25 = vld [vmem:[%s2 + $0x4] sm:$0xf]
    %v26 = vld [vmem:[%s2 + $0x8] sm:$0xf]
    %v27 = vld [vmem:[%s2 + $0xc] sm:$0xf]
    %v28 = vld [vmem:[%s2 + $0x10] sm:$0xf]
    %v29 = vld [vmem:[%s2 + $0x14] sm:$0xf]
    %v30 = vld [vmem:[%s2 + $0x18] sm:$0xf]
    %v31 = vld [vmem:[%s2 + $0x1c] sm:$0xf]
    %v32 = vunpack.c.l.bf16 %v24
    %v33 = vunpack.c.l.bf16 %v25
    %v34 = vunpack.c.l.bf16 %v26
    %v35 = vunpack.c.l.bf16 %v27
    %v36 = vunpack.c.l.bf16 %v28
    %v37 = vunpack.c.l.bf16 %v29
    %v38 = vunpack.c.l.bf16 %v30
    %v39 = vunpack.c.l.bf16 %v31
    %v40 = vld [vmem:[%s2 + $0x20] sm:$0xf]
    %v41 = vld [vmem:[%s2 + $0x24] sm:$0xf]
    %v42 = vld [vmem:[%s2 + $0x28] sm:$0xf]
    %v43 = vld [vmem:[%s2 + $0x2c] sm:$0xf]
    %v44 = vld [vmem:[%s2 + $0x30] sm:$0xf]
    %v45 = vld [vmem:[%s2 + $0x34] sm:$0xf]
    %v46 = vld [vmem:[%s2 + $0x38] sm:$0xf]
    %v47 = vld [vmem:[%s2 + $0x3c] sm:$0xf]
    %v48 = vunpack.c.l.bf16 %v40
    %v49 = vunpack.c.l.bf16 %v41
    %v50 = vunpack.c.l.bf16 %v42
    %v51 = vunpack.c.l.bf16 %v43
    %v52 = vunpack.c.l.bf16 %v44
    %v53 = vunpack.c.l.bf16 %v45
    %v54 = vunpack.c.l.bf16 %v46
    %v55 = vunpack.c.l.bf16 %v47
    %v56 = vld [vmem:[%s2 + $0x40] sm:$0xf]
    %v57 = vld [vmem:[%s2 + $0x44] sm:$0xf]
    %v58 = vld [vmem:[%s2 + $0x48] sm:$0xf]
    %v59 = vld [vmem:[%s2 + $0x4c] sm:$0xf]
    %v60 = vld [vmem:[%s2 + $0x50] sm:$0xf]
    %v61 = vld [vmem:[%s2 + $0x54] sm:$0xf]
    %v62 = vld [vmem:[%s2 + $0x58] sm:$0xf]
    %v63 = vld [vmem:[%s2 + $0x5c] sm:$0xf]
    %v64 = vunpack.c.l.bf16 %v56
    %v65 = vunpack.c.l.bf16 %v57
    %v66 = vunpack.c.l.bf16 %v58
    %v67 = vunpack.c.l.bf16 %v59
    %v68 = vunpack.c.l.bf16 %v60
    %v69 = vunpack.c.l.bf16 %v61
    %v70 = vunpack.c.l.bf16 %v62
    %v71 = vunpack.c.l.bf16 %v63
    %v72 = vld [vmem:[%s2 + $0x60] sm:$0xf]
    %v73 = vld [vmem:[%s2 + $0x64] sm:$0xf]
    %v74 = vld [vmem:[%s2 + $0x68] sm:$0xf]
    %v75 = vld [vmem:[%s2 + $0x6c] sm:$0xf]
    %v76 = vld [vmem:[%s2 + $0x70] sm:$0xf]
    %v77 = vld [vmem:[%s2 + $0x74] sm:$0xf]
    %v78 = vld [vmem:[%s2 + $0x78] sm:$0xf]
    %v79 = vld [vmem:[%s2 + $0x7c] sm:$0xf]
    %v80 = vunpack.c.l.bf16 %v72
    %v81 = vunpack.c.l.bf16 %v73
    %v82 = vunpack.c.l.bf16 %v74
    %v83 = vunpack.c.l.bf16 %v75
    %v84 = vunpack.c.l.bf16 %v76
    %v85 = vunpack.c.l.bf16 %v77
    %v86 = vunpack.c.l.bf16 %v78
    %v87 = vunpack.c.l.bf16 %v79
    %v88 = vld [vmem:[%s3 + $0x30] sm:$0xff]
    %v89 = vld [vmem:[%s3 + $0x38] sm:$0xff]
    %v90 = vld [vmem:[%s3 + $0x40] sm:$0xff]
    %v91 = vld [vmem:[%s3 + $0x48] sm:$0xff]
    %v92 = vld [vmem:[%s3 + $0x50] sm:$0xff]
    %v93 = vld [vmem:[%s3 + $0x58] sm:$0xff]
    %v94 = vld [vmem:[%s3 + $0x60] sm:$0xff]
    %v95 = vld [vmem:[%s3 + $0x68] sm:$0xff]
    %vm96 = vcmask 523264
    %v98 = vsel %vm96, %v19, 0
    %100 = vmatprep.subr.mxu0 0.0
    %101 = vmatpush1.msra.mxu0 0.0
    %102 = vmatprep.subr.mxu0 0.0
    %103 = vmatpush1.msra.mxu0 0.0
    %104 = vmatprep.subr.mxu0 0.0
    %105 = vmatpush1.msra.mxu0 0.0
    %106 = vmatprep.subr.mxu0 0.0
    %107 = vmatpush1.msra.mxu0 0.0
    %108 = vmatprep.subr.mxu0 0.0
    %109 = vmatpush1.msra.mxu0 0.0
    %110 = vmatprep.subr.mxu0 0.0
    %111 = vmatpush1.msra.mxu0 0.0
    %112 = vmatprep.subr.mxu0 0.0
    %113 = vmatpush1.msra.mxu0 0.0
    %114 = vmatprep.subr.mxu0 0.0
    %115 = vmatpush1.msra.mxu0 0.0
    %116 = vmatprep.subr.mxu0 0.0
    %117 = vmatpush1.msra.mxu0 %v39
    %118 = vmatprep.subr.mxu0 0.0
    %119 = vmatpush1.msra.mxu0 %v38
    %120 = vmatprep.subr.mxu0 0.0
    %121 = vmatpush1.msra.mxu0 %v37
    %122 = vmatprep.subr.mxu0 0.0
    %123 = vmatpush1.msra.mxu0 %v36
    %124 = vmatprep.subr.mxu0 0.0
    %125 = vmatpush1.msra.mxu0 %v35
    %126 = vmatprep.subr.mxu0 0.0
    %127 = vmatpush1.msra.mxu0 %v34
    %128 = vmatprep.subr.mxu0 0.0
    %129 = vmatpush1.msra.mxu0 %v33
    %130 = vmatprep.subr.mxu0 0.0
    %131 = vmatpush1.msra.mxu0 %v32
    %132 = vmatprep.subr.mxu0 0.0
    %133 = vmatpush2.msra.mxu0 0.0
    %134 = vmatprep.subr.mxu0 0.0
    %135 = vmatpush2.msra.mxu0 0.0
    %136 = vmatprep.subr.mxu0 0.0
    %137 = vmatpush2.msra.mxu0 0.0
    %138 = vmatprep.subr.mxu0 0.0
    %139 = vmatpush2.msra.mxu0 0.0
    %140 = vmatprep.subr.mxu0 0.0
    %141 = vmatpush2.msra.mxu0 0.0
    %142 = vmatprep.subr.mxu0 0.0
    %143 = vmatpush2.msra.mxu0 0.0
    %144 = vmatprep.subr.mxu0 0.0
    %145 = vmatpush2.msra.mxu0 0.0
    %146 = vmatprep.subr.mxu0 0.0
    %147 = vmatpush2.msra.mxu0 0.0
    %148 = vmatprep.subr.mxu0 0.0
    %149 = vmatpush2.msra.mxu0 0.0
    %150 = vmatprep.subr.mxu0 0.0
    %151 = vmatpush2.msra.mxu0 0.0
    %152 = vmatprep.subr.mxu0 0.0
    %153 = vmatpush2.msra.mxu0 0.0
    %154 = vmatprep.subr.mxu0 0.0
    %155 = vmatpush2.msra.mxu0 0.0
    %156 = vmatprep.subr.mxu0 0.0
    %157 = vmatpush2.msra.mxu0 0.0
    %158 = vmatprep.subr.mxu0 0.0
    %159 = vmatpush2.msra.mxu0 0.0
    %160 = vmatprep.subr.mxu0 0.0
    %161 = vmatpush2.msra.mxu0 0.0
    %162 = vmatprep.subr.mxu0 0.0
    %163 = vmatpush2.msra.mxu0 0.0
    %164 = vmatprep.mubr.f32.mxu0 0.0
    %165 = vmatmul.mubr.f32.gmra.mxu0 %v98
    %v166 = vpop.f32.mrf.mxu0
    %v167 = vadd.f32 0.0, %v166
    %v168 = vpop.f32.mrf.mxu0
    %169 = vdwg.mxu0
    %171 = vset.pattern.permute.xlu0 0
    %172 = vperm.xlu0 %171, %v88
    %v173 = vpop.permute.xlu0 %172
    %176 = vset.pattern.permute.xlu0 0
    %177 = vperm.xlu0 %176, %v89
    %v178 = vpop.permute.xlu0 %177
    %v180 = vlaneseq
    %v181 = vshrl.u32 %v180, 7
    %v182 = vsub.s32 0, %v181
    %v183 = vrot.slane %v167, %v182
    %v184 = vmul.f32 %v173, %v183
    %v185 = vmul.f32 %v178, %v183
    %186 = vmatprep.subr.mxu0 0.0
    %187 = vmatpush1.msra.mxu0 0.0
    %188 = vmatprep.subr.mxu0 0.0
    %189 = vmatpush1.msra.mxu0 0.0
    %190 = vmatprep.subr.mxu0 0.0
    %191 = vmatpush1.msra.mxu0 0.0
    %192 = vmatprep.subr.mxu0 0.0
    %193 = vmatpush1.msra.mxu0 0.0
    %194 = vmatprep.subr.mxu0 0.0
    %195 = vmatpush1.msra.mxu0 0.0
    %196 = vmatprep.subr.mxu0 0.0
    %197 = vmatpush1.msra.mxu0 0.0
    %198 = vmatprep.subr.mxu0 0.0
    %199 = vmatpush1.msra.mxu0 0.0
    %200 = vmatprep.subr.mxu0 0.0
    %201 = vmatpush1.msra.mxu0 0.0
    %202 = vmatprep.subr.mxu0 0.0
    %203 = vmatpush1.msra.mxu0 %v55
    %204 = vmatprep.subr.mxu0 0.0
    %205 = vmatpush1.msra.mxu0 %v54
    %206 = vmatprep.subr.mxu0 0.0
    %207 = vmatpush1.msra.mxu0 %v53
    %208 = vmatprep.subr.mxu0 0.0
    %209 = vmatpush1.msra.mxu0 %v52
    %210 = vmatprep.subr.mxu0 0.0
    %211 = vmatpush1.msra.mxu0 %v51
    %212 = vmatprep.subr.mxu0 0.0
    %213 = vmatpush1.msra.mxu0 %v50
    %214 = vmatprep.subr.mxu0 0.0
    %215 = vmatpush1.msra.mxu0 %v49
    %216 = vmatprep.subr.mxu0 0.0
    %217 = vmatpush1.msra.mxu0 %v48
    %218 = vmatprep.subr.mxu0 0.0
    %219 = vmatpush2.msra.mxu0 0.0
    %220 = vmatprep.subr.mxu0 0.0
    %221 = vmatpush2.msra.mxu0 0.0
    %222 = vmatprep.subr.mxu0 0.0
    %223 = vmatpush2.msra.mxu0 0.0
    %224 = vmatprep.subr.mxu0 0.0
    %225 = vmatpush2.msra.mxu0 0.0
    %226 = vmatprep.subr.mxu0 0.0
    %227 = vmatpush2.msra.mxu0 0.0
    %228 = vmatprep.subr.mxu0 0.0
    %229 = vmatpush2.msra.mxu0 0.0
    %230 = vmatprep.subr.mxu0 0.0
    %231 = vmatpush2.msra.mxu0 0.0
    %232 = vmatprep.subr.mxu0 0.0
    %233 = vmatpush2.msra.mxu0 0.0
    %234 = vmatprep.subr.mxu0 0.0
    %235 = vmatpush2.msra.mxu0 0.0
    %236 = vmatprep.subr.mxu0 0.0
    %237 = vmatpush2.msra.mxu0 0.0
    %238 = vmatprep.subr.mxu0 0.0
    %239 = vmatpush2.msra.mxu0 0.0
    %240 = vmatprep.subr.mxu0 0.0
    %241 = vmatpush2.msra.mxu0 0.0
    %242 = vmatprep.subr.mxu0 0.0
    %243 = vmatpush2.msra.mxu0 0.0
    %244 = vmatprep.subr.mxu0 0.0
    %245 = vmatpush2.msra.mxu0 0.0
    %246 = vmatprep.subr.mxu0 0.0
    %247 = vmatpush2.msra.mxu0 0.0
    %248 = vmatprep.subr.mxu0 0.0
    %249 = vmatpush2.msra.mxu0 0.0
    %250 = vmatprep.mubr.f32.mxu0 0.0
    %251 = vmatmul.mubr.f32.gmra.mxu0 %v98
    %v252 = vpop.f32.mrf.mxu0
    %v253 = vadd.f32 0.0, %v252
    %v254 = vpop.f32.mrf.mxu0
    %255 = vdwg.mxu0
    %257 = vset.pattern.permute.xlu0 0
    %258 = vperm.xlu0 %257, %v90
    %v259 = vpop.permute.xlu0 %258
    %262 = vset.pattern.permute.xlu0 0
    %263 = vperm.xlu0 %262, %v91
    %v264 = vpop.permute.xlu0 %263
    %v266 = vlaneseq
    %v267 = vshrl.u32 %v266, 7
    %v268 = vsub.s32 0, %v267
    %v269 = vrot.slane %v253, %v268
    %v270 = vmul.f32 %v259, %v269
    %v271 = vmul.f32 %v264, %v269
    %v272 = vadd.f32 %v184, %v270
    %v273 = vadd.f32 %v185, %v271
    %274 = vmatprep.subr.mxu0 0.0
    %275 = vmatpush1.msra.mxu0 0.0
    %276 = vmatprep.subr.mxu0 0.0
    %277 = vmatpush1.msra.mxu0 0.0
    %278 = vmatprep.subr.mxu0 0.0
    %279 = vmatpush1.msra.mxu0 0.0
    %280 = vmatprep.subr.mxu0 0.0
    %281 = vmatpush1.msra.mxu0 0.0
    %282 = vmatprep.subr.mxu0 0.0
    %283 = vmatpush1.msra.mxu0 0.0
    %284 = vmatprep.subr.mxu0 0.0
    %285 = vmatpush1.msra.mxu0 0.0
    %286 = vmatprep.subr.mxu0 0.0
    %287 = vmatpush1.msra.mxu0 0.0
    %288 = vmatprep.subr.mxu0 0.0
    %289 = vmatpush1.msra.mxu0 0.0
    %290 = vmatprep.subr.mxu0 0.0
    %291 = vmatpush1.msra.mxu0 %v71
    %292 = vmatprep.subr.mxu0 0.0
    %293 = vmatpush1.msra.mxu0 %v70
    %294 = vmatprep.subr.mxu0 0.0
    %295 = vmatpush1.msra.mxu0 %v69
    %296 = vmatprep.subr.mxu0 0.0
    %297 = vmatpush1.msra.mxu0 %v68
    %298 = vmatprep.subr.mxu0 0.0
    %299 = vmatpush1.msra.mxu0 %v67
    %300 = vmatprep.subr.mxu0 0.0
    %301 = vmatpush1.msra.mxu0 %v66
    %302 = vmatprep.subr.mxu0 0.0
    %303 = vmatpush1.msra.mxu0 %v65
    %304 = vmatprep.subr.mxu0 0.0
    %305 = vmatpush1.msra.mxu0 %v64
    %306 = vmatprep.subr.mxu0 0.0
    %307 = vmatpush2.msra.mxu0 0.0
    %308 = vmatprep.subr.mxu0 0.0
    %309 = vmatpush2.msra.mxu0 0.0
    %310 = vmatprep.subr.mxu0 0.0
    %311 = vmatpush2.msra.mxu0 0.0
    %312 = vmatprep.subr.mxu0 0.0
    %313 = vmatpush2.msra.mxu0 0.0
    %314 = vmatprep.subr.mxu0 0.0
    %315 = vmatpush2.msra.mxu0 0.0
    %316 = vmatprep.subr.mxu0 0.0
    %317 = vmatpush2.msra.mxu0 0.0
    %318 = vmatprep.subr.mxu0 0.0
    %319 = vmatpush2.msra.mxu0 0.0
    %320 = vmatprep.subr.mxu0 0.0
    %321 = vmatpush2.msra.mxu0 0.0
    %322 = vmatprep.subr.mxu0 0.0
    %323 = vmatpush2.msra.mxu0 0.0
    %324 = vmatprep.subr.mxu0 0.0
    %325 = vmatpush2.msra.mxu0 0.0
    %326 = vmatprep.subr.mxu0 0.0
    %327 = vmatpush2.msra.mxu0 0.0
    %328 = vmatprep.subr.mxu0 0.0
    %329 = vmatpush2.msra.mxu0 0.0
    %330 = vmatprep.subr.mxu0 0.0
    %331 = vmatpush2.msra.mxu0 0.0
    %332 = vmatprep.subr.mxu0 0.0
    %333 = vmatpush2.msra.mxu0 0.0
    %334 = vmatprep.subr.mxu0 0.0
    %335 = vmatpush2.msra.mxu0 0.0
    %336 = vmatprep.subr.mxu0 0.0
    %337 = vmatpush2.msra.mxu0 0.0
    %338 = vmatprep.mubr.f32.mxu0 0.0
    %339 = vmatmul.mubr.f32.gmra.mxu0 %v98
    %v340 = vpop.f32.mrf.mxu0
    %v341 = vadd.f32 0.0, %v340
    %v342 = vpop.f32.mrf.mxu0
    %343 = vdwg.mxu0
    %345 = vset.pattern.permute.xlu0 0
    %346 = vperm.xlu0 %345, %v92
    %v347 = vpop.permute.xlu0 %346
    %350 = vset.pattern.permute.xlu0 0
    %351 = vperm.xlu0 %350, %v93
    %v352 = vpop.permute.xlu0 %351
    %v354 = vlaneseq
    %v355 = vshrl.u32 %v354, 7
    %v356 = vsub.s32 0, %v355
    %v357 = vrot.slane %v341, %v356
    %v358 = vmul.f32 %v347, %v357
    %v359 = vmul.f32 %v352, %v357
    %v360 = vadd.f32 %v272, %v358
    %v361 = vadd.f32 %v273, %v359
    %362 = vmatprep.subr.mxu0 0.0
    %363 = vmatpush1.msra.mxu0 0.0
    %364 = vmatprep.subr.mxu0 0.0
    %365 = vmatpush1.msra.mxu0 0.0
    %366 = vmatprep.subr.mxu0 0.0
    %367 = vmatpush1.msra.mxu0 0.0
    %368 = vmatprep.subr.mxu0 0.0
    %369 = vmatpush1.msra.mxu0 0.0
    %370 = vmatprep.subr.mxu0 0.0
    %371 = vmatpush1.msra.mxu0 0.0
    %372 = vmatprep.subr.mxu0 0.0
    %373 = vmatpush1.msra.mxu0 0.0
    %374 = vmatprep.subr.mxu0 0.0
    %375 = vmatpush1.msra.mxu0 0.0
    %376 = vmatprep.subr.mxu0 0.0
    %377 = vmatpush1.msra.mxu0 0.0
    %378 = vmatprep.subr.mxu0 0.0
    %379 = vmatpush1.msra.mxu0 %v87
    %380 = vmatprep.subr.mxu0 0.0
    %381 = vmatpush1.msra.mxu0 %v86
    %382 = vmatprep.subr.mxu0 0.0
    %383 = vmatpush1.msra.mxu0 %v85
    %384 = vmatprep.subr.mxu0 0.0
    %385 = vmatpush1.msra.mxu0 %v84
    %386 = vmatprep.subr.mxu0 0.0
    %387 = vmatpush1.msra.mxu0 %v83
    %388 = vmatprep.subr.mxu0 0.0
    %389 = vmatpush1.msra.mxu0 %v82
    %390 = vmatprep.subr.mxu0 0.0
    %391 = vmatpush1.msra.mxu0 %v81
    %392 = vmatprep.subr.mxu0 0.0
    %393 = vmatpush1.msra.mxu0 %v80
    %394 = vmatprep.subr.mxu0 0.0
    %395 = vmatpush2.msra.mxu0 0.0
    %396 = vmatprep.subr.mxu0 0.0
    %397 = vmatpush2.msra.mxu0 0.0
    %398 = vmatprep.subr.mxu0 0.0
    %399 = vmatpush2.msra.mxu0 0.0
    %400 = vmatprep.subr.mxu0 0.0
    %401 = vmatpush2.msra.mxu0 0.0
    %402 = vmatprep.subr.mxu0 0.0
    %403 = vmatpush2.msra.mxu0 0.0
    %404 = vmatprep.subr.mxu0 0.0
    %405 = vmatpush2.msra.mxu0 0.0
    %406 = vmatprep.subr.mxu0 0.0
    %407 = vmatpush2.msra.mxu0 0.0
    %408 = vmatprep.subr.mxu0 0.0
    %409 = vmatpush2.msra.mxu0 0.0
    %410 = vmatprep.subr.mxu0 0.0
    %411 = vmatpush2.msra.mxu0 0.0
    %412 = vmatprep.subr.mxu0 0.0
    %413 = vmatpush2.msra.mxu0 0.0
    %414 = vmatprep.subr.mxu0 0.0
    %415 = vmatpush2.msra.mxu0 0.0
    %416 = vmatprep.subr.mxu0 0.0
    %417 = vmatpush2.msra.mxu0 0.0
    %418 = vmatprep.subr.mxu0 0.0
    %419 = vmatpush2.msra.mxu0 0.0
    %420 = vmatprep.subr.mxu0 0.0
    %421 = vmatpush2.msra.mxu0 0.0
    %422 = vmatprep.subr.mxu0 0.0
    %423 = vmatpush2.msra.mxu0 0.0
    %424 = vmatprep.subr.mxu0 0.0
    %425 = vmatpush2.msra.mxu0 0.0
    %426 = vmatprep.mubr.f32.mxu0 0.0
    %427 = vmatmul.mubr.f32.gmra.mxu0 %v98
    %v428 = vpop.f32.mrf.mxu0
    %v429 = vadd.f32 0.0, %v428
    %v430 = vpop.f32.mrf.mxu0
    %431 = vdwg.mxu0
    %433 = vset.pattern.permute.xlu0 0
    %434 = vperm.xlu0 %433, %v94
    %v435 = vpop.permute.xlu0 %434
    %438 = vset.pattern.permute.xlu0 0
    %439 = vperm.xlu0 %438, %v95
    %v440 = vpop.permute.xlu0 %439
    %v442 = vlaneseq
    %v443 = vshrl.u32 %v442, 7
    %v444 = vsub.s32 0, %v443
    %v445 = vrot.slane %v429, %v444
    %v446 = vmul.f32 %v435, %v445
    %v447 = vmul.f32 %v440, %v445
    %v448 = vadd.f32 %v360, %v446
    %v449 = vadd.f32 %v361, %v447
    %451 = vset.pattern.permute.xlu0 0
    %452 = vperm.xlu0 %451, %v22
    %v453 = vpop.permute.xlu0 %452
    %456 = vset.pattern.permute.xlu0 0
    %457 = vperm.xlu0 %456, %v23
    %v458 = vpop.permute.xlu0 %457
    %v460 = vadd.f32 %v448, %v453
    %v461 = vadd.f32 %v449, %v458
    %v462 = vmax.f32 %v460, 0.0
    %v463 = vmax.f32 %v461, 0.0
    %v465 = vsel %vm96, %v21, 0
    %467 = vmatprep.subr.mxu0 0.0
    %468 = vmatpush1.msra.mxu0 0.0
    %469 = vmatprep.subr.mxu0 0.0
    %470 = vmatpush1.msra.mxu0 0.0
    %471 = vmatprep.subr.mxu0 0.0
    %472 = vmatpush1.msra.mxu0 0.0
    %473 = vmatprep.subr.mxu0 0.0
    %474 = vmatpush1.msra.mxu0 0.0
    %475 = vmatprep.subr.mxu0 0.0
    %476 = vmatpush1.msra.mxu0 0.0
    %477 = vmatprep.subr.mxu0 0.0
    %478 = vmatpush1.msra.mxu0 0.0
    %479 = vmatprep.subr.mxu0 0.0
    %480 = vmatpush1.msra.mxu0 0.0
    %481 = vmatprep.subr.mxu0 0.0
    %482 = vmatpush1.msra.mxu0 0.0
    %483 = vmatprep.subr.mxu0 0.0
    %484 = vmatpush1.msra.mxu0 %v39
    %485 = vmatprep.subr.mxu0 0.0
    %486 = vmatpush1.msra.mxu0 %v38
    %487 = vmatprep.subr.mxu0 0.0
    %488 = vmatpush1.msra.mxu0 %v37
    %489 = vmatprep.subr.mxu0 0.0
    %490 = vmatpush1.msra.mxu0 %v36
    %491 = vmatprep.subr.mxu0 0.0
    %492 = vmatpush1.msra.mxu0 %v35
    %493 = vmatprep.subr.mxu0 0.0
    %494 = vmatpush1.msra.mxu0 %v34
    %495 = vmatprep.subr.mxu0 0.0
    %496 = vmatpush1.msra.mxu0 %v33
    %497 = vmatprep.subr.mxu0 0.0
    %498 = vmatpush1.msra.mxu0 %v32
    %499 = vmatprep.subr.mxu0 0.0
    %500 = vmatpush2.msra.mxu0 0.0
    %501 = vmatprep.subr.mxu0 0.0
    %502 = vmatpush2.msra.mxu0 0.0
    %503 = vmatprep.subr.mxu0 0.0
    %504 = vmatpush2.msra.mxu0 0.0
    %505 = vmatprep.subr.mxu0 0.0
    %506 = vmatpush2.msra.mxu0 0.0
    %507 = vmatprep.subr.mxu0 0.0
    %508 = vmatpush2.msra.mxu0 0.0
    %509 = vmatprep.subr.mxu0 0.0
    %510 = vmatpush2.msra.mxu0 0.0
    %511 = vmatprep.subr.mxu0 0.0
    %512 = vmatpush2.msra.mxu0 0.0
    %513 = vmatprep.subr.mxu0 0.0
    %514 = vmatpush2.msra.mxu0 0.0
    %515 = vmatprep.subr.mxu0 0.0
    %516 = vmatpush2.msra.mxu0 0.0
    %517 = vmatprep.subr.mxu0 0.0
    %518 = vmatpush2.msra.mxu0 0.0
    %519 = vmatprep.subr.mxu0 0.0
    %520 = vmatpush2.msra.mxu0 0.0
    %521 = vmatprep.subr.mxu0 0.0
    %522 = vmatpush2.msra.mxu0 0.0
    %523 = vmatprep.subr.mxu0 0.0
    %524 = vmatpush2.msra.mxu0 0.0
    %525 = vmatprep.subr.mxu0 0.0
    %526 = vmatpush2.msra.mxu0 0.0
    %527 = vmatprep.subr.mxu0 0.0
    %528 = vmatpush2.msra.mxu0 0.0
    %529 = vmatprep.subr.mxu0 0.0
    %530 = vmatpush2.msra.mxu0 0.0
    %531 = vmatprep.mubr.f32.mxu0 0.0
    %532 = vmatmul.mubr.f32.gmra.mxu0 %v465
    %v533 = vpop.f32.mrf.mxu0
    %v534 = vadd.f32 0.0, %v533
    %v535 = vpop.f32.mrf.mxu0
    %536 = vdwg.mxu0
    %v537 = vlaneseq
    %v538 = vshrl.u32 %v537, 7
    %v539 = vsub.s32 0, %v538
    %v540 = vrot.slane %v534, %v539
    %v541 = vmul.f32 %v173, %v540
    %v542 = vmul.f32 %v178, %v540
    %543 = vmatprep.subr.mxu0 0.0
    %544 = vmatpush1.msra.mxu0 0.0
    %545 = vmatprep.subr.mxu0 0.0
    %546 = vmatpush1.msra.mxu0 0.0
    %547 = vmatprep.subr.mxu0 0.0
    %548 = vmatpush1.msra.mxu0 0.0
    %549 = vmatprep.subr.mxu0 0.0
    %550 = vmatpush1.msra.mxu0 0.0
    %551 = vmatprep.subr.mxu0 0.0
    %552 = vmatpush1.msra.mxu0 0.0
    %553 = vmatprep.subr.mxu0 0.0
    %554 = vmatpush1.msra.mxu0 0.0
    %555 = vmatprep.subr.mxu0 0.0
    %556 = vmatpush1.msra.mxu0 0.0
    %557 = vmatprep.subr.mxu0 0.0
    %558 = vmatpush1.msra.mxu0 0.0
    %559 = vmatprep.subr.mxu0 0.0
    %560 = vmatpush1.msra.mxu0 %v55
    %561 = vmatprep.subr.mxu0 0.0
    %562 = vmatpush1.msra.mxu0 %v54
    %563 = vmatprep.subr.mxu0 0.0
    %564 = vmatpush1.msra.mxu0 %v53
    %565 = vmatprep.subr.mxu0 0.0
    %566 = vmatpush1.msra.mxu0 %v52
    %567 = vmatprep.subr.mxu0 0.0
    %568 = vmatpush1.msra.mxu0 %v51
    %569 = vmatprep.subr.mxu0 0.0
    %570 = vmatpush1.msra.mxu0 %v50
    %571 = vmatprep.subr.mxu0 0.0
    %572 = vmatpush1.msra.mxu0 %v49
    %573 = vmatprep.subr.mxu0 0.0
    %574 = vmatpush1.msra.mxu0 %v48
    %575 = vmatprep.subr.mxu0 0.0
    %576 = vmatpush2.msra.mxu0 0.0
    %577 = vmatprep.subr.mxu0 0.0
    %578 = vmatpush2.msra.mxu0 0.0
    %579 = vmatprep.subr.mxu0 0.0
    %580 = vmatpush2.msra.mxu0 0.0
    %581 = vmatprep.subr.mxu0 0.0
    %582 = vmatpush2.msra.mxu0 0.0
    %583 = vmatprep.subr.mxu0 0.0
    %584 = vmatpush2.msra.mxu0 0.0
    %585 = vmatprep.subr.mxu0 0.0
    %586 = vmatpush2.msra.mxu0 0.0
    %587 = vmatprep.subr.mxu0 0.0
    %588 = vmatpush2.msra.mxu0 0.0
    %589 = vmatprep.subr.mxu0 0.0
    %590 = vmatpush2.msra.mxu0 0.0
    %591 = vmatprep.subr.mxu0 0.0
    %592 = vmatpush2.msra.mxu0 0.0
    %593 = vmatprep.subr.mxu0 0.0
    %594 = vmatpush2.msra.mxu0 0.0
    %595 = vmatprep.subr.mxu0 0.0
    %596 = vmatpush2.msra.mxu0 0.0
    %597 = vmatprep.subr.mxu0 0.0
    %598 = vmatpush2.msra.mxu0 0.0
    %599 = vmatprep.subr.mxu0 0.0
    %600 = vmatpush2.msra.mxu0 0.0
    %601 = vmatprep.subr.mxu0 0.0
    %602 = vmatpush2.msra.mxu0 0.0
    %603 = vmatprep.subr.mxu0 0.0
    %604 = vmatpush2.msra.mxu0 0.0
    %605 = vmatprep.subr.mxu0 0.0
    %606 = vmatpush2.msra.mxu0 0.0
    %607 = vmatprep.mubr.f32.mxu0 0.0
    %608 = vmatmul.mubr.f32.gmra.mxu0 %v465
    %v609 = vpop.f32.mrf.mxu0
    %v610 = vadd.f32 0.0, %v609
    %v611 = vpop.f32.mrf.mxu0
    %612 = vdwg.mxu0
    %v613 = vlaneseq
    %v614 = vshrl.u32 %v613, 7
    %v615 = vsub.s32 0, %v614
    %v616 = vrot.slane %v610, %v615
    %v617 = vmul.f32 %v259, %v616
    %v618 = vmul.f32 %v264, %v616
    %v619 = vadd.f32 %v541, %v617
    %v620 = vadd.f32 %v542, %v618
    %621 = vmatprep.subr.mxu0 0.0
    %622 = vmatpush1.msra.mxu0 0.0
    %623 = vmatprep.subr.mxu0 0.0
    %624 = vmatpush1.msra.mxu0 0.0
    %625 = vmatprep.subr.mxu0 0.0
    %626 = vmatpush1.msra.mxu0 0.0
    %627 = vmatprep.subr.mxu0 0.0
    %628 = vmatpush1.msra.mxu0 0.0
    %629 = vmatprep.subr.mxu0 0.0
    %630 = vmatpush1.msra.mxu0 0.0
    %631 = vmatprep.subr.mxu0 0.0
    %632 = vmatpush1.msra.mxu0 0.0
    %633 = vmatprep.subr.mxu0 0.0
    %634 = vmatpush1.msra.mxu0 0.0
    %635 = vmatprep.subr.mxu0 0.0
    %636 = vmatpush1.msra.mxu0 0.0
    %637 = vmatprep.subr.mxu0 0.0
    %638 = vmatpush1.msra.mxu0 %v71
    %639 = vmatprep.subr.mxu0 0.0
    %640 = vmatpush1.msra.mxu0 %v70
    %641 = vmatprep.subr.mxu0 0.0
    %642 = vmatpush1.msra.mxu0 %v69
    %643 = vmatprep.subr.mxu0 0.0
    %644 = vmatpush1.msra.mxu0 %v68
    %645 = vmatprep.subr.mxu0 0.0
    %646 = vmatpush1.msra.mxu0 %v67
    %647 = vmatprep.subr.mxu0 0.0
    %648 = vmatpush1.msra.mxu0 %v66
    %649 = vmatprep.subr.mxu0 0.0
    %650 = vmatpush1.msra.mxu0 %v65
    %651 = vmatprep.subr.mxu0 0.0
    %652 = vmatpush1.msra.mxu0 %v64
    %653 = vmatprep.subr.mxu0 0.0
    %654 = vmatpush2.msra.mxu0 0.0
    %655 = vmatprep.subr.mxu0 0.0
    %656 = vmatpush2.msra.mxu0 0.0
    %657 = vmatprep.subr.mxu0 0.0
    %658 = vmatpush2.msra.mxu0 0.0
    %659 = vmatprep.subr.mxu0 0.0
    %660 = vmatpush2.msra.mxu0 0.0
    %661 = vmatprep.subr.mxu0 0.0
    %662 = vmatpush2.msra.mxu0 0.0
    %663 = vmatprep.subr.mxu0 0.0
    %664 = vmatpush2.msra.mxu0 0.0
    %665 = vmatprep.subr.mxu0 0.0
    %666 = vmatpush2.msra.mxu0 0.0
    %667 = vmatprep.subr.mxu0 0.0
    %668 = vmatpush2.msra.mxu0 0.0
    %669 = vmatprep.subr.mxu0 0.0
    %670 = vmatpush2.msra.mxu0 0.0
    %671 = vmatprep.subr.mxu0 0.0
    %672 = vmatpush2.msra.mxu0 0.0
    %673 = vmatprep.subr.mxu0 0.0
    %674 = vmatpush2.msra.mxu0 0.0
    %675 = vmatprep.subr.mxu0 0.0
    %676 = vmatpush2.msra.mxu0 0.0
    %677 = vmatprep.subr.mxu0 0.0
    %678 = vmatpush2.msra.mxu0 0.0
    %679 = vmatprep.subr.mxu0 0.0
    %680 = vmatpush2.msra.mxu0 0.0
    %681 = vmatprep.subr.mxu0 0.0
    %682 = vmatpush2.msra.mxu0 0.0
    %683 = vmatprep.subr.mxu0 0.0
    %684 = vmatpush2.msra.mxu0 0.0
    %685 = vmatprep.mubr.f32.mxu0 0.0
    %686 = vmatmul.mubr.f32.gmra.mxu0 %v465
    %v687 = vpop.f32.mrf.mxu0
    %v688 = vadd.f32 0.0, %v687
    %v689 = vpop.f32.mrf.mxu0
    %690 = vdwg.mxu0
    %v691 = vlaneseq
    %v692 = vshrl.u32 %v691, 7
    %v693 = vsub.s32 0, %v692
    %v694 = vrot.slane %v688, %v693
    %v695 = vmul.f32 %v347, %v694
    %v696 = vmul.f32 %v352, %v694
    %v697 = vadd.f32 %v619, %v695
    %v698 = vadd.f32 %v620, %v696
    %699 = vmatprep.subr.mxu0 0.0
    %700 = vmatpush1.msra.mxu0 0.0
    %701 = vmatprep.subr.mxu0 0.0
    %702 = vmatpush1.msra.mxu0 0.0
    %703 = vmatprep.subr.mxu0 0.0
    %704 = vmatpush1.msra.mxu0 0.0
    %705 = vmatprep.subr.mxu0 0.0
    %706 = vmatpush1.msra.mxu0 0.0
    %707 = vmatprep.subr.mxu0 0.0
    %708 = vmatpush1.msra.mxu0 0.0
    %709 = vmatprep.subr.mxu0 0.0
    %710 = vmatpush1.msra.mxu0 0.0
    %711 = vmatprep.subr.mxu0 0.0
    %712 = vmatpush1.msra.mxu0 0.0
    %713 = vmatprep.subr.mxu0 0.0
    %714 = vmatpush1.msra.mxu0 0.0
    %715 = vmatprep.subr.mxu0 0.0
    %716 = vmatpush1.msra.mxu0 %v87
    %717 = vmatprep.subr.mxu0 0.0
    %718 = vmatpush1.msra.mxu0 %v86
    %719 = vmatprep.subr.mxu0 0.0
    %720 = vmatpush1.msra.mxu0 %v85
    %721 = vmatprep.subr.mxu0 0.0
    %722 = vmatpush1.msra.mxu0 %v84
    %723 = vmatprep.subr.mxu0 0.0
    %724 = vmatpush1.msra.mxu0 %v83
    %725 = vmatprep.subr.mxu0 0.0
    %726 = vmatpush1.msra.mxu0 %v82
    %727 = vmatprep.subr.mxu0 0.0
    %728 = vmatpush1.msra.mxu0 %v81
    %729 = vmatprep.subr.mxu0 0.0
    %730 = vmatpush1.msra.mxu0 %v80
    %731 = vmatprep.subr.mxu0 0.0
    %732 = vmatpush2.msra.mxu0 0.0
    %733 = vmatprep.subr.mxu0 0.0
    %734 = vmatpush2.msra.mxu0 0.0
    %735 = vmatprep.subr.mxu0 0.0
    %736 = vmatpush2.msra.mxu0 0.0
    %737 = vmatprep.subr.mxu0 0.0
    %738 = vmatpush2.msra.mxu0 0.0
    %739 = vmatprep.subr.mxu0 0.0
    %740 = vmatpush2.msra.mxu0 0.0
    %741 = vmatprep.subr.mxu0 0.0
    %742 = vmatpush2.msra.mxu0 0.0
    %743 = vmatprep.subr.mxu0 0.0
    %744 = vmatpush2.msra.mxu0 0.0
    %745 = vmatprep.subr.mxu0 0.0
    %746 = vmatpush2.msra.mxu0 0.0
    %747 = vmatprep.subr.mxu0 0.0
    %748 = vmatpush2.msra.mxu0 0.0
    %749 = vmatprep.subr.mxu0 0.0
    %750 = vmatpush2.msra.mxu0 0.0
    %751 = vmatprep.subr.mxu0 0.0
    %752 = vmatpush2.msra.mxu0 0.0
    %753 = vmatprep.subr.mxu0 0.0
    %754 = vmatpush2.msra.mxu0 0.0
    %755 = vmatprep.subr.mxu0 0.0
    %756 = vmatpush2.msra.mxu0 0.0
    %757 = vmatprep.subr.mxu0 0.0
    %758 = vmatpush2.msra.mxu0 0.0
    %759 = vmatprep.subr.mxu0 0.0
    %760 = vmatpush2.msra.mxu0 0.0
    %761 = vmatprep.subr.mxu0 0.0
    %762 = vmatpush2.msra.mxu0 0.0
    %763 = vmatprep.mubr.f32.mxu0 0.0
    %764 = vmatmul.mubr.f32.gmra.mxu0 %v465
    %v765 = vpop.f32.mrf.mxu0
    %v766 = vadd.f32 0.0, %v765
    %v767 = vpop.f32.mrf.mxu0
    %768 = vdwg.mxu0
    %v769 = vlaneseq
    %v770 = vshrl.u32 %v769, 7
    %v771 = vsub.s32 0, %v770
    %v772 = vrot.slane %v766, %v771
    %v773 = vmul.f32 %v435, %v772
    %v774 = vmul.f32 %v440, %v772
    %v775 = vadd.f32 %v697, %v773
    %v776 = vadd.f32 %v698, %v774
    %v777 = vadd.f32 %v775, %v453
    %v778 = vadd.f32 %v776, %v458
    %v779 = vmax.f32 %v777, 0.0
    %v780 = vmax.f32 %v778, 0.0
    %v781 = vld [vmem:[%s3 + $0x10] sm:$0xff]
    %v782 = vld [vmem:[%s3 + $0x18] sm:$0xff]
    %v783 = vld [vmem:[%s3 + $0x20] sm:$0xff]
    %v784 = vld [vmem:[%s3 + $0x28] sm:$0xff]
    %vm785 = vcmask 261120
    %v786 = vsel %vm785, %v462, 0.0
    %787 = vadd.xlane.f32.xlu0 %v786
    %v788 = vpop.xlane.xlu0 %787
    %v789 = vsel %vm785, %v463, 0.0
    %790 = vadd.xlane.f32.xlu0 %v789
    %v791 = vpop.xlane.xlu0 %790
    %v792 = vadd.f32 %v788, 0.0
    %v793 = vadd.f32 %v791, 0.0
    %v794 = vsel %vm785, %v779, 0.0
    %795 = vadd.xlane.f32.xlu0 %v794
    %v796 = vpop.xlane.xlu0 %795
    %v797 = vsel %vm785, %v780, 0.0
    %798 = vadd.xlane.f32.xlu0 %v797
    %v799 = vpop.xlane.xlu0 %798
    %v800 = vadd.f32 %v792, %v796
    %v801 = vadd.f32 %v793, %v799
    %v802 = vmul.f32 %v800, 0.015625
    %v803 = vmul.f32 %v801, 0.015625
    %v804 = vsub.f32 %v462, %v802
    %v805 = vsub.f32 %v463, %v803
    %v806 = vsub.f32 %v779, %v802
    %v807 = vsub.f32 %v780, %v803
    %v808 = vmul.f32 %v804, %v804
    %v809 = vmul.f32 %v805, %v805
    %v810 = vsel %vm785, %v808, 0.0
    %811 = vadd.xlane.f32.xlu0 %v810
    %v812 = vpop.xlane.xlu0 %811
    %v813 = vsel %vm785, %v809, 0.0
    %814 = vadd.xlane.f32.xlu0 %v813
    %v815 = vpop.xlane.xlu0 %814
    %v816 = vadd.f32 %v812, 0.0
    %v817 = vadd.f32 %v815, 0.0
    %v818 = vmul.f32 %v806, %v806
    %v819 = vmul.f32 %v807, %v807
    %v820 = vsel %vm785, %v818, 0.0
    %821 = vadd.xlane.f32.xlu0 %v820
    %v822 = vpop.xlane.xlu0 %821
    %v823 = vsel %vm785, %v819, 0.0
    %824 = vadd.xlane.f32.xlu0 %v823
    %v825 = vpop.xlane.xlu0 %824
    %v826 = vadd.f32 %v816, %v822
    %v827 = vadd.f32 %v817, %v825
    %v828 = vmul.f32 %v826, 0.015625
    %v829 = vmul.f32 %v827, 0.015625
    %v830 = vadd.f32 %v828, 1e-05
    %v831 = vadd.f32 %v829, 1e-05
    %v832 = vrsqrt.pop %v830
    %v833 = vrsqrt.pop %v831
    %v834 = vmul.f32 %v832, %v781
    %v835 = vmul.f32 %v833, %v782
    %837 = vset.pattern.permute.xlu0 0
    %838 = vperm.xlu0 %837, %v834
    %v839 = vpop.permute.xlu0 %838
    %842 = vset.pattern.permute.xlu0 0
    %843 = vperm.xlu0 %842, %v835
    %v844 = vpop.permute.xlu0 %843
    %v846 = vmul.f32 %v804, %v839
    %v847 = vmul.f32 %v805, %v844
    %849 = vset.pattern.permute.xlu0 0
    %850 = vperm.xlu0 %849, %v783
    %v851 = vpop.permute.xlu0 %850
    %854 = vset.pattern.permute.xlu0 0
    %855 = vperm.xlu0 %854, %v784
    %v856 = vpop.permute.xlu0 %855
    %v858 = vadd.f32 %v846, %v851
    %v859 = vadd.f32 %v847, %v856
    %v860 = vmul.f32 %v806, %v839
    %v861 = vmul.f32 %v807, %v844
    %v862 = vadd.f32 %v860, %v851
    %v863 = vadd.f32 %v861, %v856
    %v864 = vld [vmem:[%s3 + $0x70] sm:$0xff]
    %v865 = vld [vmem:[%s3 + $0x78] sm:$0xff]
    %v866 = vld [vmem:[%s3 + $0x80] sm:$0xff]
    %v867 = vld [vmem:[%s3 + $0x88] sm:$0xff]
    %v868 = vld [vmem:[%s2 + $0x80] sm:$0xf]
    %v869 = vld [vmem:[%s2 + $0x84] sm:$0xf]
    %v870 = vld [vmem:[%s2 + $0x88] sm:$0xf]
    %v871 = vld [vmem:[%s2 + $0x8c] sm:$0xf]
    %v872 = vld [vmem:[%s2 + $0x90] sm:$0xf]
    %v873 = vld [vmem:[%s2 + $0x94] sm:$0xf]
    %v874 = vld [vmem:[%s2 + $0x98] sm:$0xf]
    %v875 = vld [vmem:[%s2 + $0x9c] sm:$0xf]
    %v876 = vld [vmem:[%s2 + $0xa0] sm:$0xf]
    %v877 = vld [vmem:[%s2 + $0xa4] sm:$0xf]
    %v878 = vld [vmem:[%s2 + $0xa8] sm:$0xf]
    %v879 = vld [vmem:[%s2 + $0xac] sm:$0xf]
    %v880 = vld [vmem:[%s2 + $0xb0] sm:$0xf]
    %v881 = vld [vmem:[%s2 + $0xb4] sm:$0xf]
    %v882 = vld [vmem:[%s2 + $0xb8] sm:$0xf]
    %v883 = vld [vmem:[%s2 + $0xbc] sm:$0xf]
    %v884 = vld [vmem:[%s1] sm:$0xf]
    %v885 = vld [vmem:[%s1 + $0x10] sm:$0xf]
    %v886 = vld [vmem:[%s1 + $0x20] sm:$0xf]
    %v887 = vld [vmem:[%s1 + $0x30] sm:$0xf]
    %v888 = vpack.c.bf16 %v859, %v858
    %v893 = vunpack.c.l.b16 %v868
    %v894 = vunpack.c.l.b16 %v869
    %v895 = vunpack.c.l.b16 %v870
    %v896 = vunpack.c.l.b16 %v871
    %v897 = vpack.c.b16 %v894, %v893
    %v898 = vpack.c.b16 %v896, %v895
    %v902 = vsel %vm785, %v888, 0
    %904 = vmatprep.subr.bf16.mxu0 0
    %905 = vmatpush1.bf16.msra.mxu0 0
    %906 = vmatprep.subr.bf16.mxu0 0
    %907 = vmatpush1.bf16.msra.mxu0 0
    %908 = vmatprep.subr.bf16.mxu0 0
    %909 = vmatpush1.bf16.msra.mxu0 0
    %910 = vmatprep.subr.bf16.mxu0 0
    %911 = vmatpush1.bf16.msra.mxu0 0
    %912 = vmatprep.subr.bf16.mxu0 0
    %913 = vmatpush1.bf16.msra.mxu0 0
    %914 = vmatprep.subr.bf16.mxu0 0
    %915 = vmatpush1.bf16.msra.mxu0 0
    %916 = vmatprep.subr.bf16.mxu0 0
    %917 = vmatpush1.bf16.msra.mxu0 %v898
    %918 = vmatprep.subr.bf16.mxu0 0
    %919 = vmatpush1.bf16.msra.mxu0 %v897
    %920 = vmatprep.subr.bf16.mxu0 0
    %921 = vmatpush2.bf16.msra.mxu0 0
    %922 = vmatprep.subr.bf16.mxu0 0
    %923 = vmatpush2.bf16.msra.mxu0 0
    %924 = vmatprep.subr.bf16.mxu0 0
    %925 = vmatpush2.bf16.msra.mxu0 0
    %926 = vmatprep.subr.bf16.mxu0 0
    %927 = vmatpush2.bf16.msra.mxu0 0
    %928 = vmatprep.subr.bf16.mxu0 0
    %929 = vmatpush2.bf16.msra.mxu0 0
    %930 = vmatprep.subr.bf16.mxu0 0
    %931 = vmatpush2.bf16.msra.mxu0 0
    %932 = vmatprep.subr.bf16.mxu0 0
    %933 = vmatpush2.bf16.msra.mxu0 0
    %934 = vmatprep.subr.bf16.mxu0 0
    %935 = vmatpush2.bf16.msra.mxu0 0
    %936 = vmatprep.mubr.bf16.mxu0 0
    %937 = vmatmul.mubr.bf16.gmra.mxu0 %v902
    %v938 = vpop.f32.mrf.mxu0
    %v939 = vadd.f32 0.0, %v938
    %v940 = vpop.f32.mrf.mxu0
    %v941 = vpop.f32.mrf.mxu0
    %v942 = vadd.f32 0.0, %v941
    %v943 = vpop.f32.mrf.mxu0
    %944 = vdwg.mxu0
    %v945 = vpack.c.bf16 %v942, %v939
    %v950 = vunpack.c.l.b16 %v872
    %v951 = vunpack.c.l.b16 %v873
    %v952 = vunpack.c.l.b16 %v874
    %v953 = vunpack.c.l.b16 %v875
    %v954 = vpack.c.b16 %v951, %v950
    %v955 = vpack.c.b16 %v953, %v952
    %958 = vmatprep.subr.bf16.mxu0 0
    %959 = vmatpush1.bf16.msra.mxu0 0
    %960 = vmatprep.subr.bf16.mxu0 0
    %961 = vmatpush1.bf16.msra.mxu0 0
    %962 = vmatprep.subr.bf16.mxu0 0
    %963 = vmatpush1.bf16.msra.mxu0 0
    %964 = vmatprep.subr.bf16.mxu0 0
    %965 = vmatpush1.bf16.msra.mxu0 0
    %966 = vmatprep.subr.bf16.mxu0 0
    %967 = vmatpush1.bf16.msra.mxu0 0
    %968 = vmatprep.subr.bf16.mxu0 0
    %969 = vmatpush1.bf16.msra.mxu0 0
    %970 = vmatprep.subr.bf16.mxu0 0
    %971 = vmatpush1.bf16.msra.mxu0 %v955
    %972 = vmatprep.subr.bf16.mxu0 0
    %973 = vmatpush1.bf16.msra.mxu0 %v954
    %974 = vmatprep.subr.bf16.mxu0 0
    %975 = vmatpush2.bf16.msra.mxu0 0
    %976 = vmatprep.subr.bf16.mxu0 0
    %977 = vmatpush2.bf16.msra.mxu0 0
    %978 = vmatprep.subr.bf16.mxu0 0
    %979 = vmatpush2.bf16.msra.mxu0 0
    %980 = vmatprep.subr.bf16.mxu0 0
    %981 = vmatpush2.bf16.msra.mxu0 0
    %982 = vmatprep.subr.bf16.mxu0 0
    %983 = vmatpush2.bf16.msra.mxu0 0
    %984 = vmatprep.subr.bf16.mxu0 0
    %985 = vmatpush2.bf16.msra.mxu0 0
    %986 = vmatprep.subr.bf16.mxu0 0
    %987 = vmatpush2.bf16.msra.mxu0 0
    %988 = vmatprep.subr.bf16.mxu0 0
    %989 = vmatpush2.bf16.msra.mxu0 0
    %990 = vmatprep.mubr.bf16.mxu0 0
    %991 = vmatmul.mubr.bf16.gmra.mxu0 %v902
    %v992 = vpop.f32.mrf.mxu0
    %v993 = vadd.f32 0.0, %v992
    %v994 = vpop.f32.mrf.mxu0
    %v995 = vpop.f32.mrf.mxu0
    %v996 = vadd.f32 0.0, %v995
    %v997 = vpop.f32.mrf.mxu0
    %998 = vdwg.mxu0
    %v999 = vpack.c.bf16 %v996, %v993
    %v1004 = vunpack.c.l.b16 %v876
    %v1005 = vunpack.c.l.b16 %v877
    %v1006 = vunpack.c.l.b16 %v878
    %v1007 = vunpack.c.l.b16 %v879
    %v1008 = vpack.c.b16 %v1005, %v1004
    %v1009 = vpack.c.b16 %v1007, %v1006
    %1012 = vmatprep.subr.bf16.mxu0 0
    %1013 = vmatpush1.bf16.msra.mxu0 0
    %1014 = vmatprep.subr.bf16.mxu0 0
    %1015 = vmatpush1.bf16.msra.mxu0 0
    %1016 = vmatprep.subr.bf16.mxu0 0
    %1017 = vmatpush1.bf16.msra.mxu0 0
    %1018 = vmatprep.subr.bf16.mxu0 0
    %1019 = vmatpush1.bf16.msra.mxu0 0
    %1020 = vmatprep.subr.bf16.mxu0 0
    %1021 = vmatpush1.bf16.msra.mxu0 0
    %1022 = vmatprep.subr.bf16.mxu0 0
    %1023 = vmatpush1.bf16.msra.mxu0 0
    %1024 = vmatprep.subr.bf16.mxu0 0
    %1025 = vmatpush1.bf16.msra.mxu0 %v1009
    %1026 = vmatprep.subr.bf16.mxu0 0
    %1027 = vmatpush1.bf16.msra.mxu0 %v1008
    %1028 = vmatprep.subr.bf16.mxu0 0
    %1029 = vmatpush2.bf16.msra.mxu0 0
    %1030 = vmatprep.subr.bf16.mxu0 0
    %1031 = vmatpush2.bf16.msra.mxu0 0
    %1032 = vmatprep.subr.bf16.mxu0 0
    %1033 = vmatpush2.bf16.msra.mxu0 0
    %1034 = vmatprep.subr.bf16.mxu0 0
    %1035 = vmatpush2.bf16.msra.mxu0 0
    %1036 = vmatprep.subr.bf16.mxu0 0
    %1037 = vmatpush2.bf16.msra.mxu0 0
    %1038 = vmatprep.subr.bf16.mxu0 0
    %1039 = vmatpush2.bf16.msra.mxu0 0
    %1040 = vmatprep.subr.bf16.mxu0 0
    %1041 = vmatpush2.bf16.msra.mxu0 0
    %1042 = vmatprep.subr.bf16.mxu0 0
    %1043 = vmatpush2.bf16.msra.mxu0 0
    %1044 = vmatprep.mubr.bf16.mxu0 0
    %1045 = vmatmul.mubr.bf16.gmra.mxu0 %v902
    %v1046 = vpop.f32.mrf.mxu0
    %v1047 = vadd.f32 0.0, %v1046
    %v1048 = vpop.f32.mrf.mxu0
    %v1049 = vpop.f32.mrf.mxu0
    %v1050 = vadd.f32 0.0, %v1049
    %v1051 = vpop.f32.mrf.mxu0
    %1052 = vdwg.mxu0
    %v1053 = vpack.c.bf16 %v1050, %v1047
    %v1058 = vunpack.c.l.b16 %v880
    %v1059 = vunpack.c.l.b16 %v881
    %v1060 = vunpack.c.l.b16 %v882
    %v1061 = vunpack.c.l.b16 %v883
    %v1062 = vpack.c.b16 %v1059, %v1058
    %v1063 = vpack.c.b16 %v1061, %v1060
    %1066 = vmatprep.subr.bf16.mxu0 0
    %1067 = vmatpush1.bf16.msra.mxu0 0
    %1068 = vmatprep.subr.bf16.mxu0 0
    %1069 = vmatpush1.bf16.msra.mxu0 0
    %1070 = vmatprep.subr.bf16.mxu0 0
    %1071 = vmatpush1.bf16.msra.mxu0 0
    %1072 = vmatprep.subr.bf16.mxu0 0
    %1073 = vmatpush1.bf16.msra.mxu0 0
    %1074 = vmatprep.subr.bf16.mxu0 0
    %1075 = vmatpush1.bf16.msra.mxu0 0
    %1076 = vmatprep.subr.bf16.mxu0 0
    %1077 = vmatpush1.bf16.msra.mxu0 0
    %1078 = vmatprep.subr.bf16.mxu0 0
    %1079 = vmatpush1.bf16.msra.mxu0 %v1063
    %1080 = vmatprep.subr.bf16.mxu0 0
    %1081 = vmatpush1.bf16.msra.mxu0 %v1062
    %1082 = vmatprep.subr.bf16.mxu0 0
    %1083 = vmatpush2.bf16.msra.mxu0 0
    %1084 = vmatprep.subr.bf16.mxu0 0
    %1085 = vmatpush2.bf16.msra.mxu0 0
    %1086 = vmatprep.subr.bf16.mxu0 0
    %1087 = vmatpush2.bf16.msra.mxu0 0
    %1088 = vmatprep.subr.bf16.mxu0 0
    %1089 = vmatpush2.bf16.msra.mxu0 0
    %1090 = vmatprep.subr.bf16.mxu0 0
    %1091 = vmatpush2.bf16.msra.mxu0 0
    %1092 = vmatprep.subr.bf16.mxu0 0
    %1093 = vmatpush2.bf16.msra.mxu0 0
    %1094 = vmatprep.subr.bf16.mxu0 0
    %1095 = vmatpush2.bf16.msra.mxu0 0
    %1096 = vmatprep.subr.bf16.mxu0 0
    %1097 = vmatpush2.bf16.msra.mxu0 0
    %1098 = vmatprep.mubr.bf16.mxu0 0
    %1099 = vmatmul.mubr.bf16.gmra.mxu0 %v902
    %v1100 = vpop.f32.mrf.mxu0
    %v1101 = vadd.f32 0.0, %v1100
    %v1102 = vpop.f32.mrf.mxu0
    %v1103 = vpop.f32.mrf.mxu0
    %v1104 = vadd.f32 0.0, %v1103
    %v1105 = vpop.f32.mrf.mxu0
    %1106 = vdwg.mxu0
    %v1107 = vpack.c.bf16 %v1104, %v1101
    %1109 = vset.pattern.permute.xlu0 0
    %1110 = vperm.xlu0 %1109, %v864
    %v1111 = vpop.permute.xlu0 %1110
    %1114 = vset.pattern.permute.xlu0 0
    %1115 = vperm.xlu0 %1114, %v865
    %v1116 = vpop.permute.xlu0 %1115
    %1119 = vset.pattern.permute.xlu0 0
    %1120 = vperm.xlu0 %1119, %v866
    %v1121 = vpop.permute.xlu0 %1120
    %1124 = vset.pattern.permute.xlu0 0
    %1125 = vperm.xlu0 %1124, %v867
    %v1126 = vpop.permute.xlu0 %1125
    %v1132 = vunpack.c.l.b16 %v884
    %v1133 = vunpack.c.l.b16 %v885
    %v1134 = vunpack.c.l.b16 %v886
    %v1135 = vunpack.c.l.b16 %v887
    %v1136 = vpack.c.b16 %v1133, %v1132
    %v1137 = vpack.c.b16 %v1135, %v1134
    %v1139 = vsel %vm96, %v1136, 0
    %v1142 = vsel %vm96, %v1137, 0
    %1144 = vmatprep.subr.bf16.mxu0 0
    %1145 = vmatpush1.bf16.msra.mxu0 0
    %1146 = vmatprep.subr.bf16.mxu0 0
    %1147 = vmatpush1.bf16.msra.mxu0 0
    %1148 = vmatprep.subr.bf16.mxu0 0
    %1149 = vmatpush1.bf16.msra.mxu0 0
    %1150 = vmatprep.subr.bf16.mxu0 0
    %1151 = vmatpush1.bf16.msra.mxu0 0
    %1152 = vmatprep.subr.bf16.mxu0 0
    %1153 = vmatpush1.bf16.msra.mxu0 %v1107
    %1154 = vmatprep.subr.bf16.mxu0 0
    %1155 = vmatpush1.bf16.msra.mxu0 %v1053
    %1156 = vmatprep.subr.bf16.mxu0 0
    %1157 = vmatpush1.bf16.msra.mxu0 %v999
    %1158 = vmatprep.subr.bf16.mxu0 0
    %1159 = vmatpush1.bf16.msra.mxu0 %v945
    %1160 = vmatprep.subr.bf16.mxu0 0
    %1161 = vmatpush2.bf16.msra.mxu0 0
    %1162 = vmatprep.subr.bf16.mxu0 0
    %1163 = vmatpush2.bf16.msra.mxu0 0
    %1164 = vmatprep.subr.bf16.mxu0 0
    %1165 = vmatpush2.bf16.msra.mxu0 0
    %1166 = vmatprep.subr.bf16.mxu0 0
    %1167 = vmatpush2.bf16.msra.mxu0 0
    %1168 = vmatprep.subr.bf16.mxu0 0
    %1169 = vmatpush2.bf16.msra.mxu0 0
    %1170 = vmatprep.subr.bf16.mxu0 0
    %1171 = vmatpush2.bf16.msra.mxu0 0
    %1172 = vmatprep.subr.bf16.mxu0 0
    %1173 = vmatpush2.bf16.msra.mxu0 0
    %1174 = vmatprep.subr.bf16.mxu0 0
    %1175 = vmatpush2.bf16.msra.mxu0 0
    %1176 = vmatprep.mubr.bf16.mxu0 0
    %1177 = vmatmul.mubr.bf16.gmra.mxu0 %v1139
    %v1178 = vpop.f32.mrf.mxu0
    %v1179 = vadd.f32 %v1111, %v1178
    %v1180 = vpop.f32.mrf.mxu0
    %v1181 = vpop.f32.mrf.mxu0
    %v1182 = vadd.f32 %v1116, %v1181
    %v1183 = vpop.f32.mrf.mxu0
    %1184 = vmatprep.mubr.bf16.mxu0 0
    %1185 = vmatmul.mubr.bf16.gmra.mxu0 %v1142
    %v1186 = vpop.f32.mrf.mxu0
    %v1187 = vadd.f32 %v1121, %v1186
    %v1188 = vpop.f32.mrf.mxu0
    %v1189 = vpop.f32.mrf.mxu0
    %v1190 = vadd.f32 %v1126, %v1189
    %v1191 = vpop.f32.mrf.mxu0
    %1192 = vdwg.mxu0
    %v1193 = vmax.f32 %v1179, 0.0
    %v1194 = vmax.f32 %v1182, 0.0
    %v1195 = vmax.f32 %v1187, 0.0
    %v1196 = vmax.f32 %v1190, 0.0
    %v1197 = vpack.c.bf16 %v863, %v862
    %v1199 = vsel %vm785, %v1197, 0
    %1201 = vmatprep.subr.bf16.mxu0 0
    %1202 = vmatpush1.bf16.msra.mxu0 0
    %1203 = vmatprep.subr.bf16.mxu0 0
    %1204 = vmatpush1.bf16.msra.mxu0 0
    %1205 = vmatprep.subr.bf16.mxu0 0
    %1206 = vmatpush1.bf16.msra.mxu0 0
    %1207 = vmatprep.subr.bf16.mxu0 0
    %1208 = vmatpush1.bf16.msra.mxu0 0
    %1209 = vmatprep.subr.bf16.mxu0 0
    %1210 = vmatpush1.bf16.msra.mxu0 0
    %1211 = vmatprep.subr.bf16.mxu0 0
    %1212 = vmatpush1.bf16.msra.mxu0 0
    %1213 = vmatprep.subr.bf16.mxu0 0
    %1214 = vmatpush1.bf16.msra.mxu0 %v898
    %1215 = vmatprep.subr.bf16.mxu0 0
    %1216 = vmatpush1.bf16.msra.mxu0 %v897
    %1217 = vmatprep.subr.bf16.mxu0 0
    %1218 = vmatpush2.bf16.msra.mxu0 0
    %1219 = vmatprep.subr.bf16.mxu0 0
    %1220 = vmatpush2.bf16.msra.mxu0 0
    %1221 = vmatprep.subr.bf16.mxu0 0
    %1222 = vmatpush2.bf16.msra.mxu0 0
    %1223 = vmatprep.subr.bf16.mxu0 0
    %1224 = vmatpush2.bf16.msra.mxu0 0
    %1225 = vmatprep.subr.bf16.mxu0 0
    %1226 = vmatpush2.bf16.msra.mxu0 0
    %1227 = vmatprep.subr.bf16.mxu0 0
    %1228 = vmatpush2.bf16.msra.mxu0 0
    %1229 = vmatprep.subr.bf16.mxu0 0
    %1230 = vmatpush2.bf16.msra.mxu0 0
    %1231 = vmatprep.subr.bf16.mxu0 0
    %1232 = vmatpush2.bf16.msra.mxu0 0
    %1233 = vmatprep.mubr.bf16.mxu0 0
    %1234 = vmatmul.mubr.bf16.gmra.mxu0 %v1199
    %v1235 = vpop.f32.mrf.mxu0
    %v1236 = vadd.f32 0.0, %v1235
    %v1237 = vpop.f32.mrf.mxu0
    %v1238 = vpop.f32.mrf.mxu0
    %v1239 = vadd.f32 0.0, %v1238
    %v1240 = vpop.f32.mrf.mxu0
    %1241 = vdwg.mxu0
    %v1242 = vpack.c.bf16 %v1239, %v1236
    %1243 = vmatprep.subr.bf16.mxu0 0
    %1244 = vmatpush1.bf16.msra.mxu0 0
    %1245 = vmatprep.subr.bf16.mxu0 0
    %1246 = vmatpush1.bf16.msra.mxu0 0
    %1247 = vmatprep.subr.bf16.mxu0 0
    %1248 = vmatpush1.bf16.msra.mxu0 0
    %1249 = vmatprep.subr.bf16.mxu0 0
    %1250 = vmatpush1.bf16.msra.mxu0 0
    %1251 = vmatprep.subr.bf16.mxu0 0
    %1252 = vmatpush1.bf16.msra.mxu0 0
    %1253 = vmatprep.subr.bf16.mxu0 0
    %1254 = vmatpush1.bf16.msra.mxu0 0
    %1255 = vmatprep.subr.bf16.mxu0 0
    %1256 = vmatpush1.bf16.msra.mxu0 %v955
    %1257 = vmatprep.subr.bf16.mxu0 0
    %1258 = vmatpush1.bf16.msra.mxu0 %v954
    %1259 = vmatprep.subr.bf16.mxu0 0
    %1260 = vmatpush2.bf16.msra.mxu0 0
    %1261 = vmatprep.subr.bf16.mxu0 0
    %1262 = vmatpush2.bf16.msra.mxu0 0
    %1263 = vmatprep.subr.bf16.mxu0 0
    %1264 = vmatpush2.bf16.msra.mxu0 0
    %1265 = vmatprep.subr.bf16.mxu0 0
    %1266 = vmatpush2.bf16.msra.mxu0 0
    %1267 = vmatprep.subr.bf16.mxu0 0
    %1268 = vmatpush2.bf16.msra.mxu0 0
    %1269 = vmatprep.subr.bf16.mxu0 0
    %1270 = vmatpush2.bf16.msra.mxu0 0
    %1271 = vmatprep.subr.bf16.mxu0 0
    %1272 = vmatpush2.bf16.msra.mxu0 0
    %1273 = vmatprep.subr.bf16.mxu0 0
    %1274 = vmatpush2.bf16.msra.mxu0 0
    %1275 = vmatprep.mubr.bf16.mxu0 0
    %1276 = vmatmul.mubr.bf16.gmra.mxu0 %v1199
    %v1277 = vpop.f32.mrf.mxu0
    %v1278 = vadd.f32 0.0, %v1277
    %v1279 = vpop.f32.mrf.mxu0
    %v1280 = vpop.f32.mrf.mxu0
    %v1281 = vadd.f32 0.0, %v1280
    %v1282 = vpop.f32.mrf.mxu0
    %1283 = vdwg.mxu0
    %v1284 = vpack.c.bf16 %v1281, %v1278
    %1285 = vmatprep.subr.bf16.mxu0 0
    %1286 = vmatpush1.bf16.msra.mxu0 0
    %1287 = vmatprep.subr.bf16.mxu0 0
    %1288 = vmatpush1.bf16.msra.mxu0 0
    %1289 = vmatprep.subr.bf16.mxu0 0
    %1290 = vmatpush1.bf16.msra.mxu0 0
    %1291 = vmatprep.subr.bf16.mxu0 0
    %1292 = vmatpush1.bf16.msra.mxu0 0
    %1293 = vmatprep.subr.bf16.mxu0 0
    %1294 = vmatpush1.bf16.msra.mxu0 0
    %1295 = vmatprep.subr.bf16.mxu0 0
    %1296 = vmatpush1.bf16.msra.mxu0 0
    %1297 = vmatprep.subr.bf16.mxu0 0
    %1298 = vmatpush1.bf16.msra.mxu0 %v1009
    %1299 = vmatprep.subr.bf16.mxu0 0
    %1300 = vmatpush1.bf16.msra.mxu0 %v1008
    %1301 = vmatprep.subr.bf16.mxu0 0
    %1302 = vmatpush2.bf16.msra.mxu0 0
    %1303 = vmatprep.subr.bf16.mxu0 0
    %1304 = vmatpush2.bf16.msra.mxu0 0
    %1305 = vmatprep.subr.bf16.mxu0 0
    %1306 = vmatpush2.bf16.msra.mxu0 0
    %1307 = vmatprep.subr.bf16.mxu0 0
    %1308 = vmatpush2.bf16.msra.mxu0 0
    %1309 = vmatprep.subr.bf16.mxu0 0
    %1310 = vmatpush2.bf16.msra.mxu0 0
    %1311 = vmatprep.subr.bf16.mxu0 0
    %1312 = vmatpush2.bf16.msra.mxu0 0
    %1313 = vmatprep.subr.bf16.mxu0 0
    %1314 = vmatpush2.bf16.msra.mxu0 0
    %1315 = vmatprep.subr.bf16.mxu0 0
    %1316 = vmatpush2.bf16.msra.mxu0 0
    %1317 = vmatprep.mubr.bf16.mxu0 0
    %1318 = vmatmul.mubr.bf16.gmra.mxu0 %v1199
    %v1319 = vpop.f32.mrf.mxu0
    %v1320 = vadd.f32 0.0, %v1319
    %v1321 = vpop.f32.mrf.mxu0
    %v1322 = vpop.f32.mrf.mxu0
    %v1323 = vadd.f32 0.0, %v1322
    %v1324 = vpop.f32.mrf.mxu0
    %1325 = vdwg.mxu0
    %v1326 = vpack.c.bf16 %v1323, %v1320
    %1327 = vmatprep.subr.bf16.mxu0 0
    %1328 = vmatpush1.bf16.msra.mxu0 0
    %1329 = vmatprep.subr.bf16.mxu0 0
    %1330 = vmatpush1.bf16.msra.mxu0 0
    %1331 = vmatprep.subr.bf16.mxu0 0
    %1332 = vmatpush1.bf16.msra.mxu0 0
    %1333 = vmatprep.subr.bf16.mxu0 0
    %1334 = vmatpush1.bf16.msra.mxu0 0
    %1335 = vmatprep.subr.bf16.mxu0 0
    %1336 = vmatpush1.bf16.msra.mxu0 0
    %1337 = vmatprep.subr.bf16.mxu0 0
    %1338 = vmatpush1.bf16.msra.mxu0 0
    %1339 = vmatprep.subr.bf16.mxu0 0
    %1340 = vmatpush1.bf16.msra.mxu0 %v1063
    %1341 = vmatprep.subr.bf16.mxu0 0
    %1342 = vmatpush1.bf16.msra.mxu0 %v1062
    %1343 = vmatprep.subr.bf16.mxu0 0
    %1344 = vmatpush2.bf16.msra.mxu0 0
    %1345 = vmatprep.subr.bf16.mxu0 0
    %1346 = vmatpush2.bf16.msra.mxu0 0
    %1347 = vmatprep.subr.bf16.mxu0 0
    %1348 = vmatpush2.bf16.msra.mxu0 0
    %1349 = vmatprep.subr.bf16.mxu0 0
    %1350 = vmatpush2.bf16.msra.mxu0 0
    %1351 = vmatprep.subr.bf16.mxu0 0
    %1352 = vmatpush2.bf16.msra.mxu0 0
    %1353 = vmatprep.subr.bf16.mxu0 0
    %1354 = vmatpush2.bf16.msra.mxu0 0
    %1355 = vmatprep.subr.bf16.mxu0 0
    %1356 = vmatpush2.bf16.msra.mxu0 0
    %1357 = vmatprep.subr.bf16.mxu0 0
    %1358 = vmatpush2.bf16.msra.mxu0 0
    %1359 = vmatprep.mubr.bf16.mxu0 0
    %1360 = vmatmul.mubr.bf16.gmra.mxu0 %v1199
    %v1361 = vpop.f32.mrf.mxu0
    %v1362 = vadd.f32 0.0, %v1361
    %v1363 = vpop.f32.mrf.mxu0
    %v1364 = vpop.f32.mrf.mxu0
    %v1365 = vadd.f32 0.0, %v1364
    %v1366 = vpop.f32.mrf.mxu0
    %1367 = vdwg.mxu0
    %v1368 = vpack.c.bf16 %v1365, %v1362
    %1369 = vmatprep.subr.bf16.mxu0 0
    %1370 = vmatpush1.bf16.msra.mxu0 0
    %1371 = vmatprep.subr.bf16.mxu0 0
    %1372 = vmatpush1.bf16.msra.mxu0 0
    %1373 = vmatprep.subr.bf16.mxu0 0
    %1374 = vmatpush1.bf16.msra.mxu0 0
    %1375 = vmatprep.subr.bf16.mxu0 0
    %1376 = vmatpush1.bf16.msra.mxu0 0
    %1377 = vmatprep.subr.bf16.mxu0 0
    %1378 = vmatpush1.bf16.msra.mxu0 %v1368
    %1379 = vmatprep.subr.bf16.mxu0 0
    %1380 = vmatpush1.bf16.msra.mxu0 %v1326
    %1381 = vmatprep.subr.bf16.mxu0 0
    %1382 = vmatpush1.bf16.msra.mxu0 %v1284
    %1383 = vmatprep.subr.bf16.mxu0 0
    %1384 = vmatpush1.bf16.msra.mxu0 %v1242
    %1385 = vmatprep.subr.bf16.mxu0 0
    %1386 = vmatpush2.bf16.msra.mxu0 0
    %1387 = vmatprep.subr.bf16.mxu0 0
    %1388 = vmatpush2.bf16.msra.mxu0 0
    %1389 = vmatprep.subr.bf16.mxu0 0
    %1390 = vmatpush2.bf16.msra.mxu0 0
    %1391 = vmatprep.subr.bf16.mxu0 0
    %1392 = vmatpush2.bf16.msra.mxu0 0
    %1393 = vmatprep.subr.bf16.mxu0 0
    %1394 = vmatpush2.bf16.msra.mxu0 0
    %1395 = vmatprep.subr.bf16.mxu0 0
    %1396 = vmatpush2.bf16.msra.mxu0 0
    %1397 = vmatprep.subr.bf16.mxu0 0
    %1398 = vmatpush2.bf16.msra.mxu0 0
    %1399 = vmatprep.subr.bf16.mxu0 0
    %1400 = vmatpush2.bf16.msra.mxu0 0
    %1401 = vmatprep.mubr.bf16.mxu0 0
    %1402 = vmatmul.mubr.bf16.gmra.mxu0 %v1139
    %v1403 = vpop.f32.mrf.mxu0
    %v1404 = vadd.f32 %v1111, %v1403
    %v1405 = vpop.f32.mrf.mxu0
    %v1406 = vpop.f32.mrf.mxu0
    %v1407 = vadd.f32 %v1116, %v1406
    %v1408 = vpop.f32.mrf.mxu0
    %1409 = vmatprep.mubr.bf16.mxu0 0
    %1410 = vmatmul.mubr.bf16.gmra.mxu0 %v1142
    %v1411 = vpop.f32.mrf.mxu0
    %v1412 = vadd.f32 %v1121, %v1411
    %v1413 = vpop.f32.mrf.mxu0
    %v1414 = vpop.f32.mrf.mxu0
    %v1415 = vadd.f32 %v1126, %v1414
    %v1416 = vpop.f32.mrf.mxu0
    %1417 = vdwg.mxu0
    %v1418 = vmax.f32 %v1404, 0.0
    %v1419 = vmax.f32 %v1407, 0.0
    %v1420 = vmax.f32 %v1412, 0.0
    %v1421 = vmax.f32 %v1415, 0.0
    %v1422 = vld [vmem:[%s3 + $0x90] sm:$0xff]
    %v1423 = vld [vmem:[%s3 + $0x98] sm:$0xff]
    %v1424 = vld [vmem:[%s3 + $0xa0] sm:$0xff]
    %v1425 = vld [vmem:[%s3 + $0xa8] sm:$0xff]
    %v1426 = vld [vmem:[%s3 + $0xb0] sm:$0xff]
    %v1427 = vld [vmem:[%s3 + $0xb8] sm:$0xff]
    %v1428 = vld [vmem:[%s3 + $0xc0] sm:$0xff]
    %v1429 = vld [vmem:[%s3 + $0xc8] sm:$0xff]
    %vm1430 = vcmask 130048
    %v1431 = vsel %vm1430, %v1193, 0.0
    %1432 = vadd.xlane.f32.xlu0 %v1431
    %v1433 = vpop.xlane.xlu0 %1432
    %v1434 = vsel %vm1430, %v1194, 0.0
    %1435 = vadd.xlane.f32.xlu0 %v1434
    %v1436 = vpop.xlane.xlu0 %1435
    %v1437 = vsel %vm1430, %v1195, 0.0
    %1438 = vadd.xlane.f32.xlu0 %v1437
    %v1439 = vpop.xlane.xlu0 %1438
    %v1440 = vsel %vm1430, %v1196, 0.0
    %1441 = vadd.xlane.f32.xlu0 %v1440
    %v1442 = vpop.xlane.xlu0 %1441
    %v1443 = vadd.f32 %v1433, 0.0
    %v1444 = vadd.f32 %v1436, 0.0
    %v1445 = vadd.f32 %v1439, 0.0
    %v1446 = vadd.f32 %v1442, 0.0
    %v1447 = vsel %vm1430, %v1418, 0.0
    %1448 = vadd.xlane.f32.xlu0 %v1447
    %v1449 = vpop.xlane.xlu0 %1448
    %v1450 = vsel %vm1430, %v1419, 0.0
    %1451 = vadd.xlane.f32.xlu0 %v1450
    %v1452 = vpop.xlane.xlu0 %1451
    %v1453 = vsel %vm1430, %v1420, 0.0
    %1454 = vadd.xlane.f32.xlu0 %v1453
    %v1455 = vpop.xlane.xlu0 %1454
    %v1456 = vsel %vm1430, %v1421, 0.0
    %1457 = vadd.xlane.f32.xlu0 %v1456
    %v1458 = vpop.xlane.xlu0 %1457
    %v1459 = vadd.f32 %v1443, %v1449
    %v1460 = vadd.f32 %v1444, %v1452
    %v1461 = vadd.f32 %v1445, %v1455
    %v1462 = vadd.f32 %v1446, %v1458
    %v1463 = vmul.f32 %v1459, 0.03125
    %v1464 = vmul.f32 %v1460, 0.03125
    %v1465 = vmul.f32 %v1461, 0.03125
    %v1466 = vmul.f32 %v1462, 0.03125
    %v1467 = vsub.f32 %v1193, %v1463
    %v1468 = vsub.f32 %v1194, %v1464
    %v1469 = vsub.f32 %v1195, %v1465
    %v1470 = vsub.f32 %v1196, %v1466
    %v1471 = vsub.f32 %v1418, %v1463
    %v1472 = vsub.f32 %v1419, %v1464
    %v1473 = vsub.f32 %v1420, %v1465
    %v1474 = vsub.f32 %v1421, %v1466
    %v1475 = vmul.f32 %v1467, %v1467
    %v1476 = vmul.f32 %v1468, %v1468
    %v1477 = vmul.f32 %v1469, %v1469
    %v1478 = vmul.f32 %v1470, %v1470
    %v1479 = vsel %vm1430, %v1475, 0.0
    %1480 = vadd.xlane.f32.xlu0 %v1479
    %v1481 = vpop.xlane.xlu0 %1480
    %v1482 = vsel %vm1430, %v1476, 0.0
    %1483 = vadd.xlane.f32.xlu0 %v1482
    %v1484 = vpop.xlane.xlu0 %1483
    %v1485 = vsel %vm1430, %v1477, 0.0
    %1486 = vadd.xlane.f32.xlu0 %v1485
    %v1487 = vpop.xlane.xlu0 %1486
    %v1488 = vsel %vm1430, %v1478, 0.0
    %1489 = vadd.xlane.f32.xlu0 %v1488
    %v1490 = vpop.xlane.xlu0 %1489
    %v1491 = vadd.f32 %v1481, 0.0
    %v1492 = vadd.f32 %v1484, 0.0
    %v1493 = vadd.f32 %v1487, 0.0
    %v1494 = vadd.f32 %v1490, 0.0
    %v1495 = vmul.f32 %v1471, %v1471
    %v1496 = vmul.f32 %v1472, %v1472
    %v1497 = vmul.f32 %v1473, %v1473
    %v1498 = vmul.f32 %v1474, %v1474
    %v1499 = vsel %vm1430, %v1495, 0.0
    %1500 = vadd.xlane.f32.xlu0 %v1499
    %v1501 = vpop.xlane.xlu0 %1500
    %v1502 = vsel %vm1430, %v1496, 0.0
    %1503 = vadd.xlane.f32.xlu0 %v1502
    %v1504 = vpop.xlane.xlu0 %1503
    %v1505 = vsel %vm1430, %v1497, 0.0
    %1506 = vadd.xlane.f32.xlu0 %v1505
    %v1507 = vpop.xlane.xlu0 %1506
    %v1508 = vsel %vm1430, %v1498, 0.0
    %1509 = vadd.xlane.f32.xlu0 %v1508
    %v1510 = vpop.xlane.xlu0 %1509
    %v1511 = vadd.f32 %v1491, %v1501
    %v1512 = vadd.f32 %v1492, %v1504
    %v1513 = vadd.f32 %v1493, %v1507
    %v1514 = vadd.f32 %v1494, %v1510
    %v1515 = vmul.f32 %v1511, 0.03125
    %v1516 = vmul.f32 %v1512, 0.03125
    %v1517 = vmul.f32 %v1513, 0.03125
    %v1518 = vmul.f32 %v1514, 0.03125
    %v1519 = vadd.f32 %v1515, 1e-05
    %v1520 = vadd.f32 %v1516, 1e-05
    %v1521 = vadd.f32 %v1517, 1e-05
    %v1522 = vadd.f32 %v1518, 1e-05
    %v1523 = vrsqrt.pop %v1519
    %v1524 = vrsqrt.pop %v1520
    %v1525 = vrsqrt.pop %v1521
    %v1526 = vrsqrt.pop %v1522
    %v1527 = vmul.f32 %v1523, %v1422
    %v1528 = vmul.f32 %v1524, %v1423
    %v1529 = vmul.f32 %v1525, %v1424
    %v1530 = vmul.f32 %v1526, %v1425
    %1532 = vset.pattern.permute.xlu0 0
    %1533 = vperm.xlu0 %1532, %v1527
    %v1534 = vpop.permute.xlu0 %1533
    %1537 = vset.pattern.permute.xlu0 0
    %1538 = vperm.xlu0 %1537, %v1528
    %v1539 = vpop.permute.xlu0 %1538
    %1542 = vset.pattern.permute.xlu0 0
    %1543 = vperm.xlu0 %1542, %v1529
    %v1544 = vpop.permute.xlu0 %1543
    %1547 = vset.pattern.permute.xlu0 0
    %1548 = vperm.xlu0 %1547, %v1530
    %v1549 = vpop.permute.xlu0 %1548
    %v1551 = vmul.f32 %v1467, %v1534
    %v1552 = vmul.f32 %v1468, %v1539
    %v1553 = vmul.f32 %v1469, %v1544
    %v1554 = vmul.f32 %v1470, %v1549
    %1556 = vset.pattern.permute.xlu0 0
    %1557 = vperm.xlu0 %1556, %v1426
    %v1558 = vpop.permute.xlu0 %1557
    %1561 = vset.pattern.permute.xlu0 0
    %1562 = vperm.xlu0 %1561, %v1427
    %v1563 = vpop.permute.xlu0 %1562
    %1566 = vset.pattern.permute.xlu0 0
    %1567 = vperm.xlu0 %1566, %v1428
    %v1568 = vpop.permute.xlu0 %1567
    %1571 = vset.pattern.permute.xlu0 0
    %1572 = vperm.xlu0 %1571, %v1429
    %v1573 = vpop.permute.xlu0 %1572
    %v1575 = vadd.f32 %v1551, %v1558
    %v1576 = vadd.f32 %v1552, %v1563
    %v1577 = vadd.f32 %v1553, %v1568
    %v1578 = vadd.f32 %v1554, %v1573
    %v1579 = vmul.f32 %v1471, %v1534
    %v1580 = vmul.f32 %v1472, %v1539
    %v1581 = vmul.f32 %v1473, %v1544
    %v1582 = vmul.f32 %v1474, %v1549
    %v1583 = vadd.f32 %v1579, %v1558
    %v1584 = vadd.f32 %v1580, %v1563
    %v1585 = vadd.f32 %v1581, %v1568
    %v1586 = vadd.f32 %v1582, %v1573
    %v1587 = vld [vmem:[%s3 + $0xd0] sm:$0xff]
    %v1588 = vld [vmem:[%s3 + $0xd8] sm:$0xff]
    %v1589 = vld [vmem:[%s3 + $0xe0] sm:$0xff]
    %v1590 = vld [vmem:[%s3 + $0xe8] sm:$0xff]
    %v1591 = vld [vmem:[%s3 + $0xf0] sm:$0xff]
    %v1592 = vld [vmem:[%s3 + $0xf8] sm:$0xff]
    %v1593 = vld [vmem:[%s3 + $0x100] sm:$0xff]
    %v1594 = vld [vmem:[%s3 + $0x108] sm:$0xff]
    %v1595 = vld [vmem:[%s2 + $0xc0] sm:$0xf]
    %v1596 = vld [vmem:[%s2 + $0xc4] sm:$0xf]
    %v1597 = vld [vmem:[%s2 + $0xc8] sm:$0xf]
    %v1598 = vld [vmem:[%s2 + $0xcc] sm:$0xf]
    %v1599 = vld [vmem:[%s2 + $0xd0] sm:$0xf]
    %v1600 = vld [vmem:[%s2 + $0xd4] sm:$0xf]
    %v1601 = vld [vmem:[%s2 + $0xd8] sm:$0xf]
    %v1602 = vld [vmem:[%s2 + $0xdc] sm:$0xf]
    %v1603 = vld [vmem:[%s1 + $0x40] sm:$0xf]
    %v1604 = vld [vmem:[%s1 + $0x50] sm:$0xf]
    %v1605 = vld [vmem:[%s1 + $0x60] sm:$0xf]
    %v1606 = vld [vmem:[%s1 + $0x70] sm:$0xf]
    %v1607 = vld [vmem:[%s1 + $0x80] sm:$0xf]
    %v1608 = vld [vmem:[%s1 + $0x90] sm:$0xf]
    %v1609 = vld [vmem:[%s1 + $0xa0] sm:$0xf]
    %v1610 = vld [vmem:[%s1 + $0xb0] sm:$0xf]
    %v1611 = vpack.c.bf16 %v1576, %v1575
    %v1612 = vpack.c.bf16 %v1578, %v1577
    %v1615 = vunpack.c.l.b16 %v1595
    %v1616 = vunpack.c.l.b16 %v1596
    %v1617 = vpack.c.b16 %v1616, %v1615
    %v1620 = vsel %vm1430, %v1611, 0
    %v1623 = vsel %vm1430, %v1612, 0
    %1625 = vmatprep.subr.bf16.mxu0 0
    %1626 = vmatpush1.bf16.msra.mxu0 0
    %1627 = vmatprep.subr.bf16.mxu0 0
    %1628 = vmatpush1.bf16.msra.mxu0 0
    %1629 = vmatprep.subr.bf16.mxu0 0
    %1630 = vmatpush1.bf16.msra.mxu0 0
    %1631 = vmatprep.subr.bf16.mxu0 0
    %1632 = vmatpush1.bf16.msra.mxu0 0
    %1633 = vmatprep.subr.bf16.mxu0 0
    %1634 = vmatpush1.bf16.msra.mxu0 0
    %1635 = vmatprep.subr.bf16.mxu0 0
    %1636 = vmatpush1.bf16.msra.mxu0 0
    %1637 = vmatprep.subr.bf16.mxu0 0
    %1638 = vmatpush1.bf16.msra.mxu0 0
    %1639 = vmatprep.subr.bf16.mxu0 0
    %1640 = vmatpush1.bf16.msra.mxu0 %v1617
    %1641 = vmatprep.subr.bf16.mxu0 0
    %1642 = vmatpush2.bf16.msra.mxu0 0
    %1643 = vmatprep.subr.bf16.mxu0 0
    %1644 = vmatpush2.bf16.msra.mxu0 0
    %1645 = vmatprep.subr.bf16.mxu0 0
    %1646 = vmatpush2.bf16.msra.mxu0 0
    %1647 = vmatprep.subr.bf16.mxu0 0
    %1648 = vmatpush2.bf16.msra.mxu0 0
    %1649 = vmatprep.subr.bf16.mxu0 0
    %1650 = vmatpush2.bf16.msra.mxu0 0
    %1651 = vmatprep.subr.bf16.mxu0 0
    %1652 = vmatpush2.bf16.msra.mxu0 0
    %1653 = vmatprep.subr.bf16.mxu0 0
    %1654 = vmatpush2.bf16.msra.mxu0 0
    %1655 = vmatprep.subr.bf16.mxu0 0
    %1656 = vmatpush2.bf16.msra.mxu0 0
    %1657 = vmatprep.mubr.bf16.mxu0 0
    %1658 = vmatmul.mubr.bf16.gmra.mxu0 %v1620
    %v1659 = vpop.f32.mrf.mxu0
    %v1660 = vadd.f32 0.0, %v1659
    %v1661 = vpop.f32.mrf.mxu0
    %v1662 = vpop.f32.mrf.mxu0
    %v1663 = vadd.f32 0.0, %v1662
    %v1664 = vpop.f32.mrf.mxu0
    %1665 = vmatprep.mubr.bf16.mxu0 0
    %1666 = vmatmul.mubr.bf16.gmra.mxu0 %v1623
    %v1667 = vpop.f32.mrf.mxu0
    %v1668 = vadd.f32 0.0, %v1667
    %v1669 = vpop.f32.mrf.mxu0
    %v1670 = vpop.f32.mrf.mxu0
    %v1671 = vadd.f32 0.0, %v1670
    %v1672 = vpop.f32.mrf.mxu0
    %1673 = vdwg.mxu0
    %v1674 = vpack.c.bf16 %v1663, %v1660
    %v1675 = vpack.c.bf16 %v1671, %v1668
    %v1678 = vunpack.c.l.b16 %v1597
    %v1679 = vunpack.c.l.b16 %v1598
    %v1680 = vpack.c.b16 %v1679, %v1678
    %1682 = vmatprep.subr.bf16.mxu0 0
    %1683 = vmatpush1.bf16.msra.mxu0 0
    %1684 = vmatprep.subr.bf16.mxu0 0
    %1685 = vmatpush1.bf16.msra.mxu0 0
    %1686 = vmatprep.subr.bf16.mxu0 0
    %1687 = vmatpush1.bf16.msra.mxu0 0
    %1688 = vmatprep.subr.bf16.mxu0 0
    %1689 = vmatpush1.bf16.msra.mxu0 0
    %1690 = vmatprep.subr.bf16.mxu0 0
    %1691 = vmatpush1.bf16.msra.mxu0 0
    %1692 = vmatprep.subr.bf16.mxu0 0
    %1693 = vmatpush1.bf16.msra.mxu0 0
    %1694 = vmatprep.subr.bf16.mxu0 0
    %1695 = vmatpush1.bf16.msra.mxu0 0
    %1696 = vmatprep.subr.bf16.mxu0 0
    %1697 = vmatpush1.bf16.msra.mxu0 %v1680
    %1698 = vmatprep.subr.bf16.mxu0 0
    %1699 = vmatpush2.bf16.msra.mxu0 0
    %1700 = vmatprep.subr.bf16.mxu0 0
    %1701 = vmatpush2.bf16.msra.mxu0 0
    %1702 = vmatprep.subr.bf16.mxu0 0
    %1703 = vmatpush2.bf16.msra.mxu0 0
    %1704 = vmatprep.subr.bf16.mxu0 0
    %1705 = vmatpush2.bf16.msra.mxu0 0
    %1706 = vmatprep.subr.bf16.mxu0 0
    %1707 = vmatpush2.bf16.msra.mxu0 0
    %1708 = vmatprep.subr.bf16.mxu0 0
    %1709 = vmatpush2.bf16.msra.mxu0 0
    %1710 = vmatprep.subr.bf16.mxu0 0
    %1711 = vmatpush2.bf16.msra.mxu0 0
    %1712 = vmatprep.subr.bf16.mxu0 0
    %1713 = vmatpush2.bf16.msra.mxu0 0
    %1714 = vmatprep.mubr.bf16.mxu0 0
    %1715 = vmatmul.mubr.bf16.gmra.mxu0 %v1620
    %v1716 = vpop.f32.mrf.mxu0
    %v1717 = vadd.f32 0.0, %v1716
    %v1718 = vpop.f32.mrf.mxu0
    %v1719 = vpop.f32.mrf.mxu0
    %v1720 = vadd.f32 0.0, %v1719
    %v1721 = vpop.f32.mrf.mxu0
    %1722 = vmatprep.mubr.bf16.mxu0 0
    %1723 = vmatmul.mubr.bf16.gmra.mxu0 %v1623
    %v1724 = vpop.f32.mrf.mxu0
    %v1725 = vadd.f32 0.0, %v1724
    %v1726 = vpop.f32.mrf.mxu0
    %v1727 = vpop.f32.mrf.mxu0
    %v1728 = vadd.f32 0.0, %v1727
    %v1729 = vpop.f32.mrf.mxu0
    %1730 = vdwg.mxu0
    %v1731 = vpack.c.bf16 %v1720, %v1717
    %v1732 = vpack.c.bf16 %v1728, %v1725
    %v1735 = vunpack.c.l.b16 %v1599
    %v1736 = vunpack.c.l.b16 %v1600
    %v1737 = vpack.c.b16 %v1736, %v1735
    %1739 = vmatprep.subr.bf16.mxu0 0
    %1740 = vmatpush1.bf16.msra.mxu0 0
    %1741 = vmatprep.subr.bf16.mxu0 0
    %1742 = vmatpush1.bf16.msra.mxu0 0
    %1743 = vmatprep.subr.bf16.mxu0 0
    %1744 = vmatpush1.bf16.msra.mxu0 0
    %1745 = vmatprep.subr.bf16.mxu0 0
    %1746 = vmatpush1.bf16.msra.mxu0 0
    %1747 = vmatprep.subr.bf16.mxu0 0
    %1748 = vmatpush1.bf16.msra.mxu0 0
    %1749 = vmatprep.subr.bf16.mxu0 0
    %1750 = vmatpush1.bf16.msra.mxu0 0
    %1751 = vmatprep.subr.bf16.mxu0 0
    %1752 = vmatpush1.bf16.msra.mxu0 0
    %1753 = vmatprep.subr.bf16.mxu0 0
    %1754 = vmatpush1.bf16.msra.mxu0 %v1737
    %1755 = vmatprep.subr.bf16.mxu0 0
    %1756 = vmatpush2.bf16.msra.mxu0 0
    %1757 = vmatprep.subr.bf16.mxu0 0
    %1758 = vmatpush2.bf16.msra.mxu0 0
    %1759 = vmatprep.subr.bf16.mxu0 0
    %1760 = vmatpush2.bf16.msra.mxu0 0
    %1761 = vmatprep.subr.bf16.mxu0 0
    %1762 = vmatpush2.bf16.msra.mxu0 0
    %1763 = vmatprep.subr.bf16.mxu0 0
    %1764 = vmatpush2.bf16.msra.mxu0 0
    %1765 = vmatprep.subr.bf16.mxu0 0
    %1766 = vmatpush2.bf16.msra.mxu0 0
    %1767 = vmatprep.subr.bf16.mxu0 0
    %1768 = vmatpush2.bf16.msra.mxu0 0
    %1769 = vmatprep.subr.bf16.mxu0 0
    %1770 = vmatpush2.bf16.msra.mxu0 0
    %1771 = vmatprep.mubr.bf16.mxu0 0
    %1772 = vmatmul.mubr.bf16.gmra.mxu0 %v1620
    %v1773 = vpop.f32.mrf.mxu0
    %v1774 = vadd.f32 0.0, %v1773
    %v1775 = vpop.f32.mrf.mxu0
    %v1776 = vpop.f32.mrf.mxu0
    %v1777 = vadd.f32 0.0, %v1776
    %v1778 = vpop.f32.mrf.mxu0
    %1779 = vmatprep.mubr.bf16.mxu0 0
    %1780 = vmatmul.mubr.bf16.gmra.mxu0 %v1623
    %v1781 = vpop.f32.mrf.mxu0
    %v1782 = vadd.f32 0.0, %v1781
    %v1783 = vpop.f32.mrf.mxu0
    %v1784 = vpop.f32.mrf.mxu0
    %v1785 = vadd.f32 0.0, %v1784
    %v1786 = vpop.f32.mrf.mxu0
    %1787 = vdwg.mxu0
    %v1788 = vpack.c.bf16 %v1777, %v1774
    %v1789 = vpack.c.bf16 %v1785, %v1782
    %v1792 = vunpack.c.l.b16 %v1601
    %v1793 = vunpack.c.l.b16 %v1602
    %v1794 = vpack.c.b16 %v1793, %v1792
    %1796 = vmatprep.subr.bf16.mxu0 0
    %1797 = vmatpush1.bf16.msra.mxu0 0
    %1798 = vmatprep.subr.bf16.mxu0 0
    %1799 = vmatpush1.bf16.msra.mxu0 0
    %1800 = vmatprep.subr.bf16.mxu0 0
    %1801 = vmatpush1.bf16.msra.mxu0 0
    %1802 = vmatprep.subr.bf16.mxu0 0
    %1803 = vmatpush1.bf16.msra.mxu0 0
    %1804 = vmatprep.subr.bf16.mxu0 0
    %1805 = vmatpush1.bf16.msra.mxu0 0
    %1806 = vmatprep.subr.bf16.mxu0 0
    %1807 = vmatpush1.bf16.msra.mxu0 0
    %1808 = vmatprep.subr.bf16.mxu0 0
    %1809 = vmatpush1.bf16.msra.mxu0 0
    %1810 = vmatprep.subr.bf16.mxu0 0
    %1811 = vmatpush1.bf16.msra.mxu0 %v1794
    %1812 = vmatprep.subr.bf16.mxu0 0
    %1813 = vmatpush2.bf16.msra.mxu0 0
    %1814 = vmatprep.subr.bf16.mxu0 0
    %1815 = vmatpush2.bf16.msra.mxu0 0
    %1816 = vmatprep.subr.bf16.mxu0 0
    %1817 = vmatpush2.bf16.msra.mxu0 0
    %1818 = vmatprep.subr.bf16.mxu0 0
    %1819 = vmatpush2.bf16.msra.mxu0 0
    %1820 = vmatprep.subr.bf16.mxu0 0
    %1821 = vmatpush2.bf16.msra.mxu0 0
    %1822 = vmatprep.subr.bf16.mxu0 0
    %1823 = vmatpush2.bf16.msra.mxu0 0
    %1824 = vmatprep.subr.bf16.mxu0 0
    %1825 = vmatpush2.bf16.msra.mxu0 0
    %1826 = vmatprep.subr.bf16.mxu0 0
    %1827 = vmatpush2.bf16.msra.mxu0 0
    %1828 = vmatprep.mubr.bf16.mxu0 0
    %1829 = vmatmul.mubr.bf16.gmra.mxu0 %v1620
    %v1830 = vpop.f32.mrf.mxu0
    %v1831 = vadd.f32 0.0, %v1830
    %v1832 = vpop.f32.mrf.mxu0
    %v1833 = vpop.f32.mrf.mxu0
    %v1834 = vadd.f32 0.0, %v1833
    %v1835 = vpop.f32.mrf.mxu0
    %1836 = vmatprep.mubr.bf16.mxu0 0
    %1837 = vmatmul.mubr.bf16.gmra.mxu0 %v1623
    %v1838 = vpop.f32.mrf.mxu0
    %v1839 = vadd.f32 0.0, %v1838
    %v1840 = vpop.f32.mrf.mxu0
    %v1841 = vpop.f32.mrf.mxu0
    %v1842 = vadd.f32 0.0, %v1841
    %v1843 = vpop.f32.mrf.mxu0
    %1844 = vdwg.mxu0
    %v1845 = vpack.c.bf16 %v1834, %v1831
    %v1846 = vpack.c.bf16 %v1842, %v1839
    %1848 = vset.pattern.permute.xlu0 0
    %1849 = vperm.xlu0 %1848, %v1587
    %v1850 = vpop.permute.xlu0 %1849
    %1853 = vset.pattern.permute.xlu0 0
    %1854 = vperm.xlu0 %1853, %v1588
    %v1855 = vpop.permute.xlu0 %1854
    %1858 = vset.pattern.permute.xlu0 0
    %1859 = vperm.xlu0 %1858, %v1589
    %v1860 = vpop.permute.xlu0 %1859
    %1863 = vset.pattern.permute.xlu0 0
    %1864 = vperm.xlu0 %1863, %v1590
    %v1865 = vpop.permute.xlu0 %1864
    %1868 = vset.pattern.permute.xlu0 0
    %1869 = vperm.xlu0 %1868, %v1591
    %v1870 = vpop.permute.xlu0 %1869
    %1873 = vset.pattern.permute.xlu0 0
    %1874 = vperm.xlu0 %1873, %v1592
    %v1875 = vpop.permute.xlu0 %1874
    %1878 = vset.pattern.permute.xlu0 0
    %1879 = vperm.xlu0 %1878, %v1593
    %v1880 = vpop.permute.xlu0 %1879
    %1883 = vset.pattern.permute.xlu0 0
    %1884 = vperm.xlu0 %1883, %v1594
    %v1885 = vpop.permute.xlu0 %1884
    %v1895 = vunpack.c.l.b16 %v1603
    %v1896 = vunpack.c.l.b16 %v1604
    %v1897 = vunpack.c.l.b16 %v1605
    %v1898 = vunpack.c.l.b16 %v1606
    %v1899 = vunpack.c.l.b16 %v1607
    %v1900 = vunpack.c.l.b16 %v1608
    %v1901 = vunpack.c.l.b16 %v1609
    %v1902 = vunpack.c.l.b16 %v1610
    %v1903 = vpack.c.b16 %v1896, %v1895
    %v1904 = vpack.c.b16 %v1898, %v1897
    %v1905 = vpack.c.b16 %v1900, %v1899
    %v1906 = vpack.c.b16 %v1902, %v1901
    %1911 = vmatprep.subr.bf16.mxu0 0
    %1912 = vmatpush1.bf16.msra.mxu0 %v1846
    %1913 = vmatprep.subr.bf16.mxu0 0
    %1914 = vmatpush1.bf16.msra.mxu0 %v1845
    %1915 = vmatprep.subr.bf16.mxu0 0
    %1916 = vmatpush1.bf16.msra.mxu0 %v1789
    %1917 = vmatprep.subr.bf16.mxu0 0
    %1918 = vmatpush1.bf16.msra.mxu0 %v1788
    %1919 = vmatprep.subr.bf16.mxu0 0
    %1920 = vmatpush1.bf16.msra.mxu0 %v1732
    %1921 = vmatprep.subr.bf16.mxu0 0
    %1922 = vmatpush1.bf16.msra.mxu0 %v1731
    %1923 = vmatprep.subr.bf16.mxu0 0
    %1924 = vmatpush1.bf16.msra.mxu0 %v1675
    %1925 = vmatprep.subr.bf16.mxu0 0
    %1926 = vmatpush1.bf16.msra.mxu0 %v1674
    %1927 = vmatprep.subr.bf16.mxu0 0
    %1928 = vmatpush2.bf16.msra.mxu0 0
    %1929 = vmatprep.subr.bf16.mxu0 0
    %1930 = vmatpush2.bf16.msra.mxu0 0
    %1931 = vmatprep.subr.bf16.mxu0 0
    %1932 = vmatpush2.bf16.msra.mxu0 0
    %1933 = vmatprep.subr.bf16.mxu0 0
    %1934 = vmatpush2.bf16.msra.mxu0 0
    %1935 = vmatprep.subr.bf16.mxu0 0
    %1936 = vmatpush2.bf16.msra.mxu0 0
    %1937 = vmatprep.subr.bf16.mxu0 0
    %1938 = vmatpush2.bf16.msra.mxu0 0
    %1939 = vmatprep.subr.bf16.mxu0 0
    %1940 = vmatpush2.bf16.msra.mxu0 0
    %1941 = vmatprep.subr.bf16.mxu0 0
    %1942 = vmatpush2.bf16.msra.mxu0 0
    %1943 = vmatprep.mubr.bf16.mxu0 0
    %1944 = vmatmul.mubr.bf16.gmra.mxu0 %v1903
    %v1945 = vpop.f32.mrf.mxu0
    %v1946 = vadd.f32 %v1850, %v1945
    %v1947 = vpop.f32.mrf.mxu0
    %v1948 = vpop.f32.mrf.mxu0
    %v1949 = vadd.f32 %v1855, %v1948
    %v1950 = vpop.f32.mrf.mxu0
    %1951 = vmatprep.mubr.bf16.mxu0 0
    %1952 = vmatmul.mubr.bf16.gmra.mxu0 %v1904
    %v1953 = vpop.f32.mrf.mxu0
    %v1954 = vadd.f32 %v1860, %v1953
    %v1955 = vpop.f32.mrf.mxu0
    %v1956 = vpop.f32.mrf.mxu0
    %v1957 = vadd.f32 %v1865, %v1956
    %v1958 = vpop.f32.mrf.mxu0
    %1959 = vmatprep.mubr.bf16.mxu0 0
    %1960 = vmatmul.mubr.bf16.gmra.mxu0 %v1905
    %v1961 = vpop.f32.mrf.mxu0
    %v1962 = vadd.f32 %v1870, %v1961
    %v1963 = vpop.f32.mrf.mxu0
    %v1964 = vpop.f32.mrf.mxu0
    %v1965 = vadd.f32 %v1875, %v1964
    %v1966 = vpop.f32.mrf.mxu0
    %1967 = vmatprep.mubr.bf16.mxu0 0
    %1968 = vmatmul.mubr.bf16.gmra.mxu0 %v1906
    %v1969 = vpop.f32.mrf.mxu0
    %v1970 = vadd.f32 %v1880, %v1969
    %v1971 = vpop.f32.mrf.mxu0
    %v1972 = vpop.f32.mrf.mxu0
    %v1973 = vadd.f32 %v1885, %v1972
    %v1974 = vpop.f32.mrf.mxu0
    %1975 = vdwg.mxu0
    %v1976 = vmax.f32 %v1946, 0.0
    %v1977 = vmax.f32 %v1949, 0.0
    %v1978 = vmax.f32 %v1954, 0.0
    %v1979 = vmax.f32 %v1957, 0.0
    %v1980 = vmax.f32 %v1962, 0.0
    %v1981 = vmax.f32 %v1965, 0.0
    %v1982 = vmax.f32 %v1970, 0.0
    %v1983 = vmax.f32 %v1973, 0.0
    %v1984 = vpack.c.bf16 %v1584, %v1583
    %v1985 = vpack.c.bf16 %v1586, %v1585
    %v1987 = vsel %vm1430, %v1984, 0
    %v1990 = vsel %vm1430, %v1985, 0
    %1992 = vmatprep.subr.bf16.mxu0 0
    %1993 = vmatpush1.bf16.msra.mxu0 0
    %1994 = vmatprep.subr.bf16.mxu0 0
    %1995 = vmatpush1.bf16.msra.mxu0 0
    %1996 = vmatprep.subr.bf16.mxu0 0
    %1997 = vmatpush1.bf16.msra.mxu0 0
    %1998 = vmatprep.subr.bf16.mxu0 0
    %1999 = vmatpush1.bf16.msra.mxu0 0
    %2000 = vmatprep.subr.bf16.mxu0 0
    %2001 = vmatpush1.bf16.msra.mxu0 0
    %2002 = vmatprep.subr.bf16.mxu0 0
    %2003 = vmatpush1.bf16.msra.mxu0 0
    %2004 = vmatprep.subr.bf16.mxu0 0
    %2005 = vmatpush1.bf16.msra.mxu0 0
    %2006 = vmatprep.subr.bf16.mxu0 0
    %2007 = vmatpush1.bf16.msra.mxu0 %v1617
    %2008 = vmatprep.subr.bf16.mxu0 0
    %2009 = vmatpush2.bf16.msra.mxu0 0
    %2010 = vmatprep.subr.bf16.mxu0 0
    %2011 = vmatpush2.bf16.msra.mxu0 0
    %2012 = vmatprep.subr.bf16.mxu0 0
    %2013 = vmatpush2.bf16.msra.mxu0 0
    %2014 = vmatprep.subr.bf16.mxu0 0
    %2015 = vmatpush2.bf16.msra.mxu0 0
    %2016 = vmatprep.subr.bf16.mxu0 0
    %2017 = vmatpush2.bf16.msra.mxu0 0
    %2018 = vmatprep.subr.bf16.mxu0 0
    %2019 = vmatpush2.bf16.msra.mxu0 0
    %2020 = vmatprep.subr.bf16.mxu0 0
    %2021 = vmatpush2.bf16.msra.mxu0 0
    %2022 = vmatprep.subr.bf16.mxu0 0
    %2023 = vmatpush2.bf16.msra.mxu0 0
    %2024 = vmatprep.mubr.bf16.mxu0 0
    %2025 = vmatmul.mubr.bf16.gmra.mxu0 %v1987
    %v2026 = vpop.f32.mrf.mxu0
    %v2027 = vadd.f32 0.0, %v2026
    %v2028 = vpop.f32.mrf.mxu0
    %v2029 = vpop.f32.mrf.mxu0
    %v2030 = vadd.f32 0.0, %v2029
    %v2031 = vpop.f32.mrf.mxu0
    %2032 = vmatprep.mubr.bf16.mxu0 0
    %2033 = vmatmul.mubr.bf16.gmra.mxu0 %v1990
    %v2034 = vpop.f32.mrf.mxu0
    %v2035 = vadd.f32 0.0, %v2034
    %v2036 = vpop.f32.mrf.mxu0
    %v2037 = vpop.f32.mrf.mxu0
    %v2038 = vadd.f32 0.0, %v2037
    %v2039 = vpop.f32.mrf.mxu0
    %2040 = vdwg.mxu0
    %v2041 = vpack.c.bf16 %v2030, %v2027
    %v2042 = vpack.c.bf16 %v2038, %v2035
    %2043 = vmatprep.subr.bf16.mxu0 0
    %2044 = vmatpush1.bf16.msra.mxu0 0
    %2045 = vmatprep.subr.bf16.mxu0 0
    %2046 = vmatpush1.bf16.msra.mxu0 0
    %2047 = vmatprep.subr.bf16.mxu0 0
    %2048 = vmatpush1.bf16.msra.mxu0 0
    %2049 = vmatprep.subr.bf16.mxu0 0
    %2050 = vmatpush1.bf16.msra.mxu0 0
    %2051 = vmatprep.subr.bf16.mxu0 0
    %2052 = vmatpush1.bf16.msra.mxu0 0
    %2053 = vmatprep.subr.bf16.mxu0 0
    %2054 = vmatpush1.bf16.msra.mxu0 0
    %2055 = vmatprep.subr.bf16.mxu0 0
    %2056 = vmatpush1.bf16.msra.mxu0 0
    %2057 = vmatprep.subr.bf16.mxu0 0
    %2058 = vmatpush1.bf16.msra.mxu0 %v1680
    %2059 = vmatprep.subr.bf16.mxu0 0
    %2060 = vmatpush2.bf16.msra.mxu0 0
    %2061 = vmatprep.subr.bf16.mxu0 0
    %2062 = vmatpush2.bf16.msra.mxu0 0
    %2063 = vmatprep.subr.bf16.mxu0 0
    %2064 = vmatpush2.bf16.msra.mxu0 0
    %2065 = vmatprep.subr.bf16.mxu0 0
    %2066 = vmatpush2.bf16.msra.mxu0 0
    %2067 = vmatprep.subr.bf16.mxu0 0
    %2068 = vmatpush2.bf16.msra.mxu0 0
    %2069 = vmatprep.subr.bf16.mxu0 0
    %2070 = vmatpush2.bf16.msra.mxu0 0
    %2071 = vmatprep.subr.bf16.mxu0 0
    %2072 = vmatpush2.bf16.msra.mxu0 0
    %2073 = vmatprep.subr.bf16.mxu0 0
    %2074 = vmatpush2.bf16.msra.mxu0 0
    %2075 = vmatprep.mubr.bf16.mxu0 0
    %2076 = vmatmul.mubr.bf16.gmra.mxu0 %v1987
    %v2077 = vpop.f32.mrf.mxu0
    %v2078 = vadd.f32 0.0, %v2077
    %v2079 = vpop.f32.mrf.mxu0
    %v2080 = vpop.f32.mrf.mxu0
    %v2081 = vadd.f32 0.0, %v2080
    %v2082 = vpop.f32.mrf.mxu0
    %2083 = vmatprep.mubr.bf16.mxu0 0
    %2084 = vmatmul.mubr.bf16.gmra.mxu0 %v1990
    %v2085 = vpop.f32.mrf.mxu0
    %v2086 = vadd.f32 0.0, %v2085
    %v2087 = vpop.f32.mrf.mxu0
    %v2088 = vpop.f32.mrf.mxu0
    %v2089 = vadd.f32 0.0, %v2088
    %v2090 = vpop.f32.mrf.mxu0
    %2091 = vdwg.mxu0
    %v2092 = vpack.c.bf16 %v2081, %v2078
    %v2093 = vpack.c.bf16 %v2089, %v2086
    %2094 = vmatprep.subr.bf16.mxu0 0
    %2095 = vmatpush1.bf16.msra.mxu0 0
    %2096 = vmatprep.subr.bf16.mxu0 0
    %2097 = vmatpush1.bf16.msra.mxu0 0
    %2098 = vmatprep.subr.bf16.mxu0 0
    %2099 = vmatpush1.bf16.msra.mxu0 0
    %2100 = vmatprep.subr.bf16.mxu0 0
    %2101 = vmatpush1.bf16.msra.mxu0 0
    %2102 = vmatprep.subr.bf16.mxu0 0
    %2103 = vmatpush1.bf16.msra.mxu0 0
    %2104 = vmatprep.subr.bf16.mxu0 0
    %2105 = vmatpush1.bf16.msra.mxu0 0
    %2106 = vmatprep.subr.bf16.mxu0 0
    %2107 = vmatpush1.bf16.msra.mxu0 0
    %2108 = vmatprep.subr.bf16.mxu0 0
    %2109 = vmatpush1.bf16.msra.mxu0 %v1737
    %2110 = vmatprep.subr.bf16.mxu0 0
    %2111 = vmatpush2.bf16.msra.mxu0 0
    %2112 = vmatprep.subr.bf16.mxu0 0
    %2113 = vmatpush2.bf16.msra.mxu0 0
    %2114 = vmatprep.subr.bf16.mxu0 0
    %2115 = vmatpush2.bf16.msra.mxu0 0
    %2116 = vmatprep.subr.bf16.mxu0 0
    %2117 = vmatpush2.bf16.msra.mxu0 0
    %2118 = vmatprep.subr.bf16.mxu0 0
    %2119 = vmatpush2.bf16.msra.mxu0 0
    %2120 = vmatprep.subr.bf16.mxu0 0
    %2121 = vmatpush2.bf16.msra.mxu0 0
    %2122 = vmatprep.subr.bf16.mxu0 0
    %2123 = vmatpush2.bf16.msra.mxu0 0
    %2124 = vmatprep.subr.bf16.mxu0 0
    %2125 = vmatpush2.bf16.msra.mxu0 0
    %2126 = vmatprep.mubr.bf16.mxu0 0
    %2127 = vmatmul.mubr.bf16.gmra.mxu0 %v1987
    %v2128 = vpop.f32.mrf.mxu0
    %v2129 = vadd.f32 0.0, %v2128
    %v2130 = vpop.f32.mrf.mxu0
    %v2131 = vpop.f32.mrf.mxu0
    %v2132 = vadd.f32 0.0, %v2131
    %v2133 = vpop.f32.mrf.mxu0
    %2134 = vmatprep.mubr.bf16.mxu0 0
    %2135 = vmatmul.mubr.bf16.gmra.mxu0 %v1990
    %v2136 = vpop.f32.mrf.mxu0
    %v2137 = vadd.f32 0.0, %v2136
    %v2138 = vpop.f32.mrf.mxu0
    %v2139 = vpop.f32.mrf.mxu0
    %v2140 = vadd.f32 0.0, %v2139
    %v2141 = vpop.f32.mrf.mxu0
    %2142 = vdwg.mxu0
    %v2143 = vpack.c.bf16 %v2132, %v2129
    %v2144 = vpack.c.bf16 %v2140, %v2137
    %2145 = vmatprep.subr.bf16.mxu0 0
    %2146 = vmatpush1.bf16.msra.mxu0 0
    %2147 = vmatprep.subr.bf16.mxu0 0
    %2148 = vmatpush1.bf16.msra.mxu0 0
    %2149 = vmatprep.subr.bf16.mxu0 0
    %2150 = vmatpush1.bf16.msra.mxu0 0
    %2151 = vmatprep.subr.bf16.mxu0 0
    %2152 = vmatpush1.bf16.msra.mxu0 0
    %2153 = vmatprep.subr.bf16.mxu0 0
    %2154 = vmatpush1.bf16.msra.mxu0 0
    %2155 = vmatprep.subr.bf16.mxu0 0
    %2156 = vmatpush1.bf16.msra.mxu0 0
    %2157 = vmatprep.subr.bf16.mxu0 0
    %2158 = vmatpush1.bf16.msra.mxu0 0
    %2159 = vmatprep.subr.bf16.mxu0 0
    %2160 = vmatpush1.bf16.msra.mxu0 %v1794
    %2161 = vmatprep.subr.bf16.mxu0 0
    %2162 = vmatpush2.bf16.msra.mxu0 0
    %2163 = vmatprep.subr.bf16.mxu0 0
    %2164 = vmatpush2.bf16.msra.mxu0 0
    %2165 = vmatprep.subr.bf16.mxu0 0
    %2166 = vmatpush2.bf16.msra.mxu0 0
    %2167 = vmatprep.subr.bf16.mxu0 0
    %2168 = vmatpush2.bf16.msra.mxu0 0
    %2169 = vmatprep.subr.bf16.mxu0 0
    %2170 = vmatpush2.bf16.msra.mxu0 0
    %2171 = vmatprep.subr.bf16.mxu0 0
    %2172 = vmatpush2.bf16.msra.mxu0 0
    %2173 = vmatprep.subr.bf16.mxu0 0
    %2174 = vmatpush2.bf16.msra.mxu0 0
    %2175 = vmatprep.subr.bf16.mxu0 0
    %2176 = vmatpush2.bf16.msra.mxu0 0
    %2177 = vmatprep.mubr.bf16.mxu0 0
    %2178 = vmatmul.mubr.bf16.gmra.mxu0 %v1987
    %v2179 = vpop.f32.mrf.mxu0
    %v2180 = vadd.f32 0.0, %v2179
    %v2181 = vpop.f32.mrf.mxu0
    %v2182 = vpop.f32.mrf.mxu0
    %v2183 = vadd.f32 0.0, %v2182
    %v2184 = vpop.f32.mrf.mxu0
    %2185 = vmatprep.mubr.bf16.mxu0 0
    %2186 = vmatmul.mubr.bf16.gmra.mxu0 %v1990
    %v2187 = vpop.f32.mrf.mxu0
    %v2188 = vadd.f32 0.0, %v2187
    %v2189 = vpop.f32.mrf.mxu0
    %v2190 = vpop.f32.mrf.mxu0
    %v2191 = vadd.f32 0.0, %v2190
    %v2192 = vpop.f32.mrf.mxu0
    %2193 = vdwg.mxu0
    %v2194 = vpack.c.bf16 %v2183, %v2180
    %v2195 = vpack.c.bf16 %v2191, %v2188
    %2196 = vmatprep.subr.bf16.mxu0 0
    %2197 = vmatpush1.bf16.msra.mxu0 %v2195
    %2198 = vmatprep.subr.bf16.mxu0 0
    %2199 = vmatpush1.bf16.msra.mxu0 %v2194
    %2200 = vmatprep.subr.bf16.mxu0 0
    %2201 = vmatpush1.bf16.msra.mxu0 %v2144
    %2202 = vmatprep.subr.bf16.mxu0 0
    %2203 = vmatpush1.bf16.msra.mxu0 %v2143
    %2204 = vmatprep.subr.bf16.mxu0 0
    %2205 = vmatpush1.bf16.msra.mxu0 %v2093
    %2206 = vmatprep.subr.bf16.mxu0 0
    %2207 = vmatpush1.bf16.msra.mxu0 %v2092
    %2208 = vmatprep.subr.bf16.mxu0 0
    %2209 = vmatpush1.bf16.msra.mxu0 %v2042
    %2210 = vmatprep.subr.bf16.mxu0 0
    %2211 = vmatpush1.bf16.msra.mxu0 %v2041
    %2212 = vmatprep.subr.bf16.mxu0 0
    %2213 = vmatpush2.bf16.msra.mxu0 0
    %2214 = vmatprep.subr.bf16.mxu0 0
    %2215 = vmatpush2.bf16.msra.mxu0 0
    %2216 = vmatprep.subr.bf16.mxu0 0
    %2217 = vmatpush2.bf16.msra.mxu0 0
    %2218 = vmatprep.subr.bf16.mxu0 0
    %2219 = vmatpush2.bf16.msra.mxu0 0
    %2220 = vmatprep.subr.bf16.mxu0 0
    %2221 = vmatpush2.bf16.msra.mxu0 0
    %2222 = vmatprep.subr.bf16.mxu0 0
    %2223 = vmatpush2.bf16.msra.mxu0 0
    %2224 = vmatprep.subr.bf16.mxu0 0
    %2225 = vmatpush2.bf16.msra.mxu0 0
    %2226 = vmatprep.subr.bf16.mxu0 0
    %2227 = vmatpush2.bf16.msra.mxu0 0
    %2228 = vmatprep.mubr.bf16.mxu0 0
    %2229 = vmatmul.mubr.bf16.gmra.mxu0 %v1903
    %v2230 = vpop.f32.mrf.mxu0
    %v2231 = vadd.f32 %v1850, %v2230
    %v2232 = vpop.f32.mrf.mxu0
    %v2233 = vpop.f32.mrf.mxu0
    %v2234 = vadd.f32 %v1855, %v2233
    %v2235 = vpop.f32.mrf.mxu0
    %2236 = vmatprep.mubr.bf16.mxu0 0
    %2237 = vmatmul.mubr.bf16.gmra.mxu0 %v1904
    %v2238 = vpop.f32.mrf.mxu0
    %v2239 = vadd.f32 %v1860, %v2238
    %v2240 = vpop.f32.mrf.mxu0
    %v2241 = vpop.f32.mrf.mxu0
    %v2242 = vadd.f32 %v1865, %v2241
    %v2243 = vpop.f32.mrf.mxu0
    %2244 = vmatprep.mubr.bf16.mxu0 0
    %2245 = vmatmul.mubr.bf16.gmra.mxu0 %v1905
    %v2246 = vpop.f32.mrf.mxu0
    %v2247 = vadd.f32 %v1870, %v2246
    %v2248 = vpop.f32.mrf.mxu0
    %v2249 = vpop.f32.mrf.mxu0
    %v2250 = vadd.f32 %v1875, %v2249
    %v2251 = vpop.f32.mrf.mxu0
    %2252 = vmatprep.mubr.bf16.mxu0 0
    %2253 = vmatmul.mubr.bf16.gmra.mxu0 %v1906
    %v2254 = vpop.f32.mrf.mxu0
    %v2255 = vadd.f32 %v1880, %v2254
    %v2256 = vpop.f32.mrf.mxu0
    %v2257 = vpop.f32.mrf.mxu0
    %v2258 = vadd.f32 %v1885, %v2257
    %v2259 = vpop.f32.mrf.mxu0
    %2260 = vdwg.mxu0
    %v2261 = vmax.f32 %v2231, 0.0
    %v2262 = vmax.f32 %v2234, 0.0
    %v2263 = vmax.f32 %v2239, 0.0
    %v2264 = vmax.f32 %v2242, 0.0
    %v2265 = vmax.f32 %v2247, 0.0
    %v2266 = vmax.f32 %v2250, 0.0
    %v2267 = vmax.f32 %v2255, 0.0
    %v2268 = vmax.f32 %v2258, 0.0
    %v2269 = vld [vmem:[%s3 + $0x110] sm:$0xff]
    %v2270 = vld [vmem:[%s3 + $0x118] sm:$0xff]
    %v2271 = vld [vmem:[%s3 + $0x120] sm:$0xff]
    %v2272 = vld [vmem:[%s3 + $0x128] sm:$0xff]
    %v2273 = vld [vmem:[%s3 + $0x130] sm:$0xff]
    %v2274 = vld [vmem:[%s3 + $0x138] sm:$0xff]
    %v2275 = vld [vmem:[%s3 + $0x140] sm:$0xff]
    %v2276 = vld [vmem:[%s3 + $0x148] sm:$0xff]
    %v2277 = vld [vmem:[%s3 + $0x150] sm:$0xff]
    %v2278 = vld [vmem:[%s3 + $0x158] sm:$0xff]
    %v2279 = vld [vmem:[%s3 + $0x160] sm:$0xff]
    %v2280 = vld [vmem:[%s3 + $0x168] sm:$0xff]
    %v2281 = vld [vmem:[%s3 + $0x170] sm:$0xff]
    %v2282 = vld [vmem:[%s3 + $0x178] sm:$0xff]
    %v2283 = vld [vmem:[%s3 + $0x180] sm:$0xff]
    %v2284 = vld [vmem:[%s3 + $0x188] sm:$0xff]
    %vm2285 = vcmask 64512
    %v2286 = vsel %vm2285, %v1976, 0.0
    %2287 = vadd.xlane.f32.xlu0 %v2286
    %v2288 = vpop.xlane.xlu0 %2287
    %v2289 = vsel %vm2285, %v1977, 0.0
    %2290 = vadd.xlane.f32.xlu0 %v2289
    %v2291 = vpop.xlane.xlu0 %2290
    %v2292 = vsel %vm2285, %v1978, 0.0
    %2293 = vadd.xlane.f32.xlu0 %v2292
    %v2294 = vpop.xlane.xlu0 %2293
    %v2295 = vsel %vm2285, %v1979, 0.0
    %2296 = vadd.xlane.f32.xlu0 %v2295
    %v2297 = vpop.xlane.xlu0 %2296
    %v2298 = vsel %vm2285, %v1980, 0.0
    %2299 = vadd.xlane.f32.xlu0 %v2298
    %v2300 = vpop.xlane.xlu0 %2299
    %v2301 = vsel %vm2285, %v1981, 0.0
    %2302 = vadd.xlane.f32.xlu0 %v2301
    %v2303 = vpop.xlane.xlu0 %2302
    %v2304 = vsel %vm2285, %v1982, 0.0
    %2305 = vadd.xlane.f32.xlu0 %v2304
    %v2306 = vpop.xlane.xlu0 %2305
    %v2307 = vsel %vm2285, %v1983, 0.0
    %2308 = vadd.xlane.f32.xlu0 %v2307
    %v2309 = vpop.xlane.xlu0 %2308
    %v2310 = vadd.f32 %v2288, 0.0
    %v2311 = vadd.f32 %v2291, 0.0
    %v2312 = vadd.f32 %v2294, 0.0
    %v2313 = vadd.f32 %v2297, 0.0
    %v2314 = vadd.f32 %v2300, 0.0
    %v2315 = vadd.f32 %v2303, 0.0
    %v2316 = vadd.f32 %v2306, 0.0
    %v2317 = vadd.f32 %v2309, 0.0
    %v2318 = vsel %vm2285, %v2261, 0.0
    %2319 = vadd.xlane.f32.xlu0 %v2318
    %v2320 = vpop.xlane.xlu0 %2319
    %v2321 = vsel %vm2285, %v2262, 0.0
    %2322 = vadd.xlane.f32.xlu0 %v2321
    %v2323 = vpop.xlane.xlu0 %2322
    %v2324 = vsel %vm2285, %v2263, 0.0
    %2325 = vadd.xlane.f32.xlu0 %v2324
    %v2326 = vpop.xlane.xlu0 %2325
    %v2327 = vsel %vm2285, %v2264, 0.0
    %2328 = vadd.xlane.f32.xlu0 %v2327
    %v2329 = vpop.xlane.xlu0 %2328
    %v2330 = vsel %vm2285, %v2265, 0.0
    %2331 = vadd.xlane.f32.xlu0 %v2330
    %v2332 = vpop.xlane.xlu0 %2331
    %v2333 = vsel %vm2285, %v2266, 0.0
    %2334 = vadd.xlane.f32.xlu0 %v2333
    %v2335 = vpop.xlane.xlu0 %2334
    %v2336 = vsel %vm2285, %v2267, 0.0
    %2337 = vadd.xlane.f32.xlu0 %v2336
    %v2338 = vpop.xlane.xlu0 %2337
    %v2339 = vsel %vm2285, %v2268, 0.0
    %2340 = vadd.xlane.f32.xlu0 %v2339
    %v2341 = vpop.xlane.xlu0 %2340
    %v2342 = vadd.f32 %v2310, %v2320
    %v2343 = vadd.f32 %v2311, %v2323
    %v2344 = vadd.f32 %v2312, %v2326
    %v2345 = vadd.f32 %v2313, %v2329
    %v2346 = vadd.f32 %v2314, %v2332
    %v2347 = vadd.f32 %v2315, %v2335
    %v2348 = vadd.f32 %v2316, %v2338
    %v2349 = vadd.f32 %v2317, %v2341
    %v2350 = vmul.f32 %v2342, 0.0625
    %v2351 = vmul.f32 %v2343, 0.0625
    %v2352 = vmul.f32 %v2344, 0.0625
    %v2353 = vmul.f32 %v2345, 0.0625
    %v2354 = vmul.f32 %v2346, 0.0625
    %v2355 = vmul.f32 %v2347, 0.0625
    %v2356 = vmul.f32 %v2348, 0.0625
    %v2357 = vmul.f32 %v2349, 0.0625
    %v2358 = vsub.f32 %v1976, %v2350
    %v2359 = vsub.f32 %v1977, %v2351
    %v2360 = vsub.f32 %v1978, %v2352
    %v2361 = vsub.f32 %v1979, %v2353
    %v2362 = vsub.f32 %v1980, %v2354
    %v2363 = vsub.f32 %v1981, %v2355
    %v2364 = vsub.f32 %v1982, %v2356
    %v2365 = vsub.f32 %v1983, %v2357
    %v2366 = vsub.f32 %v2261, %v2350
    %v2367 = vsub.f32 %v2262, %v2351
    %v2368 = vsub.f32 %v2263, %v2352
    %v2369 = vsub.f32 %v2264, %v2353
    %v2370 = vsub.f32 %v2265, %v2354
    %v2371 = vsub.f32 %v2266, %v2355
    %v2372 = vsub.f32 %v2267, %v2356
    %v2373 = vsub.f32 %v2268, %v2357
    %v2374 = vmul.f32 %v2358, %v2358
    %v2375 = vmul.f32 %v2359, %v2359
    %v2376 = vmul.f32 %v2360, %v2360
    %v2377 = vmul.f32 %v2361, %v2361
    %v2378 = vmul.f32 %v2362, %v2362
    %v2379 = vmul.f32 %v2363, %v2363
    %v2380 = vmul.f32 %v2364, %v2364
    %v2381 = vmul.f32 %v2365, %v2365
    %v2382 = vsel %vm2285, %v2374, 0.0
    %2383 = vadd.xlane.f32.xlu0 %v2382
    %v2384 = vpop.xlane.xlu0 %2383
    %v2385 = vsel %vm2285, %v2375, 0.0
    %2386 = vadd.xlane.f32.xlu0 %v2385
    %v2387 = vpop.xlane.xlu0 %2386
    %v2388 = vsel %vm2285, %v2376, 0.0
    %2389 = vadd.xlane.f32.xlu0 %v2388
    %v2390 = vpop.xlane.xlu0 %2389
    %v2391 = vsel %vm2285, %v2377, 0.0
    %2392 = vadd.xlane.f32.xlu0 %v2391
    %v2393 = vpop.xlane.xlu0 %2392
    %v2394 = vsel %vm2285, %v2378, 0.0
    %2395 = vadd.xlane.f32.xlu0 %v2394
    %v2396 = vpop.xlane.xlu0 %2395
    %v2397 = vsel %vm2285, %v2379, 0.0
    %2398 = vadd.xlane.f32.xlu0 %v2397
    %v2399 = vpop.xlane.xlu0 %2398
    %v2400 = vsel %vm2285, %v2380, 0.0
    %2401 = vadd.xlane.f32.xlu0 %v2400
    %v2402 = vpop.xlane.xlu0 %2401
    %v2403 = vsel %vm2285, %v2381, 0.0
    %2404 = vadd.xlane.f32.xlu0 %v2403
    %v2405 = vpop.xlane.xlu0 %2404
    %v2406 = vadd.f32 %v2384, 0.0
    %v2407 = vadd.f32 %v2387, 0.0
    %v2408 = vadd.f32 %v2390, 0.0
    %v2409 = vadd.f32 %v2393, 0.0
    %v2410 = vadd.f32 %v2396, 0.0
    %v2411 = vadd.f32 %v2399, 0.0
    %v2412 = vadd.f32 %v2402, 0.0
    %v2413 = vadd.f32 %v2405, 0.0
    %v2414 = vmul.f32 %v2366, %v2366
    %v2415 = vmul.f32 %v2367, %v2367
    %v2416 = vmul.f32 %v2368, %v2368
    %v2417 = vmul.f32 %v2369, %v2369
    %v2418 = vmul.f32 %v2370, %v2370
    %v2419 = vmul.f32 %v2371, %v2371
    %v2420 = vmul.f32 %v2372, %v2372
    %v2421 = vmul.f32 %v2373, %v2373
    %v2422 = vsel %vm2285, %v2414, 0.0
    %2423 = vadd.xlane.f32.xlu0 %v2422
    %v2424 = vpop.xlane.xlu0 %2423
    %v2425 = vsel %vm2285, %v2415, 0.0
    %2426 = vadd.xlane.f32.xlu0 %v2425
    %v2427 = vpop.xlane.xlu0 %2426
    %v2428 = vsel %vm2285, %v2416, 0.0
    %2429 = vadd.xlane.f32.xlu0 %v2428
    %v2430 = vpop.xlane.xlu0 %2429
    %v2431 = vsel %vm2285, %v2417, 0.0
    %2432 = vadd.xlane.f32.xlu0 %v2431
    %v2433 = vpop.xlane.xlu0 %2432
    %v2434 = vsel %vm2285, %v2418, 0.0
    %2435 = vadd.xlane.f32.xlu0 %v2434
    %v2436 = vpop.xlane.xlu0 %2435
    %v2437 = vsel %vm2285, %v2419, 0.0
    %2438 = vadd.xlane.f32.xlu0 %v2437
    %v2439 = vpop.xlane.xlu0 %2438
    %v2440 = vsel %vm2285, %v2420, 0.0
    %2441 = vadd.xlane.f32.xlu0 %v2440
    %v2442 = vpop.xlane.xlu0 %2441
    %v2443 = vsel %vm2285, %v2421, 0.0
    %2444 = vadd.xlane.f32.xlu0 %v2443
    %v2445 = vpop.xlane.xlu0 %2444
    %v2446 = vadd.f32 %v2406, %v2424
    %v2447 = vadd.f32 %v2407, %v2427
    %v2448 = vadd.f32 %v2408, %v2430
    %v2449 = vadd.f32 %v2409, %v2433
    %v2450 = vadd.f32 %v2410, %v2436
    %v2451 = vadd.f32 %v2411, %v2439
    %v2452 = vadd.f32 %v2412, %v2442
    %v2453 = vadd.f32 %v2413, %v2445
    %v2454 = vmul.f32 %v2446, 0.0625
    %v2455 = vmul.f32 %v2447, 0.0625
    %v2456 = vmul.f32 %v2448, 0.0625
    %v2457 = vmul.f32 %v2449, 0.0625
    %v2458 = vmul.f32 %v2450, 0.0625
    %v2459 = vmul.f32 %v2451, 0.0625
    %v2460 = vmul.f32 %v2452, 0.0625
    %v2461 = vmul.f32 %v2453, 0.0625
    %v2462 = vadd.f32 %v2454, 1e-05
    %v2463 = vadd.f32 %v2455, 1e-05
    %v2464 = vadd.f32 %v2456, 1e-05
    %v2465 = vadd.f32 %v2457, 1e-05
    %v2466 = vadd.f32 %v2458, 1e-05
    %v2467 = vadd.f32 %v2459, 1e-05
    %v2468 = vadd.f32 %v2460, 1e-05
    %v2469 = vadd.f32 %v2461, 1e-05
    %v2470 = vrsqrt.pop %v2462
    %v2471 = vrsqrt.pop %v2463
    %v2472 = vrsqrt.pop %v2464
    %v2473 = vrsqrt.pop %v2465
    %v2474 = vrsqrt.pop %v2466
    %v2475 = vrsqrt.pop %v2467
    %v2476 = vrsqrt.pop %v2468
    %v2477 = vrsqrt.pop %v2469
    %v2478 = vmul.f32 %v2470, %v2269
    %v2479 = vmul.f32 %v2471, %v2270
    %v2480 = vmul.f32 %v2472, %v2271
    %v2481 = vmul.f32 %v2473, %v2272
    %v2482 = vmul.f32 %v2474, %v2273
    %v2483 = vmul.f32 %v2475, %v2274
    %v2484 = vmul.f32 %v2476, %v2275
    %v2485 = vmul.f32 %v2477, %v2276
    %2487 = vset.pattern.permute.xlu0 0
    %2488 = vperm.xlu0 %2487, %v2478
    %v2489 = vpop.permute.xlu0 %2488
    %2492 = vset.pattern.permute.xlu0 0
    %2493 = vperm.xlu0 %2492, %v2479
    %v2494 = vpop.permute.xlu0 %2493
    %2497 = vset.pattern.permute.xlu0 0
    %2498 = vperm.xlu0 %2497, %v2480
    %v2499 = vpop.permute.xlu0 %2498
    %2502 = vset.pattern.permute.xlu0 0
    %2503 = vperm.xlu0 %2502, %v2481
    %v2504 = vpop.permute.xlu0 %2503
    %2507 = vset.pattern.permute.xlu0 0
    %2508 = vperm.xlu0 %2507, %v2482
    %v2509 = vpop.permute.xlu0 %2508
    %2512 = vset.pattern.permute.xlu0 0
    %2513 = vperm.xlu0 %2512, %v2483
    %v2514 = vpop.permute.xlu0 %2513
    %2517 = vset.pattern.permute.xlu0 0
    %2518 = vperm.xlu0 %2517, %v2484
    %v2519 = vpop.permute.xlu0 %2518
    %2522 = vset.pattern.permute.xlu0 0
    %2523 = vperm.xlu0 %2522, %v2485
    %v2524 = vpop.permute.xlu0 %2523
    %v2526 = vmul.f32 %v2358, %v2489
    %v2527 = vmul.f32 %v2359, %v2494
    %v2528 = vmul.f32 %v2360, %v2499
    %v2529 = vmul.f32 %v2361, %v2504
    %v2530 = vmul.f32 %v2362, %v2509
    %v2531 = vmul.f32 %v2363, %v2514
    %v2532 = vmul.f32 %v2364, %v2519
    %v2533 = vmul.f32 %v2365, %v2524
    %2535 = vset.pattern.permute.xlu0 0
    %2536 = vperm.xlu0 %2535, %v2277
    %v2537 = vpop.permute.xlu0 %2536
    %2540 = vset.pattern.permute.xlu0 0
    %2541 = vperm.xlu0 %2540, %v2278
    %v2542 = vpop.permute.xlu0 %2541
    %2545 = vset.pattern.permute.xlu0 0
    %2546 = vperm.xlu0 %2545, %v2279
    %v2547 = vpop.permute.xlu0 %2546
    %2550 = vset.pattern.permute.xlu0 0
    %2551 = vperm.xlu0 %2550, %v2280
    %v2552 = vpop.permute.xlu0 %2551
    %2555 = vset.pattern.permute.xlu0 0
    %2556 = vperm.xlu0 %2555, %v2281
    %v2557 = vpop.permute.xlu0 %2556
    %2560 = vset.pattern.permute.xlu0 0
    %2561 = vperm.xlu0 %2560, %v2282
    %v2562 = vpop.permute.xlu0 %2561
    %2565 = vset.pattern.permute.xlu0 0
    %2566 = vperm.xlu0 %2565, %v2283
    %v2567 = vpop.permute.xlu0 %2566
    %2570 = vset.pattern.permute.xlu0 0
    %2571 = vperm.xlu0 %2570, %v2284
    %v2572 = vpop.permute.xlu0 %2571
    %v2574 = vadd.f32 %v2526, %v2537
    %v2575 = vadd.f32 %v2527, %v2542
    %v2576 = vadd.f32 %v2528, %v2547
    %v2577 = vadd.f32 %v2529, %v2552
    %v2578 = vadd.f32 %v2530, %v2557
    %v2579 = vadd.f32 %v2531, %v2562
    %v2580 = vadd.f32 %v2532, %v2567
    %v2581 = vadd.f32 %v2533, %v2572
    %v2582 = vmul.f32 %v2366, %v2489
    %v2583 = vmul.f32 %v2367, %v2494
    %v2584 = vmul.f32 %v2368, %v2499
    %v2585 = vmul.f32 %v2369, %v2504
    %v2586 = vmul.f32 %v2370, %v2509
    %v2587 = vmul.f32 %v2371, %v2514
    %v2588 = vmul.f32 %v2372, %v2519
    %v2589 = vmul.f32 %v2373, %v2524
    %v2590 = vadd.f32 %v2582, %v2537
    %v2591 = vadd.f32 %v2583, %v2542
    %v2592 = vadd.f32 %v2584, %v2547
    %v2593 = vadd.f32 %v2585, %v2552
    %v2594 = vadd.f32 %v2586, %v2557
    %v2595 = vadd.f32 %v2587, %v2562
    %v2596 = vadd.f32 %v2588, %v2567
    %v2597 = vadd.f32 %v2589, %v2572
    %v2598 = vld [vmem:[%s3 + $0x190] sm:$0xff]
    %v2599 = vld [vmem:[%s3 + $0x198] sm:$0xff]
    %v2600 = vld [vmem:[%s3 + $0x1a0] sm:$0xff]
    %v2601 = vld [vmem:[%s3 + $0x1a8] sm:$0xff]
    %v2602 = vld [vmem:[%s3 + $0x1b0] sm:$0xff]
    %v2603 = vld [vmem:[%s3 + $0x1b8] sm:$0xff]
    %v2604 = vld [vmem:[%s3 + $0x1c0] sm:$0xff]
    %v2605 = vld [vmem:[%s3 + $0x1c8] sm:$0xff]
    %v2606 = vld [vmem:[%s3 + $0x1d0] sm:$0xff]
    %v2607 = vld [vmem:[%s3 + $0x1d8] sm:$0xff]
    %v2608 = vld [vmem:[%s3 + $0x1e0] sm:$0xff]
    %v2609 = vld [vmem:[%s3 + $0x1e8] sm:$0xff]
    %v2610 = vld [vmem:[%s3 + $0x1f0] sm:$0xff]
    %v2611 = vld [vmem:[%s3 + $0x1f8] sm:$0xff]
    %v2612 = vld [vmem:[%s3 + $0x200] sm:$0xff]
    %v2613 = vld [vmem:[%s3 + $0x208] sm:$0xff]
    %v2614 = vld [vmem:[%s2 + $0xe0] sm:$0xf]
    %v2615 = vld [vmem:[%s2 + $0xe8] sm:$0xf]
    %v2616 = vld [vmem:[%s2 + $0xf0] sm:$0xf]
    %v2617 = vld [vmem:[%s2 + $0xf8] sm:$0xf]
    %v2618 = vld [vmem:[%s1 + $0xc0] sm:$0xff]
    %v2619 = vld [vmem:[%s1 + $0xd0] sm:$0xff]
    %v2620 = vld [vmem:[%s1 + $0xe0] sm:$0xff]
    %v2621 = vld [vmem:[%s1 + $0xf0] sm:$0xff]
    %v2622 = vld [vmem:[%s1 + $0x100] sm:$0xff]
    %v2623 = vld [vmem:[%s1 + $0x110] sm:$0xff]
    %v2624 = vld [vmem:[%s1 + $0x120] sm:$0xff]
    %v2625 = vld [vmem:[%s1 + $0x130] sm:$0xff]
    %v2626 = vld [vmem:[%s1 + $0x140] sm:$0xff]
    %v2627 = vld [vmem:[%s1 + $0x150] sm:$0xff]
    %v2628 = vld [vmem:[%s1 + $0x160] sm:$0xff]
    %v2629 = vld [vmem:[%s1 + $0x170] sm:$0xff]
    %v2630 = vld [vmem:[%s1 + $0x180] sm:$0xff]
    %v2631 = vld [vmem:[%s1 + $0x190] sm:$0xff]
    %v2632 = vld [vmem:[%s1 + $0x1a0] sm:$0xff]
    %v2633 = vld [vmem:[%s1 + $0x1b0] sm:$0xff]
    %v2634 = vpack.c.bf16 %v2575, %v2574
    %v2635 = vpack.c.bf16 %v2577, %v2576
    %v2636 = vpack.c.bf16 %v2579, %v2578
    %v2637 = vpack.c.bf16 %v2581, %v2580
    %v2639 = vsel %vm2285, %v2634, 0
    %v2642 = vsel %vm2285, %v2635, 0
    %v2645 = vsel %vm2285, %v2636, 0
    %v2648 = vsel %vm2285, %v2637, 0
    %vm2650 = vcmask 1043456
    %v2652 = vsel %vm2650, %v2614, 0
    %2654 = vmatprep.subr.bf16.mxu0 0
    %2655 = vmatpush1.bf16.msra.mxu0 0
    %2656 = vmatprep.subr.bf16.mxu0 0
    %2657 = vmatpush1.bf16.msra.mxu0 0
    %2658 = vmatprep.subr.bf16.mxu0 0
    %2659 = vmatpush1.bf16.msra.mxu0 0
    %2660 = vmatprep.subr.bf16.mxu0 0
    %2661 = vmatpush1.bf16.msra.mxu0 0
    %2662 = vmatprep.subr.bf16.mxu0 0
    %2663 = vmatpush1.bf16.msra.mxu0 0
    %2664 = vmatprep.subr.bf16.mxu0 0
    %2665 = vmatpush1.bf16.msra.mxu0 0
    %2666 = vmatprep.subr.bf16.mxu0 0
    %2667 = vmatpush1.bf16.msra.mxu0 0
    %2668 = vmatprep.subr.bf16.mxu0 0
    %2669 = vmatpush1.bf16.msra.mxu0 %v2652
    %2670 = vmatprep.subr.bf16.mxu0 0
    %2671 = vmatpush2.bf16.msra.mxu0 0
    %2672 = vmatprep.subr.bf16.mxu0 0
    %2673 = vmatpush2.bf16.msra.mxu0 0
    %2674 = vmatprep.subr.bf16.mxu0 0
    %2675 = vmatpush2.bf16.msra.mxu0 0
    %2676 = vmatprep.subr.bf16.mxu0 0
    %2677 = vmatpush2.bf16.msra.mxu0 0
    %2678 = vmatprep.subr.bf16.mxu0 0
    %2679 = vmatpush2.bf16.msra.mxu0 0
    %2680 = vmatprep.subr.bf16.mxu0 0
    %2681 = vmatpush2.bf16.msra.mxu0 0
    %2682 = vmatprep.subr.bf16.mxu0 0
    %2683 = vmatpush2.bf16.msra.mxu0 0
    %2684 = vmatprep.subr.bf16.mxu0 0
    %2685 = vmatpush2.bf16.msra.mxu0 0
    %2686 = vmatprep.mubr.bf16.mxu0 0
    %2687 = vmatmul.mubr.bf16.gmra.mxu0 %v2639
    %v2688 = vpop.f32.mrf.mxu0
    %v2689 = vadd.f32 0.0, %v2688
    %v2690 = vpop.f32.mrf.mxu0
    %v2691 = vpop.f32.mrf.mxu0
    %v2692 = vadd.f32 0.0, %v2691
    %v2693 = vpop.f32.mrf.mxu0
    %2694 = vmatprep.mubr.bf16.mxu0 0
    %2695 = vmatmul.mubr.bf16.gmra.mxu0 %v2642
    %v2696 = vpop.f32.mrf.mxu0
    %v2697 = vadd.f32 0.0, %v2696
    %v2698 = vpop.f32.mrf.mxu0
    %v2699 = vpop.f32.mrf.mxu0
    %v2700 = vadd.f32 0.0, %v2699
    %v2701 = vpop.f32.mrf.mxu0
    %2702 = vmatprep.mubr.bf16.mxu0 0
    %2703 = vmatmul.mubr.bf16.gmra.mxu0 %v2645
    %v2704 = vpop.f32.mrf.mxu0
    %v2705 = vadd.f32 0.0, %v2704
    %v2706 = vpop.f32.mrf.mxu0
    %v2707 = vpop.f32.mrf.mxu0
    %v2708 = vadd.f32 0.0, %v2707
    %v2709 = vpop.f32.mrf.mxu0
    %2710 = vmatprep.mubr.bf16.mxu0 0
    %2711 = vmatmul.mubr.bf16.gmra.mxu0 %v2648
    %v2712 = vpop.f32.mrf.mxu0
    %v2713 = vadd.f32 0.0, %v2712
    %v2714 = vpop.f32.mrf.mxu0
    %v2715 = vpop.f32.mrf.mxu0
    %v2716 = vadd.f32 0.0, %v2715
    %v2717 = vpop.f32.mrf.mxu0
    %2718 = vdwg.mxu0
    %v2719 = vpack.c.bf16 %v2692, %v2689
    %v2720 = vpack.c.bf16 %v2700, %v2697
    %v2721 = vpack.c.bf16 %v2708, %v2705
    %v2722 = vpack.c.bf16 %v2716, %v2713
    %v2724 = vsel %vm2650, %v2615, 0
    %2726 = vmatprep.subr.bf16.mxu0 0
    %2727 = vmatpush1.bf16.msra.mxu0 0
    %2728 = vmatprep.subr.bf16.mxu0 0
    %2729 = vmatpush1.bf16.msra.mxu0 0
    %2730 = vmatprep.subr.bf16.mxu0 0
    %2731 = vmatpush1.bf16.msra.mxu0 0
    %2732 = vmatprep.subr.bf16.mxu0 0
    %2733 = vmatpush1.bf16.msra.mxu0 0
    %2734 = vmatprep.subr.bf16.mxu0 0
    %2735 = vmatpush1.bf16.msra.mxu0 0
    %2736 = vmatprep.subr.bf16.mxu0 0
    %2737 = vmatpush1.bf16.msra.mxu0 0
    %2738 = vmatprep.subr.bf16.mxu0 0
    %2739 = vmatpush1.bf16.msra.mxu0 0
    %2740 = vmatprep.subr.bf16.mxu0 0
    %2741 = vmatpush1.bf16.msra.mxu0 %v2724
    %2742 = vmatprep.subr.bf16.mxu0 0
    %2743 = vmatpush2.bf16.msra.mxu0 0
    %2744 = vmatprep.subr.bf16.mxu0 0
    %2745 = vmatpush2.bf16.msra.mxu0 0
    %2746 = vmatprep.subr.bf16.mxu0 0
    %2747 = vmatpush2.bf16.msra.mxu0 0
    %2748 = vmatprep.subr.bf16.mxu0 0
    %2749 = vmatpush2.bf16.msra.mxu0 0
    %2750 = vmatprep.subr.bf16.mxu0 0
    %2751 = vmatpush2.bf16.msra.mxu0 0
    %2752 = vmatprep.subr.bf16.mxu0 0
    %2753 = vmatpush2.bf16.msra.mxu0 0
    %2754 = vmatprep.subr.bf16.mxu0 0
    %2755 = vmatpush2.bf16.msra.mxu0 0
    %2756 = vmatprep.subr.bf16.mxu0 0
    %2757 = vmatpush2.bf16.msra.mxu0 0
    %2758 = vmatprep.mubr.bf16.mxu0 0
    %2759 = vmatmul.mubr.bf16.gmra.mxu0 %v2639
    %v2760 = vpop.f32.mrf.mxu0
    %v2761 = vadd.f32 0.0, %v2760
    %v2762 = vpop.f32.mrf.mxu0
    %v2763 = vpop.f32.mrf.mxu0
    %v2764 = vadd.f32 0.0, %v2763
    %v2765 = vpop.f32.mrf.mxu0
    %2766 = vmatprep.mubr.bf16.mxu0 0
    %2767 = vmatmul.mubr.bf16.gmra.mxu0 %v2642
    %v2768 = vpop.f32.mrf.mxu0
    %v2769 = vadd.f32 0.0, %v2768
    %v2770 = vpop.f32.mrf.mxu0
    %v2771 = vpop.f32.mrf.mxu0
    %v2772 = vadd.f32 0.0, %v2771
    %v2773 = vpop.f32.mrf.mxu0
    %2774 = vmatprep.mubr.bf16.mxu0 0
    %2775 = vmatmul.mubr.bf16.gmra.mxu0 %v2645
    %v2776 = vpop.f32.mrf.mxu0
    %v2777 = vadd.f32 0.0, %v2776
    %v2778 = vpop.f32.mrf.mxu0
    %v2779 = vpop.f32.mrf.mxu0
    %v2780 = vadd.f32 0.0, %v2779
    %v2781 = vpop.f32.mrf.mxu0
    %2782 = vmatprep.mubr.bf16.mxu0 0
    %2783 = vmatmul.mubr.bf16.gmra.mxu0 %v2648
    %v2784 = vpop.f32.mrf.mxu0
    %v2785 = vadd.f32 0.0, %v2784
    %v2786 = vpop.f32.mrf.mxu0
    %v2787 = vpop.f32.mrf.mxu0
    %v2788 = vadd.f32 0.0, %v2787
    %v2789 = vpop.f32.mrf.mxu0
    %2790 = vdwg.mxu0
    %v2791 = vpack.c.bf16 %v2764, %v2761
    %v2792 = vpack.c.bf16 %v2772, %v2769
    %v2793 = vpack.c.bf16 %v2780, %v2777
    %v2794 = vpack.c.bf16 %v2788, %v2785
    %v2796 = vsel %vm2650, %v2616, 0
    %2798 = vmatprep.subr.bf16.mxu0 0
    %2799 = vmatpush1.bf16.msra.mxu0 0
    %2800 = vmatprep.subr.bf16.mxu0 0
    %2801 = vmatpush1.bf16.msra.mxu0 0
    %2802 = vmatprep.subr.bf16.mxu0 0
    %2803 = vmatpush1.bf16.msra.mxu0 0
    %2804 = vmatprep.subr.bf16.mxu0 0
    %2805 = vmatpush1.bf16.msra.mxu0 0
    %2806 = vmatprep.subr.bf16.mxu0 0
    %2807 = vmatpush1.bf16.msra.mxu0 0
    %2808 = vmatprep.subr.bf16.mxu0 0
    %2809 = vmatpush1.bf16.msra.mxu0 0
    %2810 = vmatprep.subr.bf16.mxu0 0
    %2811 = vmatpush1.bf16.msra.mxu0 0
    %2812 = vmatprep.subr.bf16.mxu0 0
    %2813 = vmatpush1.bf16.msra.mxu0 %v2796
    %2814 = vmatprep.subr.bf16.mxu0 0
    %2815 = vmatpush2.bf16.msra.mxu0 0
    %2816 = vmatprep.subr.bf16.mxu0 0
    %2817 = vmatpush2.bf16.msra.mxu0 0
    %2818 = vmatprep.subr.bf16.mxu0 0
    %2819 = vmatpush2.bf16.msra.mxu0 0
    %2820 = vmatprep.subr.bf16.mxu0 0
    %2821 = vmatpush2.bf16.msra.mxu0 0
    %2822 = vmatprep.subr.bf16.mxu0 0
    %2823 = vmatpush2.bf16.msra.mxu0 0
    %2824 = vmatprep.subr.bf16.mxu0 0
    %2825 = vmatpush2.bf16.msra.mxu0 0
    %2826 = vmatprep.subr.bf16.mxu0 0
    %2827 = vmatpush2.bf16.msra.mxu0 0
    %2828 = vmatprep.subr.bf16.mxu0 0
    %2829 = vmatpush2.bf16.msra.mxu0 0
    %2830 = vmatprep.mubr.bf16.mxu0 0
    %2831 = vmatmul.mubr.bf16.gmra.mxu0 %v2639
    %v2832 = vpop.f32.mrf.mxu0
    %v2833 = vadd.f32 0.0, %v2832
    %v2834 = vpop.f32.mrf.mxu0
    %v2835 = vpop.f32.mrf.mxu0
    %v2836 = vadd.f32 0.0, %v2835
    %v2837 = vpop.f32.mrf.mxu0
    %2838 = vmatprep.mubr.bf16.mxu0 0
    %2839 = vmatmul.mubr.bf16.gmra.mxu0 %v2642
    %v2840 = vpop.f32.mrf.mxu0
    %v2841 = vadd.f32 0.0, %v2840
    %v2842 = vpop.f32.mrf.mxu0
    %v2843 = vpop.f32.mrf.mxu0
    %v2844 = vadd.f32 0.0, %v2843
    %v2845 = vpop.f32.mrf.mxu0
    %2846 = vmatprep.mubr.bf16.mxu0 0
    %2847 = vmatmul.mubr.bf16.gmra.mxu0 %v2645
    %v2848 = vpop.f32.mrf.mxu0
    %v2849 = vadd.f32 0.0, %v2848
    %v2850 = vpop.f32.mrf.mxu0
    %v2851 = vpop.f32.mrf.mxu0
    %v2852 = vadd.f32 0.0, %v2851
    %v2853 = vpop.f32.mrf.mxu0
    %2854 = vmatprep.mubr.bf16.mxu0 0
    %2855 = vmatmul.mubr.bf16.gmra.mxu0 %v2648
    %v2856 = vpop.f32.mrf.mxu0
    %v2857 = vadd.f32 0.0, %v2856
    %v2858 = vpop.f32.mrf.mxu0
    %v2859 = vpop.f32.mrf.mxu0
    %v2860 = vadd.f32 0.0, %v2859
    %v2861 = vpop.f32.mrf.mxu0
    %2862 = vdwg.mxu0
    %v2863 = vpack.c.bf16 %v2836, %v2833
    %v2864 = vpack.c.bf16 %v2844, %v2841
    %v2865 = vpack.c.bf16 %v2852, %v2849
    %v2866 = vpack.c.bf16 %v2860, %v2857
    %v2868 = vsel %vm2650, %v2617, 0
    %2870 = vmatprep.subr.bf16.mxu0 0
    %2871 = vmatpush1.bf16.msra.mxu0 0
    %2872 = vmatprep.subr.bf16.mxu0 0
    %2873 = vmatpush1.bf16.msra.mxu0 0
    %2874 = vmatprep.subr.bf16.mxu0 0
    %2875 = vmatpush1.bf16.msra.mxu0 0
    %2876 = vmatprep.subr.bf16.mxu0 0
    %2877 = vmatpush1.bf16.msra.mxu0 0
    %2878 = vmatprep.subr.bf16.mxu0 0
    %2879 = vmatpush1.bf16.msra.mxu0 0
    %2880 = vmatprep.subr.bf16.mxu0 0
    %2881 = vmatpush1.bf16.msra.mxu0 0
    %2882 = vmatprep.subr.bf16.mxu0 0
    %2883 = vmatpush1.bf16.msra.mxu0 0
    %2884 = vmatprep.subr.bf16.mxu0 0
    %2885 = vmatpush1.bf16.msra.mxu0 %v2868
    %2886 = vmatprep.subr.bf16.mxu0 0
    %2887 = vmatpush2.bf16.msra.mxu0 0
    %2888 = vmatprep.subr.bf16.mxu0 0
    %2889 = vmatpush2.bf16.msra.mxu0 0
    %2890 = vmatprep.subr.bf16.mxu0 0
    %2891 = vmatpush2.bf16.msra.mxu0 0
    %2892 = vmatprep.subr.bf16.mxu0 0
    %2893 = vmatpush2.bf16.msra.mxu0 0
    %2894 = vmatprep.subr.bf16.mxu0 0
    %2895 = vmatpush2.bf16.msra.mxu0 0
    %2896 = vmatprep.subr.bf16.mxu0 0
    %2897 = vmatpush2.bf16.msra.mxu0 0
    %2898 = vmatprep.subr.bf16.mxu0 0
    %2899 = vmatpush2.bf16.msra.mxu0 0
    %2900 = vmatprep.subr.bf16.mxu0 0
    %2901 = vmatpush2.bf16.msra.mxu0 0
    %2902 = vmatprep.mubr.bf16.mxu0 0
    %2903 = vmatmul.mubr.bf16.gmra.mxu0 %v2639
    %v2904 = vpop.f32.mrf.mxu0
    %v2905 = vadd.f32 0.0, %v2904
    %v2906 = vpop.f32.mrf.mxu0
    %v2907 = vpop.f32.mrf.mxu0
    %v2908 = vadd.f32 0.0, %v2907
    %v2909 = vpop.f32.mrf.mxu0
    %2910 = vmatprep.mubr.bf16.mxu0 0
    %2911 = vmatmul.mubr.bf16.gmra.mxu0 %v2642
    %v2912 = vpop.f32.mrf.mxu0
    %v2913 = vadd.f32 0.0, %v2912
    %v2914 = vpop.f32.mrf.mxu0
    %v2915 = vpop.f32.mrf.mxu0
    %v2916 = vadd.f32 0.0, %v2915
    %v2917 = vpop.f32.mrf.mxu0
    %2918 = vmatprep.mubr.bf16.mxu0 0
    %2919 = vmatmul.mubr.bf16.gmra.mxu0 %v2645
    %v2920 = vpop.f32.mrf.mxu0
    %v2921 = vadd.f32 0.0, %v2920
    %v2922 = vpop.f32.mrf.mxu0
    %v2923 = vpop.f32.mrf.mxu0
    %v2924 = vadd.f32 0.0, %v2923
    %v2925 = vpop.f32.mrf.mxu0
    %2926 = vmatprep.mubr.bf16.mxu0 0
    %2927 = vmatmul.mubr.bf16.gmra.mxu0 %v2648
    %v2928 = vpop.f32.mrf.mxu0
    %v2929 = vadd.f32 0.0, %v2928
    %v2930 = vpop.f32.mrf.mxu0
    %v2931 = vpop.f32.mrf.mxu0
    %v2932 = vadd.f32 0.0, %v2931
    %v2933 = vpop.f32.mrf.mxu0
    %2934 = vdwg.mxu0
    %v2935 = vpack.c.bf16 %v2908, %v2905
    %v2936 = vpack.c.bf16 %v2916, %v2913
    %v2937 = vpack.c.bf16 %v2924, %v2921
    %v2938 = vpack.c.bf16 %v2932, %v2929
    %2940 = vset.pattern.permute.xlu0 0
    %2941 = vperm.xlu0 %2940, %v2598
    %v2942 = vpop.permute.xlu0 %2941
    %2945 = vset.pattern.permute.xlu0 0
    %2946 = vperm.xlu0 %2945, %v2599
    %v2947 = vpop.permute.xlu0 %2946
    %2950 = vset.pattern.permute.xlu0 0
    %2951 = vperm.xlu0 %2950, %v2600
    %v2952 = vpop.permute.xlu0 %2951
    %2955 = vset.pattern.permute.xlu0 0
    %2956 = vperm.xlu0 %2955, %v2601
    %v2957 = vpop.permute.xlu0 %2956
    %2960 = vset.pattern.permute.xlu0 0
    %2961 = vperm.xlu0 %2960, %v2602
    %v2962 = vpop.permute.xlu0 %2961
    %2965 = vset.pattern.permute.xlu0 0
    %2966 = vperm.xlu0 %2965, %v2603
    %v2967 = vpop.permute.xlu0 %2966
    %2970 = vset.pattern.permute.xlu0 0
    %2971 = vperm.xlu0 %2970, %v2604
    %v2972 = vpop.permute.xlu0 %2971
    %2975 = vset.pattern.permute.xlu0 0
    %2976 = vperm.xlu0 %2975, %v2605
    %v2977 = vpop.permute.xlu0 %2976
    %2980 = vset.pattern.permute.xlu0 0
    %2981 = vperm.xlu0 %2980, %v2606
    %v2982 = vpop.permute.xlu0 %2981
    %2985 = vset.pattern.permute.xlu0 0
    %2986 = vperm.xlu0 %2985, %v2607
    %v2987 = vpop.permute.xlu0 %2986
    %2990 = vset.pattern.permute.xlu0 0
    %2991 = vperm.xlu0 %2990, %v2608
    %v2992 = vpop.permute.xlu0 %2991
    %2995 = vset.pattern.permute.xlu0 0
    %2996 = vperm.xlu0 %2995, %v2609
    %v2997 = vpop.permute.xlu0 %2996
    %3000 = vset.pattern.permute.xlu0 0
    %3001 = vperm.xlu0 %3000, %v2610
    %v3002 = vpop.permute.xlu0 %3001
    %3005 = vset.pattern.permute.xlu0 0
    %3006 = vperm.xlu0 %3005, %v2611
    %v3007 = vpop.permute.xlu0 %3006
    %3010 = vset.pattern.permute.xlu0 0
    %3011 = vperm.xlu0 %3010, %v2612
    %v3012 = vpop.permute.xlu0 %3011
    %3015 = vset.pattern.permute.xlu0 0
    %3016 = vperm.xlu0 %3015, %v2613
    %v3017 = vpop.permute.xlu0 %3016
    %v3035 = vunpack.c.l.b16 %v2618
    %v3036 = vunpack.c.h.b16 %v2618
    %v3037 = vunpack.c.l.b16 %v2619
    %v3038 = vunpack.c.h.b16 %v2619
    %v3039 = vunpack.c.l.b16 %v2620
    %v3040 = vunpack.c.h.b16 %v2620
    %v3041 = vunpack.c.l.b16 %v2621
    %v3042 = vunpack.c.h.b16 %v2621
    %v3043 = vunpack.c.l.b16 %v2622
    %v3044 = vunpack.c.h.b16 %v2622
    %v3045 = vunpack.c.l.b16 %v2623
    %v3046 = vunpack.c.h.b16 %v2623
    %v3047 = vunpack.c.l.b16 %v2624
    %v3048 = vunpack.c.h.b16 %v2624
    %v3049 = vunpack.c.l.b16 %v2625
    %v3050 = vunpack.c.h.b16 %v2625
    %v3051 = vunpack.c.l.b16 %v2626
    %v3052 = vunpack.c.h.b16 %v2626
    %v3053 = vunpack.c.l.b16 %v2627
    %v3054 = vunpack.c.h.b16 %v2627
    %v3055 = vunpack.c.l.b16 %v2628
    %v3056 = vunpack.c.h.b16 %v2628
    %v3057 = vunpack.c.l.b16 %v2629
    %v3058 = vunpack.c.h.b16 %v2629
    %v3059 = vunpack.c.l.b16 %v2630
    %v3060 = vunpack.c.h.b16 %v2630
    %v3061 = vunpack.c.l.b16 %v2631
    %v3062 = vunpack.c.h.b16 %v2631
    %v3063 = vunpack.c.l.b16 %v2632
    %v3064 = vunpack.c.h.b16 %v2632
    %v3065 = vunpack.c.l.b16 %v2633
    %v3066 = vunpack.c.h.b16 %v2633
    %v3067 = vpack.c.b16 %v3037, %v3035
    %v3068 = vpack.c.b16 %v3038, %v3036
    %v3069 = vpack.c.b16 %v3041, %v3039
    %v3070 = vpack.c.b16 %v3042, %v3040
    %v3071 = vpack.c.b16 %v3045, %v3043
    %v3072 = vpack.c.b16 %v3046, %v3044
    %v3073 = vpack.c.b16 %v3049, %v3047
    %v3074 = vpack.c.b16 %v3050, %v3048
    %v3075 = vpack.c.b16 %v3053, %v3051
    %v3076 = vpack.c.b16 %v3054, %v3052
    %v3077 = vpack.c.b16 %v3057, %v3055
    %v3078 = vpack.c.b16 %v3058, %v3056
    %v3079 = vpack.c.b16 %v3061, %v3059
    %v3080 = vpack.c.b16 %v3062, %v3060
    %v3081 = vpack.c.b16 %v3065, %v3063
    %v3082 = vpack.c.b16 %v3066, %v3064
    %3099 = vmatprep.subr.bf16.mxu0 0
    %3100 = vmatpush1.bf16.msra.mxu0 %v2794
    %3101 = vmatprep.subr.bf16.mxu0 0
    %3102 = vmatpush1.bf16.msra.mxu0 %v2793
    %3103 = vmatprep.subr.bf16.mxu0 0
    %3104 = vmatpush1.bf16.msra.mxu0 %v2792
    %3105 = vmatprep.subr.bf16.mxu0 0
    %3106 = vmatpush1.bf16.msra.mxu0 %v2791
    %3107 = vmatprep.subr.bf16.mxu0 0
    %3108 = vmatpush1.bf16.msra.mxu0 %v2722
    %3109 = vmatprep.subr.bf16.mxu0 0
    %3110 = vmatpush1.bf16.msra.mxu0 %v2721
    %3111 = vmatprep.subr.bf16.mxu0 0
    %3112 = vmatpush1.bf16.msra.mxu0 %v2720
    %3113 = vmatprep.subr.bf16.mxu0 0
    %3114 = vmatpush1.bf16.msra.mxu0 %v2719
    %3115 = vmatprep.subr.bf16.mxu0 0
    %3116 = vmatpush2.bf16.msra.mxu0 %v2938
    %3117 = vmatprep.subr.bf16.mxu0 0
    %3118 = vmatpush2.bf16.msra.mxu0 %v2937
    %3119 = vmatprep.subr.bf16.mxu0 0
    %3120 = vmatpush2.bf16.msra.mxu0 %v2936
    %3121 = vmatprep.subr.bf16.mxu0 0
    %3122 = vmatpush2.bf16.msra.mxu0 %v2935
    %3123 = vmatprep.subr.bf16.mxu0 0
    %3124 = vmatpush2.bf16.msra.mxu0 %v2866
    %3125 = vmatprep.subr.bf16.mxu0 0
    %3126 = vmatpush2.bf16.msra.mxu0 %v2865
    %3127 = vmatprep.subr.bf16.mxu0 0
    %3128 = vmatpush2.bf16.msra.mxu0 %v2864
    %3129 = vmatprep.subr.bf16.mxu0 0
    %3130 = vmatpush2.bf16.msra.mxu0 %v2863
    %3131 = vmatprep.mubr.bf16.mxu0 %v3068
    %3132 = vmatmul.mubr.bf16.gmra.mxu0 %v3067
    %v3133 = vpop.f32.mrf.mxu0
    %v3134 = vadd.f32 %v2942, %v3133
    %v3135 = vpop.f32.mrf.mxu0
    %v3136 = vpop.f32.mrf.mxu0
    %v3137 = vadd.f32 %v2947, %v3136
    %v3138 = vpop.f32.mrf.mxu0
    %3139 = vmatprep.mubr.bf16.mxu0 %v3070
    %3140 = vmatmul.mubr.bf16.gmra.mxu0 %v3069
    %v3141 = vpop.f32.mrf.mxu0
    %v3142 = vadd.f32 %v2952, %v3141
    %v3143 = vpop.f32.mrf.mxu0
    %v3144 = vpop.f32.mrf.mxu0
    %v3145 = vadd.f32 %v2957, %v3144
    %v3146 = vpop.f32.mrf.mxu0
    %3147 = vmatprep.mubr.bf16.mxu0 %v3072
    %3148 = vmatmul.mubr.bf16.gmra.mxu0 %v3071
    %v3149 = vpop.f32.mrf.mxu0
    %v3150 = vadd.f32 %v2962, %v3149
    %v3151 = vpop.f32.mrf.mxu0
    %v3152 = vpop.f32.mrf.mxu0
    %v3153 = vadd.f32 %v2967, %v3152
    %v3154 = vpop.f32.mrf.mxu0
    %3155 = vmatprep.mubr.bf16.mxu0 %v3074
    %3156 = vmatmul.mubr.bf16.gmra.mxu0 %v3073
    %v3157 = vpop.f32.mrf.mxu0
    %v3158 = vadd.f32 %v2972, %v3157
    %v3159 = vpop.f32.mrf.mxu0
    %v3160 = vpop.f32.mrf.mxu0
    %v3161 = vadd.f32 %v2977, %v3160
    %v3162 = vpop.f32.mrf.mxu0
    %3163 = vmatprep.mubr.bf16.mxu0 %v3076
    %3164 = vmatmul.mubr.bf16.gmra.mxu0 %v3075
    %v3165 = vpop.f32.mrf.mxu0
    %v3166 = vadd.f32 %v2982, %v3165
    %v3167 = vpop.f32.mrf.mxu0
    %v3168 = vpop.f32.mrf.mxu0
    %v3169 = vadd.f32 %v2987, %v3168
    %v3170 = vpop.f32.mrf.mxu0
    %3171 = vmatprep.mubr.bf16.mxu0 %v3078
    %3172 = vmatmul.mubr.bf16.gmra.mxu0 %v3077
    %v3173 = vpop.f32.mrf.mxu0
    %v3174 = vadd.f32 %v2992, %v3173
    %v3175 = vpop.f32.mrf.mxu0
    %v3176 = vpop.f32.mrf.mxu0
    %v3177 = vadd.f32 %v2997, %v3176
    %v3178 = vpop.f32.mrf.mxu0
    %3179 = vmatprep.mubr.bf16.mxu0 %v3080
    %3180 = vmatmul.mubr.bf16.gmra.mxu0 %v3079
    %v3181 = vpop.f32.mrf.mxu0
    %v3182 = vadd.f32 %v3002, %v3181
    %v3183 = vpop.f32.mrf.mxu0
    %v3184 = vpop.f32.mrf.mxu0
    %v3185 = vadd.f32 %v3007, %v3184
    %v3186 = vpop.f32.mrf.mxu0
    %3187 = vmatprep.mubr.bf16.mxu0 %v3082
    %3188 = vmatmul.mubr.bf16.gmra.mxu0 %v3081
    %v3189 = vpop.f32.mrf.mxu0
    %v3190 = vadd.f32 %v3012, %v3189
    %v3191 = vpop.f32.mrf.mxu0
    %v3192 = vpop.f32.mrf.mxu0
    %v3193 = vadd.f32 %v3017, %v3192
    %v3194 = vpop.f32.mrf.mxu0
    %3195 = vdwg.mxu0
    %v3196 = vmax.f32 %v3134, 0.0
    %v3197 = vmax.f32 %v3137, 0.0
    %v3198 = vmax.f32 %v3142, 0.0
    %v3199 = vmax.f32 %v3145, 0.0
    %v3200 = vmax.f32 %v3150, 0.0
    %v3201 = vmax.f32 %v3153, 0.0
    %v3202 = vmax.f32 %v3158, 0.0
    %v3203 = vmax.f32 %v3161, 0.0
    %v3204 = vmax.f32 %v3166, 0.0
    %v3205 = vmax.f32 %v3169, 0.0
    %v3206 = vmax.f32 %v3174, 0.0
    %v3207 = vmax.f32 %v3177, 0.0
    %v3208 = vmax.f32 %v3182, 0.0
    %v3209 = vmax.f32 %v3185, 0.0
    %v3210 = vmax.f32 %v3190, 0.0
    %v3211 = vmax.f32 %v3193, 0.0
    %v3212 = vpack.c.bf16 %v2591, %v2590
    %v3213 = vpack.c.bf16 %v2593, %v2592
    %v3214 = vpack.c.bf16 %v2595, %v2594
    %v3215 = vpack.c.bf16 %v2597, %v2596
    %v3217 = vsel %vm2285, %v3212, 0
    %v3220 = vsel %vm2285, %v3213, 0
    %v3223 = vsel %vm2285, %v3214, 0
    %v3226 = vsel %vm2285, %v3215, 0
    %3228 = vmatprep.subr.bf16.mxu0 0
    %3229 = vmatpush1.bf16.msra.mxu0 0
    %3230 = vmatprep.subr.bf16.mxu0 0
    %3231 = vmatpush1.bf16.msra.mxu0 0
    %3232 = vmatprep.subr.bf16.mxu0 0
    %3233 = vmatpush1.bf16.msra.mxu0 0
    %3234 = vmatprep.subr.bf16.mxu0 0
    %3235 = vmatpush1.bf16.msra.mxu0 0
    %3236 = vmatprep.subr.bf16.mxu0 0
    %3237 = vmatpush1.bf16.msra.mxu0 0
    %3238 = vmatprep.subr.bf16.mxu0 0
    %3239 = vmatpush1.bf16.msra.mxu0 0
    %3240 = vmatprep.subr.bf16.mxu0 0
    %3241 = vmatpush1.bf16.msra.mxu0 0
    %3242 = vmatprep.subr.bf16.mxu0 0
    %3243 = vmatpush1.bf16.msra.mxu0 %v2652
    %3244 = vmatprep.subr.bf16.mxu0 0
    %3245 = vmatpush2.bf16.msra.mxu0 0
    %3246 = vmatprep.subr.bf16.mxu0 0
    %3247 = vmatpush2.bf16.msra.mxu0 0
    %3248 = vmatprep.subr.bf16.mxu0 0
    %3249 = vmatpush2.bf16.msra.mxu0 0
    %3250 = vmatprep.subr.bf16.mxu0 0
    %3251 = vmatpush2.bf16.msra.mxu0 0
    %3252 = vmatprep.subr.bf16.mxu0 0
    %3253 = vmatpush2.bf16.msra.mxu0 0
    %3254 = vmatprep.subr.bf16.mxu0 0
    %3255 = vmatpush2.bf16.msra.mxu0 0
    %3256 = vmatprep.subr.bf16.mxu0 0
    %3257 = vmatpush2.bf16.msra.mxu0 0
    %3258 = vmatprep.subr.bf16.mxu0 0
    %3259 = vmatpush2.bf16.msra.mxu0 0
    %3260 = vmatprep.mubr.bf16.mxu0 0
    %3261 = vmatmul.mubr.bf16.gmra.mxu0 %v3217
    %v3262 = vpop.f32.mrf.mxu0
    %v3263 = vadd.f32 0.0, %v3262
    %v3264 = vpop.f32.mrf.mxu0
    %v3265 = vpop.f32.mrf.mxu0
    %v3266 = vadd.f32 0.0, %v3265
    %v3267 = vpop.f32.mrf.mxu0
    %3268 = vmatprep.mubr.bf16.mxu0 0
    %3269 = vmatmul.mubr.bf16.gmra.mxu0 %v3220
    %v3270 = vpop.f32.mrf.mxu0
    %v3271 = vadd.f32 0.0, %v3270
    %v3272 = vpop.f32.mrf.mxu0
    %v3273 = vpop.f32.mrf.mxu0
    %v3274 = vadd.f32 0.0, %v3273
    %v3275 = vpop.f32.mrf.mxu0
    %3276 = vmatprep.mubr.bf16.mxu0 0
    %3277 = vmatmul.mubr.bf16.gmra.mxu0 %v3223
    %v3278 = vpop.f32.mrf.mxu0
    %v3279 = vadd.f32 0.0, %v3278
    %v3280 = vpop.f32.mrf.mxu0
    %v3281 = vpop.f32.mrf.mxu0
    %v3282 = vadd.f32 0.0, %v3281
    %v3283 = vpop.f32.mrf.mxu0
    %3284 = vmatprep.mubr.bf16.mxu0 0
    %3285 = vmatmul.mubr.bf16.gmra.mxu0 %v3226
    %v3286 = vpop.f32.mrf.mxu0
    %v3287 = vadd.f32 0.0, %v3286
    %v3288 = vpop.f32.mrf.mxu0
    %v3289 = vpop.f32.mrf.mxu0
    %v3290 = vadd.f32 0.0, %v3289
    %v3291 = vpop.f32.mrf.mxu0
    %3292 = vdwg.mxu0
    %v3293 = vpack.c.bf16 %v3266, %v3263
    %v3294 = vpack.c.bf16 %v3274, %v3271
    %v3295 = vpack.c.bf16 %v3282, %v3279
    %v3296 = vpack.c.bf16 %v3290, %v3287
    %3297 = vmatprep.subr.bf16.mxu0 0
    %3298 = vmatpush1.bf16.msra.mxu0 0
    %3299 = vmatprep.subr.bf16.mxu0 0
    %3300 = vmatpush1.bf16.msra.mxu0 0
    %3301 = vmatprep.subr.bf16.mxu0 0
    %3302 = vmatpush1.bf16.msra.mxu0 0
    %3303 = vmatprep.subr.bf16.mxu0 0
    %3304 = vmatpush1.bf16.msra.mxu0 0
    %3305 = vmatprep.subr.bf16.mxu0 0
    %3306 = vmatpush1.bf16.msra.mxu0 0
    %3307 = vmatprep.subr.bf16.mxu0 0
    %3308 = vmatpush1.bf16.msra.mxu0 0
    %3309 = vmatprep.subr.bf16.mxu0 0
    %3310 = vmatpush1.bf16.msra.mxu0 0
    %3311 = vmatprep.subr.bf16.mxu0 0
    %3312 = vmatpush1.bf16.msra.mxu0 %v2724
    %3313 = vmatprep.subr.bf16.mxu0 0
    %3314 = vmatpush2.bf16.msra.mxu0 0
    %3315 = vmatprep.subr.bf16.mxu0 0
    %3316 = vmatpush2.bf16.msra.mxu0 0
    %3317 = vmatprep.subr.bf16.mxu0 0
    %3318 = vmatpush2.bf16.msra.mxu0 0
    %3319 = vmatprep.subr.bf16.mxu0 0
    %3320 = vmatpush2.bf16.msra.mxu0 0
    %3321 = vmatprep.subr.bf16.mxu0 0
    %3322 = vmatpush2.bf16.msra.mxu0 0
    %3323 = vmatprep.subr.bf16.mxu0 0
    %3324 = vmatpush2.bf16.msra.mxu0 0
    %3325 = vmatprep.subr.bf16.mxu0 0
    %3326 = vmatpush2.bf16.msra.mxu0 0
    %3327 = vmatprep.subr.bf16.mxu0 0
    %3328 = vmatpush2.bf16.msra.mxu0 0
    %3329 = vmatprep.mubr.bf16.mxu0 0
    %3330 = vmatmul.mubr.bf16.gmra.mxu0 %v3217
    %v3331 = vpop.f32.mrf.mxu0
    %v3332 = vadd.f32 0.0, %v3331
    %v3333 = vpop.f32.mrf.mxu0
    %v3334 = vpop.f32.mrf.mxu0
    %v3335 = vadd.f32 0.0, %v3334
    %v3336 = vpop.f32.mrf.mxu0
    %3337 = vmatprep.mubr.bf16.mxu0 0
    %3338 = vmatmul.mubr.bf16.gmra.mxu0 %v3220
    %v3339 = vpop.f32.mrf.mxu0
    %v3340 = vadd.f32 0.0, %v3339
    %v3341 = vpop.f32.mrf.mxu0
    %v3342 = vpop.f32.mrf.mxu0
    %v3343 = vadd.f32 0.0, %v3342
    %v3344 = vpop.f32.mrf.mxu0
    %3345 = vmatprep.mubr.bf16.mxu0 0
    %3346 = vmatmul.mubr.bf16.gmra.mxu0 %v3223
    %v3347 = vpop.f32.mrf.mxu0
    %v3348 = vadd.f32 0.0, %v3347
    %v3349 = vpop.f32.mrf.mxu0
    %v3350 = vpop.f32.mrf.mxu0
    %v3351 = vadd.f32 0.0, %v3350
    %v3352 = vpop.f32.mrf.mxu0
    %3353 = vmatprep.mubr.bf16.mxu0 0
    %3354 = vmatmul.mubr.bf16.gmra.mxu0 %v3226
    %v3355 = vpop.f32.mrf.mxu0
    %v3356 = vadd.f32 0.0, %v3355
    %v3357 = vpop.f32.mrf.mxu0
    %v3358 = vpop.f32.mrf.mxu0
    %v3359 = vadd.f32 0.0, %v3358
    %v3360 = vpop.f32.mrf.mxu0
    %3361 = vdwg.mxu0
    %v3362 = vpack.c.bf16 %v3335, %v3332
    %v3363 = vpack.c.bf16 %v3343, %v3340
    %v3364 = vpack.c.bf16 %v3351, %v3348
    %v3365 = vpack.c.bf16 %v3359, %v3356
    %3366 = vmatprep.subr.bf16.mxu0 0
    %3367 = vmatpush1.bf16.msra.mxu0 0
    %3368 = vmatprep.subr.bf16.mxu0 0
    %3369 = vmatpush1.bf16.msra.mxu0 0
    %3370 = vmatprep.subr.bf16.mxu0 0
    %3371 = vmatpush1.bf16.msra.mxu0 0
    %3372 = vmatprep.subr.bf16.mxu0 0
    %3373 = vmatpush1.bf16.msra.mxu0 0
    %3374 = vmatprep.subr.bf16.mxu0 0
    %3375 = vmatpush1.bf16.msra.mxu0 0
    %3376 = vmatprep.subr.bf16.mxu0 0
    %3377 = vmatpush1.bf16.msra.mxu0 0
    %3378 = vmatprep.subr.bf16.mxu0 0
    %3379 = vmatpush1.bf16.msra.mxu0 0
    %3380 = vmatprep.subr.bf16.mxu0 0
    %3381 = vmatpush1.bf16.msra.mxu0 %v2796
    %3382 = vmatprep.subr.bf16.mxu0 0
    %3383 = vmatpush2.bf16.msra.mxu0 0
    %3384 = vmatprep.subr.bf16.mxu0 0
    %3385 = vmatpush2.bf16.msra.mxu0 0
    %3386 = vmatprep.subr.bf16.mxu0 0
    %3387 = vmatpush2.bf16.msra.mxu0 0
    %3388 = vmatprep.subr.bf16.mxu0 0
    %3389 = vmatpush2.bf16.msra.mxu0 0
    %3390 = vmatprep.subr.bf16.mxu0 0
    %3391 = vmatpush2.bf16.msra.mxu0 0
    %3392 = vmatprep.subr.bf16.mxu0 0
    %3393 = vmatpush2.bf16.msra.mxu0 0
    %3394 = vmatprep.subr.bf16.mxu0 0
    %3395 = vmatpush2.bf16.msra.mxu0 0
    %3396 = vmatprep.subr.bf16.mxu0 0
    %3397 = vmatpush2.bf16.msra.mxu0 0
    %3398 = vmatprep.mubr.bf16.mxu0 0
    %3399 = vmatmul.mubr.bf16.gmra.mxu0 %v3217
    %v3400 = vpop.f32.mrf.mxu0
    %v3401 = vadd.f32 0.0, %v3400
    %v3402 = vpop.f32.mrf.mxu0
    %v3403 = vpop.f32.mrf.mxu0
    %v3404 = vadd.f32 0.0, %v3403
    %v3405 = vpop.f32.mrf.mxu0
    %3406 = vmatprep.mubr.bf16.mxu0 0
    %3407 = vmatmul.mubr.bf16.gmra.mxu0 %v3220
    %v3408 = vpop.f32.mrf.mxu0
    %v3409 = vadd.f32 0.0, %v3408
    %v3410 = vpop.f32.mrf.mxu0
    %v3411 = vpop.f32.mrf.mxu0
    %v3412 = vadd.f32 0.0, %v3411
    %v3413 = vpop.f32.mrf.mxu0
    %3414 = vmatprep.mubr.bf16.mxu0 0
    %3415 = vmatmul.mubr.bf16.gmra.mxu0 %v3223
    %v3416 = vpop.f32.mrf.mxu0
    %v3417 = vadd.f32 0.0, %v3416
    %v3418 = vpop.f32.mrf.mxu0
    %v3419 = vpop.f32.mrf.mxu0
    %v3420 = vadd.f32 0.0, %v3419
    %v3421 = vpop.f32.mrf.mxu0
    %3422 = vmatprep.mubr.bf16.mxu0 0
    %3423 = vmatmul.mubr.bf16.gmra.mxu0 %v3226
    %v3424 = vpop.f32.mrf.mxu0
    %v3425 = vadd.f32 0.0, %v3424
    %v3426 = vpop.f32.mrf.mxu0
    %v3427 = vpop.f32.mrf.mxu0
    %v3428 = vadd.f32 0.0, %v3427
    %v3429 = vpop.f32.mrf.mxu0
    %3430 = vdwg.mxu0
    %v3431 = vpack.c.bf16 %v3404, %v3401
    %v3432 = vpack.c.bf16 %v3412, %v3409
    %v3433 = vpack.c.bf16 %v3420, %v3417
    %v3434 = vpack.c.bf16 %v3428, %v3425
    %3435 = vmatprep.subr.bf16.mxu0 0
    %3436 = vmatpush1.bf16.msra.mxu0 0
    %3437 = vmatprep.subr.bf16.mxu0 0
    %3438 = vmatpush1.bf16.msra.mxu0 0
    %3439 = vmatprep.subr.bf16.mxu0 0
    %3440 = vmatpush1.bf16.msra.mxu0 0
    %3441 = vmatprep.subr.bf16.mxu0 0
    %3442 = vmatpush1.bf16.msra.mxu0 0
    %3443 = vmatprep.subr.bf16.mxu0 0
    %3444 = vmatpush1.bf16.msra.mxu0 0
    %3445 = vmatprep.subr.bf16.mxu0 0
    %3446 = vmatpush1.bf16.msra.mxu0 0
    %3447 = vmatprep.subr.bf16.mxu0 0
    %3448 = vmatpush1.bf16.msra.mxu0 0
    %3449 = vmatprep.subr.bf16.mxu0 0
    %3450 = vmatpush1.bf16.msra.mxu0 %v2868
    %3451 = vmatprep.subr.bf16.mxu0 0
    %3452 = vmatpush2.bf16.msra.mxu0 0
    %3453 = vmatprep.subr.bf16.mxu0 0
    %3454 = vmatpush2.bf16.msra.mxu0 0
    %3455 = vmatprep.subr.bf16.mxu0 0
    %3456 = vmatpush2.bf16.msra.mxu0 0
    %3457 = vmatprep.subr.bf16.mxu0 0
    %3458 = vmatpush2.bf16.msra.mxu0 0
    %3459 = vmatprep.subr.bf16.mxu0 0
    %3460 = vmatpush2.bf16.msra.mxu0 0
    %3461 = vmatprep.subr.bf16.mxu0 0
    %3462 = vmatpush2.bf16.msra.mxu0 0
    %3463 = vmatprep.subr.bf16.mxu0 0
    %3464 = vmatpush2.bf16.msra.mxu0 0
    %3465 = vmatprep.subr.bf16.mxu0 0
    %3466 = vmatpush2.bf16.msra.mxu0 0
    %3467 = vmatprep.mubr.bf16.mxu0 0
    %3468 = vmatmul.mubr.bf16.gmra.mxu0 %v3217
    %v3469 = vpop.f32.mrf.mxu0
    %v3470 = vadd.f32 0.0, %v3469
    %v3471 = vpop.f32.mrf.mxu0
    %v3472 = vpop.f32.mrf.mxu0
    %v3473 = vadd.f32 0.0, %v3472
    %v3474 = vpop.f32.mrf.mxu0
    %3475 = vmatprep.mubr.bf16.mxu0 0
    %3476 = vmatmul.mubr.bf16.gmra.mxu0 %v3220
    %v3477 = vpop.f32.mrf.mxu0
    %v3478 = vadd.f32 0.0, %v3477
    %v3479 = vpop.f32.mrf.mxu0
    %v3480 = vpop.f32.mrf.mxu0
    %v3481 = vadd.f32 0.0, %v3480
    %v3482 = vpop.f32.mrf.mxu0
    %3483 = vmatprep.mubr.bf16.mxu0 0
    %3484 = vmatmul.mubr.bf16.gmra.mxu0 %v3223
    %v3485 = vpop.f32.mrf.mxu0
    %v3486 = vadd.f32 0.0, %v3485
    %v3487 = vpop.f32.mrf.mxu0
    %v3488 = vpop.f32.mrf.mxu0
    %v3489 = vadd.f32 0.0, %v3488
    %v3490 = vpop.f32.mrf.mxu0
    %3491 = vmatprep.mubr.bf16.mxu0 0
    %3492 = vmatmul.mubr.bf16.gmra.mxu0 %v3226
    %v3493 = vpop.f32.mrf.mxu0
    %v3494 = vadd.f32 0.0, %v3493
    %v3495 = vpop.f32.mrf.mxu0
    %v3496 = vpop.f32.mrf.mxu0
    %v3497 = vadd.f32 0.0, %v3496
    %v3498 = vpop.f32.mrf.mxu0
    %3499 = vdwg.mxu0
    %v3500 = vpack.c.bf16 %v3473, %v3470
    %v3501 = vpack.c.bf16 %v3481, %v3478
    %v3502 = vpack.c.bf16 %v3489, %v3486
    %v3503 = vpack.c.bf16 %v3497, %v3494
    %3504 = vmatprep.subr.bf16.mxu0 0
    %3505 = vmatpush1.bf16.msra.mxu0 %v3365
    %3506 = vmatprep.subr.bf16.mxu0 0
    %3507 = vmatpush1.bf16.msra.mxu0 %v3364
    %3508 = vmatprep.subr.bf16.mxu0 0
    %3509 = vmatpush1.bf16.msra.mxu0 %v3363
    %3510 = vmatprep.subr.bf16.mxu0 0
    %3511 = vmatpush1.bf16.msra.mxu0 %v3362
    %3512 = vmatprep.subr.bf16.mxu0 0
    %3513 = vmatpush1.bf16.msra.mxu0 %v3296
    %3514 = vmatprep.subr.bf16.mxu0 0
    %3515 = vmatpush1.bf16.msra.mxu0 %v3295
    %3516 = vmatprep.subr.bf16.mxu0 0
    %3517 = vmatpush1.bf16.msra.mxu0 %v3294
    %3518 = vmatprep.subr.bf16.mxu0 0
    %3519 = vmatpush1.bf16.msra.mxu0 %v3293
    %3520 = vmatprep.subr.bf16.mxu0 0
    %3521 = vmatpush2.bf16.msra.mxu0 %v3503
    %3522 = vmatprep.subr.bf16.mxu0 0
    %3523 = vmatpush2.bf16.msra.mxu0 %v3502
    %3524 = vmatprep.subr.bf16.mxu0 0
    %3525 = vmatpush2.bf16.msra.mxu0 %v3501
    %3526 = vmatprep.subr.bf16.mxu0 0
    %3527 = vmatpush2.bf16.msra.mxu0 %v3500
    %3528 = vmatprep.subr.bf16.mxu0 0
    %3529 = vmatpush2.bf16.msra.mxu0 %v3434
    %3530 = vmatprep.subr.bf16.mxu0 0
    %3531 = vmatpush2.bf16.msra.mxu0 %v3433
    %3532 = vmatprep.subr.bf16.mxu0 0
    %3533 = vmatpush2.bf16.msra.mxu0 %v3432
    %3534 = vmatprep.subr.bf16.mxu0 0
    %3535 = vmatpush2.bf16.msra.mxu0 %v3431
    %3536 = vmatprep.mubr.bf16.mxu0 %v3068
    %3537 = vmatmul.mubr.bf16.gmra.mxu0 %v3067
    %v3538 = vpop.f32.mrf.mxu0
    %v3539 = vadd.f32 %v2942, %v3538
    %v3540 = vpop.f32.mrf.mxu0
    %v3541 = vpop.f32.mrf.mxu0
    %v3542 = vadd.f32 %v2947, %v3541
    %v3543 = vpop.f32.mrf.mxu0
    %3544 = vmatprep.mubr.bf16.mxu0 %v3070
    %3545 = vmatmul.mubr.bf16.gmra.mxu0 %v3069
    %v3546 = vpop.f32.mrf.mxu0
    %v3547 = vadd.f32 %v2952, %v3546
    %v3548 = vpop.f32.mrf.mxu0
    %v3549 = vpop.f32.mrf.mxu0
    %v3550 = vadd.f32 %v2957, %v3549
    %v3551 = vpop.f32.mrf.mxu0
    %3552 = vmatprep.mubr.bf16.mxu0 %v3072
    %3553 = vmatmul.mubr.bf16.gmra.mxu0 %v3071
    %v3554 = vpop.f32.mrf.mxu0
    %v3555 = vadd.f32 %v2962, %v3554
    %v3556 = vpop.f32.mrf.mxu0
    %v3557 = vpop.f32.mrf.mxu0
    %v3558 = vadd.f32 %v2967, %v3557
    %v3559 = vpop.f32.mrf.mxu0
    %3560 = vmatprep.mubr.bf16.mxu0 %v3074
    %3561 = vmatmul.mubr.bf16.gmra.mxu0 %v3073
    %v3562 = vpop.f32.mrf.mxu0
    %v3563 = vadd.f32 %v2972, %v3562
    %v3564 = vpop.f32.mrf.mxu0
    %v3565 = vpop.f32.mrf.mxu0
    %v3566 = vadd.f32 %v2977, %v3565
    %v3567 = vpop.f32.mrf.mxu0
    %3568 = vmatprep.mubr.bf16.mxu0 %v3076
    %3569 = vmatmul.mubr.bf16.gmra.mxu0 %v3075
    %v3570 = vpop.f32.mrf.mxu0
    %v3571 = vadd.f32 %v2982, %v3570
    %v3572 = vpop.f32.mrf.mxu0
    %v3573 = vpop.f32.mrf.mxu0
    %v3574 = vadd.f32 %v2987, %v3573
    %v3575 = vpop.f32.mrf.mxu0
    %3576 = vmatprep.mubr.bf16.mxu0 %v3078
    %3577 = vmatmul.mubr.bf16.gmra.mxu0 %v3077
    %v3578 = vpop.f32.mrf.mxu0
    %v3579 = vadd.f32 %v2992, %v3578
    %v3580 = vpop.f32.mrf.mxu0
    %v3581 = vpop.f32.mrf.mxu0
    %v3582 = vadd.f32 %v2997, %v3581
    %v3583 = vpop.f32.mrf.mxu0
    %3584 = vmatprep.mubr.bf16.mxu0 %v3080
    %3585 = vmatmul.mubr.bf16.gmra.mxu0 %v3079
    %v3586 = vpop.f32.mrf.mxu0
    %v3587 = vadd.f32 %v3002, %v3586
    %v3588 = vpop.f32.mrf.mxu0
    %v3589 = vpop.f32.mrf.mxu0
    %v3590 = vadd.f32 %v3007, %v3589
    %v3591 = vpop.f32.mrf.mxu0
    %3592 = vmatprep.mubr.bf16.mxu0 %v3082
    %3593 = vmatmul.mubr.bf16.gmra.mxu0 %v3081
    %v3594 = vpop.f32.mrf.mxu0
    %v3595 = vadd.f32 %v3012, %v3594
    %v3596 = vpop.f32.mrf.mxu0
    %v3597 = vpop.f32.mrf.mxu0
    %v3598 = vadd.f32 %v3017, %v3597
    %v3599 = vpop.f32.mrf.mxu0
    %3600 = vdwg.mxu0
    %v3601 = vmax.f32 %v3539, 0.0
    %v3602 = vmax.f32 %v3542, 0.0
    %v3603 = vmax.f32 %v3547, 0.0
    %v3604 = vmax.f32 %v3550, 0.0
    %v3605 = vmax.f32 %v3555, 0.0
    %v3606 = vmax.f32 %v3558, 0.0
    %v3607 = vmax.f32 %v3563, 0.0
    %v3608 = vmax.f32 %v3566, 0.0
    %v3609 = vmax.f32 %v3571, 0.0
    %v3610 = vmax.f32 %v3574, 0.0
    %v3611 = vmax.f32 %v3579, 0.0
    %v3612 = vmax.f32 %v3582, 0.0
    %v3613 = vmax.f32 %v3587, 0.0
    %v3614 = vmax.f32 %v3590, 0.0
    %v3615 = vmax.f32 %v3595, 0.0
    %v3616 = vmax.f32 %v3598, 0.0
    %v3617 = vld [vmem:[%s3 + $0x210] sm:$0xff]
    %v3618 = vld [vmem:[%s3 + $0x218] sm:$0xff]
    %v3619 = vld [vmem:[%s3 + $0x220] sm:$0xff]
    %v3620 = vld [vmem:[%s3 + $0x228] sm:$0xff]
    %v3621 = vld [vmem:[%s3 + $0x230] sm:$0xff]
    %v3622 = vld [vmem:[%s3 + $0x238] sm:$0xff]
    %v3623 = vld [vmem:[%s3 + $0x240] sm:$0xff]
    %v3624 = vld [vmem:[%s3 + $0x248] sm:$0xff]
    %v3625 = vld [vmem:[%s3 + $0x250] sm:$0xff]
    %v3626 = vld [vmem:[%s3 + $0x258] sm:$0xff]
    %v3627 = vld [vmem:[%s3 + $0x260] sm:$0xff]
    %v3628 = vld [vmem:[%s3 + $0x268] sm:$0xff]
    %v3629 = vld [vmem:[%s3 + $0x270] sm:$0xff]
    %v3630 = vld [vmem:[%s3 + $0x278] sm:$0xff]
    %v3631 = vld [vmem:[%s3 + $0x280] sm:$0xff]
    %v3632 = vld [vmem:[%s3 + $0x288] sm:$0xff]
    %v3633 = vld [vmem:[%s3 + $0x290] sm:$0xff]
    %v3634 = vld [vmem:[%s3 + $0x298] sm:$0xff]
    %v3635 = vld [vmem:[%s3 + $0x2a0] sm:$0xff]
    %v3636 = vld [vmem:[%s3 + $0x2a8] sm:$0xff]
    %v3637 = vld [vmem:[%s3 + $0x2b0] sm:$0xff]
    %v3638 = vld [vmem:[%s3 + $0x2b8] sm:$0xff]
    %v3639 = vld [vmem:[%s3 + $0x2c0] sm:$0xff]
    %v3640 = vld [vmem:[%s3 + $0x2c8] sm:$0xff]
    %v3641 = vld [vmem:[%s3 + $0x2d0] sm:$0xff]
    %v3642 = vld [vmem:[%s3 + $0x2d8] sm:$0xff]
    %v3643 = vld [vmem:[%s3 + $0x2e0] sm:$0xff]
    %v3644 = vld [vmem:[%s3 + $0x2e8] sm:$0xff]
    %v3645 = vld [vmem:[%s3 + $0x2f0] sm:$0xff]
    %v3646 = vld [vmem:[%s3 + $0x2f8] sm:$0xff]
    %v3647 = vld [vmem:[%s3 + $0x300] sm:$0xff]
    %v3648 = vld [vmem:[%s3 + $0x308] sm:$0xff]
    %vm3649 = vcmask 31744
    %v3650 = vsel %vm3649, %v3196, 0.0
    %3651 = vadd.xlane.f32.xlu0 %v3650
    %v3652 = vpop.xlane.xlu0 %3651
    %v3653 = vsel %vm3649, %v3197, 0.0
    %3654 = vadd.xlane.f32.xlu0 %v3653
    %v3655 = vpop.xlane.xlu0 %3654
    %v3656 = vsel %vm3649, %v3198, 0.0
    %3657 = vadd.xlane.f32.xlu0 %v3656
    %v3658 = vpop.xlane.xlu0 %3657
    %v3659 = vsel %vm3649, %v3199, 0.0
    %3660 = vadd.xlane.f32.xlu0 %v3659
    %v3661 = vpop.xlane.xlu0 %3660
    %v3662 = vsel %vm3649, %v3200, 0.0
    %3663 = vadd.xlane.f32.xlu0 %v3662
    %v3664 = vpop.xlane.xlu0 %3663
    %v3665 = vsel %vm3649, %v3201, 0.0
    %3666 = vadd.xlane.f32.xlu0 %v3665
    %v3667 = vpop.xlane.xlu0 %3666
    %v3668 = vsel %vm3649, %v3202, 0.0
    %3669 = vadd.xlane.f32.xlu0 %v3668
    %v3670 = vpop.xlane.xlu0 %3669
    %v3671 = vsel %vm3649, %v3203, 0.0
    %3672 = vadd.xlane.f32.xlu0 %v3671
    %v3673 = vpop.xlane.xlu0 %3672
    %v3674 = vsel %vm3649, %v3204, 0.0
    %3675 = vadd.xlane.f32.xlu0 %v3674
    %v3676 = vpop.xlane.xlu0 %3675
    %v3677 = vsel %vm3649, %v3205, 0.0
    %3678 = vadd.xlane.f32.xlu0 %v3677
    %v3679 = vpop.xlane.xlu0 %3678
    %v3680 = vsel %vm3649, %v3206, 0.0
    %3681 = vadd.xlane.f32.xlu0 %v3680
    %v3682 = vpop.xlane.xlu0 %3681
    %v3683 = vsel %vm3649, %v3207, 0.0
    %3684 = vadd.xlane.f32.xlu0 %v3683
    %v3685 = vpop.xlane.xlu0 %3684
    %v3686 = vsel %vm3649, %v3208, 0.0
    %3687 = vadd.xlane.f32.xlu0 %v3686
    %v3688 = vpop.xlane.xlu0 %3687
    %v3689 = vsel %vm3649, %v3209, 0.0
    %3690 = vadd.xlane.f32.xlu0 %v3689
    %v3691 = vpop.xlane.xlu0 %3690
    %v3692 = vsel %vm3649, %v3210, 0.0
    %3693 = vadd.xlane.f32.xlu0 %v3692
    %v3694 = vpop.xlane.xlu0 %3693
    %v3695 = vsel %vm3649, %v3211, 0.0
    %3696 = vadd.xlane.f32.xlu0 %v3695
    %v3697 = vpop.xlane.xlu0 %3696
    %v3698 = vadd.f32 %v3652, 0.0
    %v3699 = vadd.f32 %v3655, 0.0
    %v3700 = vadd.f32 %v3658, 0.0
    %v3701 = vadd.f32 %v3661, 0.0
    %v3702 = vadd.f32 %v3664, 0.0
    %v3703 = vadd.f32 %v3667, 0.0
    %v3704 = vadd.f32 %v3670, 0.0
    %v3705 = vadd.f32 %v3673, 0.0
    %v3706 = vadd.f32 %v3676, 0.0
    %v3707 = vadd.f32 %v3679, 0.0
    %v3708 = vadd.f32 %v3682, 0.0
    %v3709 = vadd.f32 %v3685, 0.0
    %v3710 = vadd.f32 %v3688, 0.0
    %v3711 = vadd.f32 %v3691, 0.0
    %v3712 = vadd.f32 %v3694, 0.0
    %v3713 = vadd.f32 %v3697, 0.0
    %v3714 = vsel %vm3649, %v3601, 0.0
    %3715 = vadd.xlane.f32.xlu0 %v3714
    %v3716 = vpop.xlane.xlu0 %3715
    %v3717 = vsel %vm3649, %v3602, 0.0
    %3718 = vadd.xlane.f32.xlu0 %v3717
    %v3719 = vpop.xlane.xlu0 %3718
    %v3720 = vsel %vm3649, %v3603, 0.0
    %3721 = vadd.xlane.f32.xlu0 %v3720
    %v3722 = vpop.xlane.xlu0 %3721
    %v3723 = vsel %vm3649, %v3604, 0.0
    %3724 = vadd.xlane.f32.xlu0 %v3723
    %v3725 = vpop.xlane.xlu0 %3724
    %v3726 = vsel %vm3649, %v3605, 0.0
    %3727 = vadd.xlane.f32.xlu0 %v3726
    %v3728 = vpop.xlane.xlu0 %3727
    %v3729 = vsel %vm3649, %v3606, 0.0
    %3730 = vadd.xlane.f32.xlu0 %v3729
    %v3731 = vpop.xlane.xlu0 %3730
    %v3732 = vsel %vm3649, %v3607, 0.0
    %3733 = vadd.xlane.f32.xlu0 %v3732
    %v3734 = vpop.xlane.xlu0 %3733
    %v3735 = vsel %vm3649, %v3608, 0.0
    %3736 = vadd.xlane.f32.xlu0 %v3735
    %v3737 = vpop.xlane.xlu0 %3736
    %v3738 = vsel %vm3649, %v3609, 0.0
    %3739 = vadd.xlane.f32.xlu0 %v3738
    %v3740 = vpop.xlane.xlu0 %3739
    %v3741 = vsel %vm3649, %v3610, 0.0
    %3742 = vadd.xlane.f32.xlu0 %v3741
    %v3743 = vpop.xlane.xlu0 %3742
    %v3744 = vsel %vm3649, %v3611, 0.0
    %3745 = vadd.xlane.f32.xlu0 %v3744
    %v3746 = vpop.xlane.xlu0 %3745
    %v3747 = vsel %vm3649, %v3612, 0.0
    %3748 = vadd.xlane.f32.xlu0 %v3747
    %v3749 = vpop.xlane.xlu0 %3748
    %v3750 = vsel %vm3649, %v3613, 0.0
    %3751 = vadd.xlane.f32.xlu0 %v3750
    %v3752 = vpop.xlane.xlu0 %3751
    %v3753 = vsel %vm3649, %v3614, 0.0
    %3754 = vadd.xlane.f32.xlu0 %v3753
    %v3755 = vpop.xlane.xlu0 %3754
    %v3756 = vsel %vm3649, %v3615, 0.0
    %3757 = vadd.xlane.f32.xlu0 %v3756
    %v3758 = vpop.xlane.xlu0 %3757
    %v3759 = vsel %vm3649, %v3616, 0.0
    %3760 = vadd.xlane.f32.xlu0 %v3759
    %v3761 = vpop.xlane.xlu0 %3760
    %v3762 = vadd.f32 %v3698, %v3716
    %v3763 = vadd.f32 %v3699, %v3719
    %v3764 = vadd.f32 %v3700, %v3722
    %v3765 = vadd.f32 %v3701, %v3725
    %v3766 = vadd.f32 %v3702, %v3728
    %v3767 = vadd.f32 %v3703, %v3731
    %v3768 = vadd.f32 %v3704, %v3734
    %v3769 = vadd.f32 %v3705, %v3737
    %v3770 = vadd.f32 %v3706, %v3740
    %v3771 = vadd.f32 %v3707, %v3743
    %v3772 = vadd.f32 %v3708, %v3746
    %v3773 = vadd.f32 %v3709, %v3749
    %v3774 = vadd.f32 %v3710, %v3752
    %v3775 = vadd.f32 %v3711, %v3755
    %v3776 = vadd.f32 %v3712, %v3758
    %v3777 = vadd.f32 %v3713, %v3761
    %v3778 = vmul.f32 %v3762, 0.125
    %v3779 = vmul.f32 %v3763, 0.125
    %v3780 = vmul.f32 %v3764, 0.125
    %v3781 = vmul.f32 %v3765, 0.125
    %v3782 = vmul.f32 %v3766, 0.125
    %v3783 = vmul.f32 %v3767, 0.125
    %v3784 = vmul.f32 %v3768, 0.125
    %v3785 = vmul.f32 %v3769, 0.125
    %v3786 = vmul.f32 %v3770, 0.125
    %v3787 = vmul.f32 %v3771, 0.125
    %v3788 = vmul.f32 %v3772, 0.125
    %v3789 = vmul.f32 %v3773, 0.125
    %v3790 = vmul.f32 %v3774, 0.125
    %v3791 = vmul.f32 %v3775, 0.125
    %v3792 = vmul.f32 %v3776, 0.125
    %v3793 = vmul.f32 %v3777, 0.125
    %v3794 = vsub.f32 %v3196, %v3778
    %v3795 = vsub.f32 %v3197, %v3779
    %v3796 = vsub.f32 %v3198, %v3780
    %v3797 = vsub.f32 %v3199, %v3781
    %v3798 = vsub.f32 %v3200, %v3782
    %v3799 = vsub.f32 %v3201, %v3783
    %v3800 = vsub.f32 %v3202, %v3784
    %v3801 = vsub.f32 %v3203, %v3785
    %v3802 = vsub.f32 %v3204, %v3786
    %v3803 = vsub.f32 %v3205, %v3787
    %v3804 = vsub.f32 %v3206, %v3788
    %v3805 = vsub.f32 %v3207, %v3789
    %v3806 = vsub.f32 %v3208, %v3790
    %v3807 = vsub.f32 %v3209, %v3791
    %v3808 = vsub.f32 %v3210, %v3792
    %v3809 = vsub.f32 %v3211, %v3793
    %v3810 = vsub.f32 %v3601, %v3778
    %v3811 = vsub.f32 %v3602, %v3779
    %v3812 = vsub.f32 %v3603, %v3780
    %v3813 = vsub.f32 %v3604, %v3781
    %v3814 = vsub.f32 %v3605, %v3782
    %v3815 = vsub.f32 %v3606, %v3783
    %v3816 = vsub.f32 %v3607, %v3784
    %v3817 = vsub.f32 %v3608, %v3785
    %v3818 = vsub.f32 %v3609, %v3786
    %v3819 = vsub.f32 %v3610, %v3787
    %v3820 = vsub.f32 %v3611, %v3788
    %v3821 = vsub.f32 %v3612, %v3789
    %v3822 = vsub.f32 %v3613, %v3790
    %v3823 = vsub.f32 %v3614, %v3791
    %v3824 = vsub.f32 %v3615, %v3792
    %v3825 = vsub.f32 %v3616, %v3793
    %v3826 = vmul.f32 %v3794, %v3794
    %v3827 = vmul.f32 %v3795, %v3795
    %v3828 = vmul.f32 %v3796, %v3796
    %v3829 = vmul.f32 %v3797, %v3797
    %v3830 = vmul.f32 %v3798, %v3798
    %v3831 = vmul.f32 %v3799, %v3799
    %v3832 = vmul.f32 %v3800, %v3800
    %v3833 = vmul.f32 %v3801, %v3801
    %v3834 = vmul.f32 %v3802, %v3802
    %v3835 = vmul.f32 %v3803, %v3803
    %v3836 = vmul.f32 %v3804, %v3804
    %v3837 = vmul.f32 %v3805, %v3805
    %v3838 = vmul.f32 %v3806, %v3806
    %v3839 = vmul.f32 %v3807, %v3807
    %v3840 = vmul.f32 %v3808, %v3808
    %v3841 = vmul.f32 %v3809, %v3809
    %v3842 = vsel %vm3649, %v3826, 0.0
    %3843 = vadd.xlane.f32.xlu0 %v3842
    %v3844 = vpop.xlane.xlu0 %3843
    %v3845 = vsel %vm3649, %v3827, 0.0
    %3846 = vadd.xlane.f32.xlu0 %v3845
    %v3847 = vpop.xlane.xlu0 %3846
    %v3848 = vsel %vm3649, %v3828, 0.0
    %3849 = vadd.xlane.f32.xlu0 %v3848
    %v3850 = vpop.xlane.xlu0 %3849
    %v3851 = vsel %vm3649, %v3829, 0.0
    %3852 = vadd.xlane.f32.xlu0 %v3851
    %v3853 = vpop.xlane.xlu0 %3852
    %v3854 = vsel %vm3649, %v3830, 0.0
    %3855 = vadd.xlane.f32.xlu0 %v3854
    %v3856 = vpop.xlane.xlu0 %3855
    %v3857 = vsel %vm3649, %v3831, 0.0
    %3858 = vadd.xlane.f32.xlu0 %v3857
    %v3859 = vpop.xlane.xlu0 %3858
    %v3860 = vsel %vm3649, %v3832, 0.0
    %3861 = vadd.xlane.f32.xlu0 %v3860
    %v3862 = vpop.xlane.xlu0 %3861
    %v3863 = vsel %vm3649, %v3833, 0.0
    %3864 = vadd.xlane.f32.xlu0 %v3863
    %v3865 = vpop.xlane.xlu0 %3864
    %v3866 = vsel %vm3649, %v3834, 0.0
    %3867 = vadd.xlane.f32.xlu0 %v3866
    %v3868 = vpop.xlane.xlu0 %3867
    %v3869 = vsel %vm3649, %v3835, 0.0
    %3870 = vadd.xlane.f32.xlu0 %v3869
    %v3871 = vpop.xlane.xlu0 %3870
    %v3872 = vsel %vm3649, %v3836, 0.0
    %3873 = vadd.xlane.f32.xlu0 %v3872
    %v3874 = vpop.xlane.xlu0 %3873
    %v3875 = vsel %vm3649, %v3837, 0.0
    %3876 = vadd.xlane.f32.xlu0 %v3875
    %v3877 = vpop.xlane.xlu0 %3876
    %v3878 = vsel %vm3649, %v3838, 0.0
    %3879 = vadd.xlane.f32.xlu0 %v3878
    %v3880 = vpop.xlane.xlu0 %3879
    %v3881 = vsel %vm3649, %v3839, 0.0
    %3882 = vadd.xlane.f32.xlu0 %v3881
    %v3883 = vpop.xlane.xlu0 %3882
    %v3884 = vsel %vm3649, %v3840, 0.0
    %3885 = vadd.xlane.f32.xlu0 %v3884
    %v3886 = vpop.xlane.xlu0 %3885
    %v3887 = vsel %vm3649, %v3841, 0.0
    %3888 = vadd.xlane.f32.xlu0 %v3887
    %v3889 = vpop.xlane.xlu0 %3888
    %v3890 = vadd.f32 %v3844, 0.0
    %v3891 = vadd.f32 %v3847, 0.0
    %v3892 = vadd.f32 %v3850, 0.0
    %v3893 = vadd.f32 %v3853, 0.0
    %v3894 = vadd.f32 %v3856, 0.0
    %v3895 = vadd.f32 %v3859, 0.0
    %v3896 = vadd.f32 %v3862, 0.0
    %v3897 = vadd.f32 %v3865, 0.0
    %v3898 = vadd.f32 %v3868, 0.0
    %v3899 = vadd.f32 %v3871, 0.0
    %v3900 = vadd.f32 %v3874, 0.0
    %v3901 = vadd.f32 %v3877, 0.0
    %v3902 = vadd.f32 %v3880, 0.0
    %v3903 = vadd.f32 %v3883, 0.0
    %v3904 = vadd.f32 %v3886, 0.0
    %v3905 = vadd.f32 %v3889, 0.0
    %v3906 = vmul.f32 %v3810, %v3810
    %v3907 = vmul.f32 %v3811, %v3811
    %v3908 = vmul.f32 %v3812, %v3812
    %v3909 = vmul.f32 %v3813, %v3813
    %v3910 = vmul.f32 %v3814, %v3814
    %v3911 = vmul.f32 %v3815, %v3815
    %v3912 = vmul.f32 %v3816, %v3816
    %v3913 = vmul.f32 %v3817, %v3817
    %v3914 = vmul.f32 %v3818, %v3818
    %v3915 = vmul.f32 %v3819, %v3819
    %v3916 = vmul.f32 %v3820, %v3820
    %v3917 = vmul.f32 %v3821, %v3821
    %v3918 = vmul.f32 %v3822, %v3822
    %v3919 = vmul.f32 %v3823, %v3823
    %v3920 = vmul.f32 %v3824, %v3824
    %v3921 = vmul.f32 %v3825, %v3825
    %v3922 = vsel %vm3649, %v3906, 0.0
    %3923 = vadd.xlane.f32.xlu0 %v3922
    %v3924 = vpop.xlane.xlu0 %3923
    %v3925 = vsel %vm3649, %v3907, 0.0
    %3926 = vadd.xlane.f32.xlu0 %v3925
    %v3927 = vpop.xlane.xlu0 %3926
    %v3928 = vsel %vm3649, %v3908, 0.0
    %3929 = vadd.xlane.f32.xlu0 %v3928
    %v3930 = vpop.xlane.xlu0 %3929
    %v3931 = vsel %vm3649, %v3909, 0.0
    %3932 = vadd.xlane.f32.xlu0 %v3931
    %v3933 = vpop.xlane.xlu0 %3932
    %v3934 = vsel %vm3649, %v3910, 0.0
    %3935 = vadd.xlane.f32.xlu0 %v3934
    %v3936 = vpop.xlane.xlu0 %3935
    %v3937 = vsel %vm3649, %v3911, 0.0
    %3938 = vadd.xlane.f32.xlu0 %v3937
    %v3939 = vpop.xlane.xlu0 %3938
    %v3940 = vsel %vm3649, %v3912, 0.0
    %3941 = vadd.xlane.f32.xlu0 %v3940
    %v3942 = vpop.xlane.xlu0 %3941
    %v3943 = vsel %vm3649, %v3913, 0.0
    %3944 = vadd.xlane.f32.xlu0 %v3943
    %v3945 = vpop.xlane.xlu0 %3944
    %v3946 = vsel %vm3649, %v3914, 0.0
    %3947 = vadd.xlane.f32.xlu0 %v3946
    %v3948 = vpop.xlane.xlu0 %3947
    %v3949 = vsel %vm3649, %v3915, 0.0
    %3950 = vadd.xlane.f32.xlu0 %v3949
    %v3951 = vpop.xlane.xlu0 %3950
    %v3952 = vsel %vm3649, %v3916, 0.0
    %3953 = vadd.xlane.f32.xlu0 %v3952
    %v3954 = vpop.xlane.xlu0 %3953
    %v3955 = vsel %vm3649, %v3917, 0.0
    %3956 = vadd.xlane.f32.xlu0 %v3955
    %v3957 = vpop.xlane.xlu0 %3956
    %v3958 = vsel %vm3649, %v3918, 0.0
    %3959 = vadd.xlane.f32.xlu0 %v3958
    %v3960 = vpop.xlane.xlu0 %3959
    %v3961 = vsel %vm3649, %v3919, 0.0
    %3962 = vadd.xlane.f32.xlu0 %v3961
    %v3963 = vpop.xlane.xlu0 %3962
    %v3964 = vsel %vm3649, %v3920, 0.0
    %3965 = vadd.xlane.f32.xlu0 %v3964
    %v3966 = vpop.xlane.xlu0 %3965
    %v3967 = vsel %vm3649, %v3921, 0.0
    %3968 = vadd.xlane.f32.xlu0 %v3967
    %v3969 = vpop.xlane.xlu0 %3968
    %v3970 = vadd.f32 %v3890, %v3924
    %v3971 = vadd.f32 %v3891, %v3927
    %v3972 = vadd.f32 %v3892, %v3930
    %v3973 = vadd.f32 %v3893, %v3933
    %v3974 = vadd.f32 %v3894, %v3936
    %v3975 = vadd.f32 %v3895, %v3939
    %v3976 = vadd.f32 %v3896, %v3942
    %v3977 = vadd.f32 %v3897, %v3945
    %v3978 = vadd.f32 %v3898, %v3948
    %v3979 = vadd.f32 %v3899, %v3951
    %v3980 = vadd.f32 %v3900, %v3954
    %v3981 = vadd.f32 %v3901, %v3957
    %v3982 = vadd.f32 %v3902, %v3960
    %v3983 = vadd.f32 %v3903, %v3963
    %v3984 = vadd.f32 %v3904, %v3966
    %v3985 = vadd.f32 %v3905, %v3969
    %v3986 = vmul.f32 %v3970, 0.125
    %v3987 = vmul.f32 %v3971, 0.125
    %v3988 = vmul.f32 %v3972, 0.125
    %v3989 = vmul.f32 %v3973, 0.125
    %v3990 = vmul.f32 %v3974, 0.125
    %v3991 = vmul.f32 %v3975, 0.125
    %v3992 = vmul.f32 %v3976, 0.125
    %v3993 = vmul.f32 %v3977, 0.125
    %v3994 = vmul.f32 %v3978, 0.125
    %v3995 = vmul.f32 %v3979, 0.125
    %v3996 = vmul.f32 %v3980, 0.125
    %v3997 = vmul.f32 %v3981, 0.125
    %v3998 = vmul.f32 %v3982, 0.125
    %v3999 = vmul.f32 %v3983, 0.125
    %v4000 = vmul.f32 %v3984, 0.125
    %v4001 = vmul.f32 %v3985, 0.125
    %v4002 = vadd.f32 %v3986, 1e-05
    %v4003 = vadd.f32 %v3987, 1e-05
    %v4004 = vadd.f32 %v3988, 1e-05
    %v4005 = vadd.f32 %v3989, 1e-05
    %v4006 = vadd.f32 %v3990, 1e-05
    %v4007 = vadd.f32 %v3991, 1e-05
    %v4008 = vadd.f32 %v3992, 1e-05
    %v4009 = vadd.f32 %v3993, 1e-05
    %v4010 = vadd.f32 %v3994, 1e-05
    %v4011 = vadd.f32 %v3995, 1e-05
    %v4012 = vadd.f32 %v3996, 1e-05
    %v4013 = vadd.f32 %v3997, 1e-05
    %v4014 = vadd.f32 %v3998, 1e-05
    %v4015 = vadd.f32 %v3999, 1e-05
    %v4016 = vadd.f32 %v4000, 1e-05
    %v4017 = vadd.f32 %v4001, 1e-05
    %v4018 = vrsqrt.pop %v4002
    %v4019 = vrsqrt.pop %v4003
    %v4020 = vrsqrt.pop %v4004
    %v4021 = vrsqrt.pop %v4005
    %v4022 = vrsqrt.pop %v4006
    %v4023 = vrsqrt.pop %v4007
    %v4024 = vrsqrt.pop %v4008
    %v4025 = vrsqrt.pop %v4009
    %v4026 = vrsqrt.pop %v4010
    %v4027 = vrsqrt.pop %v4011
    %v4028 = vrsqrt.pop %v4012
    %v4029 = vrsqrt.pop %v4013
    %v4030 = vrsqrt.pop %v4014
    %v4031 = vrsqrt.pop %v4015
    %v4032 = vrsqrt.pop %v4016
    %v4033 = vrsqrt.pop %v4017
    %v4034 = vmul.f32 %v4018, %v3617
    %v4035 = vmul.f32 %v4019, %v3618
    %v4036 = vmul.f32 %v4020, %v3619
    %v4037 = vmul.f32 %v4021, %v3620
    %v4038 = vmul.f32 %v4022, %v3621
    %v4039 = vmul.f32 %v4023, %v3622
    %v4040 = vmul.f32 %v4024, %v3623
    %v4041 = vmul.f32 %v4025, %v3624
    %v4042 = vmul.f32 %v4026, %v3625
    %v4043 = vmul.f32 %v4027, %v3626
    %v4044 = vmul.f32 %v4028, %v3627
    %v4045 = vmul.f32 %v4029, %v3628
    %v4046 = vmul.f32 %v4030, %v3629
    %v4047 = vmul.f32 %v4031, %v3630
    %v4048 = vmul.f32 %v4032, %v3631
    %v4049 = vmul.f32 %v4033, %v3632
    %4051 = vset.pattern.permute.xlu0 0
    %4052 = vperm.xlu0 %4051, %v4034
    %v4053 = vpop.permute.xlu0 %4052
    %4056 = vset.pattern.permute.xlu0 0
    %4057 = vperm.xlu0 %4056, %v4035
    %v4058 = vpop.permute.xlu0 %4057
    %4061 = vset.pattern.permute.xlu0 0
    %4062 = vperm.xlu0 %4061, %v4036
    %v4063 = vpop.permute.xlu0 %4062
    %4066 = vset.pattern.permute.xlu0 0
    %4067 = vperm.xlu0 %4066, %v4037
    %v4068 = vpop.permute.xlu0 %4067
    %4071 = vset.pattern.permute.xlu0 0
    %4072 = vperm.xlu0 %4071, %v4038
    %v4073 = vpop.permute.xlu0 %4072
    %4076 = vset.pattern.permute.xlu0 0
    %4077 = vperm.xlu0 %4076, %v4039
    %v4078 = vpop.permute.xlu0 %4077
    %4081 = vset.pattern.permute.xlu0 0
    %4082 = vperm.xlu0 %4081, %v4040
    %v4083 = vpop.permute.xlu0 %4082
    %4086 = vset.pattern.permute.xlu0 0
    %4087 = vperm.xlu0 %4086, %v4041
    %v4088 = vpop.permute.xlu0 %4087
    %4091 = vset.pattern.permute.xlu0 0
    %4092 = vperm.xlu0 %4091, %v4042
    %v4093 = vpop.permute.xlu0 %4092
    %4096 = vset.pattern.permute.xlu0 0
    %4097 = vperm.xlu0 %4096, %v4043
    %v4098 = vpop.permute.xlu0 %4097
    %4101 = vset.pattern.permute.xlu0 0
    %4102 = vperm.xlu0 %4101, %v4044
    %v4103 = vpop.permute.xlu0 %4102
    %4106 = vset.pattern.permute.xlu0 0
    %4107 = vperm.xlu0 %4106, %v4045
    %v4108 = vpop.permute.xlu0 %4107
    %4111 = vset.pattern.permute.xlu0 0
    %4112 = vperm.xlu0 %4111, %v4046
    %v4113 = vpop.permute.xlu0 %4112
    %4116 = vset.pattern.permute.xlu0 0
    %4117 = vperm.xlu0 %4116, %v4047
    %v4118 = vpop.permute.xlu0 %4117
    %4121 = vset.pattern.permute.xlu0 0
    %4122 = vperm.xlu0 %4121, %v4048
    %v4123 = vpop.permute.xlu0 %4122
    %4126 = vset.pattern.permute.xlu0 0
    %4127 = vperm.xlu0 %4126, %v4049
    %v4128 = vpop.permute.xlu0 %4127
    %v4130 = vmul.f32 %v3794, %v4053
    %v4131 = vmul.f32 %v3795, %v4058
    %v4132 = vmul.f32 %v3796, %v4063
    %v4133 = vmul.f32 %v3797, %v4068
    %v4134 = vmul.f32 %v3798, %v4073
    %v4135 = vmul.f32 %v3799, %v4078
    %v4136 = vmul.f32 %v3800, %v4083
    %v4137 = vmul.f32 %v3801, %v4088
    %v4138 = vmul.f32 %v3802, %v4093
    %v4139 = vmul.f32 %v3803, %v4098
    %v4140 = vmul.f32 %v3804, %v4103
    %v4141 = vmul.f32 %v3805, %v4108
    %v4142 = vmul.f32 %v3806, %v4113
    %v4143 = vmul.f32 %v3807, %v4118
    %v4144 = vmul.f32 %v3808, %v4123
    %v4145 = vmul.f32 %v3809, %v4128
    %4147 = vset.pattern.permute.xlu0 0
    %4148 = vperm.xlu0 %4147, %v3633
    %v4149 = vpop.permute.xlu0 %4148
    %4152 = vset.pattern.permute.xlu0 0
    %4153 = vperm.xlu0 %4152, %v3634
    %v4154 = vpop.permute.xlu0 %4153
    %4157 = vset.pattern.permute.xlu0 0
    %4158 = vperm.xlu0 %4157, %v3635
    %v4159 = vpop.permute.xlu0 %4158
    %4162 = vset.pattern.permute.xlu0 0
    %4163 = vperm.xlu0 %4162, %v3636
    %v4164 = vpop.permute.xlu0 %4163
    %4167 = vset.pattern.permute.xlu0 0
    %4168 = vperm.xlu0 %4167, %v3637
    %v4169 = vpop.permute.xlu0 %4168
    %4172 = vset.pattern.permute.xlu0 0
    %4173 = vperm.xlu0 %4172, %v3638
    %v4174 = vpop.permute.xlu0 %4173
    %4177 = vset.pattern.permute.xlu0 0
    %4178 = vperm.xlu0 %4177, %v3639
    %v4179 = vpop.permute.xlu0 %4178
    %4182 = vset.pattern.permute.xlu0 0
    %4183 = vperm.xlu0 %4182, %v3640
    %v4184 = vpop.permute.xlu0 %4183
    %4187 = vset.pattern.permute.xlu0 0
    %4188 = vperm.xlu0 %4187, %v3641
    %v4189 = vpop.permute.xlu0 %4188
    %4192 = vset.pattern.permute.xlu0 0
    %4193 = vperm.xlu0 %4192, %v3642
    %v4194 = vpop.permute.xlu0 %4193
    %4197 = vset.pattern.permute.xlu0 0
    %4198 = vperm.xlu0 %4197, %v3643
    %v4199 = vpop.permute.xlu0 %4198
    %4202 = vset.pattern.permute.xlu0 0
    %4203 = vperm.xlu0 %4202, %v3644
    %v4204 = vpop.permute.xlu0 %4203
    %4207 = vset.pattern.permute.xlu0 0
    %4208 = vperm.xlu0 %4207, %v3645
    %v4209 = vpop.permute.xlu0 %4208
    %4212 = vset.pattern.permute.xlu0 0
    %4213 = vperm.xlu0 %4212, %v3646
    %v4214 = vpop.permute.xlu0 %4213
    %4217 = vset.pattern.permute.xlu0 0
    %4218 = vperm.xlu0 %4217, %v3647
    %v4219 = vpop.permute.xlu0 %4218
    %4222 = vset.pattern.permute.xlu0 0
    %4223 = vperm.xlu0 %4222, %v3648
    %v4224 = vpop.permute.xlu0 %4223
    %v4226 = vadd.f32 %v4130, %v4149
    %v4227 = vadd.f32 %v4131, %v4154
    %v4228 = vadd.f32 %v4132, %v4159
    %v4229 = vadd.f32 %v4133, %v4164
    %v4230 = vadd.f32 %v4134, %v4169
    %v4231 = vadd.f32 %v4135, %v4174
    %v4232 = vadd.f32 %v4136, %v4179
    %v4233 = vadd.f32 %v4137, %v4184
    %v4234 = vadd.f32 %v4138, %v4189
    %v4235 = vadd.f32 %v4139, %v4194
    %v4236 = vadd.f32 %v4140, %v4199
    %v4237 = vadd.f32 %v4141, %v4204
    %v4238 = vadd.f32 %v4142, %v4209
    %v4239 = vadd.f32 %v4143, %v4214
    %v4240 = vadd.f32 %v4144, %v4219
    %v4241 = vadd.f32 %v4145, %v4224
    %v4242 = vmul.f32 %v3810, %v4053
    %v4243 = vmul.f32 %v3811, %v4058
    %v4244 = vmul.f32 %v3812, %v4063
    %v4245 = vmul.f32 %v3813, %v4068
    %v4246 = vmul.f32 %v3814, %v4073
    %v4247 = vmul.f32 %v3815, %v4078
    %v4248 = vmul.f32 %v3816, %v4083
    %v4249 = vmul.f32 %v3817, %v4088
    %v4250 = vmul.f32 %v3818, %v4093
    %v4251 = vmul.f32 %v3819, %v4098
    %v4252 = vmul.f32 %v3820, %v4103
    %v4253 = vmul.f32 %v3821, %v4108
    %v4254 = vmul.f32 %v3822, %v4113
    %v4255 = vmul.f32 %v3823, %v4118
    %v4256 = vmul.f32 %v3824, %v4123
    %v4257 = vmul.f32 %v3825, %v4128
    %v4258 = vadd.f32 %v4242, %v4149
    %v4259 = vadd.f32 %v4243, %v4154
    %v4260 = vadd.f32 %v4244, %v4159
    %v4261 = vadd.f32 %v4245, %v4164
    %v4262 = vadd.f32 %v4246, %v4169
    %v4263 = vadd.f32 %v4247, %v4174
    %v4264 = vadd.f32 %v4248, %v4179
    %v4265 = vadd.f32 %v4249, %v4184
    %v4266 = vadd.f32 %v4250, %v4189
    %v4267 = vadd.f32 %v4251, %v4194
    %v4268 = vadd.f32 %v4252, %v4199
    %v4269 = vadd.f32 %v4253, %v4204
    %v4270 = vadd.f32 %v4254, %v4209
    %v4271 = vadd.f32 %v4255, %v4214
    %v4272 = vadd.f32 %v4256, %v4219
    %v4273 = vadd.f32 %v4257, %v4224
    %v4274 = vld [vmem:[%s3 + $0x310] sm:$0xff]
    %v4275 = vld [vmem:[%s3 + $0x318] sm:$0xff]
    %v4276 = vld [vmem:[%s3 + $0x320] sm:$0xff]
    %v4277 = vld [vmem:[%s3 + $0x328] sm:$0xff]
    %v4278 = vld [vmem:[%s3 + $0x330] sm:$0xff]
    %v4279 = vld [vmem:[%s3 + $0x338] sm:$0xff]
    %v4280 = vld [vmem:[%s3 + $0x340] sm:$0xff]
    %v4281 = vld [vmem:[%s3 + $0x348] sm:$0xff]
    %v4282 = vld [vmem:[%s2 + $0x100] sm:$0x3]
    %v4283 = vld [vmem:[%s2 + $0x108] sm:$0x3]
    %v4284 = vld [vmem:[%s2 + $0x110] sm:$0x3]
    %v4285 = vld [vmem:[%s2 + $0x118] sm:$0x3]
    %v4286 = vld [vmem:[%s1 + $0x1c0] sm:$0xff]
    %v4287 = vld [vmem:[%s1 + $0x1c8] sm:$0xff]
    %v4288 = vld [vmem:[%s1 + $0x1d0] sm:$0xff]
    %v4289 = vld [vmem:[%s1 + $0x1d8] sm:$0xff]
    %v4290 = vld [vmem:[%s1 + $0x1e0] sm:$0xff]
    %v4291 = vld [vmem:[%s1 + $0x1e8] sm:$0xff]
    %v4292 = vld [vmem:[%s1 + $0x1f0] sm:$0xff]
    %v4293 = vld [vmem:[%s1 + $0x1f8] sm:$0xff]
    %v4294 = vld [vmem:[%s1 + $0x200] sm:$0xff]
    %v4295 = vld [vmem:[%s1 + $0x208] sm:$0xff]
    %v4296 = vld [vmem:[%s1 + $0x210] sm:$0xff]
    %v4297 = vld [vmem:[%s1 + $0x218] sm:$0xff]
    %v4298 = vld [vmem:[%s1 + $0x220] sm:$0xff]
    %v4299 = vld [vmem:[%s1 + $0x228] sm:$0xff]
    %v4300 = vld [vmem:[%s1 + $0x230] sm:$0xff]
    %v4301 = vld [vmem:[%s1 + $0x238] sm:$0xff]
    %v4302 = vpack.c.bf16 %v4227, %v4226
    %v4303 = vpack.c.bf16 %v4229, %v4228
    %v4304 = vpack.c.bf16 %v4231, %v4230
    %v4305 = vpack.c.bf16 %v4233, %v4232
    %v4306 = vpack.c.bf16 %v4235, %v4234
    %v4307 = vpack.c.bf16 %v4237, %v4236
    %v4308 = vpack.c.bf16 %v4239, %v4238
    %v4309 = vpack.c.bf16 %v4241, %v4240
    %v4311 = vsel %vm3649, %v4302, 0
    %v4314 = vsel %vm3649, %v4303, 0
    %v4317 = vsel %vm3649, %v4304, 0
    %v4320 = vsel %vm3649, %v4305, 0
    %v4323 = vsel %vm3649, %v4306, 0
    %v4326 = vsel %vm3649, %v4307, 0
    %v4329 = vsel %vm3649, %v4308, 0
    %v4332 = vsel %vm3649, %v4309, 0
    %vm4334 = vcmask 1041408
    %v4336 = vsel %vm4334, %v4282, 0
    %4338 = vmatprep.subr.bf16.mxu0 0
    %4339 = vmatpush1.bf16.msra.mxu0 0
    %4340 = vmatprep.subr.bf16.mxu0 0
    %4341 = vmatpush1.bf16.msra.mxu0 0
    %4342 = vmatprep.subr.bf16.mxu0 0
    %4343 = vmatpush1.bf16.msra.mxu0 0
    %4344 = vmatprep.subr.bf16.mxu0 0
    %4345 = vmatpush1.bf16.msra.mxu0 0
    %4346 = vmatprep.subr.bf16.mxu0 0
    %4347 = vmatpush1.bf16.msra.mxu0 0
    %4348 = vmatprep.subr.bf16.mxu0 0
    %4349 = vmatpush1.bf16.msra.mxu0 0
    %4350 = vmatprep.subr.bf16.mxu0 0
    %4351 = vmatpush1.bf16.msra.mxu0 0
    %4352 = vmatprep.subr.bf16.mxu0 0
    %4353 = vmatpush1.bf16.msra.mxu0 %v4336
    %4354 = vmatprep.subr.bf16.mxu0 0
    %4355 = vmatpush2.bf16.msra.mxu0 0
    %4356 = vmatprep.subr.bf16.mxu0 0
    %4357 = vmatpush2.bf16.msra.mxu0 0
    %4358 = vmatprep.subr.bf16.mxu0 0
    %4359 = vmatpush2.bf16.msra.mxu0 0
    %4360 = vmatprep.subr.bf16.mxu0 0
    %4361 = vmatpush2.bf16.msra.mxu0 0
    %4362 = vmatprep.subr.bf16.mxu0 0
    %4363 = vmatpush2.bf16.msra.mxu0 0
    %4364 = vmatprep.subr.bf16.mxu0 0
    %4365 = vmatpush2.bf16.msra.mxu0 0
    %4366 = vmatprep.subr.bf16.mxu0 0
    %4367 = vmatpush2.bf16.msra.mxu0 0
    %4368 = vmatprep.subr.bf16.mxu0 0
    %4369 = vmatpush2.bf16.msra.mxu0 0
    %4370 = vmatprep.mubr.bf16.mxu0 0
    %4371 = vmatmul.mubr.bf16.gmra.mxu0 %v4311
    %v4372 = vpop.f32.mrf.mxu0
    %v4373 = vadd.f32 0.0, %v4372
    %v4374 = vpop.f32.mrf.mxu0
    %v4375 = vpop.f32.mrf.mxu0
    %v4376 = vadd.f32 0.0, %v4375
    %v4377 = vpop.f32.mrf.mxu0
    %4378 = vmatprep.mubr.bf16.mxu0 0
    %4379 = vmatmul.mubr.bf16.gmra.mxu0 %v4314
    %v4380 = vpop.f32.mrf.mxu0
    %v4381 = vadd.f32 0.0, %v4380
    %v4382 = vpop.f32.mrf.mxu0
    %v4383 = vpop.f32.mrf.mxu0
    %v4384 = vadd.f32 0.0, %v4383
    %v4385 = vpop.f32.mrf.mxu0
    %4386 = vmatprep.mubr.bf16.mxu0 0
    %4387 = vmatmul.mubr.bf16.gmra.mxu0 %v4317
    %v4388 = vpop.f32.mrf.mxu0
    %v4389 = vadd.f32 0.0, %v4388
    %v4390 = vpop.f32.mrf.mxu0
    %v4391 = vpop.f32.mrf.mxu0
    %v4392 = vadd.f32 0.0, %v4391
    %v4393 = vpop.f32.mrf.mxu0
    %4394 = vmatprep.mubr.bf16.mxu0 0
    %4395 = vmatmul.mubr.bf16.gmra.mxu0 %v4320
    %v4396 = vpop.f32.mrf.mxu0
    %v4397 = vadd.f32 0.0, %v4396
    %v4398 = vpop.f32.mrf.mxu0
    %v4399 = vpop.f32.mrf.mxu0
    %v4400 = vadd.f32 0.0, %v4399
    %v4401 = vpop.f32.mrf.mxu0
    %4402 = vmatprep.mubr.bf16.mxu0 0
    %4403 = vmatmul.mubr.bf16.gmra.mxu0 %v4323
    %v4404 = vpop.f32.mrf.mxu0
    %v4405 = vadd.f32 0.0, %v4404
    %v4406 = vpop.f32.mrf.mxu0
    %v4407 = vpop.f32.mrf.mxu0
    %v4408 = vadd.f32 0.0, %v4407
    %v4409 = vpop.f32.mrf.mxu0
    %4410 = vmatprep.mubr.bf16.mxu0 0
    %4411 = vmatmul.mubr.bf16.gmra.mxu0 %v4326
    %v4412 = vpop.f32.mrf.mxu0
    %v4413 = vadd.f32 0.0, %v4412
    %v4414 = vpop.f32.mrf.mxu0
    %v4415 = vpop.f32.mrf.mxu0
    %v4416 = vadd.f32 0.0, %v4415
    %v4417 = vpop.f32.mrf.mxu0
    %4418 = vmatprep.mubr.bf16.mxu0 0
    %4419 = vmatmul.mubr.bf16.gmra.mxu0 %v4329
    %v4420 = vpop.f32.mrf.mxu0
    %v4421 = vadd.f32 0.0, %v4420
    %v4422 = vpop.f32.mrf.mxu0
    %v4423 = vpop.f32.mrf.mxu0
    %v4424 = vadd.f32 0.0, %v4423
    %v4425 = vpop.f32.mrf.mxu0
    %4426 = vmatprep.mubr.bf16.mxu0 0
    %4427 = vmatmul.mubr.bf16.gmra.mxu0 %v4332
    %v4428 = vpop.f32.mrf.mxu0
    %v4429 = vadd.f32 0.0, %v4428
    %v4430 = vpop.f32.mrf.mxu0
    %v4431 = vpop.f32.mrf.mxu0
    %v4432 = vadd.f32 0.0, %v4431
    %v4433 = vpop.f32.mrf.mxu0
    %4434 = vdwg.mxu0
    %v4435 = vpack.c.bf16 %v4376, %v4373
    %v4436 = vpack.c.bf16 %v4384, %v4381
    %v4437 = vpack.c.bf16 %v4392, %v4389
    %v4438 = vpack.c.bf16 %v4400, %v4397
    %v4439 = vpack.c.bf16 %v4408, %v4405
    %v4440 = vpack.c.bf16 %v4416, %v4413
    %v4441 = vpack.c.bf16 %v4424, %v4421
    %v4442 = vpack.c.bf16 %v4432, %v4429
    %v4444 = vsel %vm4334, %v4283, 0
    %4446 = vmatprep.subr.bf16.mxu0 0
    %4447 = vmatpush1.bf16.msra.mxu0 0
    %4448 = vmatprep.subr.bf16.mxu0 0
    %4449 = vmatpush1.bf16.msra.mxu0 0
    %4450 = vmatprep.subr.bf16.mxu0 0
    %4451 = vmatpush1.bf16.msra.mxu0 0
    %4452 = vmatprep.subr.bf16.mxu0 0
    %4453 = vmatpush1.bf16.msra.mxu0 0
    %4454 = vmatprep.subr.bf16.mxu0 0
    %4455 = vmatpush1.bf16.msra.mxu0 0
    %4456 = vmatprep.subr.bf16.mxu0 0
    %4457 = vmatpush1.bf16.msra.mxu0 0
    %4458 = vmatprep.subr.bf16.mxu0 0
    %4459 = vmatpush1.bf16.msra.mxu0 0
    %4460 = vmatprep.subr.bf16.mxu0 0
    %4461 = vmatpush1.bf16.msra.mxu0 %v4444
    %4462 = vmatprep.subr.bf16.mxu0 0
    %4463 = vmatpush2.bf16.msra.mxu0 0
    %4464 = vmatprep.subr.bf16.mxu0 0
    %4465 = vmatpush2.bf16.msra.mxu0 0
    %4466 = vmatprep.subr.bf16.mxu0 0
    %4467 = vmatpush2.bf16.msra.mxu0 0
    %4468 = vmatprep.subr.bf16.mxu0 0
    %4469 = vmatpush2.bf16.msra.mxu0 0
    %4470 = vmatprep.subr.bf16.mxu0 0
    %4471 = vmatpush2.bf16.msra.mxu0 0
    %4472 = vmatprep.subr.bf16.mxu0 0
    %4473 = vmatpush2.bf16.msra.mxu0 0
    %4474 = vmatprep.subr.bf16.mxu0 0
    %4475 = vmatpush2.bf16.msra.mxu0 0
    %4476 = vmatprep.subr.bf16.mxu0 0
    %4477 = vmatpush2.bf16.msra.mxu0 0
    %4478 = vmatprep.mubr.bf16.mxu0 0
    %4479 = vmatmul.mubr.bf16.gmra.mxu0 %v4311
    %v4480 = vpop.f32.mrf.mxu0
    %v4481 = vadd.f32 0.0, %v4480
    %v4482 = vpop.f32.mrf.mxu0
    %v4483 = vpop.f32.mrf.mxu0
    %v4484 = vadd.f32 0.0, %v4483
    %v4485 = vpop.f32.mrf.mxu0
    %4486 = vmatprep.mubr.bf16.mxu0 0
    %4487 = vmatmul.mubr.bf16.gmra.mxu0 %v4314
    %v4488 = vpop.f32.mrf.mxu0
    %v4489 = vadd.f32 0.0, %v4488
    %v4490 = vpop.f32.mrf.mxu0
    %v4491 = vpop.f32.mrf.mxu0
    %v4492 = vadd.f32 0.0, %v4491
    %v4493 = vpop.f32.mrf.mxu0
    %4494 = vmatprep.mubr.bf16.mxu0 0
    %4495 = vmatmul.mubr.bf16.gmra.mxu0 %v4317
    %v4496 = vpop.f32.mrf.mxu0
    %v4497 = vadd.f32 0.0, %v4496
    %v4498 = vpop.f32.mrf.mxu0
    %v4499 = vpop.f32.mrf.mxu0
    %v4500 = vadd.f32 0.0, %v4499
    %v4501 = vpop.f32.mrf.mxu0
    %4502 = vmatprep.mubr.bf16.mxu0 0
    %4503 = vmatmul.mubr.bf16.gmra.mxu0 %v4320
    %v4504 = vpop.f32.mrf.mxu0
    %v4505 = vadd.f32 0.0, %v4504
    %v4506 = vpop.f32.mrf.mxu0
    %v4507 = vpop.f32.mrf.mxu0
    %v4508 = vadd.f32 0.0, %v4507
    %v4509 = vpop.f32.mrf.mxu0
    %4510 = vmatprep.mubr.bf16.mxu0 0
    %4511 = vmatmul.mubr.bf16.gmra.mxu0 %v4323
    %v4512 = vpop.f32.mrf.mxu0
    %v4513 = vadd.f32 0.0, %v4512
    %v4514 = vpop.f32.mrf.mxu0
    %v4515 = vpop.f32.mrf.mxu0
    %v4516 = vadd.f32 0.0, %v4515
    %v4517 = vpop.f32.mrf.mxu0
    %4518 = vmatprep.mubr.bf16.mxu0 0
    %4519 = vmatmul.mubr.bf16.gmra.mxu0 %v4326
    %v4520 = vpop.f32.mrf.mxu0
    %v4521 = vadd.f32 0.0, %v4520
    %v4522 = vpop.f32.mrf.mxu0
    %v4523 = vpop.f32.mrf.mxu0
    %v4524 = vadd.f32 0.0, %v4523
    %v4525 = vpop.f32.mrf.mxu0
    %4526 = vmatprep.mubr.bf16.mxu0 0
    %4527 = vmatmul.mubr.bf16.gmra.mxu0 %v4329
    %v4528 = vpop.f32.mrf.mxu0
    %v4529 = vadd.f32 0.0, %v4528
    %v4530 = vpop.f32.mrf.mxu0
    %v4531 = vpop.f32.mrf.mxu0
    %v4532 = vadd.f32 0.0, %v4531
    %v4533 = vpop.f32.mrf.mxu0
    %4534 = vmatprep.mubr.bf16.mxu0 0
    %4535 = vmatmul.mubr.bf16.gmra.mxu0 %v4332
    %v4536 = vpop.f32.mrf.mxu0
    %v4537 = vadd.f32 0.0, %v4536
    %v4538 = vpop.f32.mrf.mxu0
    %v4539 = vpop.f32.mrf.mxu0
    %v4540 = vadd.f32 0.0, %v4539
    %v4541 = vpop.f32.mrf.mxu0
    %4542 = vdwg.mxu0
    %v4543 = vpack.c.bf16 %v4484, %v4481
    %v4544 = vpack.c.bf16 %v4492, %v4489
    %v4545 = vpack.c.bf16 %v4500, %v4497
    %v4546 = vpack.c.bf16 %v4508, %v4505
    %v4547 = vpack.c.bf16 %v4516, %v4513
    %v4548 = vpack.c.bf16 %v4524, %v4521
    %v4549 = vpack.c.bf16 %v4532, %v4529
    %v4550 = vpack.c.bf16 %v4540, %v4537
    %v4552 = vsel %vm4334, %v4284, 0
    %4554 = vmatprep.subr.bf16.mxu0 0
    %4555 = vmatpush1.bf16.msra.mxu0 0
    %4556 = vmatprep.subr.bf16.mxu0 0
    %4557 = vmatpush1.bf16.msra.mxu0 0
    %4558 = vmatprep.subr.bf16.mxu0 0
    %4559 = vmatpush1.bf16.msra.mxu0 0
    %4560 = vmatprep.subr.bf16.mxu0 0
    %4561 = vmatpush1.bf16.msra.mxu0 0
    %4562 = vmatprep.subr.bf16.mxu0 0
    %4563 = vmatpush1.bf16.msra.mxu0 0
    %4564 = vmatprep.subr.bf16.mxu0 0
    %4565 = vmatpush1.bf16.msra.mxu0 0
    %4566 = vmatprep.subr.bf16.mxu0 0
    %4567 = vmatpush1.bf16.msra.mxu0 0
    %4568 = vmatprep.subr.bf16.mxu0 0
    %4569 = vmatpush1.bf16.msra.mxu0 %v4552
    %4570 = vmatprep.subr.bf16.mxu0 0
    %4571 = vmatpush2.bf16.msra.mxu0 0
    %4572 = vmatprep.subr.bf16.mxu0 0
    %4573 = vmatpush2.bf16.msra.mxu0 0
    %4574 = vmatprep.subr.bf16.mxu0 0
    %4575 = vmatpush2.bf16.msra.mxu0 0
    %4576 = vmatprep.subr.bf16.mxu0 0
    %4577 = vmatpush2.bf16.msra.mxu0 0
    %4578 = vmatprep.subr.bf16.mxu0 0
    %4579 = vmatpush2.bf16.msra.mxu0 0
    %4580 = vmatprep.subr.bf16.mxu0 0
    %4581 = vmatpush2.bf16.msra.mxu0 0
    %4582 = vmatprep.subr.bf16.mxu0 0
    %4583 = vmatpush2.bf16.msra.mxu0 0
    %4584 = vmatprep.subr.bf16.mxu0 0
    %4585 = vmatpush2.bf16.msra.mxu0 0
    %4586 = vmatprep.mubr.bf16.mxu0 0
    %4587 = vmatmul.mubr.bf16.gmra.mxu0 %v4311
    %v4588 = vpop.f32.mrf.mxu0
    %v4589 = vadd.f32 0.0, %v4588
    %v4590 = vpop.f32.mrf.mxu0
    %v4591 = vpop.f32.mrf.mxu0
    %v4592 = vadd.f32 0.0, %v4591
    %v4593 = vpop.f32.mrf.mxu0
    %4594 = vmatprep.mubr.bf16.mxu0 0
    %4595 = vmatmul.mubr.bf16.gmra.mxu0 %v4314
    %v4596 = vpop.f32.mrf.mxu0
    %v4597 = vadd.f32 0.0, %v4596
    %v4598 = vpop.f32.mrf.mxu0
    %v4599 = vpop.f32.mrf.mxu0
    %v4600 = vadd.f32 0.0, %v4599
    %v4601 = vpop.f32.mrf.mxu0
    %4602 = vmatprep.mubr.bf16.mxu0 0
    %4603 = vmatmul.mubr.bf16.gmra.mxu0 %v4317
    %v4604 = vpop.f32.mrf.mxu0
    %v4605 = vadd.f32 0.0, %v4604
    %v4606 = vpop.f32.mrf.mxu0
    %v4607 = vpop.f32.mrf.mxu0
    %v4608 = vadd.f32 0.0, %v4607
    %v4609 = vpop.f32.mrf.mxu0
    %4610 = vmatprep.mubr.bf16.mxu0 0
    %4611 = vmatmul.mubr.bf16.gmra.mxu0 %v4320
    %v4612 = vpop.f32.mrf.mxu0
    %v4613 = vadd.f32 0.0, %v4612
    %v4614 = vpop.f32.mrf.mxu0
    %v4615 = vpop.f32.mrf.mxu0
    %v4616 = vadd.f32 0.0, %v4615
    %v4617 = vpop.f32.mrf.mxu0
    %4618 = vmatprep.mubr.bf16.mxu0 0
    %4619 = vmatmul.mubr.bf16.gmra.mxu0 %v4323
    %v4620 = vpop.f32.mrf.mxu0
    %v4621 = vadd.f32 0.0, %v4620
    %v4622 = vpop.f32.mrf.mxu0
    %v4623 = vpop.f32.mrf.mxu0
    %v4624 = vadd.f32 0.0, %v4623
    %v4625 = vpop.f32.mrf.mxu0
    %4626 = vmatprep.mubr.bf16.mxu0 0
    %4627 = vmatmul.mubr.bf16.gmra.mxu0 %v4326
    %v4628 = vpop.f32.mrf.mxu0
    %v4629 = vadd.f32 0.0, %v4628
    %v4630 = vpop.f32.mrf.mxu0
    %v4631 = vpop.f32.mrf.mxu0
    %v4632 = vadd.f32 0.0, %v4631
    %v4633 = vpop.f32.mrf.mxu0
    %4634 = vmatprep.mubr.bf16.mxu0 0
    %4635 = vmatmul.mubr.bf16.gmra.mxu0 %v4329
    %v4636 = vpop.f32.mrf.mxu0
    %v4637 = vadd.f32 0.0, %v4636
    %v4638 = vpop.f32.mrf.mxu0
    %v4639 = vpop.f32.mrf.mxu0
    %v4640 = vadd.f32 0.0, %v4639
    %v4641 = vpop.f32.mrf.mxu0
    %4642 = vmatprep.mubr.bf16.mxu0 0
    %4643 = vmatmul.mubr.bf16.gmra.mxu0 %v4332
    %v4644 = vpop.f32.mrf.mxu0
    %v4645 = vadd.f32 0.0, %v4644
    %v4646 = vpop.f32.mrf.mxu0
    %v4647 = vpop.f32.mrf.mxu0
    %v4648 = vadd.f32 0.0, %v4647
    %v4649 = vpop.f32.mrf.mxu0
    %4650 = vdwg.mxu0
    %v4651 = vpack.c.bf16 %v4592, %v4589
    %v4652 = vpack.c.bf16 %v4600, %v4597
    %v4653 = vpack.c.bf16 %v4608, %v4605
    %v4654 = vpack.c.bf16 %v4616, %v4613
    %v4655 = vpack.c.bf16 %v4624, %v4621
    %v4656 = vpack.c.bf16 %v4632, %v4629
    %v4657 = vpack.c.bf16 %v4640, %v4637
    %v4658 = vpack.c.bf16 %v4648, %v4645
    %v4660 = vsel %vm4334, %v4285, 0
    %4662 = vmatprep.subr.bf16.mxu0 0
    %4663 = vmatpush1.bf16.msra.mxu0 0
    %4664 = vmatprep.subr.bf16.mxu0 0
    %4665 = vmatpush1.bf16.msra.mxu0 0
    %4666 = vmatprep.subr.bf16.mxu0 0
    %4667 = vmatpush1.bf16.msra.mxu0 0
    %4668 = vmatprep.subr.bf16.mxu0 0
    %4669 = vmatpush1.bf16.msra.mxu0 0
    %4670 = vmatprep.subr.bf16.mxu0 0
    %4671 = vmatpush1.bf16.msra.mxu0 0
    %4672 = vmatprep.subr.bf16.mxu0 0
    %4673 = vmatpush1.bf16.msra.mxu0 0
    %4674 = vmatprep.subr.bf16.mxu0 0
    %4675 = vmatpush1.bf16.msra.mxu0 0
    %4676 = vmatprep.subr.bf16.mxu0 0
    %4677 = vmatpush1.bf16.msra.mxu0 %v4660
    %4678 = vmatprep.subr.bf16.mxu0 0
    %4679 = vmatpush2.bf16.msra.mxu0 0
    %4680 = vmatprep.subr.bf16.mxu0 0
    %4681 = vmatpush2.bf16.msra.mxu0 0
    %4682 = vmatprep.subr.bf16.mxu0 0
    %4683 = vmatpush2.bf16.msra.mxu0 0
    %4684 = vmatprep.subr.bf16.mxu0 0
    %4685 = vmatpush2.bf16.msra.mxu0 0
    %4686 = vmatprep.subr.bf16.mxu0 0
    %4687 = vmatpush2.bf16.msra.mxu0 0
    %4688 = vmatprep.subr.bf16.mxu0 0
    %4689 = vmatpush2.bf16.msra.mxu0 0
    %4690 = vmatprep.subr.bf16.mxu0 0
    %4691 = vmatpush2.bf16.msra.mxu0 0
    %4692 = vmatprep.subr.bf16.mxu0 0
    %4693 = vmatpush2.bf16.msra.mxu0 0
    %4694 = vmatprep.mubr.bf16.mxu0 0
    %4695 = vmatmul.mubr.bf16.gmra.mxu0 %v4311
    %v4696 = vpop.f32.mrf.mxu0
    %v4697 = vadd.f32 0.0, %v4696
    %v4698 = vpop.f32.mrf.mxu0
    %v4699 = vpop.f32.mrf.mxu0
    %v4700 = vadd.f32 0.0, %v4699
    %v4701 = vpop.f32.mrf.mxu0
    %4702 = vmatprep.mubr.bf16.mxu0 0
    %4703 = vmatmul.mubr.bf16.gmra.mxu0 %v4314
    %v4704 = vpop.f32.mrf.mxu0
    %v4705 = vadd.f32 0.0, %v4704
    %v4706 = vpop.f32.mrf.mxu0
    %v4707 = vpop.f32.mrf.mxu0
    %v4708 = vadd.f32 0.0, %v4707
    %v4709 = vpop.f32.mrf.mxu0
    %4710 = vmatprep.mubr.bf16.mxu0 0
    %4711 = vmatmul.mubr.bf16.gmra.mxu0 %v4317
    %v4712 = vpop.f32.mrf.mxu0
    %v4713 = vadd.f32 0.0, %v4712
    %v4714 = vpop.f32.mrf.mxu0
    %v4715 = vpop.f32.mrf.mxu0
    %v4716 = vadd.f32 0.0, %v4715
    %v4717 = vpop.f32.mrf.mxu0
    %4718 = vmatprep.mubr.bf16.mxu0 0
    %4719 = vmatmul.mubr.bf16.gmra.mxu0 %v4320
    %v4720 = vpop.f32.mrf.mxu0
    %v4721 = vadd.f32 0.0, %v4720
    %v4722 = vpop.f32.mrf.mxu0
    %v4723 = vpop.f32.mrf.mxu0
    %v4724 = vadd.f32 0.0, %v4723
    %v4725 = vpop.f32.mrf.mxu0
    %4726 = vmatprep.mubr.bf16.mxu0 0
    %4727 = vmatmul.mubr.bf16.gmra.mxu0 %v4323
    %v4728 = vpop.f32.mrf.mxu0
    %v4729 = vadd.f32 0.0, %v4728
    %v4730 = vpop.f32.mrf.mxu0
    %v4731 = vpop.f32.mrf.mxu0
    %v4732 = vadd.f32 0.0, %v4731
    %v4733 = vpop.f32.mrf.mxu0
    %4734 = vmatprep.mubr.bf16.mxu0 0
    %4735 = vmatmul.mubr.bf16.gmra.mxu0 %v4326
    %v4736 = vpop.f32.mrf.mxu0
    %v4737 = vadd.f32 0.0, %v4736
    %v4738 = vpop.f32.mrf.mxu0
    %v4739 = vpop.f32.mrf.mxu0
    %v4740 = vadd.f32 0.0, %v4739
    %v4741 = vpop.f32.mrf.mxu0
    %4742 = vmatprep.mubr.bf16.mxu0 0
    %4743 = vmatmul.mubr.bf16.gmra.mxu0 %v4329
    %v4744 = vpop.f32.mrf.mxu0
    %v4745 = vadd.f32 0.0, %v4744
    %v4746 = vpop.f32.mrf.mxu0
    %v4747 = vpop.f32.mrf.mxu0
    %v4748 = vadd.f32 0.0, %v4747
    %v4749 = vpop.f32.mrf.mxu0
    %4750 = vmatprep.mubr.bf16.mxu0 0
    %4751 = vmatmul.mubr.bf16.gmra.mxu0 %v4332
    %v4752 = vpop.f32.mrf.mxu0
    %v4753 = vadd.f32 0.0, %v4752
    %v4754 = vpop.f32.mrf.mxu0
    %v4755 = vpop.f32.mrf.mxu0
    %v4756 = vadd.f32 0.0, %v4755
    %v4757 = vpop.f32.mrf.mxu0
    %4758 = vdwg.mxu0
    %v4759 = vpack.c.bf16 %v4700, %v4697
    %v4760 = vpack.c.bf16 %v4708, %v4705
    %v4761 = vpack.c.bf16 %v4716, %v4713
    %v4762 = vpack.c.bf16 %v4724, %v4721
    %v4763 = vpack.c.bf16 %v4732, %v4729
    %v4764 = vpack.c.bf16 %v4740, %v4737
    %v4765 = vpack.c.bf16 %v4748, %v4745
    %v4766 = vpack.c.bf16 %v4756, %v4753
    %4768 = vset.pattern.permute.xlu0 0
    %4769 = vperm.xlu0 %4768, %v4274
    %v4770 = vpop.permute.xlu0 %4769
    %4773 = vset.pattern.permute.xlu0 0
    %4774 = vperm.xlu0 %4773, %v4275
    %v4775 = vpop.permute.xlu0 %4774
    %4778 = vset.pattern.permute.xlu0 0
    %4779 = vperm.xlu0 %4778, %v4276
    %v4780 = vpop.permute.xlu0 %4779
    %4783 = vset.pattern.permute.xlu0 0
    %4784 = vperm.xlu0 %4783, %v4277
    %v4785 = vpop.permute.xlu0 %4784
    %4788 = vset.pattern.permute.xlu0 0
    %4789 = vperm.xlu0 %4788, %v4278
    %v4790 = vpop.permute.xlu0 %4789
    %4793 = vset.pattern.permute.xlu0 0
    %4794 = vperm.xlu0 %4793, %v4279
    %v4795 = vpop.permute.xlu0 %4794
    %4798 = vset.pattern.permute.xlu0 0
    %4799 = vperm.xlu0 %4798, %v4280
    %v4800 = vpop.permute.xlu0 %4799
    %4803 = vset.pattern.permute.xlu0 0
    %4804 = vperm.xlu0 %4803, %v4281
    %v4805 = vpop.permute.xlu0 %4804
    %v4823 = vunpack.c.l.b16 %v4286
    %v4824 = vunpack.c.h.b16 %v4286
    %v4825 = vunpack.c.l.b16 %v4287
    %v4826 = vunpack.c.h.b16 %v4287
    %v4827 = vunpack.c.l.b16 %v4288
    %v4828 = vunpack.c.h.b16 %v4288
    %v4829 = vunpack.c.l.b16 %v4289
    %v4830 = vunpack.c.h.b16 %v4289
    %v4831 = vunpack.c.l.b16 %v4290
    %v4832 = vunpack.c.h.b16 %v4290
    %v4833 = vunpack.c.l.b16 %v4291
    %v4834 = vunpack.c.h.b16 %v4291
    %v4835 = vunpack.c.l.b16 %v4292
    %v4836 = vunpack.c.h.b16 %v4292
    %v4837 = vunpack.c.l.b16 %v4293
    %v4838 = vunpack.c.h.b16 %v4293
    %v4839 = vunpack.c.l.b16 %v4294
    %v4840 = vunpack.c.h.b16 %v4294
    %v4841 = vunpack.c.l.b16 %v4295
    %v4842 = vunpack.c.h.b16 %v4295
    %v4843 = vunpack.c.l.b16 %v4296
    %v4844 = vunpack.c.h.b16 %v4296
    %v4845 = vunpack.c.l.b16 %v4297
    %v4846 = vunpack.c.h.b16 %v4297
    %v4847 = vunpack.c.l.b16 %v4298
    %v4848 = vunpack.c.h.b16 %v4298
    %v4849 = vunpack.c.l.b16 %v4299
    %v4850 = vunpack.c.h.b16 %v4299
    %v4851 = vunpack.c.l.b16 %v4300
    %v4852 = vunpack.c.h.b16 %v4300
    %v4853 = vunpack.c.l.b16 %v4301
    %v4854 = vunpack.c.h.b16 %v4301
    %v4855 = vpack.c.b16 %v4827, %v4823
    %v4856 = vpack.c.b16 %v4828, %v4824
    %v4857 = vpack.c.b16 %v4829, %v4825
    %v4858 = vpack.c.b16 %v4830, %v4826
    %v4859 = vpack.c.b16 %v4835, %v4831
    %v4860 = vpack.c.b16 %v4836, %v4832
    %v4861 = vpack.c.b16 %v4837, %v4833
    %v4862 = vpack.c.b16 %v4838, %v4834
    %v4863 = vpack.c.b16 %v4843, %v4839
    %v4864 = vpack.c.b16 %v4844, %v4840
    %v4865 = vpack.c.b16 %v4845, %v4841
    %v4866 = vpack.c.b16 %v4846, %v4842
    %v4867 = vpack.c.b16 %v4851, %v4847
    %v4868 = vpack.c.b16 %v4852, %v4848
    %v4869 = vpack.c.b16 %v4853, %v4849
    %v4870 = vpack.c.b16 %v4854, %v4850
    %4887 = vmatprep.subr.bf16.mxu0 0
    %4888 = vmatpush1.bf16.msra.mxu0 %v4442
    %4889 = vmatprep.subr.bf16.mxu0 0
    %4890 = vmatpush1.bf16.msra.mxu0 %v4441
    %4891 = vmatprep.subr.bf16.mxu0 0
    %4892 = vmatpush1.bf16.msra.mxu0 %v4440
    %4893 = vmatprep.subr.bf16.mxu0 0
    %4894 = vmatpush1.bf16.msra.mxu0 %v4439
    %4895 = vmatprep.subr.bf16.mxu0 0
    %4896 = vmatpush1.bf16.msra.mxu0 %v4438
    %4897 = vmatprep.subr.bf16.mxu0 0
    %4898 = vmatpush1.bf16.msra.mxu0 %v4437
    %4899 = vmatprep.subr.bf16.mxu0 0
    %4900 = vmatpush1.bf16.msra.mxu0 %v4436
    %4901 = vmatprep.subr.bf16.mxu0 0
    %4902 = vmatpush1.bf16.msra.mxu0 %v4435
    %4903 = vmatprep.subr.bf16.mxu0 0
    %4904 = vmatpush2.bf16.msra.mxu0 %v4550
    %4905 = vmatprep.subr.bf16.mxu0 0
    %4906 = vmatpush2.bf16.msra.mxu0 %v4549
    %4907 = vmatprep.subr.bf16.mxu0 0
    %4908 = vmatpush2.bf16.msra.mxu0 %v4548
    %4909 = vmatprep.subr.bf16.mxu0 0
    %4910 = vmatpush2.bf16.msra.mxu0 %v4547
    %4911 = vmatprep.subr.bf16.mxu0 0
    %4912 = vmatpush2.bf16.msra.mxu0 %v4546
    %4913 = vmatprep.subr.bf16.mxu0 0
    %4914 = vmatpush2.bf16.msra.mxu0 %v4545
    %4915 = vmatprep.subr.bf16.mxu0 0
    %4916 = vmatpush2.bf16.msra.mxu0 %v4544
    %4917 = vmatprep.subr.bf16.mxu0 0
    %4918 = vmatpush2.bf16.msra.mxu0 %v4543
    %4919 = vmatprep.mubr.bf16.mxu0 %v4856
    %4920 = vmatmul.mubr.bf16.gmra.mxu0 %v4855
    %v4921 = vpop.f32.mrf.mxu0
    %v4922 = vadd.f32 %v4770, %v4921
    %v4923 = vpop.f32.mrf.mxu0
    %v4924 = vpop.f32.mrf.mxu0
    %v4925 = vadd.f32 %v4775, %v4924
    %v4926 = vpop.f32.mrf.mxu0
    %4927 = vmatprep.mubr.bf16.mxu0 %v4860
    %4928 = vmatmul.mubr.bf16.gmra.mxu0 %v4859
    %v4929 = vpop.f32.mrf.mxu0
    %v4930 = vadd.f32 %v4780, %v4929
    %v4931 = vpop.f32.mrf.mxu0
    %v4932 = vpop.f32.mrf.mxu0
    %v4933 = vadd.f32 %v4785, %v4932
    %v4934 = vpop.f32.mrf.mxu0
    %4935 = vmatprep.mubr.bf16.mxu0 %v4864
    %4936 = vmatmul.mubr.bf16.gmra.mxu0 %v4863
    %v4937 = vpop.f32.mrf.mxu0
    %v4938 = vadd.f32 %v4790, %v4937
    %v4939 = vpop.f32.mrf.mxu0
    %v4940 = vpop.f32.mrf.mxu0
    %v4941 = vadd.f32 %v4795, %v4940
    %v4942 = vpop.f32.mrf.mxu0
    %4943 = vmatprep.mubr.bf16.mxu0 %v4868
    %4944 = vmatmul.mubr.bf16.gmra.mxu0 %v4867
    %v4945 = vpop.f32.mrf.mxu0
    %v4946 = vadd.f32 %v4800, %v4945
    %v4947 = vpop.f32.mrf.mxu0
    %v4948 = vpop.f32.mrf.mxu0
    %v4949 = vadd.f32 %v4805, %v4948
    %v4950 = vpop.f32.mrf.mxu0
    %4951 = vdwg.mxu0
    %4952 = vmatprep.subr.bf16.mxu0 0
    %4953 = vmatpush1.bf16.msra.mxu0 %v4658
    %4954 = vmatprep.subr.bf16.mxu0 0
    %4955 = vmatpush1.bf16.msra.mxu0 %v4657
    %4956 = vmatprep.subr.bf16.mxu0 0
    %4957 = vmatpush1.bf16.msra.mxu0 %v4656
    %4958 = vmatprep.subr.bf16.mxu0 0
    %4959 = vmatpush1.bf16.msra.mxu0 %v4655
    %4960 = vmatprep.subr.bf16.mxu0 0
    %4961 = vmatpush1.bf16.msra.mxu0 %v4654
    %4962 = vmatprep.subr.bf16.mxu0 0
    %4963 = vmatpush1.bf16.msra.mxu0 %v4653
    %4964 = vmatprep.subr.bf16.mxu0 0
    %4965 = vmatpush1.bf16.msra.mxu0 %v4652
    %4966 = vmatprep.subr.bf16.mxu0 0
    %4967 = vmatpush1.bf16.msra.mxu0 %v4651
    %4968 = vmatprep.subr.bf16.mxu0 0
    %4969 = vmatpush2.bf16.msra.mxu0 %v4766
    %4970 = vmatprep.subr.bf16.mxu0 0
    %4971 = vmatpush2.bf16.msra.mxu0 %v4765
    %4972 = vmatprep.subr.bf16.mxu0 0
    %4973 = vmatpush2.bf16.msra.mxu0 %v4764
    %4974 = vmatprep.subr.bf16.mxu0 0
    %4975 = vmatpush2.bf16.msra.mxu0 %v4763
    %4976 = vmatprep.subr.bf16.mxu0 0
    %4977 = vmatpush2.bf16.msra.mxu0 %v4762
    %4978 = vmatprep.subr.bf16.mxu0 0
    %4979 = vmatpush2.bf16.msra.mxu0 %v4761
    %4980 = vmatprep.subr.bf16.mxu0 0
    %4981 = vmatpush2.bf16.msra.mxu0 %v4760
    %4982 = vmatprep.subr.bf16.mxu0 0
    %4983 = vmatpush2.bf16.msra.mxu0 %v4759
    %4984 = vmatprep.mubr.bf16.mxu0 %v4858
    %4985 = vmatmul.mubr.bf16.gmra.mxu0 %v4857
    %v4986 = vpop.f32.mrf.mxu0
    %v4987 = vadd.f32 %v4922, %v4986
    %v4988 = vpop.f32.mrf.mxu0
    %v4989 = vpop.f32.mrf.mxu0
    %v4990 = vadd.f32 %v4925, %v4989
    %v4991 = vpop.f32.mrf.mxu0
    %4992 = vmatprep.mubr.bf16.mxu0 %v4862
    %4993 = vmatmul.mubr.bf16.gmra.mxu0 %v4861
    %v4994 = vpop.f32.mrf.mxu0
    %v4995 = vadd.f32 %v4930, %v4994
    %v4996 = vpop.f32.mrf.mxu0
    %v4997 = vpop.f32.mrf.mxu0
    %v4998 = vadd.f32 %v4933, %v4997
    %v4999 = vpop.f32.mrf.mxu0
    %5000 = vmatprep.mubr.bf16.mxu0 %v4866
    %5001 = vmatmul.mubr.bf16.gmra.mxu0 %v4865
    %v5002 = vpop.f32.mrf.mxu0
    %v5003 = vadd.f32 %v4938, %v5002
    %v5004 = vpop.f32.mrf.mxu0
    %v5005 = vpop.f32.mrf.mxu0
    %v5006 = vadd.f32 %v4941, %v5005
    %v5007 = vpop.f32.mrf.mxu0
    %5008 = vmatprep.mubr.bf16.mxu0 %v4870
    %5009 = vmatmul.mubr.bf16.gmra.mxu0 %v4869
    %v5010 = vpop.f32.mrf.mxu0
    %v5011 = vadd.f32 %v4946, %v5010
    %v5012 = vpop.f32.mrf.mxu0
    %v5013 = vpop.f32.mrf.mxu0
    %v5014 = vadd.f32 %v4949, %v5013
    %v5015 = vpop.f32.mrf.mxu0
    %5016 = vdwg.mxu0
    %v5017 = vmax.f32 %v4987, 0.0
    %v5018 = vmax.f32 %v4990, 0.0
    %v5019 = vmax.f32 %v4995, 0.0
    %v5020 = vmax.f32 %v4998, 0.0
    %v5021 = vmax.f32 %v5003, 0.0
    %v5022 = vmax.f32 %v5006, 0.0
    %v5023 = vmax.f32 %v5011, 0.0
    %v5024 = vmax.f32 %v5014, 0.0
    %v5025 = vpack.c.bf16 %v4259, %v4258
    %v5026 = vpack.c.bf16 %v4261, %v4260
    %v5027 = vpack.c.bf16 %v4263, %v4262
    %v5028 = vpack.c.bf16 %v4265, %v4264
    %v5029 = vpack.c.bf16 %v4267, %v4266
    %v5030 = vpack.c.bf16 %v4269, %v4268
    %v5031 = vpack.c.bf16 %v4271, %v4270
    %v5032 = vpack.c.bf16 %v4273, %v4272
    %v5034 = vsel %vm3649, %v5025, 0
    %v5037 = vsel %vm3649, %v5026, 0
    %v5040 = vsel %vm3649, %v5027, 0
    %v5043 = vsel %vm3649, %v5028, 0
    %v5046 = vsel %vm3649, %v5029, 0
    %v5049 = vsel %vm3649, %v5030, 0
    %v5052 = vsel %vm3649, %v5031, 0
    %v5055 = vsel %vm3649, %v5032, 0
    %5057 = vmatprep.subr.bf16.mxu0 0
    %5058 = vmatpush1.bf16.msra.mxu0 0
    %5059 = vmatprep.subr.bf16.mxu0 0
    %5060 = vmatpush1.bf16.msra.mxu0 0
    %5061 = vmatprep.subr.bf16.mxu0 0
    %5062 = vmatpush1.bf16.msra.mxu0 0
    %5063 = vmatprep.subr.bf16.mxu0 0
    %5064 = vmatpush1.bf16.msra.mxu0 0
    %5065 = vmatprep.subr.bf16.mxu0 0
    %5066 = vmatpush1.bf16.msra.mxu0 0
    %5067 = vmatprep.subr.bf16.mxu0 0
    %5068 = vmatpush1.bf16.msra.mxu0 0
    %5069 = vmatprep.subr.bf16.mxu0 0
    %5070 = vmatpush1.bf16.msra.mxu0 0
    %5071 = vmatprep.subr.bf16.mxu0 0
    %5072 = vmatpush1.bf16.msra.mxu0 %v4336
    %5073 = vmatprep.subr.bf16.mxu0 0
    %5074 = vmatpush2.bf16.msra.mxu0 0
    %5075 = vmatprep.subr.bf16.mxu0 0
    %5076 = vmatpush2.bf16.msra.mxu0 0
    %5077 = vmatprep.subr.bf16.mxu0 0
    %5078 = vmatpush2.bf16.msra.mxu0 0
    %5079 = vmatprep.subr.bf16.mxu0 0
    %5080 = vmatpush2.bf16.msra.mxu0 0
    %5081 = vmatprep.subr.bf16.mxu0 0
    %5082 = vmatpush2.bf16.msra.mxu0 0
    %5083 = vmatprep.subr.bf16.mxu0 0
    %5084 = vmatpush2.bf16.msra.mxu0 0
    %5085 = vmatprep.subr.bf16.mxu0 0
    %5086 = vmatpush2.bf16.msra.mxu0 0
    %5087 = vmatprep.subr.bf16.mxu0 0
    %5088 = vmatpush2.bf16.msra.mxu0 0
    %5089 = vmatprep.mubr.bf16.mxu0 0
    %5090 = vmatmul.mubr.bf16.gmra.mxu0 %v5034
    %v5091 = vpop.f32.mrf.mxu0
    %v5092 = vadd.f32 0.0, %v5091
    %v5093 = vpop.f32.mrf.mxu0
    %v5094 = vpop.f32.mrf.mxu0
    %v5095 = vadd.f32 0.0, %v5094
    %v5096 = vpop.f32.mrf.mxu0
    %5097 = vmatprep.mubr.bf16.mxu0 0
    %5098 = vmatmul.mubr.bf16.gmra.mxu0 %v5037
    %v5099 = vpop.f32.mrf.mxu0
    %v5100 = vadd.f32 0.0, %v5099
    %v5101 = vpop.f32.mrf.mxu0
    %v5102 = vpop.f32.mrf.mxu0
    %v5103 = vadd.f32 0.0, %v5102
    %v5104 = vpop.f32.mrf.mxu0
    %5105 = vmatprep.mubr.bf16.mxu0 0
    %5106 = vmatmul.mubr.bf16.gmra.mxu0 %v5040
    %v5107 = vpop.f32.mrf.mxu0
    %v5108 = vadd.f32 0.0, %v5107
    %v5109 = vpop.f32.mrf.mxu0
    %v5110 = vpop.f32.mrf.mxu0
    %v5111 = vadd.f32 0.0, %v5110
    %v5112 = vpop.f32.mrf.mxu0
    %5113 = vmatprep.mubr.bf16.mxu0 0
    %5114 = vmatmul.mubr.bf16.gmra.mxu0 %v5043
    %v5115 = vpop.f32.mrf.mxu0
    %v5116 = vadd.f32 0.0, %v5115
    %v5117 = vpop.f32.mrf.mxu0
    %v5118 = vpop.f32.mrf.mxu0
    %v5119 = vadd.f32 0.0, %v5118
    %v5120 = vpop.f32.mrf.mxu0
    %5121 = vmatprep.mubr.bf16.mxu0 0
    %5122 = vmatmul.mubr.bf16.gmra.mxu0 %v5046
    %v5123 = vpop.f32.mrf.mxu0
    %v5124 = vadd.f32 0.0, %v5123
    %v5125 = vpop.f32.mrf.mxu0
    %v5126 = vpop.f32.mrf.mxu0
    %v5127 = vadd.f32 0.0, %v5126
    %v5128 = vpop.f32.mrf.mxu0
    %5129 = vmatprep.mubr.bf16.mxu0 0
    %5130 = vmatmul.mubr.bf16.gmra.mxu0 %v5049
    %v5131 = vpop.f32.mrf.mxu0
    %v5132 = vadd.f32 0.0, %v5131
    %v5133 = vpop.f32.mrf.mxu0
    %v5134 = vpop.f32.mrf.mxu0
    %v5135 = vadd.f32 0.0, %v5134
    %v5136 = vpop.f32.mrf.mxu0
    %5137 = vmatprep.mubr.bf16.mxu0 0
    %5138 = vmatmul.mubr.bf16.gmra.mxu0 %v5052
    %v5139 = vpop.f32.mrf.mxu0
    %v5140 = vadd.f32 0.0, %v5139
    %v5141 = vpop.f32.mrf.mxu0
    %v5142 = vpop.f32.mrf.mxu0
    %v5143 = vadd.f32 0.0, %v5142
    %v5144 = vpop.f32.mrf.mxu0
    %5145 = vmatprep.mubr.bf16.mxu0 0
    %5146 = vmatmul.mubr.bf16.gmra.mxu0 %v5055
    %v5147 = vpop.f32.mrf.mxu0
    %v5148 = vadd.f32 0.0, %v5147
    %v5149 = vpop.f32.mrf.mxu0
    %v5150 = vpop.f32.mrf.mxu0
    %v5151 = vadd.f32 0.0, %v5150
    %v5152 = vpop.f32.mrf.mxu0
    %5153 = vdwg.mxu0
    %v5154 = vpack.c.bf16 %v5095, %v5092
    %v5155 = vpack.c.bf16 %v5103, %v5100
    %v5156 = vpack.c.bf16 %v5111, %v5108
    %v5157 = vpack.c.bf16 %v5119, %v5116
    %v5158 = vpack.c.bf16 %v5127, %v5124
    %v5159 = vpack.c.bf16 %v5135, %v5132
    %v5160 = vpack.c.bf16 %v5143, %v5140
    %v5161 = vpack.c.bf16 %v5151, %v5148
    %5162 = vmatprep.subr.bf16.mxu0 0
    %5163 = vmatpush1.bf16.msra.mxu0 0
    %5164 = vmatprep.subr.bf16.mxu0 0
    %5165 = vmatpush1.bf16.msra.mxu0 0
    %5166 = vmatprep.subr.bf16.mxu0 0
    %5167 = vmatpush1.bf16.msra.mxu0 0
    %5168 = vmatprep.subr.bf16.mxu0 0
    %5169 = vmatpush1.bf16.msra.mxu0 0
    %5170 = vmatprep.subr.bf16.mxu0 0
    %5171 = vmatpush1.bf16.msra.mxu0 0
    %5172 = vmatprep.subr.bf16.mxu0 0
    %5173 = vmatpush1.bf16.msra.mxu0 0
    %5174 = vmatprep.subr.bf16.mxu0 0
    %5175 = vmatpush1.bf16.msra.mxu0 0
    %5176 = vmatprep.subr.bf16.mxu0 0
    %5177 = vmatpush1.bf16.msra.mxu0 %v4444
    %5178 = vmatprep.subr.bf16.mxu0 0
    %5179 = vmatpush2.bf16.msra.mxu0 0
    %5180 = vmatprep.subr.bf16.mxu0 0
    %5181 = vmatpush2.bf16.msra.mxu0 0
    %5182 = vmatprep.subr.bf16.mxu0 0
    %5183 = vmatpush2.bf16.msra.mxu0 0
    %5184 = vmatprep.subr.bf16.mxu0 0
    %5185 = vmatpush2.bf16.msra.mxu0 0
    %5186 = vmatprep.subr.bf16.mxu0 0
    %5187 = vmatpush2.bf16.msra.mxu0 0
    %5188 = vmatprep.subr.bf16.mxu0 0
    %5189 = vmatpush2.bf16.msra.mxu0 0
    %5190 = vmatprep.subr.bf16.mxu0 0
    %5191 = vmatpush2.bf16.msra.mxu0 0
    %5192 = vmatprep.subr.bf16.mxu0 0
    %5193 = vmatpush2.bf16.msra.mxu0 0
    %5194 = vmatprep.mubr.bf16.mxu0 0
    %5195 = vmatmul.mubr.bf16.gmra.mxu0 %v5034
    %v5196 = vpop.f32.mrf.mxu0
    %v5197 = vadd.f32 0.0, %v5196
    %v5198 = vpop.f32.mrf.mxu0
    %v5199 = vpop.f32.mrf.mxu0
    %v5200 = vadd.f32 0.0, %v5199
    %v5201 = vpop.f32.mrf.mxu0
    %5202 = vmatprep.mubr.bf16.mxu0 0
    %5203 = vmatmul.mubr.bf16.gmra.mxu0 %v5037
    %v5204 = vpop.f32.mrf.mxu0
    %v5205 = vadd.f32 0.0, %v5204
    %v5206 = vpop.f32.mrf.mxu0
    %v5207 = vpop.f32.mrf.mxu0
    %v5208 = vadd.f32 0.0, %v5207
    %v5209 = vpop.f32.mrf.mxu0
    %5210 = vmatprep.mubr.bf16.mxu0 0
    %5211 = vmatmul.mubr.bf16.gmra.mxu0 %v5040
    %v5212 = vpop.f32.mrf.mxu0
    %v5213 = vadd.f32 0.0, %v5212
    %v5214 = vpop.f32.mrf.mxu0
    %v5215 = vpop.f32.mrf.mxu0
    %v5216 = vadd.f32 0.0, %v5215
    %v5217 = vpop.f32.mrf.mxu0
    %5218 = vmatprep.mubr.bf16.mxu0 0
    %5219 = vmatmul.mubr.bf16.gmra.mxu0 %v5043
    %v5220 = vpop.f32.mrf.mxu0
    %v5221 = vadd.f32 0.0, %v5220
    %v5222 = vpop.f32.mrf.mxu0
    %v5223 = vpop.f32.mrf.mxu0
    %v5224 = vadd.f32 0.0, %v5223
    %v5225 = vpop.f32.mrf.mxu0
    %5226 = vmatprep.mubr.bf16.mxu0 0
    %5227 = vmatmul.mubr.bf16.gmra.mxu0 %v5046
    %v5228 = vpop.f32.mrf.mxu0
    %v5229 = vadd.f32 0.0, %v5228
    %v5230 = vpop.f32.mrf.mxu0
    %v5231 = vpop.f32.mrf.mxu0
    %v5232 = vadd.f32 0.0, %v5231
    %v5233 = vpop.f32.mrf.mxu0
    %5234 = vmatprep.mubr.bf16.mxu0 0
    %5235 = vmatmul.mubr.bf16.gmra.mxu0 %v5049
    %v5236 = vpop.f32.mrf.mxu0
    %v5237 = vadd.f32 0.0, %v5236
    %v5238 = vpop.f32.mrf.mxu0
    %v5239 = vpop.f32.mrf.mxu0
    %v5240 = vadd.f32 0.0, %v5239
    %v5241 = vpop.f32.mrf.mxu0
    %5242 = vmatprep.mubr.bf16.mxu0 0
    %5243 = vmatmul.mubr.bf16.gmra.mxu0 %v5052
    %v5244 = vpop.f32.mrf.mxu0
    %v5245 = vadd.f32 0.0, %v5244
    %v5246 = vpop.f32.mrf.mxu0
    %v5247 = vpop.f32.mrf.mxu0
    %v5248 = vadd.f32 0.0, %v5247
    %v5249 = vpop.f32.mrf.mxu0
    %5250 = vmatprep.mubr.bf16.mxu0 0
    %5251 = vmatmul.mubr.bf16.gmra.mxu0 %v5055
    %v5252 = vpop.f32.mrf.mxu0
    %v5253 = vadd.f32 0.0, %v5252
    %v5254 = vpop.f32.mrf.mxu0
    %v5255 = vpop.f32.mrf.mxu0
    %v5256 = vadd.f32 0.0, %v5255
    %v5257 = vpop.f32.mrf.mxu0
    %5258 = vdwg.mxu0
    %v5259 = vpack.c.bf16 %v5200, %v5197
    %v5260 = vpack.c.bf16 %v5208, %v5205
    %v5261 = vpack.c.bf16 %v5216, %v5213
    %v5262 = vpack.c.bf16 %v5224, %v5221
    %v5263 = vpack.c.bf16 %v5232, %v5229
    %v5264 = vpack.c.bf16 %v5240, %v5237
    %v5265 = vpack.c.bf16 %v5248, %v5245
    %v5266 = vpack.c.bf16 %v5256, %v5253
    %5267 = vmatprep.subr.bf16.mxu0 0
    %5268 = vmatpush1.bf16.msra.mxu0 0
    %5269 = vmatprep.subr.bf16.mxu0 0
    %5270 = vmatpush1.bf16.msra.mxu0 0
    %5271 = vmatprep.subr.bf16.mxu0 0
    %5272 = vmatpush1.bf16.msra.mxu0 0
    %5273 = vmatprep.subr.bf16.mxu0 0
    %5274 = vmatpush1.bf16.msra.mxu0 0
    %5275 = vmatprep.subr.bf16.mxu0 0
    %5276 = vmatpush1.bf16.msra.mxu0 0
    %5277 = vmatprep.subr.bf16.mxu0 0
    %5278 = vmatpush1.bf16.msra.mxu0 0
    %5279 = vmatprep.subr.bf16.mxu0 0
    %5280 = vmatpush1.bf16.msra.mxu0 0
    %5281 = vmatprep.subr.bf16.mxu0 0
    %5282 = vmatpush1.bf16.msra.mxu0 %v4552
    %5283 = vmatprep.subr.bf16.mxu0 0
    %5284 = vmatpush2.bf16.msra.mxu0 0
    %5285 = vmatprep.subr.bf16.mxu0 0
    %5286 = vmatpush2.bf16.msra.mxu0 0
    %5287 = vmatprep.subr.bf16.mxu0 0
    %5288 = vmatpush2.bf16.msra.mxu0 0
    %5289 = vmatprep.subr.bf16.mxu0 0
    %5290 = vmatpush2.bf16.msra.mxu0 0
    %5291 = vmatprep.subr.bf16.mxu0 0
    %5292 = vmatpush2.bf16.msra.mxu0 0
    %5293 = vmatprep.subr.bf16.mxu0 0
    %5294 = vmatpush2.bf16.msra.mxu0 0
    %5295 = vmatprep.subr.bf16.mxu0 0
    %5296 = vmatpush2.bf16.msra.mxu0 0
    %5297 = vmatprep.subr.bf16.mxu0 0
    %5298 = vmatpush2.bf16.msra.mxu0 0
    %5299 = vmatprep.mubr.bf16.mxu0 0
    %5300 = vmatmul.mubr.bf16.gmra.mxu0 %v5034
    %v5301 = vpop.f32.mrf.mxu0
    %v5302 = vadd.f32 0.0, %v5301
    %v5303 = vpop.f32.mrf.mxu0
    %v5304 = vpop.f32.mrf.mxu0
    %v5305 = vadd.f32 0.0, %v5304
    %v5306 = vpop.f32.mrf.mxu0
    %5307 = vmatprep.mubr.bf16.mxu0 0
    %5308 = vmatmul.mubr.bf16.gmra.mxu0 %v5037
    %v5309 = vpop.f32.mrf.mxu0
    %v5310 = vadd.f32 0.0, %v5309
    %v5311 = vpop.f32.mrf.mxu0
    %v5312 = vpop.f32.mrf.mxu0
    %v5313 = vadd.f32 0.0, %v5312
    %v5314 = vpop.f32.mrf.mxu0
    %5315 = vmatprep.mubr.bf16.mxu0 0
    %5316 = vmatmul.mubr.bf16.gmra.mxu0 %v5040
    %v5317 = vpop.f32.mrf.mxu0
    %v5318 = vadd.f32 0.0, %v5317
    %v5319 = vpop.f32.mrf.mxu0
    %v5320 = vpop.f32.mrf.mxu0
    %v5321 = vadd.f32 0.0, %v5320
    %v5322 = vpop.f32.mrf.mxu0
    %5323 = vmatprep.mubr.bf16.mxu0 0
    %5324 = vmatmul.mubr.bf16.gmra.mxu0 %v5043
    %v5325 = vpop.f32.mrf.mxu0
    %v5326 = vadd.f32 0.0, %v5325
    %v5327 = vpop.f32.mrf.mxu0
    %v5328 = vpop.f32.mrf.mxu0
    %v5329 = vadd.f32 0.0, %v5328
    %v5330 = vpop.f32.mrf.mxu0
    %5331 = vmatprep.mubr.bf16.mxu0 0
    %5332 = vmatmul.mubr.bf16.gmra.mxu0 %v5046
    %v5333 = vpop.f32.mrf.mxu0
    %v5334 = vadd.f32 0.0, %v5333
    %v5335 = vpop.f32.mrf.mxu0
    %v5336 = vpop.f32.mrf.mxu0
    %v5337 = vadd.f32 0.0, %v5336
    %v5338 = vpop.f32.mrf.mxu0
    %5339 = vmatprep.mubr.bf16.mxu0 0
    %5340 = vmatmul.mubr.bf16.gmra.mxu0 %v5049
    %v5341 = vpop.f32.mrf.mxu0
    %v5342 = vadd.f32 0.0, %v5341
    %v5343 = vpop.f32.mrf.mxu0
    %v5344 = vpop.f32.mrf.mxu0
    %v5345 = vadd.f32 0.0, %v5344
    %v5346 = vpop.f32.mrf.mxu0
    %5347 = vmatprep.mubr.bf16.mxu0 0
    %5348 = vmatmul.mubr.bf16.gmra.mxu0 %v5052
    %v5349 = vpop.f32.mrf.mxu0
    %v5350 = vadd.f32 0.0, %v5349
    %v5351 = vpop.f32.mrf.mxu0
    %v5352 = vpop.f32.mrf.mxu0
    %v5353 = vadd.f32 0.0, %v5352
    %v5354 = vpop.f32.mrf.mxu0
    %5355 = vmatprep.mubr.bf16.mxu0 0
    %5356 = vmatmul.mubr.bf16.gmra.mxu0 %v5055
    %v5357 = vpop.f32.mrf.mxu0
    %v5358 = vadd.f32 0.0, %v5357
    %v5359 = vpop.f32.mrf.mxu0
    %v5360 = vpop.f32.mrf.mxu0
    %v5361 = vadd.f32 0.0, %v5360
    %v5362 = vpop.f32.mrf.mxu0
    %5363 = vdwg.mxu0
    %v5364 = vpack.c.bf16 %v5305, %v5302
    %v5365 = vpack.c.bf16 %v5313, %v5310
    %v5366 = vpack.c.bf16 %v5321, %v5318
    %v5367 = vpack.c.bf16 %v5329, %v5326
    %v5368 = vpack.c.bf16 %v5337, %v5334
    %v5369 = vpack.c.bf16 %v5345, %v5342
    %v5370 = vpack.c.bf16 %v5353, %v5350
    %v5371 = vpack.c.bf16 %v5361, %v5358
    %5372 = vmatprep.subr.bf16.mxu0 0
    %5373 = vmatpush1.bf16.msra.mxu0 0
    %5374 = vmatprep.subr.bf16.mxu0 0
    %5375 = vmatpush1.bf16.msra.mxu0 0
    %5376 = vmatprep.subr.bf16.mxu0 0
    %5377 = vmatpush1.bf16.msra.mxu0 0
    %5378 = vmatprep.subr.bf16.mxu0 0
    %5379 = vmatpush1.bf16.msra.mxu0 0
    %5380 = vmatprep.subr.bf16.mxu0 0
    %5381 = vmatpush1.bf16.msra.mxu0 0
    %5382 = vmatprep.subr.bf16.mxu0 0
    %5383 = vmatpush1.bf16.msra.mxu0 0
    %5384 = vmatprep.subr.bf16.mxu0 0
    %5385 = vmatpush1.bf16.msra.mxu0 0
    %5386 = vmatprep.subr.bf16.mxu0 0
    %5387 = vmatpush1.bf16.msra.mxu0 %v4660
    %5388 = vmatprep.subr.bf16.mxu0 0
    %5389 = vmatpush2.bf16.msra.mxu0 0
    %5390 = vmatprep.subr.bf16.mxu0 0
    %5391 = vmatpush2.bf16.msra.mxu0 0
    %5392 = vmatprep.subr.bf16.mxu0 0
    %5393 = vmatpush2.bf16.msra.mxu0 0
    %5394 = vmatprep.subr.bf16.mxu0 0
    %5395 = vmatpush2.bf16.msra.mxu0 0
    %5396 = vmatprep.subr.bf16.mxu0 0
    %5397 = vmatpush2.bf16.msra.mxu0 0
    %5398 = vmatprep.subr.bf16.mxu0 0
    %5399 = vmatpush2.bf16.msra.mxu0 0
    %5400 = vmatprep.subr.bf16.mxu0 0
    %5401 = vmatpush2.bf16.msra.mxu0 0
    %5402 = vmatprep.subr.bf16.mxu0 0
    %5403 = vmatpush2.bf16.msra.mxu0 0
    %5404 = vmatprep.mubr.bf16.mxu0 0
    %5405 = vmatmul.mubr.bf16.gmra.mxu0 %v5034
    %v5406 = vpop.f32.mrf.mxu0
    %v5407 = vadd.f32 0.0, %v5406
    %v5408 = vpop.f32.mrf.mxu0
    %v5409 = vpop.f32.mrf.mxu0
    %v5410 = vadd.f32 0.0, %v5409
    %v5411 = vpop.f32.mrf.mxu0
    %5412 = vmatprep.mubr.bf16.mxu0 0
    %5413 = vmatmul.mubr.bf16.gmra.mxu0 %v5037
    %v5414 = vpop.f32.mrf.mxu0
    %v5415 = vadd.f32 0.0, %v5414
    %v5416 = vpop.f32.mrf.mxu0
    %v5417 = vpop.f32.mrf.mxu0
    %v5418 = vadd.f32 0.0, %v5417
    %v5419 = vpop.f32.mrf.mxu0
    %5420 = vmatprep.mubr.bf16.mxu0 0
    %5421 = vmatmul.mubr.bf16.gmra.mxu0 %v5040
    %v5422 = vpop.f32.mrf.mxu0
    %v5423 = vadd.f32 0.0, %v5422
    %v5424 = vpop.f32.mrf.mxu0
    %v5425 = vpop.f32.mrf.mxu0
    %v5426 = vadd.f32 0.0, %v5425
    %v5427 = vpop.f32.mrf.mxu0
    %5428 = vmatprep.mubr.bf16.mxu0 0
    %5429 = vmatmul.mubr.bf16.gmra.mxu0 %v5043
    %v5430 = vpop.f32.mrf.mxu0
    %v5431 = vadd.f32 0.0, %v5430
    %v5432 = vpop.f32.mrf.mxu0
    %v5433 = vpop.f32.mrf.mxu0
    %v5434 = vadd.f32 0.0, %v5433
    %v5435 = vpop.f32.mrf.mxu0
    %5436 = vmatprep.mubr.bf16.mxu0 0
    %5437 = vmatmul.mubr.bf16.gmra.mxu0 %v5046
    %v5438 = vpop.f32.mrf.mxu0
    %v5439 = vadd.f32 0.0, %v5438
    %v5440 = vpop.f32.mrf.mxu0
    %v5441 = vpop.f32.mrf.mxu0
    %v5442 = vadd.f32 0.0, %v5441
    %v5443 = vpop.f32.mrf.mxu0
    %5444 = vmatprep.mubr.bf16.mxu0 0
    %5445 = vmatmul.mubr.bf16.gmra.mxu0 %v5049
    %v5446 = vpop.f32.mrf.mxu0
    %v5447 = vadd.f32 0.0, %v5446
    %v5448 = vpop.f32.mrf.mxu0
    %v5449 = vpop.f32.mrf.mxu0
    %v5450 = vadd.f32 0.0, %v5449
    %v5451 = vpop.f32.mrf.mxu0
    %5452 = vmatprep.mubr.bf16.mxu0 0
    %5453 = vmatmul.mubr.bf16.gmra.mxu0 %v5052
    %v5454 = vpop.f32.mrf.mxu0
    %v5455 = vadd.f32 0.0, %v5454
    %v5456 = vpop.f32.mrf.mxu0
    %v5457 = vpop.f32.mrf.mxu0
    %v5458 = vadd.f32 0.0, %v5457
    %v5459 = vpop.f32.mrf.mxu0
    %5460 = vmatprep.mubr.bf16.mxu0 0
    %5461 = vmatmul.mubr.bf16.gmra.mxu0 %v5055
    %v5462 = vpop.f32.mrf.mxu0
    %v5463 = vadd.f32 0.0, %v5462
    %v5464 = vpop.f32.mrf.mxu0
    %v5465 = vpop.f32.mrf.mxu0
    %v5466 = vadd.f32 0.0, %v5465
    %v5467 = vpop.f32.mrf.mxu0
    %5468 = vdwg.mxu0
    %v5469 = vpack.c.bf16 %v5410, %v5407
    %v5470 = vpack.c.bf16 %v5418, %v5415
    %v5471 = vpack.c.bf16 %v5426, %v5423
    %v5472 = vpack.c.bf16 %v5434, %v5431
    %v5473 = vpack.c.bf16 %v5442, %v5439
    %v5474 = vpack.c.bf16 %v5450, %v5447
    %v5475 = vpack.c.bf16 %v5458, %v5455
    %v5476 = vpack.c.bf16 %v5466, %v5463
    %5477 = vmatprep.subr.bf16.mxu0 0
    %5478 = vmatpush1.bf16.msra.mxu0 %v5161
    %5479 = vmatprep.subr.bf16.mxu0 0
    %5480 = vmatpush1.bf16.msra.mxu0 %v5160
    %5481 = vmatprep.subr.bf16.mxu0 0
    %5482 = vmatpush1.bf16.msra.mxu0 %v5159
    %5483 = vmatprep.subr.bf16.mxu0 0
    %5484 = vmatpush1.bf16.msra.mxu0 %v5158
    %5485 = vmatprep.subr.bf16.mxu0 0
    %5486 = vmatpush1.bf16.msra.mxu0 %v5157
    %5487 = vmatprep.subr.bf16.mxu0 0
    %5488 = vmatpush1.bf16.msra.mxu0 %v5156
    %5489 = vmatprep.subr.bf16.mxu0 0
    %5490 = vmatpush1.bf16.msra.mxu0 %v5155
    %5491 = vmatprep.subr.bf16.mxu0 0
    %5492 = vmatpush1.bf16.msra.mxu0 %v5154
    %5493 = vmatprep.subr.bf16.mxu0 0
    %5494 = vmatpush2.bf16.msra.mxu0 %v5266
    %5495 = vmatprep.subr.bf16.mxu0 0
    %5496 = vmatpush2.bf16.msra.mxu0 %v5265
    %5497 = vmatprep.subr.bf16.mxu0 0
    %5498 = vmatpush2.bf16.msra.mxu0 %v5264
    %5499 = vmatprep.subr.bf16.mxu0 0
    %5500 = vmatpush2.bf16.msra.mxu0 %v5263
    %5501 = vmatprep.subr.bf16.mxu0 0
    %5502 = vmatpush2.bf16.msra.mxu0 %v5262
    %5503 = vmatprep.subr.bf16.mxu0 0
    %5504 = vmatpush2.bf16.msra.mxu0 %v5261
    %5505 = vmatprep.subr.bf16.mxu0 0
    %5506 = vmatpush2.bf16.msra.mxu0 %v5260
    %5507 = vmatprep.subr.bf16.mxu0 0
    %5508 = vmatpush2.bf16.msra.mxu0 %v5259
    %5509 = vmatprep.mubr.bf16.mxu0 %v4856
    %5510 = vmatmul.mubr.bf16.gmra.mxu0 %v4855
    %v5511 = vpop.f32.mrf.mxu0
    %v5512 = vadd.f32 %v4770, %v5511
    %v5513 = vpop.f32.mrf.mxu0
    %v5514 = vpop.f32.mrf.mxu0
    %v5515 = vadd.f32 %v4775, %v5514
    %v5516 = vpop.f32.mrf.mxu0
    %5517 = vmatprep.mubr.bf16.mxu0 %v4860
    %5518 = vmatmul.mubr.bf16.gmra.mxu0 %v4859
    %v5519 = vpop.f32.mrf.mxu0
    %v5520 = vadd.f32 %v4780, %v5519
    %v5521 = vpop.f32.mrf.mxu0
    %v5522 = vpop.f32.mrf.mxu0
    %v5523 = vadd.f32 %v4785, %v5522
    %v5524 = vpop.f32.mrf.mxu0
    %5525 = vmatprep.mubr.bf16.mxu0 %v4864
    %5526 = vmatmul.mubr.bf16.gmra.mxu0 %v4863
    %v5527 = vpop.f32.mrf.mxu0
    %v5528 = vadd.f32 %v4790, %v5527
    %v5529 = vpop.f32.mrf.mxu0
    %v5530 = vpop.f32.mrf.mxu0
    %v5531 = vadd.f32 %v4795, %v5530
    %v5532 = vpop.f32.mrf.mxu0
    %5533 = vmatprep.mubr.bf16.mxu0 %v4868
    %5534 = vmatmul.mubr.bf16.gmra.mxu0 %v4867
    %v5535 = vpop.f32.mrf.mxu0
    %v5536 = vadd.f32 %v4800, %v5535
    %v5537 = vpop.f32.mrf.mxu0
    %v5538 = vpop.f32.mrf.mxu0
    %v5539 = vadd.f32 %v4805, %v5538
    %v5540 = vpop.f32.mrf.mxu0
    %5541 = vdwg.mxu0
    %5542 = vmatprep.subr.bf16.mxu0 0
    %5543 = vmatpush1.bf16.msra.mxu0 %v5371
    %5544 = vmatprep.subr.bf16.mxu0 0
    %5545 = vmatpush1.bf16.msra.mxu0 %v5370
    %5546 = vmatprep.subr.bf16.mxu0 0
    %5547 = vmatpush1.bf16.msra.mxu0 %v5369
    %5548 = vmatprep.subr.bf16.mxu0 0
    %5549 = vmatpush1.bf16.msra.mxu0 %v5368
    %5550 = vmatprep.subr.bf16.mxu0 0
    %5551 = vmatpush1.bf16.msra.mxu0 %v5367
    %5552 = vmatprep.subr.bf16.mxu0 0
    %5553 = vmatpush1.bf16.msra.mxu0 %v5366
    %5554 = vmatprep.subr.bf16.mxu0 0
    %5555 = vmatpush1.bf16.msra.mxu0 %v5365
    %5556 = vmatprep.subr.bf16.mxu0 0
    %5557 = vmatpush1.bf16.msra.mxu0 %v5364
    %5558 = vmatprep.subr.bf16.mxu0 0
    %5559 = vmatpush2.bf16.msra.mxu0 %v5476
    %5560 = vmatprep.subr.bf16.mxu0 0
    %5561 = vmatpush2.bf16.msra.mxu0 %v5475
    %5562 = vmatprep.subr.bf16.mxu0 0
    %5563 = vmatpush2.bf16.msra.mxu0 %v5474
    %5564 = vmatprep.subr.bf16.mxu0 0
    %5565 = vmatpush2.bf16.msra.mxu0 %v5473
    %5566 = vmatprep.subr.bf16.mxu0 0
    %5567 = vmatpush2.bf16.msra.mxu0 %v5472
    %5568 = vmatprep.subr.bf16.mxu0 0
    %5569 = vmatpush2.bf16.msra.mxu0 %v5471
    %5570 = vmatprep.subr.bf16.mxu0 0
    %5571 = vmatpush2.bf16.msra.mxu0 %v5470
    %5572 = vmatprep.subr.bf16.mxu0 0
    %5573 = vmatpush2.bf16.msra.mxu0 %v5469
    %5574 = vmatprep.mubr.bf16.mxu0 %v4858
    %5575 = vmatmul.mubr.bf16.gmra.mxu0 %v4857
    %v5576 = vpop.f32.mrf.mxu0
    %v5577 = vadd.f32 %v5512, %v5576
    %v5578 = vpop.f32.mrf.mxu0
    %v5579 = vpop.f32.mrf.mxu0
    %v5580 = vadd.f32 %v5515, %v5579
    %v5581 = vpop.f32.mrf.mxu0
    %5582 = vmatprep.mubr.bf16.mxu0 %v4862
    %5583 = vmatmul.mubr.bf16.gmra.mxu0 %v4861
    %v5584 = vpop.f32.mrf.mxu0
    %v5585 = vadd.f32 %v5520, %v5584
    %v5586 = vpop.f32.mrf.mxu0
    %v5587 = vpop.f32.mrf.mxu0
    %v5588 = vadd.f32 %v5523, %v5587
    %v5589 = vpop.f32.mrf.mxu0
    %5590 = vmatprep.mubr.bf16.mxu0 %v4866
    %5591 = vmatmul.mubr.bf16.gmra.mxu0 %v4865
    %v5592 = vpop.f32.mrf.mxu0
    %v5593 = vadd.f32 %v5528, %v5592
    %v5594 = vpop.f32.mrf.mxu0
    %v5595 = vpop.f32.mrf.mxu0
    %v5596 = vadd.f32 %v5531, %v5595
    %v5597 = vpop.f32.mrf.mxu0
    %5598 = vmatprep.mubr.bf16.mxu0 %v4870
    %5599 = vmatmul.mubr.bf16.gmra.mxu0 %v4869
    %v5600 = vpop.f32.mrf.mxu0
    %v5601 = vadd.f32 %v5536, %v5600
    %v5602 = vpop.f32.mrf.mxu0
    %v5603 = vpop.f32.mrf.mxu0
    %v5604 = vadd.f32 %v5539, %v5603
    %v5605 = vpop.f32.mrf.mxu0
    %5606 = vdwg.mxu0
    %v5607 = vmax.f32 %v5577, 0.0
    %v5608 = vmax.f32 %v5580, 0.0
    %v5609 = vmax.f32 %v5585, 0.0
    %v5610 = vmax.f32 %v5588, 0.0
    %v5611 = vmax.f32 %v5593, 0.0
    %v5612 = vmax.f32 %v5596, 0.0
    %v5613 = vmax.f32 %v5601, 0.0
    %v5614 = vmax.f32 %v5604, 0.0
    %v5615 = vld [vmem:[%s3 + $0x350] sm:$0xff]
    %v5616 = vld [vmem:[%s3 + $0x358] sm:$0xff]
    %v5617 = vld [vmem:[%s3 + $0x360] sm:$0xff]
    %v5618 = vld [vmem:[%s3 + $0x368] sm:$0xff]
    %v5619 = vld [vmem:[%s3 + $0x370] sm:$0xff]
    %v5620 = vld [vmem:[%s3 + $0x378] sm:$0xff]
    %v5621 = vld [vmem:[%s3 + $0x380] sm:$0xff]
    %v5622 = vld [vmem:[%s3 + $0x388] sm:$0xff]
    %v5623 = vld [vmem:[%s3 + $0x390] sm:$0xff]
    %v5624 = vld [vmem:[%s3 + $0x398] sm:$0xff]
    %v5625 = vld [vmem:[%s3 + $0x3a0] sm:$0xff]
    %v5626 = vld [vmem:[%s3 + $0x3a8] sm:$0xff]
    %v5627 = vld [vmem:[%s3 + $0x3b0] sm:$0xff]
    %v5628 = vld [vmem:[%s3 + $0x3b8] sm:$0xff]
    %v5629 = vld [vmem:[%s3 + $0x3c0] sm:$0xff]
    %v5630 = vld [vmem:[%s3 + $0x3c8] sm:$0xff]
    %v5631 = vsel %vm2285, %v5017, 0.0
    %5632 = vadd.xlane.f32.xlu0 %v5631
    %v5633 = vpop.xlane.xlu0 %5632
    %v5634 = vsel %vm2285, %v5018, 0.0
    %5635 = vadd.xlane.f32.xlu0 %v5634
    %v5636 = vpop.xlane.xlu0 %5635
    %v5637 = vsel %vm2285, %v5019, 0.0
    %5638 = vadd.xlane.f32.xlu0 %v5637
    %v5639 = vpop.xlane.xlu0 %5638
    %v5640 = vsel %vm2285, %v5020, 0.0
    %5641 = vadd.xlane.f32.xlu0 %v5640
    %v5642 = vpop.xlane.xlu0 %5641
    %v5643 = vsel %vm2285, %v5021, 0.0
    %5644 = vadd.xlane.f32.xlu0 %v5643
    %v5645 = vpop.xlane.xlu0 %5644
    %v5646 = vsel %vm2285, %v5022, 0.0
    %5647 = vadd.xlane.f32.xlu0 %v5646
    %v5648 = vpop.xlane.xlu0 %5647
    %v5649 = vsel %vm2285, %v5023, 0.0
    %5650 = vadd.xlane.f32.xlu0 %v5649
    %v5651 = vpop.xlane.xlu0 %5650
    %v5652 = vsel %vm2285, %v5024, 0.0
    %5653 = vadd.xlane.f32.xlu0 %v5652
    %v5654 = vpop.xlane.xlu0 %5653
    %v5655 = vadd.f32 %v5633, 0.0
    %v5656 = vadd.f32 %v5636, 0.0
    %v5657 = vadd.f32 %v5639, 0.0
    %v5658 = vadd.f32 %v5642, 0.0
    %v5659 = vadd.f32 %v5645, 0.0
    %v5660 = vadd.f32 %v5648, 0.0
    %v5661 = vadd.f32 %v5651, 0.0
    %v5662 = vadd.f32 %v5654, 0.0
    %v5663 = vsel %vm2285, %v5607, 0.0
    %5664 = vadd.xlane.f32.xlu0 %v5663
    %v5665 = vpop.xlane.xlu0 %5664
    %v5666 = vsel %vm2285, %v5608, 0.0
    %5667 = vadd.xlane.f32.xlu0 %v5666
    %v5668 = vpop.xlane.xlu0 %5667
    %v5669 = vsel %vm2285, %v5609, 0.0
    %5670 = vadd.xlane.f32.xlu0 %v5669
    %v5671 = vpop.xlane.xlu0 %5670
    %v5672 = vsel %vm2285, %v5610, 0.0
    %5673 = vadd.xlane.f32.xlu0 %v5672
    %v5674 = vpop.xlane.xlu0 %5673
    %v5675 = vsel %vm2285, %v5611, 0.0
    %5676 = vadd.xlane.f32.xlu0 %v5675
    %v5677 = vpop.xlane.xlu0 %5676
    %v5678 = vsel %vm2285, %v5612, 0.0
    %5679 = vadd.xlane.f32.xlu0 %v5678
    %v5680 = vpop.xlane.xlu0 %5679
    %v5681 = vsel %vm2285, %v5613, 0.0
    %5682 = vadd.xlane.f32.xlu0 %v5681
    %v5683 = vpop.xlane.xlu0 %5682
    %v5684 = vsel %vm2285, %v5614, 0.0
    %5685 = vadd.xlane.f32.xlu0 %v5684
    %v5686 = vpop.xlane.xlu0 %5685
    %v5687 = vadd.f32 %v5655, %v5665
    %v5688 = vadd.f32 %v5656, %v5668
    %v5689 = vadd.f32 %v5657, %v5671
    %v5690 = vadd.f32 %v5658, %v5674
    %v5691 = vadd.f32 %v5659, %v5677
    %v5692 = vadd.f32 %v5660, %v5680
    %v5693 = vadd.f32 %v5661, %v5683
    %v5694 = vadd.f32 %v5662, %v5686
    %v5695 = vmul.f32 %v5687, 0.0625
    %v5696 = vmul.f32 %v5688, 0.0625
    %v5697 = vmul.f32 %v5689, 0.0625
    %v5698 = vmul.f32 %v5690, 0.0625
    %v5699 = vmul.f32 %v5691, 0.0625
    %v5700 = vmul.f32 %v5692, 0.0625
    %v5701 = vmul.f32 %v5693, 0.0625
    %v5702 = vmul.f32 %v5694, 0.0625
    %v5703 = vsub.f32 %v5017, %v5695
    %v5704 = vsub.f32 %v5018, %v5696
    %v5705 = vsub.f32 %v5019, %v5697
    %v5706 = vsub.f32 %v5020, %v5698
    %v5707 = vsub.f32 %v5021, %v5699
    %v5708 = vsub.f32 %v5022, %v5700
    %v5709 = vsub.f32 %v5023, %v5701
    %v5710 = vsub.f32 %v5024, %v5702
    %v5711 = vsub.f32 %v5607, %v5695
    %v5712 = vsub.f32 %v5608, %v5696
    %v5713 = vsub.f32 %v5609, %v5697
    %v5714 = vsub.f32 %v5610, %v5698
    %v5715 = vsub.f32 %v5611, %v5699
    %v5716 = vsub.f32 %v5612, %v5700
    %v5717 = vsub.f32 %v5613, %v5701
    %v5718 = vsub.f32 %v5614, %v5702
    %v5719 = vmul.f32 %v5703, %v5703
    %v5720 = vmul.f32 %v5704, %v5704
    %v5721 = vmul.f32 %v5705, %v5705
    %v5722 = vmul.f32 %v5706, %v5706
    %v5723 = vmul.f32 %v5707, %v5707
    %v5724 = vmul.f32 %v5708, %v5708
    %v5725 = vmul.f32 %v5709, %v5709
    %v5726 = vmul.f32 %v5710, %v5710
    %v5727 = vsel %vm2285, %v5719, 0.0
    %5728 = vadd.xlane.f32.xlu0 %v5727
    %v5729 = vpop.xlane.xlu0 %5728
    %v5730 = vsel %vm2285, %v5720, 0.0
    %5731 = vadd.xlane.f32.xlu0 %v5730
    %v5732 = vpop.xlane.xlu0 %5731
    %v5733 = vsel %vm2285, %v5721, 0.0
    %5734 = vadd.xlane.f32.xlu0 %v5733
    %v5735 = vpop.xlane.xlu0 %5734
    %v5736 = vsel %vm2285, %v5722, 0.0
    %5737 = vadd.xlane.f32.xlu0 %v5736
    %v5738 = vpop.xlane.xlu0 %5737
    %v5739 = vsel %vm2285, %v5723, 0.0
    %5740 = vadd.xlane.f32.xlu0 %v5739
    %v5741 = vpop.xlane.xlu0 %5740
    %v5742 = vsel %vm2285, %v5724, 0.0
    %5743 = vadd.xlane.f32.xlu0 %v5742
    %v5744 = vpop.xlane.xlu0 %5743
    %v5745 = vsel %vm2285, %v5725, 0.0
    %5746 = vadd.xlane.f32.xlu0 %v5745
    %v5747 = vpop.xlane.xlu0 %5746
    %v5748 = vsel %vm2285, %v5726, 0.0
    %5749 = vadd.xlane.f32.xlu0 %v5748
    %v5750 = vpop.xlane.xlu0 %5749
    %v5751 = vadd.f32 %v5729, 0.0
    %v5752 = vadd.f32 %v5732, 0.0
    %v5753 = vadd.f32 %v5735, 0.0
    %v5754 = vadd.f32 %v5738, 0.0
    %v5755 = vadd.f32 %v5741, 0.0
    %v5756 = vadd.f32 %v5744, 0.0
    %v5757 = vadd.f32 %v5747, 0.0
    %v5758 = vadd.f32 %v5750, 0.0
    %v5759 = vmul.f32 %v5711, %v5711
    %v5760 = vmul.f32 %v5712, %v5712
    %v5761 = vmul.f32 %v5713, %v5713
    %v5762 = vmul.f32 %v5714, %v5714
    %v5763 = vmul.f32 %v5715, %v5715
    %v5764 = vmul.f32 %v5716, %v5716
    %v5765 = vmul.f32 %v5717, %v5717
    %v5766 = vmul.f32 %v5718, %v5718
    %v5767 = vsel %vm2285, %v5759, 0.0
    %5768 = vadd.xlane.f32.xlu0 %v5767
    %v5769 = vpop.xlane.xlu0 %5768
    %v5770 = vsel %vm2285, %v5760, 0.0
    %5771 = vadd.xlane.f32.xlu0 %v5770
    %v5772 = vpop.xlane.xlu0 %5771
    %v5773 = vsel %vm2285, %v5761, 0.0
    %5774 = vadd.xlane.f32.xlu0 %v5773
    %v5775 = vpop.xlane.xlu0 %5774
    %v5776 = vsel %vm2285, %v5762, 0.0
    %5777 = vadd.xlane.f32.xlu0 %v5776
    %v5778 = vpop.xlane.xlu0 %5777
    %v5779 = vsel %vm2285, %v5763, 0.0
    %5780 = vadd.xlane.f32.xlu0 %v5779
    %v5781 = vpop.xlane.xlu0 %5780
    %v5782 = vsel %vm2285, %v5764, 0.0
    %5783 = vadd.xlane.f32.xlu0 %v5782
    %v5784 = vpop.xlane.xlu0 %5783
    %v5785 = vsel %vm2285, %v5765, 0.0
    %5786 = vadd.xlane.f32.xlu0 %v5785
    %v5787 = vpop.xlane.xlu0 %5786
    %v5788 = vsel %vm2285, %v5766, 0.0
    %5789 = vadd.xlane.f32.xlu0 %v5788
    %v5790 = vpop.xlane.xlu0 %5789
    %v5791 = vadd.f32 %v5751, %v5769
    %v5792 = vadd.f32 %v5752, %v5772
    %v5793 = vadd.f32 %v5753, %v5775
    %v5794 = vadd.f32 %v5754, %v5778
    %v5795 = vadd.f32 %v5755, %v5781
    %v5796 = vadd.f32 %v5756, %v5784
    %v5797 = vadd.f32 %v5757, %v5787
    %v5798 = vadd.f32 %v5758, %v5790
    %v5799 = vmul.f32 %v5791, 0.0625
    %v5800 = vmul.f32 %v5792, 0.0625
    %v5801 = vmul.f32 %v5793, 0.0625
    %v5802 = vmul.f32 %v5794, 0.0625
    %v5803 = vmul.f32 %v5795, 0.0625
    %v5804 = vmul.f32 %v5796, 0.0625
    %v5805 = vmul.f32 %v5797, 0.0625
    %v5806 = vmul.f32 %v5798, 0.0625
    %v5807 = vadd.f32 %v5799, 1e-05
    %v5808 = vadd.f32 %v5800, 1e-05
    %v5809 = vadd.f32 %v5801, 1e-05
    %v5810 = vadd.f32 %v5802, 1e-05
    %v5811 = vadd.f32 %v5803, 1e-05
    %v5812 = vadd.f32 %v5804, 1e-05
    %v5813 = vadd.f32 %v5805, 1e-05
    %v5814 = vadd.f32 %v5806, 1e-05
    %v5815 = vrsqrt.pop %v5807
    %v5816 = vrsqrt.pop %v5808
    %v5817 = vrsqrt.pop %v5809
    %v5818 = vrsqrt.pop %v5810
    %v5819 = vrsqrt.pop %v5811
    %v5820 = vrsqrt.pop %v5812
    %v5821 = vrsqrt.pop %v5813
    %v5822 = vrsqrt.pop %v5814
    %v5823 = vmul.f32 %v5815, %v5615
    %v5824 = vmul.f32 %v5816, %v5616
    %v5825 = vmul.f32 %v5817, %v5617
    %v5826 = vmul.f32 %v5818, %v5618
    %v5827 = vmul.f32 %v5819, %v5619
    %v5828 = vmul.f32 %v5820, %v5620
    %v5829 = vmul.f32 %v5821, %v5621
    %v5830 = vmul.f32 %v5822, %v5622
    %5832 = vset.pattern.permute.xlu0 0
    %5833 = vperm.xlu0 %5832, %v5823
    %v5834 = vpop.permute.xlu0 %5833
    %5837 = vset.pattern.permute.xlu0 0
    %5838 = vperm.xlu0 %5837, %v5824
    %v5839 = vpop.permute.xlu0 %5838
    %5842 = vset.pattern.permute.xlu0 0
    %5843 = vperm.xlu0 %5842, %v5825
    %v5844 = vpop.permute.xlu0 %5843
    %5847 = vset.pattern.permute.xlu0 0
    %5848 = vperm.xlu0 %5847, %v5826
    %v5849 = vpop.permute.xlu0 %5848
    %5852 = vset.pattern.permute.xlu0 0
    %5853 = vperm.xlu0 %5852, %v5827
    %v5854 = vpop.permute.xlu0 %5853
    %5857 = vset.pattern.permute.xlu0 0
    %5858 = vperm.xlu0 %5857, %v5828
    %v5859 = vpop.permute.xlu0 %5858
    %5862 = vset.pattern.permute.xlu0 0
    %5863 = vperm.xlu0 %5862, %v5829
    %v5864 = vpop.permute.xlu0 %5863
    %5867 = vset.pattern.permute.xlu0 0
    %5868 = vperm.xlu0 %5867, %v5830
    %v5869 = vpop.permute.xlu0 %5868
    %v5871 = vmul.f32 %v5703, %v5834
    %v5872 = vmul.f32 %v5704, %v5839
    %v5873 = vmul.f32 %v5705, %v5844
    %v5874 = vmul.f32 %v5706, %v5849
    %v5875 = vmul.f32 %v5707, %v5854
    %v5876 = vmul.f32 %v5708, %v5859
    %v5877 = vmul.f32 %v5709, %v5864
    %v5878 = vmul.f32 %v5710, %v5869
    %5880 = vset.pattern.permute.xlu0 0
    %5881 = vperm.xlu0 %5880, %v5623
    %v5882 = vpop.permute.xlu0 %5881
    %5885 = vset.pattern.permute.xlu0 0
    %5886 = vperm.xlu0 %5885, %v5624
    %v5887 = vpop.permute.xlu0 %5886
    %5890 = vset.pattern.permute.xlu0 0
    %5891 = vperm.xlu0 %5890, %v5625
    %v5892 = vpop.permute.xlu0 %5891
    %5895 = vset.pattern.permute.xlu0 0
    %5896 = vperm.xlu0 %5895, %v5626
    %v5897 = vpop.permute.xlu0 %5896
    %5900 = vset.pattern.permute.xlu0 0
    %5901 = vperm.xlu0 %5900, %v5627
    %v5902 = vpop.permute.xlu0 %5901
    %5905 = vset.pattern.permute.xlu0 0
    %5906 = vperm.xlu0 %5905, %v5628
    %v5907 = vpop.permute.xlu0 %5906
    %5910 = vset.pattern.permute.xlu0 0
    %5911 = vperm.xlu0 %5910, %v5629
    %v5912 = vpop.permute.xlu0 %5911
    %5915 = vset.pattern.permute.xlu0 0
    %5916 = vperm.xlu0 %5915, %v5630
    %v5917 = vpop.permute.xlu0 %5916
    %v5919 = vadd.f32 %v5871, %v5882
    %v5920 = vadd.f32 %v5872, %v5887
    %v5921 = vadd.f32 %v5873, %v5892
    %v5922 = vadd.f32 %v5874, %v5897
    %v5923 = vadd.f32 %v5875, %v5902
    %v5924 = vadd.f32 %v5876, %v5907
    %v5925 = vadd.f32 %v5877, %v5912
    %v5926 = vadd.f32 %v5878, %v5917
    %v5927 = vmul.f32 %v5711, %v5834
    %v5928 = vmul.f32 %v5712, %v5839
    %v5929 = vmul.f32 %v5713, %v5844
    %v5930 = vmul.f32 %v5714, %v5849
    %v5931 = vmul.f32 %v5715, %v5854
    %v5932 = vmul.f32 %v5716, %v5859
    %v5933 = vmul.f32 %v5717, %v5864
    %v5934 = vmul.f32 %v5718, %v5869
    %v5935 = vadd.f32 %v5927, %v5882
    %v5936 = vadd.f32 %v5928, %v5887
    %v5937 = vadd.f32 %v5929, %v5892
    %v5938 = vadd.f32 %v5930, %v5897
    %v5939 = vadd.f32 %v5931, %v5902
    %v5940 = vadd.f32 %v5932, %v5907
    %v5941 = vadd.f32 %v5933, %v5912
    %v5942 = vadd.f32 %v5934, %v5917
    %v5943 = vld [vmem:[%s3 + $0x3d0] sm:$0xff]
    %v5944 = vld [vmem:[%s3 + $0x3d8] sm:$0xff]
    %v5945 = vld [vmem:[%s3 + $0x3e0] sm:$0xff]
    %v5946 = vld [vmem:[%s3 + $0x3e8] sm:$0xff]
    %v5947 = vld [vmem:[%s2 + $0x120] sm:$0xf]
    %v5948 = vld [vmem:[%s2 + $0x128] sm:$0xf]
    %v5949 = vld [vmem:[%s2 + $0x130] sm:$0xf]
    %v5950 = vld [vmem:[%s2 + $0x138] sm:$0xf]
    %v5951 = vld [vmem:[%s1 + $0x240] sm:$0xff]
    %v5952 = vld [vmem:[%s1 + $0x250] sm:$0xff]
    %v5953 = vld [vmem:[%s1 + $0x260] sm:$0xff]
    %v5954 = vld [vmem:[%s1 + $0x270] sm:$0xff]
    %v5955 = vpack.c.bf16 %v5920, %v5919
    %v5956 = vpack.c.bf16 %v5922, %v5921
    %v5957 = vpack.c.bf16 %v5924, %v5923
    %v5958 = vpack.c.bf16 %v5926, %v5925
    %v5960 = vsel %vm2285, %v5955, 0
    %v5963 = vsel %vm2285, %v5956, 0
    %v5966 = vsel %vm2285, %v5957, 0
    %v5969 = vsel %vm2285, %v5958, 0
    %v5972 = vsel %vm2650, %v5947, 0
    %5974 = vmatprep.subr.bf16.mxu0 0
    %5975 = vmatpush1.bf16.msra.mxu0 0
    %5976 = vmatprep.subr.bf16.mxu0 0
    %5977 = vmatpush1.bf16.msra.mxu0 0
    %5978 = vmatprep.subr.bf16.mxu0 0
    %5979 = vmatpush1.bf16.msra.mxu0 0
    %5980 = vmatprep.subr.bf16.mxu0 0
    %5981 = vmatpush1.bf16.msra.mxu0 0
    %5982 = vmatprep.subr.bf16.mxu0 0
    %5983 = vmatpush1.bf16.msra.mxu0 0
    %5984 = vmatprep.subr.bf16.mxu0 0
    %5985 = vmatpush1.bf16.msra.mxu0 0
    %5986 = vmatprep.subr.bf16.mxu0 0
    %5987 = vmatpush1.bf16.msra.mxu0 0
    %5988 = vmatprep.subr.bf16.mxu0 0
    %5989 = vmatpush1.bf16.msra.mxu0 %v5972
    %5990 = vmatprep.subr.bf16.mxu0 0
    %5991 = vmatpush2.bf16.msra.mxu0 0
    %5992 = vmatprep.subr.bf16.mxu0 0
    %5993 = vmatpush2.bf16.msra.mxu0 0
    %5994 = vmatprep.subr.bf16.mxu0 0
    %5995 = vmatpush2.bf16.msra.mxu0 0
    %5996 = vmatprep.subr.bf16.mxu0 0
    %5997 = vmatpush2.bf16.msra.mxu0 0
    %5998 = vmatprep.subr.bf16.mxu0 0
    %5999 = vmatpush2.bf16.msra.mxu0 0
    %6000 = vmatprep.subr.bf16.mxu0 0
    %6001 = vmatpush2.bf16.msra.mxu0 0
    %6002 = vmatprep.subr.bf16.mxu0 0
    %6003 = vmatpush2.bf16.msra.mxu0 0
    %6004 = vmatprep.subr.bf16.mxu0 0
    %6005 = vmatpush2.bf16.msra.mxu0 0
    %6006 = vmatprep.mubr.bf16.mxu0 0
    %6007 = vmatmul.mubr.bf16.gmra.mxu0 %v5960
    %v6008 = vpop.f32.mrf.mxu0
    %v6009 = vadd.f32 0.0, %v6008
    %v6010 = vpop.f32.mrf.mxu0
    %v6011 = vpop.f32.mrf.mxu0
    %v6012 = vadd.f32 0.0, %v6011
    %v6013 = vpop.f32.mrf.mxu0
    %6014 = vmatprep.mubr.bf16.mxu0 0
    %6015 = vmatmul.mubr.bf16.gmra.mxu0 %v5963
    %v6016 = vpop.f32.mrf.mxu0
    %v6017 = vadd.f32 0.0, %v6016
    %v6018 = vpop.f32.mrf.mxu0
    %v6019 = vpop.f32.mrf.mxu0
    %v6020 = vadd.f32 0.0, %v6019
    %v6021 = vpop.f32.mrf.mxu0
    %6022 = vmatprep.mubr.bf16.mxu0 0
    %6023 = vmatmul.mubr.bf16.gmra.mxu0 %v5966
    %v6024 = vpop.f32.mrf.mxu0
    %v6025 = vadd.f32 0.0, %v6024
    %v6026 = vpop.f32.mrf.mxu0
    %v6027 = vpop.f32.mrf.mxu0
    %v6028 = vadd.f32 0.0, %v6027
    %v6029 = vpop.f32.mrf.mxu0
    %6030 = vmatprep.mubr.bf16.mxu0 0
    %6031 = vmatmul.mubr.bf16.gmra.mxu0 %v5969
    %v6032 = vpop.f32.mrf.mxu0
    %v6033 = vadd.f32 0.0, %v6032
    %v6034 = vpop.f32.mrf.mxu0
    %v6035 = vpop.f32.mrf.mxu0
    %v6036 = vadd.f32 0.0, %v6035
    %v6037 = vpop.f32.mrf.mxu0
    %6038 = vdwg.mxu0
    %v6039 = vpack.c.bf16 %v6012, %v6009
    %v6040 = vpack.c.bf16 %v6020, %v6017
    %v6041 = vpack.c.bf16 %v6028, %v6025
    %v6042 = vpack.c.bf16 %v6036, %v6033
    %v6044 = vsel %vm2650, %v5948, 0
    %6046 = vmatprep.subr.bf16.mxu0 0
    %6047 = vmatpush1.bf16.msra.mxu0 0
    %6048 = vmatprep.subr.bf16.mxu0 0
    %6049 = vmatpush1.bf16.msra.mxu0 0
    %6050 = vmatprep.subr.bf16.mxu0 0
    %6051 = vmatpush1.bf16.msra.mxu0 0
    %6052 = vmatprep.subr.bf16.mxu0 0
    %6053 = vmatpush1.bf16.msra.mxu0 0
    %6054 = vmatprep.subr.bf16.mxu0 0
    %6055 = vmatpush1.bf16.msra.mxu0 0
    %6056 = vmatprep.subr.bf16.mxu0 0
    %6057 = vmatpush1.bf16.msra.mxu0 0
    %6058 = vmatprep.subr.bf16.mxu0 0
    %6059 = vmatpush1.bf16.msra.mxu0 0
    %6060 = vmatprep.subr.bf16.mxu0 0
    %6061 = vmatpush1.bf16.msra.mxu0 %v6044
    %6062 = vmatprep.subr.bf16.mxu0 0
    %6063 = vmatpush2.bf16.msra.mxu0 0
    %6064 = vmatprep.subr.bf16.mxu0 0
    %6065 = vmatpush2.bf16.msra.mxu0 0
    %6066 = vmatprep.subr.bf16.mxu0 0
    %6067 = vmatpush2.bf16.msra.mxu0 0
    %6068 = vmatprep.subr.bf16.mxu0 0
    %6069 = vmatpush2.bf16.msra.mxu0 0
    %6070 = vmatprep.subr.bf16.mxu0 0
    %6071 = vmatpush2.bf16.msra.mxu0 0
    %6072 = vmatprep.subr.bf16.mxu0 0
    %6073 = vmatpush2.bf16.msra.mxu0 0
    %6074 = vmatprep.subr.bf16.mxu0 0
    %6075 = vmatpush2.bf16.msra.mxu0 0
    %6076 = vmatprep.subr.bf16.mxu0 0
    %6077 = vmatpush2.bf16.msra.mxu0 0
    %6078 = vmatprep.mubr.bf16.mxu0 0
    %6079 = vmatmul.mubr.bf16.gmra.mxu0 %v5960
    %v6080 = vpop.f32.mrf.mxu0
    %v6081 = vadd.f32 0.0, %v6080
    %v6082 = vpop.f32.mrf.mxu0
    %v6083 = vpop.f32.mrf.mxu0
    %v6084 = vadd.f32 0.0, %v6083
    %v6085 = vpop.f32.mrf.mxu0
    %6086 = vmatprep.mubr.bf16.mxu0 0
    %6087 = vmatmul.mubr.bf16.gmra.mxu0 %v5963
    %v6088 = vpop.f32.mrf.mxu0
    %v6089 = vadd.f32 0.0, %v6088
    %v6090 = vpop.f32.mrf.mxu0
    %v6091 = vpop.f32.mrf.mxu0
    %v6092 = vadd.f32 0.0, %v6091
    %v6093 = vpop.f32.mrf.mxu0
    %6094 = vmatprep.mubr.bf16.mxu0 0
    %6095 = vmatmul.mubr.bf16.gmra.mxu0 %v5966
    %v6096 = vpop.f32.mrf.mxu0
    %v6097 = vadd.f32 0.0, %v6096
    %v6098 = vpop.f32.mrf.mxu0
    %v6099 = vpop.f32.mrf.mxu0
    %v6100 = vadd.f32 0.0, %v6099
    %v6101 = vpop.f32.mrf.mxu0
    %6102 = vmatprep.mubr.bf16.mxu0 0
    %6103 = vmatmul.mubr.bf16.gmra.mxu0 %v5969
    %v6104 = vpop.f32.mrf.mxu0
    %v6105 = vadd.f32 0.0, %v6104
    %v6106 = vpop.f32.mrf.mxu0
    %v6107 = vpop.f32.mrf.mxu0
    %v6108 = vadd.f32 0.0, %v6107
    %v6109 = vpop.f32.mrf.mxu0
    %6110 = vdwg.mxu0
    %v6111 = vpack.c.bf16 %v6084, %v6081
    %v6112 = vpack.c.bf16 %v6092, %v6089
    %v6113 = vpack.c.bf16 %v6100, %v6097
    %v6114 = vpack.c.bf16 %v6108, %v6105
    %v6116 = vsel %vm2650, %v5949, 0
    %6118 = vmatprep.subr.bf16.mxu0 0
    %6119 = vmatpush1.bf16.msra.mxu0 0
    %6120 = vmatprep.subr.bf16.mxu0 0
    %6121 = vmatpush1.bf16.msra.mxu0 0
    %6122 = vmatprep.subr.bf16.mxu0 0
    %6123 = vmatpush1.bf16.msra.mxu0 0
    %6124 = vmatprep.subr.bf16.mxu0 0
    %6125 = vmatpush1.bf16.msra.mxu0 0
    %6126 = vmatprep.subr.bf16.mxu0 0
    %6127 = vmatpush1.bf16.msra.mxu0 0
    %6128 = vmatprep.subr.bf16.mxu0 0
    %6129 = vmatpush1.bf16.msra.mxu0 0
    %6130 = vmatprep.subr.bf16.mxu0 0
    %6131 = vmatpush1.bf16.msra.mxu0 0
    %6132 = vmatprep.subr.bf16.mxu0 0
    %6133 = vmatpush1.bf16.msra.mxu0 %v6116
    %6134 = vmatprep.subr.bf16.mxu0 0
    %6135 = vmatpush2.bf16.msra.mxu0 0
    %6136 = vmatprep.subr.bf16.mxu0 0
    %6137 = vmatpush2.bf16.msra.mxu0 0
    %6138 = vmatprep.subr.bf16.mxu0 0
    %6139 = vmatpush2.bf16.msra.mxu0 0
    %6140 = vmatprep.subr.bf16.mxu0 0
    %6141 = vmatpush2.bf16.msra.mxu0 0
    %6142 = vmatprep.subr.bf16.mxu0 0
    %6143 = vmatpush2.bf16.msra.mxu0 0
    %6144 = vmatprep.subr.bf16.mxu0 0
    %6145 = vmatpush2.bf16.msra.mxu0 0
    %6146 = vmatprep.subr.bf16.mxu0 0
    %6147 = vmatpush2.bf16.msra.mxu0 0
    %6148 = vmatprep.subr.bf16.mxu0 0
    %6149 = vmatpush2.bf16.msra.mxu0 0
    %6150 = vmatprep.mubr.bf16.mxu0 0
    %6151 = vmatmul.mubr.bf16.gmra.mxu0 %v5960
    %v6152 = vpop.f32.mrf.mxu0
    %v6153 = vadd.f32 0.0, %v6152
    %v6154 = vpop.f32.mrf.mxu0
    %v6155 = vpop.f32.mrf.mxu0
    %v6156 = vadd.f32 0.0, %v6155
    %v6157 = vpop.f32.mrf.mxu0
    %6158 = vmatprep.mubr.bf16.mxu0 0
    %6159 = vmatmul.mubr.bf16.gmra.mxu0 %v5963
    %v6160 = vpop.f32.mrf.mxu0
    %v6161 = vadd.f32 0.0, %v6160
    %v6162 = vpop.f32.mrf.mxu0
    %v6163 = vpop.f32.mrf.mxu0
    %v6164 = vadd.f32 0.0, %v6163
    %v6165 = vpop.f32.mrf.mxu0
    %6166 = vmatprep.mubr.bf16.mxu0 0
    %6167 = vmatmul.mubr.bf16.gmra.mxu0 %v5966
    %v6168 = vpop.f32.mrf.mxu0
    %v6169 = vadd.f32 0.0, %v6168
    %v6170 = vpop.f32.mrf.mxu0
    %v6171 = vpop.f32.mrf.mxu0
    %v6172 = vadd.f32 0.0, %v6171
    %v6173 = vpop.f32.mrf.mxu0
    %6174 = vmatprep.mubr.bf16.mxu0 0
    %6175 = vmatmul.mubr.bf16.gmra.mxu0 %v5969
    %v6176 = vpop.f32.mrf.mxu0
    %v6177 = vadd.f32 0.0, %v6176
    %v6178 = vpop.f32.mrf.mxu0
    %v6179 = vpop.f32.mrf.mxu0
    %v6180 = vadd.f32 0.0, %v6179
    %v6181 = vpop.f32.mrf.mxu0
    %6182 = vdwg.mxu0
    %v6183 = vpack.c.bf16 %v6156, %v6153
    %v6184 = vpack.c.bf16 %v6164, %v6161
    %v6185 = vpack.c.bf16 %v6172, %v6169
    %v6186 = vpack.c.bf16 %v6180, %v6177
    %v6188 = vsel %vm2650, %v5950, 0
    %6190 = vmatprep.subr.bf16.mxu0 0
    %6191 = vmatpush1.bf16.msra.mxu0 0
    %6192 = vmatprep.subr.bf16.mxu0 0
    %6193 = vmatpush1.bf16.msra.mxu0 0
    %6194 = vmatprep.subr.bf16.mxu0 0
    %6195 = vmatpush1.bf16.msra.mxu0 0
    %6196 = vmatprep.subr.bf16.mxu0 0
    %6197 = vmatpush1.bf16.msra.mxu0 0
    %6198 = vmatprep.subr.bf16.mxu0 0
    %6199 = vmatpush1.bf16.msra.mxu0 0
    %6200 = vmatprep.subr.bf16.mxu0 0
    %6201 = vmatpush1.bf16.msra.mxu0 0
    %6202 = vmatprep.subr.bf16.mxu0 0
    %6203 = vmatpush1.bf16.msra.mxu0 0
    %6204 = vmatprep.subr.bf16.mxu0 0
    %6205 = vmatpush1.bf16.msra.mxu0 %v6188
    %6206 = vmatprep.subr.bf16.mxu0 0
    %6207 = vmatpush2.bf16.msra.mxu0 0
    %6208 = vmatprep.subr.bf16.mxu0 0
    %6209 = vmatpush2.bf16.msra.mxu0 0
    %6210 = vmatprep.subr.bf16.mxu0 0
    %6211 = vmatpush2.bf16.msra.mxu0 0
    %6212 = vmatprep.subr.bf16.mxu0 0
    %6213 = vmatpush2.bf16.msra.mxu0 0
    %6214 = vmatprep.subr.bf16.mxu0 0
    %6215 = vmatpush2.bf16.msra.mxu0 0
    %6216 = vmatprep.subr.bf16.mxu0 0
    %6217 = vmatpush2.bf16.msra.mxu0 0
    %6218 = vmatprep.subr.bf16.mxu0 0
    %6219 = vmatpush2.bf16.msra.mxu0 0
    %6220 = vmatprep.subr.bf16.mxu0 0
    %6221 = vmatpush2.bf16.msra.mxu0 0
    %6222 = vmatprep.mubr.bf16.mxu0 0
    %6223 = vmatmul.mubr.bf16.gmra.mxu0 %v5960
    %v6224 = vpop.f32.mrf.mxu0
    %v6225 = vadd.f32 0.0, %v6224
    %v6226 = vpop.f32.mrf.mxu0
    %v6227 = vpop.f32.mrf.mxu0
    %v6228 = vadd.f32 0.0, %v6227
    %v6229 = vpop.f32.mrf.mxu0
    %6230 = vmatprep.mubr.bf16.mxu0 0
    %6231 = vmatmul.mubr.bf16.gmra.mxu0 %v5963
    %v6232 = vpop.f32.mrf.mxu0
    %v6233 = vadd.f32 0.0, %v6232
    %v6234 = vpop.f32.mrf.mxu0
    %v6235 = vpop.f32.mrf.mxu0
    %v6236 = vadd.f32 0.0, %v6235
    %v6237 = vpop.f32.mrf.mxu0
    %6238 = vmatprep.mubr.bf16.mxu0 0
    %6239 = vmatmul.mubr.bf16.gmra.mxu0 %v5966
    %v6240 = vpop.f32.mrf.mxu0
    %v6241 = vadd.f32 0.0, %v6240
    %v6242 = vpop.f32.mrf.mxu0
    %v6243 = vpop.f32.mrf.mxu0
    %v6244 = vadd.f32 0.0, %v6243
    %v6245 = vpop.f32.mrf.mxu0
    %6246 = vmatprep.mubr.bf16.mxu0 0
    %6247 = vmatmul.mubr.bf16.gmra.mxu0 %v5969
    %v6248 = vpop.f32.mrf.mxu0
    %v6249 = vadd.f32 0.0, %v6248
    %v6250 = vpop.f32.mrf.mxu0
    %v6251 = vpop.f32.mrf.mxu0
    %v6252 = vadd.f32 0.0, %v6251
    %v6253 = vpop.f32.mrf.mxu0
    %6254 = vdwg.mxu0
    %v6255 = vpack.c.bf16 %v6228, %v6225
    %v6256 = vpack.c.bf16 %v6236, %v6233
    %v6257 = vpack.c.bf16 %v6244, %v6241
    %v6258 = vpack.c.bf16 %v6252, %v6249
    %6260 = vset.pattern.permute.xlu0 0
    %6261 = vperm.xlu0 %6260, %v5943
    %v6262 = vpop.permute.xlu0 %6261
    %6265 = vset.pattern.permute.xlu0 0
    %6266 = vperm.xlu0 %6265, %v5944
    %v6267 = vpop.permute.xlu0 %6266
    %6270 = vset.pattern.permute.xlu0 0
    %6271 = vperm.xlu0 %6270, %v5945
    %v6272 = vpop.permute.xlu0 %6271
    %6275 = vset.pattern.permute.xlu0 0
    %6276 = vperm.xlu0 %6275, %v5946
    %v6277 = vpop.permute.xlu0 %6276
    %v6283 = vunpack.c.l.b16 %v5951
    %v6284 = vunpack.c.h.b16 %v5951
    %v6285 = vunpack.c.l.b16 %v5952
    %v6286 = vunpack.c.h.b16 %v5952
    %v6287 = vunpack.c.l.b16 %v5953
    %v6288 = vunpack.c.h.b16 %v5953
    %v6289 = vunpack.c.l.b16 %v5954
    %v6290 = vunpack.c.h.b16 %v5954
    %v6291 = vpack.c.b16 %v6285, %v6283
    %v6292 = vpack.c.b16 %v6286, %v6284
    %v6293 = vpack.c.b16 %v6289, %v6287
    %v6294 = vpack.c.b16 %v6290, %v6288
    %6299 = vmatprep.subr.bf16.mxu0 0
    %6300 = vmatpush1.bf16.msra.mxu0 %v6114
    %6301 = vmatprep.subr.bf16.mxu0 0
    %6302 = vmatpush1.bf16.msra.mxu0 %v6113
    %6303 = vmatprep.subr.bf16.mxu0 0
    %6304 = vmatpush1.bf16.msra.mxu0 %v6112
    %6305 = vmatprep.subr.bf16.mxu0 0
    %6306 = vmatpush1.bf16.msra.mxu0 %v6111
    %6307 = vmatprep.subr.bf16.mxu0 0
    %6308 = vmatpush1.bf16.msra.mxu0 %v6042
    %6309 = vmatprep.subr.bf16.mxu0 0
    %6310 = vmatpush1.bf16.msra.mxu0 %v6041
    %6311 = vmatprep.subr.bf16.mxu0 0
    %6312 = vmatpush1.bf16.msra.mxu0 %v6040
    %6313 = vmatprep.subr.bf16.mxu0 0
    %6314 = vmatpush1.bf16.msra.mxu0 %v6039
    %6315 = vmatprep.subr.bf16.mxu0 0
    %6316 = vmatpush2.bf16.msra.mxu0 %v6258
    %6317 = vmatprep.subr.bf16.mxu0 0
    %6318 = vmatpush2.bf16.msra.mxu0 %v6257
    %6319 = vmatprep.subr.bf16.mxu0 0
    %6320 = vmatpush2.bf16.msra.mxu0 %v6256
    %6321 = vmatprep.subr.bf16.mxu0 0
    %6322 = vmatpush2.bf16.msra.mxu0 %v6255
    %6323 = vmatprep.subr.bf16.mxu0 0
    %6324 = vmatpush2.bf16.msra.mxu0 %v6186
    %6325 = vmatprep.subr.bf16.mxu0 0
    %6326 = vmatpush2.bf16.msra.mxu0 %v6185
    %6327 = vmatprep.subr.bf16.mxu0 0
    %6328 = vmatpush2.bf16.msra.mxu0 %v6184
    %6329 = vmatprep.subr.bf16.mxu0 0
    %6330 = vmatpush2.bf16.msra.mxu0 %v6183
    %6331 = vmatprep.mubr.bf16.mxu0 %v6292
    %6332 = vmatmul.mubr.bf16.gmra.mxu0 %v6291
    %v6333 = vpop.f32.mrf.mxu0
    %v6334 = vadd.f32 %v6262, %v6333
    %v6335 = vpop.f32.mrf.mxu0
    %v6336 = vpop.f32.mrf.mxu0
    %v6337 = vadd.f32 %v6267, %v6336
    %v6338 = vpop.f32.mrf.mxu0
    %6339 = vmatprep.mubr.bf16.mxu0 %v6294
    %6340 = vmatmul.mubr.bf16.gmra.mxu0 %v6293
    %v6341 = vpop.f32.mrf.mxu0
    %v6342 = vadd.f32 %v6272, %v6341
    %v6343 = vpop.f32.mrf.mxu0
    %v6344 = vpop.f32.mrf.mxu0
    %v6345 = vadd.f32 %v6277, %v6344
    %v6346 = vpop.f32.mrf.mxu0
    %6347 = vdwg.mxu0
    %v6348 = vmax.f32 %v6334, 0.0
    %v6349 = vmax.f32 %v6337, 0.0
    %v6350 = vmax.f32 %v6342, 0.0
    %v6351 = vmax.f32 %v6345, 0.0
    %v6352 = vpack.c.bf16 %v5936, %v5935
    %v6353 = vpack.c.bf16 %v5938, %v5937
    %v6354 = vpack.c.bf16 %v5940, %v5939
    %v6355 = vpack.c.bf16 %v5942, %v5941
    %v6357 = vsel %vm2285, %v6352, 0
    %v6360 = vsel %vm2285, %v6353, 0
    %v6363 = vsel %vm2285, %v6354, 0
    %v6366 = vsel %vm2285, %v6355, 0
    %6368 = vmatprep.subr.bf16.mxu0 0
    %6369 = vmatpush1.bf16.msra.mxu0 0
    %6370 = vmatprep.subr.bf16.mxu0 0
    %6371 = vmatpush1.bf16.msra.mxu0 0
    %6372 = vmatprep.subr.bf16.mxu0 0
    %6373 = vmatpush1.bf16.msra.mxu0 0
    %6374 = vmatprep.subr.bf16.mxu0 0
    %6375 = vmatpush1.bf16.msra.mxu0 0
    %6376 = vmatprep.subr.bf16.mxu0 0
    %6377 = vmatpush1.bf16.msra.mxu0 0
    %6378 = vmatprep.subr.bf16.mxu0 0
    %6379 = vmatpush1.bf16.msra.mxu0 0
    %6380 = vmatprep.subr.bf16.mxu0 0
    %6381 = vmatpush1.bf16.msra.mxu0 0
    %6382 = vmatprep.subr.bf16.mxu0 0
    %6383 = vmatpush1.bf16.msra.mxu0 %v5972
    %6384 = vmatprep.subr.bf16.mxu0 0
    %6385 = vmatpush2.bf16.msra.mxu0 0
    %6386 = vmatprep.subr.bf16.mxu0 0
    %6387 = vmatpush2.bf16.msra.mxu0 0
    %6388 = vmatprep.subr.bf16.mxu0 0
    %6389 = vmatpush2.bf16.msra.mxu0 0
    %6390 = vmatprep.subr.bf16.mxu0 0
    %6391 = vmatpush2.bf16.msra.mxu0 0
    %6392 = vmatprep.subr.bf16.mxu0 0
    %6393 = vmatpush2.bf16.msra.mxu0 0
    %6394 = vmatprep.subr.bf16.mxu0 0
    %6395 = vmatpush2.bf16.msra.mxu0 0
    %6396 = vmatprep.subr.bf16.mxu0 0
    %6397 = vmatpush2.bf16.msra.mxu0 0
    %6398 = vmatprep.subr.bf16.mxu0 0
    %6399 = vmatpush2.bf16.msra.mxu0 0
    %6400 = vmatprep.mubr.bf16.mxu0 0
    %6401 = vmatmul.mubr.bf16.gmra.mxu0 %v6357
    %v6402 = vpop.f32.mrf.mxu0
    %v6403 = vadd.f32 0.0, %v6402
    %v6404 = vpop.f32.mrf.mxu0
    %v6405 = vpop.f32.mrf.mxu0
    %v6406 = vadd.f32 0.0, %v6405
    %v6407 = vpop.f32.mrf.mxu0
    %6408 = vmatprep.mubr.bf16.mxu0 0
    %6409 = vmatmul.mubr.bf16.gmra.mxu0 %v6360
    %v6410 = vpop.f32.mrf.mxu0
    %v6411 = vadd.f32 0.0, %v6410
    %v6412 = vpop.f32.mrf.mxu0
    %v6413 = vpop.f32.mrf.mxu0
    %v6414 = vadd.f32 0.0, %v6413
    %v6415 = vpop.f32.mrf.mxu0
    %6416 = vmatprep.mubr.bf16.mxu0 0
    %6417 = vmatmul.mubr.bf16.gmra.mxu0 %v6363
    %v6418 = vpop.f32.mrf.mxu0
    %v6419 = vadd.f32 0.0, %v6418
    %v6420 = vpop.f32.mrf.mxu0
    %v6421 = vpop.f32.mrf.mxu0
    %v6422 = vadd.f32 0.0, %v6421
    %v6423 = vpop.f32.mrf.mxu0
    %6424 = vmatprep.mubr.bf16.mxu0 0
    %6425 = vmatmul.mubr.bf16.gmra.mxu0 %v6366
    %v6426 = vpop.f32.mrf.mxu0
    %v6427 = vadd.f32 0.0, %v6426
    %v6428 = vpop.f32.mrf.mxu0
    %v6429 = vpop.f32.mrf.mxu0
    %v6430 = vadd.f32 0.0, %v6429
    %v6431 = vpop.f32.mrf.mxu0
    %6432 = vdwg.mxu0
    %v6433 = vpack.c.bf16 %v6406, %v6403
    %v6434 = vpack.c.bf16 %v6414, %v6411
    %v6435 = vpack.c.bf16 %v6422, %v6419
    %v6436 = vpack.c.bf16 %v6430, %v6427
    %6437 = vmatprep.subr.bf16.mxu0 0
    %6438 = vmatpush1.bf16.msra.mxu0 0
    %6439 = vmatprep.subr.bf16.mxu0 0
    %6440 = vmatpush1.bf16.msra.mxu0 0
    %6441 = vmatprep.subr.bf16.mxu0 0
    %6442 = vmatpush1.bf16.msra.mxu0 0
    %6443 = vmatprep.subr.bf16.mxu0 0
    %6444 = vmatpush1.bf16.msra.mxu0 0
    %6445 = vmatprep.subr.bf16.mxu0 0
    %6446 = vmatpush1.bf16.msra.mxu0 0
    %6447 = vmatprep.subr.bf16.mxu0 0
    %6448 = vmatpush1.bf16.msra.mxu0 0
    %6449 = vmatprep.subr.bf16.mxu0 0
    %6450 = vmatpush1.bf16.msra.mxu0 0
    %6451 = vmatprep.subr.bf16.mxu0 0
    %6452 = vmatpush1.bf16.msra.mxu0 %v6044
    %6453 = vmatprep.subr.bf16.mxu0 0
    %6454 = vmatpush2.bf16.msra.mxu0 0
    %6455 = vmatprep.subr.bf16.mxu0 0
    %6456 = vmatpush2.bf16.msra.mxu0 0
    %6457 = vmatprep.subr.bf16.mxu0 0
    %6458 = vmatpush2.bf16.msra.mxu0 0
    %6459 = vmatprep.subr.bf16.mxu0 0
    %6460 = vmatpush2.bf16.msra.mxu0 0
    %6461 = vmatprep.subr.bf16.mxu0 0
    %6462 = vmatpush2.bf16.msra.mxu0 0
    %6463 = vmatprep.subr.bf16.mxu0 0
    %6464 = vmatpush2.bf16.msra.mxu0 0
    %6465 = vmatprep.subr.bf16.mxu0 0
    %6466 = vmatpush2.bf16.msra.mxu0 0
    %6467 = vmatprep.subr.bf16.mxu0 0
    %6468 = vmatpush2.bf16.msra.mxu0 0
    %6469 = vmatprep.mubr.bf16.mxu0 0
    %6470 = vmatmul.mubr.bf16.gmra.mxu0 %v6357
    %v6471 = vpop.f32.mrf.mxu0
    %v6472 = vadd.f32 0.0, %v6471
    %v6473 = vpop.f32.mrf.mxu0
    %v6474 = vpop.f32.mrf.mxu0
    %v6475 = vadd.f32 0.0, %v6474
    %v6476 = vpop.f32.mrf.mxu0
    %6477 = vmatprep.mubr.bf16.mxu0 0
    %6478 = vmatmul.mubr.bf16.gmra.mxu0 %v6360
    %v6479 = vpop.f32.mrf.mxu0
    %v6480 = vadd.f32 0.0, %v6479
    %v6481 = vpop.f32.mrf.mxu0
    %v6482 = vpop.f32.mrf.mxu0
    %v6483 = vadd.f32 0.0, %v6482
    %v6484 = vpop.f32.mrf.mxu0
    %6485 = vmatprep.mubr.bf16.mxu0 0
    %6486 = vmatmul.mubr.bf16.gmra.mxu0 %v6363
    %v6487 = vpop.f32.mrf.mxu0
    %v6488 = vadd.f32 0.0, %v6487
    %v6489 = vpop.f32.mrf.mxu0
    %v6490 = vpop.f32.mrf.mxu0
    %v6491 = vadd.f32 0.0, %v6490
    %v6492 = vpop.f32.mrf.mxu0
    %6493 = vmatprep.mubr.bf16.mxu0 0
    %6494 = vmatmul.mubr.bf16.gmra.mxu0 %v6366
    %v6495 = vpop.f32.mrf.mxu0
    %v6496 = vadd.f32 0.0, %v6495
    %v6497 = vpop.f32.mrf.mxu0
    %v6498 = vpop.f32.mrf.mxu0
    %v6499 = vadd.f32 0.0, %v6498
    %v6500 = vpop.f32.mrf.mxu0
    %6501 = vdwg.mxu0
    %v6502 = vpack.c.bf16 %v6475, %v6472
    %v6503 = vpack.c.bf16 %v6483, %v6480
    %v6504 = vpack.c.bf16 %v6491, %v6488
    %v6505 = vpack.c.bf16 %v6499, %v6496
    %6506 = vmatprep.subr.bf16.mxu0 0
    %6507 = vmatpush1.bf16.msra.mxu0 0
    %6508 = vmatprep.subr.bf16.mxu0 0
    %6509 = vmatpush1.bf16.msra.mxu0 0
    %6510 = vmatprep.subr.bf16.mxu0 0
    %6511 = vmatpush1.bf16.msra.mxu0 0
    %6512 = vmatprep.subr.bf16.mxu0 0
    %6513 = vmatpush1.bf16.msra.mxu0 0
    %6514 = vmatprep.subr.bf16.mxu0 0
    %6515 = vmatpush1.bf16.msra.mxu0 0
    %6516 = vmatprep.subr.bf16.mxu0 0
    %6517 = vmatpush1.bf16.msra.mxu0 0
    %6518 = vmatprep.subr.bf16.mxu0 0
    %6519 = vmatpush1.bf16.msra.mxu0 0
    %6520 = vmatprep.subr.bf16.mxu0 0
    %6521 = vmatpush1.bf16.msra.mxu0 %v6116
    %6522 = vmatprep.subr.bf16.mxu0 0
    %6523 = vmatpush2.bf16.msra.mxu0 0
    %6524 = vmatprep.subr.bf16.mxu0 0
    %6525 = vmatpush2.bf16.msra.mxu0 0
    %6526 = vmatprep.subr.bf16.mxu0 0
    %6527 = vmatpush2.bf16.msra.mxu0 0
    %6528 = vmatprep.subr.bf16.mxu0 0
    %6529 = vmatpush2.bf16.msra.mxu0 0
    %6530 = vmatprep.subr.bf16.mxu0 0
    %6531 = vmatpush2.bf16.msra.mxu0 0
    %6532 = vmatprep.subr.bf16.mxu0 0
    %6533 = vmatpush2.bf16.msra.mxu0 0
    %6534 = vmatprep.subr.bf16.mxu0 0
    %6535 = vmatpush2.bf16.msra.mxu0 0
    %6536 = vmatprep.subr.bf16.mxu0 0
    %6537 = vmatpush2.bf16.msra.mxu0 0
    %6538 = vmatprep.mubr.bf16.mxu0 0
    %6539 = vmatmul.mubr.bf16.gmra.mxu0 %v6357
    %v6540 = vpop.f32.mrf.mxu0
    %v6541 = vadd.f32 0.0, %v6540
    %v6542 = vpop.f32.mrf.mxu0
    %v6543 = vpop.f32.mrf.mxu0
    %v6544 = vadd.f32 0.0, %v6543
    %v6545 = vpop.f32.mrf.mxu0
    %6546 = vmatprep.mubr.bf16.mxu0 0
    %6547 = vmatmul.mubr.bf16.gmra.mxu0 %v6360
    %v6548 = vpop.f32.mrf.mxu0
    %v6549 = vadd.f32 0.0, %v6548
    %v6550 = vpop.f32.mrf.mxu0
    %v6551 = vpop.f32.mrf.mxu0
    %v6552 = vadd.f32 0.0, %v6551
    %v6553 = vpop.f32.mrf.mxu0
    %6554 = vmatprep.mubr.bf16.mxu0 0
    %6555 = vmatmul.mubr.bf16.gmra.mxu0 %v6363
    %v6556 = vpop.f32.mrf.mxu0
    %v6557 = vadd.f32 0.0, %v6556
    %v6558 = vpop.f32.mrf.mxu0
    %v6559 = vpop.f32.mrf.mxu0
    %v6560 = vadd.f32 0.0, %v6559
    %v6561 = vpop.f32.mrf.mxu0
    %6562 = vmatprep.mubr.bf16.mxu0 0
    %6563 = vmatmul.mubr.bf16.gmra.mxu0 %v6366
    %v6564 = vpop.f32.mrf.mxu0
    %v6565 = vadd.f32 0.0, %v6564
    %v6566 = vpop.f32.mrf.mxu0
    %v6567 = vpop.f32.mrf.mxu0
    %v6568 = vadd.f32 0.0, %v6567
    %v6569 = vpop.f32.mrf.mxu0
    %6570 = vdwg.mxu0
    %v6571 = vpack.c.bf16 %v6544, %v6541
    %v6572 = vpack.c.bf16 %v6552, %v6549
    %v6573 = vpack.c.bf16 %v6560, %v6557
    %v6574 = vpack.c.bf16 %v6568, %v6565
    %6575 = vmatprep.subr.bf16.mxu0 0
    %6576 = vmatpush1.bf16.msra.mxu0 0
    %6577 = vmatprep.subr.bf16.mxu0 0
    %6578 = vmatpush1.bf16.msra.mxu0 0
    %6579 = vmatprep.subr.bf16.mxu0 0
    %6580 = vmatpush1.bf16.msra.mxu0 0
    %6581 = vmatprep.subr.bf16.mxu0 0
    %6582 = vmatpush1.bf16.msra.mxu0 0
    %6583 = vmatprep.subr.bf16.mxu0 0
    %6584 = vmatpush1.bf16.msra.mxu0 0
    %6585 = vmatprep.subr.bf16.mxu0 0
    %6586 = vmatpush1.bf16.msra.mxu0 0
    %6587 = vmatprep.subr.bf16.mxu0 0
    %6588 = vmatpush1.bf16.msra.mxu0 0
    %6589 = vmatprep.subr.bf16.mxu0 0
    %6590 = vmatpush1.bf16.msra.mxu0 %v6188
    %6591 = vmatprep.subr.bf16.mxu0 0
    %6592 = vmatpush2.bf16.msra.mxu0 0
    %6593 = vmatprep.subr.bf16.mxu0 0
    %6594 = vmatpush2.bf16.msra.mxu0 0
    %6595 = vmatprep.subr.bf16.mxu0 0
    %6596 = vmatpush2.bf16.msra.mxu0 0
    %6597 = vmatprep.subr.bf16.mxu0 0
    %6598 = vmatpush2.bf16.msra.mxu0 0
    %6599 = vmatprep.subr.bf16.mxu0 0
    %6600 = vmatpush2.bf16.msra.mxu0 0
    %6601 = vmatprep.subr.bf16.mxu0 0
    %6602 = vmatpush2.bf16.msra.mxu0 0
    %6603 = vmatprep.subr.bf16.mxu0 0
    %6604 = vmatpush2.bf16.msra.mxu0 0
    %6605 = vmatprep.subr.bf16.mxu0 0
    %6606 = vmatpush2.bf16.msra.mxu0 0
    %6607 = vmatprep.mubr.bf16.mxu0 0
    %6608 = vmatmul.mubr.bf16.gmra.mxu0 %v6357
    %v6609 = vpop.f32.mrf.mxu0
    %v6610 = vadd.f32 0.0, %v6609
    %v6611 = vpop.f32.mrf.mxu0
    %v6612 = vpop.f32.mrf.mxu0
    %v6613 = vadd.f32 0.0, %v6612
    %v6614 = vpop.f32.mrf.mxu0
    %6615 = vmatprep.mubr.bf16.mxu0 0
    %6616 = vmatmul.mubr.bf16.gmra.mxu0 %v6360
    %v6617 = vpop.f32.mrf.mxu0
    %v6618 = vadd.f32 0.0, %v6617
    %v6619 = vpop.f32.mrf.mxu0
    %v6620 = vpop.f32.mrf.mxu0
    %v6621 = vadd.f32 0.0, %v6620
    %v6622 = vpop.f32.mrf.mxu0
    %6623 = vmatprep.mubr.bf16.mxu0 0
    %6624 = vmatmul.mubr.bf16.gmra.mxu0 %v6363
    %v6625 = vpop.f32.mrf.mxu0
    %v6626 = vadd.f32 0.0, %v6625
    %v6627 = vpop.f32.mrf.mxu0
    %v6628 = vpop.f32.mrf.mxu0
    %v6629 = vadd.f32 0.0, %v6628
    %v6630 = vpop.f32.mrf.mxu0
    %6631 = vmatprep.mubr.bf16.mxu0 0
    %6632 = vmatmul.mubr.bf16.gmra.mxu0 %v6366
    %v6633 = vpop.f32.mrf.mxu0
    %v6634 = vadd.f32 0.0, %v6633
    %v6635 = vpop.f32.mrf.mxu0
    %v6636 = vpop.f32.mrf.mxu0
    %v6637 = vadd.f32 0.0, %v6636
    %v6638 = vpop.f32.mrf.mxu0
    %6639 = vdwg.mxu0
    %v6640 = vpack.c.bf16 %v6613, %v6610
    %v6641 = vpack.c.bf16 %v6621, %v6618
    %v6642 = vpack.c.bf16 %v6629, %v6626
    %v6643 = vpack.c.bf16 %v6637, %v6634
    %6644 = vmatprep.subr.bf16.mxu0 0
    %6645 = vmatpush1.bf16.msra.mxu0 %v6505
    %6646 = vmatprep.subr.bf16.mxu0 0
    %6647 = vmatpush1.bf16.msra.mxu0 %v6504
    %6648 = vmatprep.subr.bf16.mxu0 0
    %6649 = vmatpush1.bf16.msra.mxu0 %v6503
    %6650 = vmatprep.subr.bf16.mxu0 0
    %6651 = vmatpush1.bf16.msra.mxu0 %v6502
    %6652 = vmatprep.subr.bf16.mxu0 0
    %6653 = vmatpush1.bf16.msra.mxu0 %v6436
    %6654 = vmatprep.subr.bf16.mxu0 0
    %6655 = vmatpush1.bf16.msra.mxu0 %v6435
    %6656 = vmatprep.subr.bf16.mxu0 0
    %6657 = vmatpush1.bf16.msra.mxu0 %v6434
    %6658 = vmatprep.subr.bf16.mxu0 0
    %6659 = vmatpush1.bf16.msra.mxu0 %v6433
    %6660 = vmatprep.subr.bf16.mxu0 0
    %6661 = vmatpush2.bf16.msra.mxu0 %v6643
    %6662 = vmatprep.subr.bf16.mxu0 0
    %6663 = vmatpush2.bf16.msra.mxu0 %v6642
    %6664 = vmatprep.subr.bf16.mxu0 0
    %6665 = vmatpush2.bf16.msra.mxu0 %v6641
    %6666 = vmatprep.subr.bf16.mxu0 0
    %6667 = vmatpush2.bf16.msra.mxu0 %v6640
    %6668 = vmatprep.subr.bf16.mxu0 0
    %6669 = vmatpush2.bf16.msra.mxu0 %v6574
    %6670 = vmatprep.subr.bf16.mxu0 0
    %6671 = vmatpush2.bf16.msra.mxu0 %v6573
    %6672 = vmatprep.subr.bf16.mxu0 0
    %6673 = vmatpush2.bf16.msra.mxu0 %v6572
    %6674 = vmatprep.subr.bf16.mxu0 0
    %6675 = vmatpush2.bf16.msra.mxu0 %v6571
    %6676 = vmatprep.mubr.bf16.mxu0 %v6292
    %6677 = vmatmul.mubr.bf16.gmra.mxu0 %v6291
    %v6678 = vpop.f32.mrf.mxu0
    %v6679 = vadd.f32 %v6262, %v6678
    %v6680 = vpop.f32.mrf.mxu0
    %v6681 = vpop.f32.mrf.mxu0
    %v6682 = vadd.f32 %v6267, %v6681
    %v6683 = vpop.f32.mrf.mxu0
    %6684 = vmatprep.mubr.bf16.mxu0 %v6294
    %6685 = vmatmul.mubr.bf16.gmra.mxu0 %v6293
    %v6686 = vpop.f32.mrf.mxu0
    %v6687 = vadd.f32 %v6272, %v6686
    %v6688 = vpop.f32.mrf.mxu0
    %v6689 = vpop.f32.mrf.mxu0
    %v6690 = vadd.f32 %v6277, %v6689
    %v6691 = vpop.f32.mrf.mxu0
    %6692 = vdwg.mxu0
    %v6693 = vmax.f32 %v6679, 0.0
    %v6694 = vmax.f32 %v6682, 0.0
    %v6695 = vmax.f32 %v6687, 0.0
    %v6696 = vmax.f32 %v6690, 0.0
    %v6697 = vld [vmem:[%s3 + $0x3f0] sm:$0xff]
    %v6698 = vld [vmem:[%s3 + $0x3f8] sm:$0xff]
    %v6699 = vld [vmem:[%s3 + $0x400] sm:$0xff]
    %v6700 = vld [vmem:[%s3 + $0x408] sm:$0xff]
    %v6701 = vld [vmem:[%s3 + $0x410] sm:$0xff]
    %v6702 = vld [vmem:[%s3 + $0x418] sm:$0xff]
    %v6703 = vld [vmem:[%s3 + $0x420] sm:$0xff]
    %v6704 = vld [vmem:[%s3 + $0x428] sm:$0xff]
    %vm6705 = vcmask 138240
    %v6706 = vsel %vm6705, %v6348, 0.0
    %6707 = vadd.xlane.f32.xlu0 %v6706
    %v6708 = vpop.xlane.xlu0 %6707
    %v6709 = vsel %vm6705, %v6349, 0.0
    %6710 = vadd.xlane.f32.xlu0 %v6709
    %v6711 = vpop.xlane.xlu0 %6710
    %v6712 = vsel %vm6705, %v6350, 0.0
    %6713 = vadd.xlane.f32.xlu0 %v6712
    %v6714 = vpop.xlane.xlu0 %6713
    %v6715 = vsel %vm6705, %v6351, 0.0
    %6716 = vadd.xlane.f32.xlu0 %v6715
    %v6717 = vpop.xlane.xlu0 %6716
    %v6718 = vadd.f32 %v6708, 0.0
    %v6719 = vadd.f32 %v6711, 0.0
    %v6720 = vadd.f32 %v6714, 0.0
    %v6721 = vadd.f32 %v6717, 0.0
    %v6722 = vsel %vm6705, %v6693, 0.0
    %6723 = vadd.xlane.f32.xlu0 %v6722
    %v6724 = vpop.xlane.xlu0 %6723
    %v6725 = vsel %vm6705, %v6694, 0.0
    %6726 = vadd.xlane.f32.xlu0 %v6725
    %v6727 = vpop.xlane.xlu0 %6726
    %v6728 = vsel %vm6705, %v6695, 0.0
    %6729 = vadd.xlane.f32.xlu0 %v6728
    %v6730 = vpop.xlane.xlu0 %6729
    %v6731 = vsel %vm6705, %v6696, 0.0
    %6732 = vadd.xlane.f32.xlu0 %v6731
    %v6733 = vpop.xlane.xlu0 %6732
    %v6734 = vadd.f32 %v6718, %v6724
    %v6735 = vadd.f32 %v6719, %v6727
    %v6736 = vadd.f32 %v6720, %v6730
    %v6737 = vadd.f32 %v6721, %v6733
    %v6738 = vmul.f32 %v6734, 0.029411765
    %v6739 = vmul.f32 %v6735, 0.029411765
    %v6740 = vmul.f32 %v6736, 0.029411765
    %v6741 = vmul.f32 %v6737, 0.029411765
    %v6742 = vsub.f32 %v6348, %v6738
    %v6743 = vsub.f32 %v6349, %v6739
    %v6744 = vsub.f32 %v6350, %v6740
    %v6745 = vsub.f32 %v6351, %v6741
    %v6746 = vsub.f32 %v6693, %v6738
    %v6747 = vsub.f32 %v6694, %v6739
    %v6748 = vsub.f32 %v6695, %v6740
    %v6749 = vsub.f32 %v6696, %v6741
    %v6750 = vmul.f32 %v6742, %v6742
    %v6751 = vmul.f32 %v6743, %v6743
    %v6752 = vmul.f32 %v6744, %v6744
    %v6753 = vmul.f32 %v6745, %v6745
    %v6754 = vsel %vm6705, %v6750, 0.0
    %6755 = vadd.xlane.f32.xlu0 %v6754
    %v6756 = vpop.xlane.xlu0 %6755
    %v6757 = vsel %vm6705, %v6751, 0.0
    %6758 = vadd.xlane.f32.xlu0 %v6757
    %v6759 = vpop.xlane.xlu0 %6758
    %v6760 = vsel %vm6705, %v6752, 0.0
    %6761 = vadd.xlane.f32.xlu0 %v6760
    %v6762 = vpop.xlane.xlu0 %6761
    %v6763 = vsel %vm6705, %v6753, 0.0
    %6764 = vadd.xlane.f32.xlu0 %v6763
    %v6765 = vpop.xlane.xlu0 %6764
    %v6766 = vadd.f32 %v6756, 0.0
    %v6767 = vadd.f32 %v6759, 0.0
    %v6768 = vadd.f32 %v6762, 0.0
    %v6769 = vadd.f32 %v6765, 0.0
    %v6770 = vmul.f32 %v6746, %v6746
    %v6771 = vmul.f32 %v6747, %v6747
    %v6772 = vmul.f32 %v6748, %v6748
    %v6773 = vmul.f32 %v6749, %v6749
    %v6774 = vsel %vm6705, %v6770, 0.0
    %6775 = vadd.xlane.f32.xlu0 %v6774
    %v6776 = vpop.xlane.xlu0 %6775
    %v6777 = vsel %vm6705, %v6771, 0.0
    %6778 = vadd.xlane.f32.xlu0 %v6777
    %v6779 = vpop.xlane.xlu0 %6778
    %v6780 = vsel %vm6705, %v6772, 0.0
    %6781 = vadd.xlane.f32.xlu0 %v6780
    %v6782 = vpop.xlane.xlu0 %6781
    %v6783 = vsel %vm6705, %v6773, 0.0
    %6784 = vadd.xlane.f32.xlu0 %v6783
    %v6785 = vpop.xlane.xlu0 %6784
    %v6786 = vadd.f32 %v6766, %v6776
    %v6787 = vadd.f32 %v6767, %v6779
    %v6788 = vadd.f32 %v6768, %v6782
    %v6789 = vadd.f32 %v6769, %v6785
    %v6790 = vmul.f32 %v6786, 0.029411765
    %v6791 = vmul.f32 %v6787, 0.029411765
    %v6792 = vmul.f32 %v6788, 0.029411765
    %v6793 = vmul.f32 %v6789, 0.029411765
    %v6794 = vadd.f32 %v6790, 1e-05
    %v6795 = vadd.f32 %v6791, 1e-05
    %v6796 = vadd.f32 %v6792, 1e-05
    %v6797 = vadd.f32 %v6793, 1e-05
    %v6798 = vrsqrt.pop %v6794
    %v6799 = vrsqrt.pop %v6795
    %v6800 = vrsqrt.pop %v6796
    %v6801 = vrsqrt.pop %v6797
    %v6802 = vmul.f32 %v6798, %v6697
    %v6803 = vmul.f32 %v6799, %v6698
    %v6804 = vmul.f32 %v6800, %v6699
    %v6805 = vmul.f32 %v6801, %v6700
    %6807 = vset.pattern.permute.xlu0 0
    %6808 = vperm.xlu0 %6807, %v6802
    %v6809 = vpop.permute.xlu0 %6808
    %6812 = vset.pattern.permute.xlu0 0
    %6813 = vperm.xlu0 %6812, %v6803
    %v6814 = vpop.permute.xlu0 %6813
    %6817 = vset.pattern.permute.xlu0 0
    %6818 = vperm.xlu0 %6817, %v6804
    %v6819 = vpop.permute.xlu0 %6818
    %6822 = vset.pattern.permute.xlu0 0
    %6823 = vperm.xlu0 %6822, %v6805
    %v6824 = vpop.permute.xlu0 %6823
    %v6826 = vmul.f32 %v6742, %v6809
    %v6827 = vmul.f32 %v6743, %v6814
    %v6828 = vmul.f32 %v6744, %v6819
    %v6829 = vmul.f32 %v6745, %v6824
    %6831 = vset.pattern.permute.xlu0 0
    %6832 = vperm.xlu0 %6831, %v6701
    %v6833 = vpop.permute.xlu0 %6832
    %6836 = vset.pattern.permute.xlu0 0
    %6837 = vperm.xlu0 %6836, %v6702
    %v6838 = vpop.permute.xlu0 %6837
    %6841 = vset.pattern.permute.xlu0 0
    %6842 = vperm.xlu0 %6841, %v6703
    %v6843 = vpop.permute.xlu0 %6842
    %6846 = vset.pattern.permute.xlu0 0
    %6847 = vperm.xlu0 %6846, %v6704
    %v6848 = vpop.permute.xlu0 %6847
    %v6850 = vadd.f32 %v6826, %v6833
    %v6851 = vadd.f32 %v6827, %v6838
    %v6852 = vadd.f32 %v6828, %v6843
    %v6853 = vadd.f32 %v6829, %v6848
    %v6854 = vmul.f32 %v6746, %v6809
    %v6855 = vmul.f32 %v6747, %v6814
    %v6856 = vmul.f32 %v6748, %v6819
    %v6857 = vmul.f32 %v6749, %v6824
    %v6858 = vadd.f32 %v6854, %v6833
    %v6859 = vadd.f32 %v6855, %v6838
    %v6860 = vadd.f32 %v6856, %v6843
    %v6861 = vadd.f32 %v6857, %v6848
    %v6862 = vld [vmem:[%s3 + $0x430] sm:$0xff]
    %v6863 = vld [vmem:[%s3 + $0x438] sm:$0xff]
    %v6864 = vld [vmem:[%s2 + $0x140] sm:$0xf]
    %v6865 = vld [vmem:[%s2 + $0x144] sm:$0xf]
    %v6866 = vld [vmem:[%s2 + $0x148] sm:$0x1]
    %v6867 = vld [vmem:[%s2 + $0x150] sm:$0xf]
    %v6868 = vld [vmem:[%s2 + $0x154] sm:$0xf]
    %v6869 = vld [vmem:[%s2 + $0x158] sm:$0x1]
    %v6870 = vld [vmem:[%s2 + $0x160] sm:$0xf]
    %v6871 = vld [vmem:[%s2 + $0x164] sm:$0xf]
    %v6872 = vld [vmem:[%s2 + $0x168] sm:$0x1]
    %v6873 = vld [vmem:[%s2 + $0x170] sm:$0xf]
    %v6874 = vld [vmem:[%s2 + $0x174] sm:$0xf]
    %v6875 = vld [vmem:[%s2 + $0x178] sm:$0x1]
    %v6876 = vld [vmem:[%s1 + $0x280] sm:$0xf]
    %v6877 = vld [vmem:[%s1 + $0x290] sm:$0xf]
    %v6878 = vpack.c.bf16 %v6851, %v6850
    %v6879 = vpack.c.bf16 %v6853, %v6852
    %v6883 = vunpack.c.l.b16 %v6864
    %v6884 = vunpack.c.l.b16 %v6865
    %v6885 = vunpack.c.l.b16 %v6866
    %v6886 = vpack.c.b16 %v6884, %v6883
    %v6887 = vpack.c.b16 %v6885, %v6885
    %v6890 = vsel %vm6705, %v6878, 0
    %v6893 = vsel %vm6705, %v6879, 0
    %vm6895 = vcmask 1040384
    %v6896 = vsel 0, 4294967295, 65535
    %v6897 = vsel %vm6895, %v6896, 0
    %v6899 = vand.u32 %v6887, %v6897
    %6901 = vmatprep.subr.bf16.mxu0 0
    %6902 = vmatpush1.bf16.msra.mxu0 0
    %6903 = vmatprep.subr.bf16.mxu0 0
    %6904 = vmatpush1.bf16.msra.mxu0 0
    %6905 = vmatprep.subr.bf16.mxu0 0
    %6906 = vmatpush1.bf16.msra.mxu0 0
    %6907 = vmatprep.subr.bf16.mxu0 0
    %6908 = vmatpush1.bf16.msra.mxu0 0
    %6909 = vmatprep.subr.bf16.mxu0 0
    %6910 = vmatpush1.bf16.msra.mxu0 0
    %6911 = vmatprep.subr.bf16.mxu0 0
    %6912 = vmatpush1.bf16.msra.mxu0 0
    %6913 = vmatprep.subr.bf16.mxu0 0
    %6914 = vmatpush1.bf16.msra.mxu0 %v6899
    %6915 = vmatprep.subr.bf16.mxu0 0
    %6916 = vmatpush1.bf16.msra.mxu0 %v6886
    %6917 = vmatprep.subr.bf16.mxu0 0
    %6918 = vmatpush2.bf16.msra.mxu0 0
    %6919 = vmatprep.subr.bf16.mxu0 0
    %6920 = vmatpush2.bf16.msra.mxu0 0
    %6921 = vmatprep.subr.bf16.mxu0 0
    %6922 = vmatpush2.bf16.msra.mxu0 0
    %6923 = vmatprep.subr.bf16.mxu0 0
    %6924 = vmatpush2.bf16.msra.mxu0 0
    %6925 = vmatprep.subr.bf16.mxu0 0
    %6926 = vmatpush2.bf16.msra.mxu0 0
    %6927 = vmatprep.subr.bf16.mxu0 0
    %6928 = vmatpush2.bf16.msra.mxu0 0
    %6929 = vmatprep.subr.bf16.mxu0 0
    %6930 = vmatpush2.bf16.msra.mxu0 0
    %6931 = vmatprep.subr.bf16.mxu0 0
    %6932 = vmatpush2.bf16.msra.mxu0 0
    %6933 = vmatprep.mubr.bf16.mxu0 0
    %6934 = vmatmul.mubr.bf16.gmra.mxu0 %v6890
    %v6935 = vpop.f32.mrf.mxu0
    %v6936 = vadd.f32 0.0, %v6935
    %v6937 = vpop.f32.mrf.mxu0
    %v6938 = vpop.f32.mrf.mxu0
    %v6939 = vadd.f32 0.0, %v6938
    %v6940 = vpop.f32.mrf.mxu0
    %6941 = vmatprep.mubr.bf16.mxu0 0
    %6942 = vmatmul.mubr.bf16.gmra.mxu0 %v6893
    %v6943 = vpop.f32.mrf.mxu0
    %v6944 = vadd.f32 0.0, %v6943
    %v6945 = vpop.f32.mrf.mxu0
    %v6946 = vpop.f32.mrf.mxu0
    %v6947 = vadd.f32 0.0, %v6946
    %v6948 = vpop.f32.mrf.mxu0
    %6949 = vdwg.mxu0
    %v6950 = vpack.c.bf16 %v6939, %v6936
    %v6951 = vpack.c.bf16 %v6947, %v6944
    %v6955 = vunpack.c.l.b16 %v6867
    %v6956 = vunpack.c.l.b16 %v6868
    %v6957 = vunpack.c.l.b16 %v6869
    %v6958 = vpack.c.b16 %v6956, %v6955
    %v6959 = vpack.c.b16 %v6957, %v6957
    %v6962 = vand.u32 %v6959, %v6897
    %6964 = vmatprep.subr.bf16.mxu0 0
    %6965 = vmatpush1.bf16.msra.mxu0 0
    %6966 = vmatprep.subr.bf16.mxu0 0
    %6967 = vmatpush1.bf16.msra.mxu0 0
    %6968 = vmatprep.subr.bf16.mxu0 0
    %6969 = vmatpush1.bf16.msra.mxu0 0
    %6970 = vmatprep.subr.bf16.mxu0 0
    %6971 = vmatpush1.bf16.msra.mxu0 0
    %6972 = vmatprep.subr.bf16.mxu0 0
    %6973 = vmatpush1.bf16.msra.mxu0 0
    %6974 = vmatprep.subr.bf16.mxu0 0
    %6975 = vmatpush1.bf16.msra.mxu0 0
    %6976 = vmatprep.subr.bf16.mxu0 0
    %6977 = vmatpush1.bf16.msra.mxu0 %v6962
    %6978 = vmatprep.subr.bf16.mxu0 0
    %6979 = vmatpush1.bf16.msra.mxu0 %v6958
    %6980 = vmatprep.subr.bf16.mxu0 0
    %6981 = vmatpush2.bf16.msra.mxu0 0
    %6982 = vmatprep.subr.bf16.mxu0 0
    %6983 = vmatpush2.bf16.msra.mxu0 0
    %6984 = vmatprep.subr.bf16.mxu0 0
    %6985 = vmatpush2.bf16.msra.mxu0 0
    %6986 = vmatprep.subr.bf16.mxu0 0
    %6987 = vmatpush2.bf16.msra.mxu0 0
    %6988 = vmatprep.subr.bf16.mxu0 0
    %6989 = vmatpush2.bf16.msra.mxu0 0
    %6990 = vmatprep.subr.bf16.mxu0 0
    %6991 = vmatpush2.bf16.msra.mxu0 0
    %6992 = vmatprep.subr.bf16.mxu0 0
    %6993 = vmatpush2.bf16.msra.mxu0 0
    %6994 = vmatprep.subr.bf16.mxu0 0
    %6995 = vmatpush2.bf16.msra.mxu0 0
    %6996 = vmatprep.mubr.bf16.mxu0 0
    %6997 = vmatmul.mubr.bf16.gmra.mxu0 %v6890
    %v6998 = vpop.f32.mrf.mxu0
    %v6999 = vadd.f32 0.0, %v6998
    %v7000 = vpop.f32.mrf.mxu0
    %v7001 = vpop.f32.mrf.mxu0
    %v7002 = vadd.f32 0.0, %v7001
    %v7003 = vpop.f32.mrf.mxu0
    %7004 = vmatprep.mubr.bf16.mxu0 0
    %7005 = vmatmul.mubr.bf16.gmra.mxu0 %v6893
    %v7006 = vpop.f32.mrf.mxu0
    %v7007 = vadd.f32 0.0, %v7006
    %v7008 = vpop.f32.mrf.mxu0
    %v7009 = vpop.f32.mrf.mxu0
    %v7010 = vadd.f32 0.0, %v7009
    %v7011 = vpop.f32.mrf.mxu0
    %7012 = vdwg.mxu0
    %v7013 = vpack.c.bf16 %v7002, %v6999
    %v7014 = vpack.c.bf16 %v7010, %v7007
    %v7018 = vunpack.c.l.b16 %v6870
    %v7019 = vunpack.c.l.b16 %v6871
    %v7020 = vunpack.c.l.b16 %v6872
    %v7021 = vpack.c.b16 %v7019, %v7018
    %v7022 = vpack.c.b16 %v7020, %v7020
    %v7025 = vand.u32 %v7022, %v6897
    %7027 = vmatprep.subr.bf16.mxu0 0
    %7028 = vmatpush1.bf16.msra.mxu0 0
    %7029 = vmatprep.subr.bf16.mxu0 0
    %7030 = vmatpush1.bf16.msra.mxu0 0
    %7031 = vmatprep.subr.bf16.mxu0 0
    %7032 = vmatpush1.bf16.msra.mxu0 0
    %7033 = vmatprep.subr.bf16.mxu0 0
    %7034 = vmatpush1.bf16.msra.mxu0 0
    %7035 = vmatprep.subr.bf16.mxu0 0
    %7036 = vmatpush1.bf16.msra.mxu0 0
    %7037 = vmatprep.subr.bf16.mxu0 0
    %7038 = vmatpush1.bf16.msra.mxu0 0
    %7039 = vmatprep.subr.bf16.mxu0 0
    %7040 = vmatpush1.bf16.msra.mxu0 %v7025
    %7041 = vmatprep.subr.bf16.mxu0 0
    %7042 = vmatpush1.bf16.msra.mxu0 %v7021
    %7043 = vmatprep.subr.bf16.mxu0 0
    %7044 = vmatpush2.bf16.msra.mxu0 0
    %7045 = vmatprep.subr.bf16.mxu0 0
    %7046 = vmatpush2.bf16.msra.mxu0 0
    %7047 = vmatprep.subr.bf16.mxu0 0
    %7048 = vmatpush2.bf16.msra.mxu0 0
    %7049 = vmatprep.subr.bf16.mxu0 0
    %7050 = vmatpush2.bf16.msra.mxu0 0
    %7051 = vmatprep.subr.bf16.mxu0 0
    %7052 = vmatpush2.bf16.msra.mxu0 0
    %7053 = vmatprep.subr.bf16.mxu0 0
    %7054 = vmatpush2.bf16.msra.mxu0 0
    %7055 = vmatprep.subr.bf16.mxu0 0
    %7056 = vmatpush2.bf16.msra.mxu0 0
    %7057 = vmatprep.subr.bf16.mxu0 0
    %7058 = vmatpush2.bf16.msra.mxu0 0
    %7059 = vmatprep.mubr.bf16.mxu0 0
    %7060 = vmatmul.mubr.bf16.gmra.mxu0 %v6890
    %v7061 = vpop.f32.mrf.mxu0
    %v7062 = vadd.f32 0.0, %v7061
    %v7063 = vpop.f32.mrf.mxu0
    %v7064 = vpop.f32.mrf.mxu0
    %v7065 = vadd.f32 0.0, %v7064
    %v7066 = vpop.f32.mrf.mxu0
    %7067 = vmatprep.mubr.bf16.mxu0 0
    %7068 = vmatmul.mubr.bf16.gmra.mxu0 %v6893
    %v7069 = vpop.f32.mrf.mxu0
    %v7070 = vadd.f32 0.0, %v7069
    %v7071 = vpop.f32.mrf.mxu0
    %v7072 = vpop.f32.mrf.mxu0
    %v7073 = vadd.f32 0.0, %v7072
    %v7074 = vpop.f32.mrf.mxu0
    %7075 = vdwg.mxu0
    %v7076 = vpack.c.bf16 %v7065, %v7062
    %v7077 = vpack.c.bf16 %v7073, %v7070
    %v7081 = vunpack.c.l.b16 %v6873
    %v7082 = vunpack.c.l.b16 %v6874
    %v7083 = vunpack.c.l.b16 %v6875
    %v7084 = vpack.c.b16 %v7082, %v7081
    %v7085 = vpack.c.b16 %v7083, %v7083
    %v7088 = vand.u32 %v7085, %v6897
    %7090 = vmatprep.subr.bf16.mxu0 0
    %7091 = vmatpush1.bf16.msra.mxu0 0
    %7092 = vmatprep.subr.bf16.mxu0 0
    %7093 = vmatpush1.bf16.msra.mxu0 0
    %7094 = vmatprep.subr.bf16.mxu0 0
    %7095 = vmatpush1.bf16.msra.mxu0 0
    %7096 = vmatprep.subr.bf16.mxu0 0
    %7097 = vmatpush1.bf16.msra.mxu0 0
    %7098 = vmatprep.subr.bf16.mxu0 0
    %7099 = vmatpush1.bf16.msra.mxu0 0
    %7100 = vmatprep.subr.bf16.mxu0 0
    %7101 = vmatpush1.bf16.msra.mxu0 0
    %7102 = vmatprep.subr.bf16.mxu0 0
    %7103 = vmatpush1.bf16.msra.mxu0 %v7088
    %7104 = vmatprep.subr.bf16.mxu0 0
    %7105 = vmatpush1.bf16.msra.mxu0 %v7084
    %7106 = vmatprep.subr.bf16.mxu0 0
    %7107 = vmatpush2.bf16.msra.mxu0 0
    %7108 = vmatprep.subr.bf16.mxu0 0
    %7109 = vmatpush2.bf16.msra.mxu0 0
    %7110 = vmatprep.subr.bf16.mxu0 0
    %7111 = vmatpush2.bf16.msra.mxu0 0
    %7112 = vmatprep.subr.bf16.mxu0 0
    %7113 = vmatpush2.bf16.msra.mxu0 0
    %7114 = vmatprep.subr.bf16.mxu0 0
    %7115 = vmatpush2.bf16.msra.mxu0 0
    %7116 = vmatprep.subr.bf16.mxu0 0
    %7117 = vmatpush2.bf16.msra.mxu0 0
    %7118 = vmatprep.subr.bf16.mxu0 0
    %7119 = vmatpush2.bf16.msra.mxu0 0
    %7120 = vmatprep.subr.bf16.mxu0 0
    %7121 = vmatpush2.bf16.msra.mxu0 0
    %7122 = vmatprep.mubr.bf16.mxu0 0
    %7123 = vmatmul.mubr.bf16.gmra.mxu0 %v6890
    %v7124 = vpop.f32.mrf.mxu0
    %v7125 = vadd.f32 0.0, %v7124
    %v7126 = vpop.f32.mrf.mxu0
    %v7127 = vpop.f32.mrf.mxu0
    %v7128 = vadd.f32 0.0, %v7127
    %v7129 = vpop.f32.mrf.mxu0
    %7130 = vmatprep.mubr.bf16.mxu0 0
    %7131 = vmatmul.mubr.bf16.gmra.mxu0 %v6893
    %v7132 = vpop.f32.mrf.mxu0
    %v7133 = vadd.f32 0.0, %v7132
    %v7134 = vpop.f32.mrf.mxu0
    %v7135 = vpop.f32.mrf.mxu0
    %v7136 = vadd.f32 0.0, %v7135
    %v7137 = vpop.f32.mrf.mxu0
    %7138 = vdwg.mxu0
    %v7139 = vpack.c.bf16 %v7128, %v7125
    %v7140 = vpack.c.bf16 %v7136, %v7133
    %7142 = vset.pattern.permute.xlu0 0
    %7143 = vperm.xlu0 %7142, %v6862
    %v7144 = vpop.permute.xlu0 %7143
    %7147 = vset.pattern.permute.xlu0 0
    %7148 = vperm.xlu0 %7147, %v6863
    %v7149 = vpop.permute.xlu0 %7148
    %v7153 = vunpack.c.l.b16 %v6876
    %v7154 = vunpack.c.l.b16 %v6877
    %v7155 = vpack.c.b16 %v7154, %v7153
    %7157 = vmatprep.subr.bf16.mxu0 0
    %7158 = vmatpush1.bf16.msra.mxu0 %v7140
    %7159 = vmatprep.subr.bf16.mxu0 0
    %7160 = vmatpush1.bf16.msra.mxu0 %v7139
    %7161 = vmatprep.subr.bf16.mxu0 0
    %7162 = vmatpush1.bf16.msra.mxu0 %v7077
    %7163 = vmatprep.subr.bf16.mxu0 0
    %7164 = vmatpush1.bf16.msra.mxu0 %v7076
    %7165 = vmatprep.subr.bf16.mxu0 0
    %7166 = vmatpush1.bf16.msra.mxu0 %v7014
    %7167 = vmatprep.subr.bf16.mxu0 0
    %7168 = vmatpush1.bf16.msra.mxu0 %v7013
    %7169 = vmatprep.subr.bf16.mxu0 0
    %7170 = vmatpush1.bf16.msra.mxu0 %v6951
    %7171 = vmatprep.subr.bf16.mxu0 0
    %7172 = vmatpush1.bf16.msra.mxu0 %v6950
    %7173 = vmatprep.subr.bf16.mxu0 0
    %7174 = vmatpush2.bf16.msra.mxu0 0
    %7175 = vmatprep.subr.bf16.mxu0 0
    %7176 = vmatpush2.bf16.msra.mxu0 0
    %7177 = vmatprep.subr.bf16.mxu0 0
    %7178 = vmatpush2.bf16.msra.mxu0 0
    %7179 = vmatprep.subr.bf16.mxu0 0
    %7180 = vmatpush2.bf16.msra.mxu0 0
    %7181 = vmatprep.subr.bf16.mxu0 0
    %7182 = vmatpush2.bf16.msra.mxu0 0
    %7183 = vmatprep.subr.bf16.mxu0 0
    %7184 = vmatpush2.bf16.msra.mxu0 0
    %7185 = vmatprep.subr.bf16.mxu0 0
    %7186 = vmatpush2.bf16.msra.mxu0 0
    %7187 = vmatprep.subr.bf16.mxu0 0
    %7188 = vmatpush2.bf16.msra.mxu0 0
    %7189 = vmatprep.mubr.bf16.mxu0 0
    %7190 = vmatmul.mubr.bf16.gmra.mxu0 %v7155
    %v7191 = vpop.f32.mrf.mxu0
    %v7192 = vadd.f32 %v7144, %v7191
    %v7193 = vpop.f32.mrf.mxu0
    %v7194 = vpop.f32.mrf.mxu0
    %v7195 = vadd.f32 %v7149, %v7194
    %v7196 = vpop.f32.mrf.mxu0
    %7197 = vdwg.mxu0
    %v7198 = vmax.f32 %v7192, 0.0
    %v7199 = vmax.f32 %v7195, 0.0
    %v7200 = vpack.c.bf16 %v6859, %v6858
    %v7201 = vpack.c.bf16 %v6861, %v6860
    %v7203 = vsel %vm6705, %v7200, 0
    %v7206 = vsel %vm6705, %v7201, 0
    %7208 = vmatprep.subr.bf16.mxu0 0
    %7209 = vmatpush1.bf16.msra.mxu0 0
    %7210 = vmatprep.subr.bf16.mxu0 0
    %7211 = vmatpush1.bf16.msra.mxu0 0
    %7212 = vmatprep.subr.bf16.mxu0 0
    %7213 = vmatpush1.bf16.msra.mxu0 0
    %7214 = vmatprep.subr.bf16.mxu0 0
    %7215 = vmatpush1.bf16.msra.mxu0 0
    %7216 = vmatprep.subr.bf16.mxu0 0
    %7217 = vmatpush1.bf16.msra.mxu0 0
    %7218 = vmatprep.subr.bf16.mxu0 0
    %7219 = vmatpush1.bf16.msra.mxu0 0
    %7220 = vmatprep.subr.bf16.mxu0 0
    %7221 = vmatpush1.bf16.msra.mxu0 %v6899
    %7222 = vmatprep.subr.bf16.mxu0 0
    %7223 = vmatpush1.bf16.msra.mxu0 %v6886
    %7224 = vmatprep.subr.bf16.mxu0 0
    %7225 = vmatpush2.bf16.msra.mxu0 0
    %7226 = vmatprep.subr.bf16.mxu0 0
    %7227 = vmatpush2.bf16.msra.mxu0 0
    %7228 = vmatprep.subr.bf16.mxu0 0
    %7229 = vmatpush2.bf16.msra.mxu0 0
    %7230 = vmatprep.subr.bf16.mxu0 0
    %7231 = vmatpush2.bf16.msra.mxu0 0
    %7232 = vmatprep.subr.bf16.mxu0 0
    %7233 = vmatpush2.bf16.msra.mxu0 0
    %7234 = vmatprep.subr.bf16.mxu0 0
    %7235 = vmatpush2.bf16.msra.mxu0 0
    %7236 = vmatprep.subr.bf16.mxu0 0
    %7237 = vmatpush2.bf16.msra.mxu0 0
    %7238 = vmatprep.subr.bf16.mxu0 0
    %7239 = vmatpush2.bf16.msra.mxu0 0
    %7240 = vmatprep.mubr.bf16.mxu0 0
    %7241 = vmatmul.mubr.bf16.gmra.mxu0 %v7203
    %v7242 = vpop.f32.mrf.mxu0
    %v7243 = vadd.f32 0.0, %v7242
    %v7244 = vpop.f32.mrf.mxu0
    %v7245 = vpop.f32.mrf.mxu0
    %v7246 = vadd.f32 0.0, %v7245
    %v7247 = vpop.f32.mrf.mxu0
    %7248 = vmatprep.mubr.bf16.mxu0 0
    %7249 = vmatmul.mubr.bf16.gmra.mxu0 %v7206
    %v7250 = vpop.f32.mrf.mxu0
    %v7251 = vadd.f32 0.0, %v7250
    %v7252 = vpop.f32.mrf.mxu0
    %v7253 = vpop.f32.mrf.mxu0
    %v7254 = vadd.f32 0.0, %v7253
    %v7255 = vpop.f32.mrf.mxu0
    %7256 = vdwg.mxu0
    %v7257 = vpack.c.bf16 %v7246, %v7243
    %v7258 = vpack.c.bf16 %v7254, %v7251
    %7259 = vmatprep.subr.bf16.mxu0 0
    %7260 = vmatpush1.bf16.msra.mxu0 0
    %7261 = vmatprep.subr.bf16.mxu0 0
    %7262 = vmatpush1.bf16.msra.mxu0 0
    %7263 = vmatprep.subr.bf16.mxu0 0
    %7264 = vmatpush1.bf16.msra.mxu0 0
    %7265 = vmatprep.subr.bf16.mxu0 0
    %7266 = vmatpush1.bf16.msra.mxu0 0
    %7267 = vmatprep.subr.bf16.mxu0 0
    %7268 = vmatpush1.bf16.msra.mxu0 0
    %7269 = vmatprep.subr.bf16.mxu0 0
    %7270 = vmatpush1.bf16.msra.mxu0 0
    %7271 = vmatprep.subr.bf16.mxu0 0
    %7272 = vmatpush1.bf16.msra.mxu0 %v6962
    %7273 = vmatprep.subr.bf16.mxu0 0
    %7274 = vmatpush1.bf16.msra.mxu0 %v6958
    %7275 = vmatprep.subr.bf16.mxu0 0
    %7276 = vmatpush2.bf16.msra.mxu0 0
    %7277 = vmatprep.subr.bf16.mxu0 0
    %7278 = vmatpush2.bf16.msra.mxu0 0
    %7279 = vmatprep.subr.bf16.mxu0 0
    %7280 = vmatpush2.bf16.msra.mxu0 0
    %7281 = vmatprep.subr.bf16.mxu0 0
    %7282 = vmatpush2.bf16.msra.mxu0 0
    %7283 = vmatprep.subr.bf16.mxu0 0
    %7284 = vmatpush2.bf16.msra.mxu0 0
    %7285 = vmatprep.subr.bf16.mxu0 0
    %7286 = vmatpush2.bf16.msra.mxu0 0
    %7287 = vmatprep.subr.bf16.mxu0 0
    %7288 = vmatpush2.bf16.msra.mxu0 0
    %7289 = vmatprep.subr.bf16.mxu0 0
    %7290 = vmatpush2.bf16.msra.mxu0 0
    %7291 = vmatprep.mubr.bf16.mxu0 0
    %7292 = vmatmul.mubr.bf16.gmra.mxu0 %v7203
    %v7293 = vpop.f32.mrf.mxu0
    %v7294 = vadd.f32 0.0, %v7293
    %v7295 = vpop.f32.mrf.mxu0
    %v7296 = vpop.f32.mrf.mxu0
    %v7297 = vadd.f32 0.0, %v7296
    %v7298 = vpop.f32.mrf.mxu0
    %7299 = vmatprep.mubr.bf16.mxu0 0
    %7300 = vmatmul.mubr.bf16.gmra.mxu0 %v7206
    %v7301 = vpop.f32.mrf.mxu0
    %v7302 = vadd.f32 0.0, %v7301
    %v7303 = vpop.f32.mrf.mxu0
    %v7304 = vpop.f32.mrf.mxu0
    %v7305 = vadd.f32 0.0, %v7304
    %v7306 = vpop.f32.mrf.mxu0
    %7307 = vdwg.mxu0
    %v7308 = vpack.c.bf16 %v7297, %v7294
    %v7309 = vpack.c.bf16 %v7305, %v7302
    %7310 = vmatprep.subr.bf16.mxu0 0
    %7311 = vmatpush1.bf16.msra.mxu0 0
    %7312 = vmatprep.subr.bf16.mxu0 0
    %7313 = vmatpush1.bf16.msra.mxu0 0
    %7314 = vmatprep.subr.bf16.mxu0 0
    %7315 = vmatpush1.bf16.msra.mxu0 0
    %7316 = vmatprep.subr.bf16.mxu0 0
    %7317 = vmatpush1.bf16.msra.mxu0 0
    %7318 = vmatprep.subr.bf16.mxu0 0
    %7319 = vmatpush1.bf16.msra.mxu0 0
    %7320 = vmatprep.subr.bf16.mxu0 0
    %7321 = vmatpush1.bf16.msra.mxu0 0
    %7322 = vmatprep.subr.bf16.mxu0 0
    %7323 = vmatpush1.bf16.msra.mxu0 %v7025
    %7324 = vmatprep.subr.bf16.mxu0 0
    %7325 = vmatpush1.bf16.msra.mxu0 %v7021
    %7326 = vmatprep.subr.bf16.mxu0 0
    %7327 = vmatpush2.bf16.msra.mxu0 0
    %7328 = vmatprep.subr.bf16.mxu0 0
    %7329 = vmatpush2.bf16.msra.mxu0 0
    %7330 = vmatprep.subr.bf16.mxu0 0
    %7331 = vmatpush2.bf16.msra.mxu0 0
    %7332 = vmatprep.subr.bf16.mxu0 0
    %7333 = vmatpush2.bf16.msra.mxu0 0
    %7334 = vmatprep.subr.bf16.mxu0 0
    %7335 = vmatpush2.bf16.msra.mxu0 0
    %7336 = vmatprep.subr.bf16.mxu0 0
    %7337 = vmatpush2.bf16.msra.mxu0 0
    %7338 = vmatprep.subr.bf16.mxu0 0
    %7339 = vmatpush2.bf16.msra.mxu0 0
    %7340 = vmatprep.subr.bf16.mxu0 0
    %7341 = vmatpush2.bf16.msra.mxu0 0
    %7342 = vmatprep.mubr.bf16.mxu0 0
    %7343 = vmatmul.mubr.bf16.gmra.mxu0 %v7203
    %v7344 = vpop.f32.mrf.mxu0
    %v7345 = vadd.f32 0.0, %v7344
    %v7346 = vpop.f32.mrf.mxu0
    %v7347 = vpop.f32.mrf.mxu0
    %v7348 = vadd.f32 0.0, %v7347
    %v7349 = vpop.f32.mrf.mxu0
    %7350 = vmatprep.mubr.bf16.mxu0 0
    %7351 = vmatmul.mubr.bf16.gmra.mxu0 %v7206
    %v7352 = vpop.f32.mrf.mxu0
    %v7353 = vadd.f32 0.0, %v7352
    %v7354 = vpop.f32.mrf.mxu0
    %v7355 = vpop.f32.mrf.mxu0
    %v7356 = vadd.f32 0.0, %v7355
    %v7357 = vpop.f32.mrf.mxu0
    %7358 = vdwg.mxu0
    %v7359 = vpack.c.bf16 %v7348, %v7345
    %v7360 = vpack.c.bf16 %v7356, %v7353
    %7361 = vmatprep.subr.bf16.mxu0 0
    %7362 = vmatpush1.bf16.msra.mxu0 0
    %7363 = vmatprep.subr.bf16.mxu0 0
    %7364 = vmatpush1.bf16.msra.mxu0 0
    %7365 = vmatprep.subr.bf16.mxu0 0
    %7366 = vmatpush1.bf16.msra.mxu0 0
    %7367 = vmatprep.subr.bf16.mxu0 0
    %7368 = vmatpush1.bf16.msra.mxu0 0
    %7369 = vmatprep.subr.bf16.mxu0 0
    %7370 = vmatpush1.bf16.msra.mxu0 0
    %7371 = vmatprep.subr.bf16.mxu0 0
    %7372 = vmatpush1.bf16.msra.mxu0 0
    %7373 = vmatprep.subr.bf16.mxu0 0
    %7374 = vmatpush1.bf16.msra.mxu0 %v7088
    %7375 = vmatprep.subr.bf16.mxu0 0
    %7376 = vmatpush1.bf16.msra.mxu0 %v7084
    %7377 = vmatprep.subr.bf16.mxu0 0
    %7378 = vmatpush2.bf16.msra.mxu0 0
    %7379 = vmatprep.subr.bf16.mxu0 0
    %7380 = vmatpush2.bf16.msra.mxu0 0
    %7381 = vmatprep.subr.bf16.mxu0 0
    %7382 = vmatpush2.bf16.msra.mxu0 0
    %7383 = vmatprep.subr.bf16.mxu0 0
    %7384 = vmatpush2.bf16.msra.mxu0 0
    %7385 = vmatprep.subr.bf16.mxu0 0
    %7386 = vmatpush2.bf16.msra.mxu0 0
    %7387 = vmatprep.subr.bf16.mxu0 0
    %7388 = vmatpush2.bf16.msra.mxu0 0
    %7389 = vmatprep.subr.bf16.mxu0 0
    %7390 = vmatpush2.bf16.msra.mxu0 0
    %7391 = vmatprep.subr.bf16.mxu0 0
    %7392 = vmatpush2.bf16.msra.mxu0 0
    %7393 = vmatprep.mubr.bf16.mxu0 0
    %7394 = vmatmul.mubr.bf16.gmra.mxu0 %v7203
    %v7395 = vpop.f32.mrf.mxu0
    %v7396 = vadd.f32 0.0, %v7395
    %v7397 = vpop.f32.mrf.mxu0
    %v7398 = vpop.f32.mrf.mxu0
    %v7399 = vadd.f32 0.0, %v7398
    %v7400 = vpop.f32.mrf.mxu0
    %7401 = vmatprep.mubr.bf16.mxu0 0
    %7402 = vmatmul.mubr.bf16.gmra.mxu0 %v7206
    %v7403 = vpop.f32.mrf.mxu0
    %v7404 = vadd.f32 0.0, %v7403
    %v7405 = vpop.f32.mrf.mxu0
    %v7406 = vpop.f32.mrf.mxu0
    %v7407 = vadd.f32 0.0, %v7406
    %v7408 = vpop.f32.mrf.mxu0
    %7409 = vdwg.mxu0
    %v7410 = vpack.c.bf16 %v7399, %v7396
    %v7411 = vpack.c.bf16 %v7407, %v7404
    %7412 = vmatprep.subr.bf16.mxu0 0
    %7413 = vmatpush1.bf16.msra.mxu0 %v7411
    %7414 = vmatprep.subr.bf16.mxu0 0
    %7415 = vmatpush1.bf16.msra.mxu0 %v7410
    %7416 = vmatprep.subr.bf16.mxu0 0
    %7417 = vmatpush1.bf16.msra.mxu0 %v7360
    %7418 = vmatprep.subr.bf16.mxu0 0
    %7419 = vmatpush1.bf16.msra.mxu0 %v7359
    %7420 = vmatprep.subr.bf16.mxu0 0
    %7421 = vmatpush1.bf16.msra.mxu0 %v7309
    %7422 = vmatprep.subr.bf16.mxu0 0
    %7423 = vmatpush1.bf16.msra.mxu0 %v7308
    %7424 = vmatprep.subr.bf16.mxu0 0
    %7425 = vmatpush1.bf16.msra.mxu0 %v7258
    %7426 = vmatprep.subr.bf16.mxu0 0
    %7427 = vmatpush1.bf16.msra.mxu0 %v7257
    %7428 = vmatprep.subr.bf16.mxu0 0
    %7429 = vmatpush2.bf16.msra.mxu0 0
    %7430 = vmatprep.subr.bf16.mxu0 0
    %7431 = vmatpush2.bf16.msra.mxu0 0
    %7432 = vmatprep.subr.bf16.mxu0 0
    %7433 = vmatpush2.bf16.msra.mxu0 0
    %7434 = vmatprep.subr.bf16.mxu0 0
    %7435 = vmatpush2.bf16.msra.mxu0 0
    %7436 = vmatprep.subr.bf16.mxu0 0
    %7437 = vmatpush2.bf16.msra.mxu0 0
    %7438 = vmatprep.subr.bf16.mxu0 0
    %7439 = vmatpush2.bf16.msra.mxu0 0
    %7440 = vmatprep.subr.bf16.mxu0 0
    %7441 = vmatpush2.bf16.msra.mxu0 0
    %7442 = vmatprep.subr.bf16.mxu0 0
    %7443 = vmatpush2.bf16.msra.mxu0 0
    %7444 = vmatprep.mubr.bf16.mxu0 0
    %7445 = vmatmul.mubr.bf16.gmra.mxu0 %v7155
    %v7446 = vpop.f32.mrf.mxu0
    %v7447 = vadd.f32 %v7144, %v7446
    %v7448 = vpop.f32.mrf.mxu0
    %v7449 = vpop.f32.mrf.mxu0
    %v7450 = vadd.f32 %v7149, %v7449
    %v7451 = vpop.f32.mrf.mxu0
    %7452 = vdwg.mxu0
    %v7453 = vmax.f32 %v7447, 0.0
    %v7454 = vmax.f32 %v7450, 0.0
    %v7455 = vld [vmem:[%s3 + $0x440] sm:$0xff]
    %v7456 = vld [vmem:[%s3 + $0x448] sm:$0xff]
    %v7457 = vld [vmem:[%s3 + $0x450] sm:$0xff]
    %v7458 = vld [vmem:[%s3 + $0x458] sm:$0xff]
    %vm7459 = vcmask 277504
    %v7460 = vsel %vm7459, %v7198, 0.0
    %7461 = vadd.xlane.f32.xlu0 %v7460
    %v7462 = vpop.xlane.xlu0 %7461
    %v7463 = vsel %vm7459, %v7199, 0.0
    %7464 = vadd.xlane.f32.xlu0 %v7463
    %v7465 = vpop.xlane.xlu0 %7464
    %v7466 = vadd.f32 %v7462, 0.0
    %v7467 = vadd.f32 %v7465, 0.0
    %v7468 = vsel %vm7459, %v7453, 0.0
    %7469 = vadd.xlane.f32.xlu0 %v7468
    %v7470 = vpop.xlane.xlu0 %7469
    %v7471 = vsel %vm7459, %v7454, 0.0
    %7472 = vadd.xlane.f32.xlu0 %v7471
    %v7473 = vpop.xlane.xlu0 %7472
    %v7474 = vadd.f32 %v7466, %v7470
    %v7475 = vadd.f32 %v7467, %v7473
    %v7476 = vmul.f32 %v7474, 0.014705882
    %v7477 = vmul.f32 %v7475, 0.014705882
    %v7478 = vsub.f32 %v7198, %v7476
    %v7479 = vsub.f32 %v7199, %v7477
    %v7480 = vsub.f32 %v7453, %v7476
    %v7481 = vsub.f32 %v7454, %v7477
    %v7482 = vmul.f32 %v7478, %v7478
    %v7483 = vmul.f32 %v7479, %v7479
    %v7484 = vsel %vm7459, %v7482, 0.0
    %7485 = vadd.xlane.f32.xlu0 %v7484
    %v7486 = vpop.xlane.xlu0 %7485
    %v7487 = vsel %vm7459, %v7483, 0.0
    %7488 = vadd.xlane.f32.xlu0 %v7487
    %v7489 = vpop.xlane.xlu0 %7488
    %v7490 = vadd.f32 %v7486, 0.0
    %v7491 = vadd.f32 %v7489, 0.0
    %v7492 = vmul.f32 %v7480, %v7480
    %v7493 = vmul.f32 %v7481, %v7481
    %v7494 = vsel %vm7459, %v7492, 0.0
    %7495 = vadd.xlane.f32.xlu0 %v7494
    %v7496 = vpop.xlane.xlu0 %7495
    %v7497 = vsel %vm7459, %v7493, 0.0
    %7498 = vadd.xlane.f32.xlu0 %v7497
    %v7499 = vpop.xlane.xlu0 %7498
    %v7500 = vadd.f32 %v7490, %v7496
    %v7501 = vadd.f32 %v7491, %v7499
    %v7502 = vmul.f32 %v7500, 0.014705882
    %v7503 = vmul.f32 %v7501, 0.014705882
    %v7504 = vadd.f32 %v7502, 1e-05
    %v7505 = vadd.f32 %v7503, 1e-05
    %v7506 = vrsqrt.pop %v7504
    %v7507 = vrsqrt.pop %v7505
    %v7508 = vmul.f32 %v7506, %v7455
    %v7509 = vmul.f32 %v7507, %v7456
    %7511 = vset.pattern.permute.xlu0 0
    %7512 = vperm.xlu0 %7511, %v7508
    %v7513 = vpop.permute.xlu0 %7512
    %7516 = vset.pattern.permute.xlu0 0
    %7517 = vperm.xlu0 %7516, %v7509
    %v7518 = vpop.permute.xlu0 %7517
    %v7520 = vmul.f32 %v7478, %v7513
    %v7521 = vmul.f32 %v7479, %v7518
    %7523 = vset.pattern.permute.xlu0 0
    %7524 = vperm.xlu0 %7523, %v7457
    %v7525 = vpop.permute.xlu0 %7524
    %7528 = vset.pattern.permute.xlu0 0
    %7529 = vperm.xlu0 %7528, %v7458
    %v7530 = vpop.permute.xlu0 %7529
    %v7532 = vadd.f32 %v7520, %v7525
    %v7533 = vadd.f32 %v7521, %v7530
    %v7534 = vmul.f32 %v7480, %v7513
    %v7535 = vmul.f32 %v7481, %v7518
    %v7536 = vadd.f32 %v7534, %v7525
    %v7537 = vadd.f32 %v7535, %v7530
    %v7538 = vld [vmem:[%s3 + $0x460] sm:$0x1]
    %v7539 = vld [vmem:[%s2 + $0x180] sm:$0xf]
    %v7540 = vld [vmem:[%s2 + $0x184] sm:$0xf]
    %v7541 = vld [vmem:[%s2 + $0x188] sm:$0xf]
    %v7542 = vld [vmem:[%s2 + $0x18c] sm:$0xf]
    %v7543 = vld [vmem:[%s2 + $0x190] sm:$0x1]
    %v7544 = vld [vmem:[%s2 + $0x198] sm:$0xf]
    %v7545 = vld [vmem:[%s2 + $0x19c] sm:$0xf]
    %v7546 = vld [vmem:[%s2 + $0x1a0] sm:$0xf]
    %v7547 = vld [vmem:[%s2 + $0x1a4] sm:$0xf]
    %v7548 = vld [vmem:[%s2 + $0x1a8] sm:$0x1]
    %v7549 = vld [vmem:[%s2 + $0x1b0] sm:$0xf]
    %v7550 = vld [vmem:[%s2 + $0x1b4] sm:$0xf]
    %v7551 = vld [vmem:[%s2 + $0x1b8] sm:$0xf]
    %v7552 = vld [vmem:[%s2 + $0x1bc] sm:$0xf]
    %v7553 = vld [vmem:[%s2 + $0x1c0] sm:$0x1]
    %v7554 = vld [vmem:[%s2 + $0x1c8] sm:$0xf]
    %v7555 = vld [vmem:[%s2 + $0x1cc] sm:$0xf]
    %v7556 = vld [vmem:[%s2 + $0x1d0] sm:$0xf]
    %v7557 = vld [vmem:[%s2 + $0x1d4] sm:$0xf]
    %v7558 = vld [vmem:[%s2 + $0x1d8] sm:$0x1]
    %v7559 = vld [vmem:[%s1 + $0x2a0] sm:$0x1]
    %v7560 = vpack.c.bf16 %v7533, %v7532
    %v7566 = vunpack.c.l.b16 %v7539
    %v7567 = vunpack.c.l.b16 %v7540
    %v7568 = vunpack.c.l.b16 %v7541
    %v7569 = vunpack.c.l.b16 %v7542
    %v7570 = vunpack.c.l.b16 %v7543
    %v7571 = vpack.c.b16 %v7567, %v7566
    %v7572 = vpack.c.b16 %v7569, %v7568
    %v7573 = vpack.c.b16 %v7570, %v7570
    %v7577 = vsel %vm7459, %v7560, 0
    %v7580 = vsel %vm6895, %v7573, 0
    %7582 = vmatprep.subr.bf16.mxu0 0
    %7583 = vmatpush1.bf16.msra.mxu0 0
    %7584 = vmatprep.subr.bf16.mxu0 0
    %7585 = vmatpush1.bf16.msra.mxu0 0
    %7586 = vmatprep.subr.bf16.mxu0 0
    %7587 = vmatpush1.bf16.msra.mxu0 0
    %7588 = vmatprep.subr.bf16.mxu0 0
    %7589 = vmatpush1.bf16.msra.mxu0 0
    %7590 = vmatprep.subr.bf16.mxu0 0
    %7591 = vmatpush1.bf16.msra.mxu0 0
    %7592 = vmatprep.subr.bf16.mxu0 0
    %7593 = vmatpush1.bf16.msra.mxu0 %v7580
    %7594 = vmatprep.subr.bf16.mxu0 0
    %7595 = vmatpush1.bf16.msra.mxu0 %v7572
    %7596 = vmatprep.subr.bf16.mxu0 0
    %7597 = vmatpush1.bf16.msra.mxu0 %v7571
    %7598 = vmatprep.subr.bf16.mxu0 0
    %7599 = vmatpush2.bf16.msra.mxu0 0
    %7600 = vmatprep.subr.bf16.mxu0 0
    %7601 = vmatpush2.bf16.msra.mxu0 0
    %7602 = vmatprep.subr.bf16.mxu0 0
    %7603 = vmatpush2.bf16.msra.mxu0 0
    %7604 = vmatprep.subr.bf16.mxu0 0
    %7605 = vmatpush2.bf16.msra.mxu0 0
    %7606 = vmatprep.subr.bf16.mxu0 0
    %7607 = vmatpush2.bf16.msra.mxu0 0
    %7608 = vmatprep.subr.bf16.mxu0 0
    %7609 = vmatpush2.bf16.msra.mxu0 0
    %7610 = vmatprep.subr.bf16.mxu0 0
    %7611 = vmatpush2.bf16.msra.mxu0 0
    %7612 = vmatprep.subr.bf16.mxu0 0
    %7613 = vmatpush2.bf16.msra.mxu0 0
    %7614 = vmatprep.mubr.bf16.mxu0 0
    %7615 = vmatmul.mubr.bf16.gmra.mxu0 %v7577
    %v7616 = vpop.f32.mrf.mxu0
    %v7617 = vadd.f32 0.0, %v7616
    %v7618 = vpop.f32.mrf.mxu0
    %v7619 = vpop.f32.mrf.mxu0
    %v7620 = vadd.f32 0.0, %v7619
    %v7621 = vpop.f32.mrf.mxu0
    %7622 = vdwg.mxu0
    %v7623 = vpack.c.bf16 %v7620, %v7617
    %v7629 = vunpack.c.l.b16 %v7544
    %v7630 = vunpack.c.l.b16 %v7545
    %v7631 = vunpack.c.l.b16 %v7546
    %v7632 = vunpack.c.l.b16 %v7547
    %v7633 = vunpack.c.l.b16 %v7548
    %v7634 = vpack.c.b16 %v7630, %v7629
    %v7635 = vpack.c.b16 %v7632, %v7631
    %v7636 = vpack.c.b16 %v7633, %v7633
    %v7640 = vsel %vm6895, %v7636, 0
    %7642 = vmatprep.subr.bf16.mxu0 0
    %7643 = vmatpush1.bf16.msra.mxu0 0
    %7644 = vmatprep.subr.bf16.mxu0 0
    %7645 = vmatpush1.bf16.msra.mxu0 0
    %7646 = vmatprep.subr.bf16.mxu0 0
    %7647 = vmatpush1.bf16.msra.mxu0 0
    %7648 = vmatprep.subr.bf16.mxu0 0
    %7649 = vmatpush1.bf16.msra.mxu0 0
    %7650 = vmatprep.subr.bf16.mxu0 0
    %7651 = vmatpush1.bf16.msra.mxu0 0
    %7652 = vmatprep.subr.bf16.mxu0 0
    %7653 = vmatpush1.bf16.msra.mxu0 %v7640
    %7654 = vmatprep.subr.bf16.mxu0 0
    %7655 = vmatpush1.bf16.msra.mxu0 %v7635
    %7656 = vmatprep.subr.bf16.mxu0 0
    %7657 = vmatpush1.bf16.msra.mxu0 %v7634
    %7658 = vmatprep.subr.bf16.mxu0 0
    %7659 = vmatpush2.bf16.msra.mxu0 0
    %7660 = vmatprep.subr.bf16.mxu0 0
    %7661 = vmatpush2.bf16.msra.mxu0 0
    %7662 = vmatprep.subr.bf16.mxu0 0
    %7663 = vmatpush2.bf16.msra.mxu0 0
    %7664 = vmatprep.subr.bf16.mxu0 0
    %7665 = vmatpush2.bf16.msra.mxu0 0
    %7666 = vmatprep.subr.bf16.mxu0 0
    %7667 = vmatpush2.bf16.msra.mxu0 0
    %7668 = vmatprep.subr.bf16.mxu0 0
    %7669 = vmatpush2.bf16.msra.mxu0 0
    %7670 = vmatprep.subr.bf16.mxu0 0
    %7671 = vmatpush2.bf16.msra.mxu0 0
    %7672 = vmatprep.subr.bf16.mxu0 0
    %7673 = vmatpush2.bf16.msra.mxu0 0
    %7674 = vmatprep.mubr.bf16.mxu0 0
    %7675 = vmatmul.mubr.bf16.gmra.mxu0 %v7577
    %v7676 = vpop.f32.mrf.mxu0
    %v7677 = vadd.f32 0.0, %v7676
    %v7678 = vpop.f32.mrf.mxu0
    %v7679 = vpop.f32.mrf.mxu0
    %v7680 = vadd.f32 0.0, %v7679
    %v7681 = vpop.f32.mrf.mxu0
    %7682 = vdwg.mxu0
    %v7683 = vpack.c.bf16 %v7680, %v7677
    %v7689 = vunpack.c.l.b16 %v7549
    %v7690 = vunpack.c.l.b16 %v7550
    %v7691 = vunpack.c.l.b16 %v7551
    %v7692 = vunpack.c.l.b16 %v7552
    %v7693 = vunpack.c.l.b16 %v7553
    %v7694 = vpack.c.b16 %v7690, %v7689
    %v7695 = vpack.c.b16 %v7692, %v7691
    %v7696 = vpack.c.b16 %v7693, %v7693
    %v7700 = vsel %vm6895, %v7696, 0
    %7702 = vmatprep.subr.bf16.mxu0 0
    %7703 = vmatpush1.bf16.msra.mxu0 0
    %7704 = vmatprep.subr.bf16.mxu0 0
    %7705 = vmatpush1.bf16.msra.mxu0 0
    %7706 = vmatprep.subr.bf16.mxu0 0
    %7707 = vmatpush1.bf16.msra.mxu0 0
    %7708 = vmatprep.subr.bf16.mxu0 0
    %7709 = vmatpush1.bf16.msra.mxu0 0
    %7710 = vmatprep.subr.bf16.mxu0 0
    %7711 = vmatpush1.bf16.msra.mxu0 0
    %7712 = vmatprep.subr.bf16.mxu0 0
    %7713 = vmatpush1.bf16.msra.mxu0 %v7700
    %7714 = vmatprep.subr.bf16.mxu0 0
    %7715 = vmatpush1.bf16.msra.mxu0 %v7695
    %7716 = vmatprep.subr.bf16.mxu0 0
    %7717 = vmatpush1.bf16.msra.mxu0 %v7694
    %7718 = vmatprep.subr.bf16.mxu0 0
    %7719 = vmatpush2.bf16.msra.mxu0 0
    %7720 = vmatprep.subr.bf16.mxu0 0
    %7721 = vmatpush2.bf16.msra.mxu0 0
    %7722 = vmatprep.subr.bf16.mxu0 0
    %7723 = vmatpush2.bf16.msra.mxu0 0
    %7724 = vmatprep.subr.bf16.mxu0 0
    %7725 = vmatpush2.bf16.msra.mxu0 0
    %7726 = vmatprep.subr.bf16.mxu0 0
    %7727 = vmatpush2.bf16.msra.mxu0 0
    %7728 = vmatprep.subr.bf16.mxu0 0
    %7729 = vmatpush2.bf16.msra.mxu0 0
    %7730 = vmatprep.subr.bf16.mxu0 0
    %7731 = vmatpush2.bf16.msra.mxu0 0
    %7732 = vmatprep.subr.bf16.mxu0 0
    %7733 = vmatpush2.bf16.msra.mxu0 0
    %7734 = vmatprep.mubr.bf16.mxu0 0
    %7735 = vmatmul.mubr.bf16.gmra.mxu0 %v7577
    %v7736 = vpop.f32.mrf.mxu0
    %v7737 = vadd.f32 0.0, %v7736
    %v7738 = vpop.f32.mrf.mxu0
    %v7739 = vpop.f32.mrf.mxu0
    %v7740 = vadd.f32 0.0, %v7739
    %v7741 = vpop.f32.mrf.mxu0
    %7742 = vdwg.mxu0
    %v7743 = vpack.c.bf16 %v7740, %v7737
    %v7749 = vunpack.c.l.b16 %v7554
    %v7750 = vunpack.c.l.b16 %v7555
    %v7751 = vunpack.c.l.b16 %v7556
    %v7752 = vunpack.c.l.b16 %v7557
    %v7753 = vunpack.c.l.b16 %v7558
    %v7754 = vpack.c.b16 %v7750, %v7749
    %v7755 = vpack.c.b16 %v7752, %v7751
    %v7756 = vpack.c.b16 %v7753, %v7753
    %v7760 = vsel %vm6895, %v7756, 0
    %7762 = vmatprep.subr.bf16.mxu0 0
    %7763 = vmatpush1.bf16.msra.mxu0 0
    %7764 = vmatprep.subr.bf16.mxu0 0
    %7765 = vmatpush1.bf16.msra.mxu0 0
    %7766 = vmatprep.subr.bf16.mxu0 0
    %7767 = vmatpush1.bf16.msra.mxu0 0
    %7768 = vmatprep.subr.bf16.mxu0 0
    %7769 = vmatpush1.bf16.msra.mxu0 0
    %7770 = vmatprep.subr.bf16.mxu0 0
    %7771 = vmatpush1.bf16.msra.mxu0 0
    %7772 = vmatprep.subr.bf16.mxu0 0
    %7773 = vmatpush1.bf16.msra.mxu0 %v7760
    %7774 = vmatprep.subr.bf16.mxu0 0
    %7775 = vmatpush1.bf16.msra.mxu0 %v7755
    %7776 = vmatprep.subr.bf16.mxu0 0
    %7777 = vmatpush1.bf16.msra.mxu0 %v7754
    %7778 = vmatprep.subr.bf16.mxu0 0
    %7779 = vmatpush2.bf16.msra.mxu0 0
    %7780 = vmatprep.subr.bf16.mxu0 0
    %7781 = vmatpush2.bf16.msra.mxu0 0
    %7782 = vmatprep.subr.bf16.mxu0 0
    %7783 = vmatpush2.bf16.msra.mxu0 0
    %7784 = vmatprep.subr.bf16.mxu0 0
    %7785 = vmatpush2.bf16.msra.mxu0 0
    %7786 = vmatprep.subr.bf16.mxu0 0
    %7787 = vmatpush2.bf16.msra.mxu0 0
    %7788 = vmatprep.subr.bf16.mxu0 0
    %7789 = vmatpush2.bf16.msra.mxu0 0
    %7790 = vmatprep.subr.bf16.mxu0 0
    %7791 = vmatpush2.bf16.msra.mxu0 0
    %7792 = vmatprep.subr.bf16.mxu0 0
    %7793 = vmatpush2.bf16.msra.mxu0 0
    %7794 = vmatprep.mubr.bf16.mxu0 0
    %7795 = vmatmul.mubr.bf16.gmra.mxu0 %v7577
    %v7796 = vpop.f32.mrf.mxu0
    %v7797 = vadd.f32 0.0, %v7796
    %v7798 = vpop.f32.mrf.mxu0
    %v7799 = vpop.f32.mrf.mxu0
    %v7800 = vadd.f32 0.0, %v7799
    %v7801 = vpop.f32.mrf.mxu0
    %7802 = vdwg.mxu0
    %v7803 = vpack.c.bf16 %v7800, %v7797
    %7805 = vset.pattern.permute.xlu0 0
    %7806 = vperm.xlu0 %7805, %v7538
    %v7807 = vpop.permute.xlu0 %7806
    %v7810 = vsel %vm96, %v7559, 0
    %7812 = vmatprep.subr.bf16.mxu0 0
    %7813 = vmatpush1.bf16.msra.mxu0 0
    %7814 = vmatprep.subr.bf16.mxu0 0
    %7815 = vmatpush1.bf16.msra.mxu0 0
    %7816 = vmatprep.subr.bf16.mxu0 0
    %7817 = vmatpush1.bf16.msra.mxu0 0
    %7818 = vmatprep.subr.bf16.mxu0 0
    %7819 = vmatpush1.bf16.msra.mxu0 0
    %7820 = vmatprep.subr.bf16.mxu0 0
    %7821 = vmatpush1.bf16.msra.mxu0 %v7803
    %7822 = vmatprep.subr.bf16.mxu0 0
    %7823 = vmatpush1.bf16.msra.mxu0 %v7743
    %7824 = vmatprep.subr.bf16.mxu0 0
    %7825 = vmatpush1.bf16.msra.mxu0 %v7683
    %7826 = vmatprep.subr.bf16.mxu0 0
    %7827 = vmatpush1.bf16.msra.mxu0 %v7623
    %7828 = vmatprep.subr.bf16.mxu0 0
    %7829 = vmatpush2.bf16.msra.mxu0 0
    %7830 = vmatprep.subr.bf16.mxu0 0
    %7831 = vmatpush2.bf16.msra.mxu0 0
    %7832 = vmatprep.subr.bf16.mxu0 0
    %7833 = vmatpush2.bf16.msra.mxu0 0
    %7834 = vmatprep.subr.bf16.mxu0 0
    %7835 = vmatpush2.bf16.msra.mxu0 0
    %7836 = vmatprep.subr.bf16.mxu0 0
    %7837 = vmatpush2.bf16.msra.mxu0 0
    %7838 = vmatprep.subr.bf16.mxu0 0
    %7839 = vmatpush2.bf16.msra.mxu0 0
    %7840 = vmatprep.subr.bf16.mxu0 0
    %7841 = vmatpush2.bf16.msra.mxu0 0
    %7842 = vmatprep.subr.bf16.mxu0 0
    %7843 = vmatpush2.bf16.msra.mxu0 0
    %7844 = vmatprep.mubr.bf16.mxu0 0
    %7845 = vmatmul.mubr.bf16.gmra.mxu0 %v7810
    %v7846 = vpop.f32.mrf.mxu0
    %v7847 = vadd.f32 %v7807, %v7846
    %v7848 = vpop.f32.mrf.mxu0
    %v7849 = vpop.f32.mrf.mxu0
    %v7850 = vpop.f32.mrf.mxu0
    %7851 = vdwg.mxu0
    %v7852 = vpack.c.bf16 %v7537, %v7536
    %v7854 = vsel %vm7459, %v7852, 0
    %7856 = vmatprep.subr.bf16.mxu0 0
    %7857 = vmatpush1.bf16.msra.mxu0 0
    %7858 = vmatprep.subr.bf16.mxu0 0
    %7859 = vmatpush1.bf16.msra.mxu0 0
    %7860 = vmatprep.subr.bf16.mxu0 0
    %7861 = vmatpush1.bf16.msra.mxu0 0
    %7862 = vmatprep.subr.bf16.mxu0 0
    %7863 = vmatpush1.bf16.msra.mxu0 0
    %7864 = vmatprep.subr.bf16.mxu0 0
    %7865 = vmatpush1.bf16.msra.mxu0 0
    %7866 = vmatprep.subr.bf16.mxu0 0
    %7867 = vmatpush1.bf16.msra.mxu0 %v7580
    %7868 = vmatprep.subr.bf16.mxu0 0
    %7869 = vmatpush1.bf16.msra.mxu0 %v7572
    %7870 = vmatprep.subr.bf16.mxu0 0
    %7871 = vmatpush1.bf16.msra.mxu0 %v7571
    %7872 = vmatprep.subr.bf16.mxu0 0
    %7873 = vmatpush2.bf16.msra.mxu0 0
    %7874 = vmatprep.subr.bf16.mxu0 0
    %7875 = vmatpush2.bf16.msra.mxu0 0
    %7876 = vmatprep.subr.bf16.mxu0 0
    %7877 = vmatpush2.bf16.msra.mxu0 0
    %7878 = vmatprep.subr.bf16.mxu0 0
    %7879 = vmatpush2.bf16.msra.mxu0 0
    %7880 = vmatprep.subr.bf16.mxu0 0
    %7881 = vmatpush2.bf16.msra.mxu0 0
    %7882 = vmatprep.subr.bf16.mxu0 0
    %7883 = vmatpush2.bf16.msra.mxu0 0
    %7884 = vmatprep.subr.bf16.mxu0 0
    %7885 = vmatpush2.bf16.msra.mxu0 0
    %7886 = vmatprep.subr.bf16.mxu0 0
    %7887 = vmatpush2.bf16.msra.mxu0 0
    %7888 = vmatprep.mubr.bf16.mxu0 0
    %7889 = vmatmul.mubr.bf16.gmra.mxu0 %v7854
    %v7890 = vpop.f32.mrf.mxu0
    %v7891 = vadd.f32 0.0, %v7890
    %v7892 = vpop.f32.mrf.mxu0
    %v7893 = vpop.f32.mrf.mxu0
    %v7894 = vadd.f32 0.0, %v7893
    %v7895 = vpop.f32.mrf.mxu0
    %7896 = vdwg.mxu0
    %v7897 = vpack.c.bf16 %v7894, %v7891
    %7898 = vmatprep.subr.bf16.mxu0 0
    %7899 = vmatpush1.bf16.msra.mxu0 0
    %7900 = vmatprep.subr.bf16.mxu0 0
    %7901 = vmatpush1.bf16.msra.mxu0 0
    %7902 = vmatprep.subr.bf16.mxu0 0
    %7903 = vmatpush1.bf16.msra.mxu0 0
    %7904 = vmatprep.subr.bf16.mxu0 0
    %7905 = vmatpush1.bf16.msra.mxu0 0
    %7906 = vmatprep.subr.bf16.mxu0 0
    %7907 = vmatpush1.bf16.msra.mxu0 0
    %7908 = vmatprep.subr.bf16.mxu0 0
    %7909 = vmatpush1.bf16.msra.mxu0 %v7640
    %7910 = vmatprep.subr.bf16.mxu0 0
    %7911 = vmatpush1.bf16.msra.mxu0 %v7635
    %7912 = vmatprep.subr.bf16.mxu0 0
    %7913 = vmatpush1.bf16.msra.mxu0 %v7634
    %7914 = vmatprep.subr.bf16.mxu0 0
    %7915 = vmatpush2.bf16.msra.mxu0 0
    %7916 = vmatprep.subr.bf16.mxu0 0
    %7917 = vmatpush2.bf16.msra.mxu0 0
    %7918 = vmatprep.subr.bf16.mxu0 0
    %7919 = vmatpush2.bf16.msra.mxu0 0
    %7920 = vmatprep.subr.bf16.mxu0 0
    %7921 = vmatpush2.bf16.msra.mxu0 0
    %7922 = vmatprep.subr.bf16.mxu0 0
    %7923 = vmatpush2.bf16.msra.mxu0 0
    %7924 = vmatprep.subr.bf16.mxu0 0
    %7925 = vmatpush2.bf16.msra.mxu0 0
    %7926 = vmatprep.subr.bf16.mxu0 0
    %7927 = vmatpush2.bf16.msra.mxu0 0
    %7928 = vmatprep.subr.bf16.mxu0 0
    %7929 = vmatpush2.bf16.msra.mxu0 0
    %7930 = vmatprep.mubr.bf16.mxu0 0
    %7931 = vmatmul.mubr.bf16.gmra.mxu0 %v7854
    %v7932 = vpop.f32.mrf.mxu0
    %v7933 = vadd.f32 0.0, %v7932
    %v7934 = vpop.f32.mrf.mxu0
    %v7935 = vpop.f32.mrf.mxu0
    %v7936 = vadd.f32 0.0, %v7935
    %v7937 = vpop.f32.mrf.mxu0
    %7938 = vdwg.mxu0
    %v7939 = vpack.c.bf16 %v7936, %v7933
    %7940 = vmatprep.subr.bf16.mxu0 0
    %7941 = vmatpush1.bf16.msra.mxu0 0
    %7942 = vmatprep.subr.bf16.mxu0 0
    %7943 = vmatpush1.bf16.msra.mxu0 0
    %7944 = vmatprep.subr.bf16.mxu0 0
    %7945 = vmatpush1.bf16.msra.mxu0 0
    %7946 = vmatprep.subr.bf16.mxu0 0
    %7947 = vmatpush1.bf16.msra.mxu0 0
    %7948 = vmatprep.subr.bf16.mxu0 0
    %7949 = vmatpush1.bf16.msra.mxu0 0
    %7950 = vmatprep.subr.bf16.mxu0 0
    %7951 = vmatpush1.bf16.msra.mxu0 %v7700
    %7952 = vmatprep.subr.bf16.mxu0 0
    %7953 = vmatpush1.bf16.msra.mxu0 %v7695
    %7954 = vmatprep.subr.bf16.mxu0 0
    %7955 = vmatpush1.bf16.msra.mxu0 %v7694
    %7956 = vmatprep.subr.bf16.mxu0 0
    %7957 = vmatpush2.bf16.msra.mxu0 0
    %7958 = vmatprep.subr.bf16.mxu0 0
    %7959 = vmatpush2.bf16.msra.mxu0 0
    %7960 = vmatprep.subr.bf16.mxu0 0
    %7961 = vmatpush2.bf16.msra.mxu0 0
    %7962 = vmatprep.subr.bf16.mxu0 0
    %7963 = vmatpush2.bf16.msra.mxu0 0
    %7964 = vmatprep.subr.bf16.mxu0 0
    %7965 = vmatpush2.bf16.msra.mxu0 0
    %7966 = vmatprep.subr.bf16.mxu0 0
    %7967 = vmatpush2.bf16.msra.mxu0 0
    %7968 = vmatprep.subr.bf16.mxu0 0
    %7969 = vmatpush2.bf16.msra.mxu0 0
    %7970 = vmatprep.subr.bf16.mxu0 0
    %7971 = vmatpush2.bf16.msra.mxu0 0
    %7972 = vmatprep.mubr.bf16.mxu0 0
    %7973 = vmatmul.mubr.bf16.gmra.mxu0 %v7854
    %v7974 = vpop.f32.mrf.mxu0
    %v7975 = vadd.f32 0.0, %v7974
    %v7976 = vpop.f32.mrf.mxu0
    %v7977 = vpop.f32.mrf.mxu0
    %v7978 = vadd.f32 0.0, %v7977
    %v7979 = vpop.f32.mrf.mxu0
    %7980 = vdwg.mxu0
    %v7981 = vpack.c.bf16 %v7978, %v7975
    %7982 = vmatprep.subr.bf16.mxu0 0
    %7983 = vmatpush1.bf16.msra.mxu0 0
    %7984 = vmatprep.subr.bf16.mxu0 0
    %7985 = vmatpush1.bf16.msra.mxu0 0
    %7986 = vmatprep.subr.bf16.mxu0 0
    %7987 = vmatpush1.bf16.msra.mxu0 0
    %7988 = vmatprep.subr.bf16.mxu0 0
    %7989 = vmatpush1.bf16.msra.mxu0 0
    %7990 = vmatprep.subr.bf16.mxu0 0
    %7991 = vmatpush1.bf16.msra.mxu0 0
    %7992 = vmatprep.subr.bf16.mxu0 0
    %7993 = vmatpush1.bf16.msra.mxu0 %v7760
    %7994 = vmatprep.subr.bf16.mxu0 0
    %7995 = vmatpush1.bf16.msra.mxu0 %v7755
    %7996 = vmatprep.subr.bf16.mxu0 0
    %7997 = vmatpush1.bf16.msra.mxu0 %v7754
    %7998 = vmatprep.subr.bf16.mxu0 0
    %7999 = vmatpush2.bf16.msra.mxu0 0
    %8000 = vmatprep.subr.bf16.mxu0 0
    %8001 = vmatpush2.bf16.msra.mxu0 0
    %8002 = vmatprep.subr.bf16.mxu0 0
    %8003 = vmatpush2.bf16.msra.mxu0 0
    %8004 = vmatprep.subr.bf16.mxu0 0
    %8005 = vmatpush2.bf16.msra.mxu0 0
    %8006 = vmatprep.subr.bf16.mxu0 0
    %8007 = vmatpush2.bf16.msra.mxu0 0
    %8008 = vmatprep.subr.bf16.mxu0 0
    %8009 = vmatpush2.bf16.msra.mxu0 0
    %8010 = vmatprep.subr.bf16.mxu0 0
    %8011 = vmatpush2.bf16.msra.mxu0 0
    %8012 = vmatprep.subr.bf16.mxu0 0
    %8013 = vmatpush2.bf16.msra.mxu0 0
    %8014 = vmatprep.mubr.bf16.mxu0 0
    %8015 = vmatmul.mubr.bf16.gmra.mxu0 %v7854
    %v8016 = vpop.f32.mrf.mxu0
    %v8017 = vadd.f32 0.0, %v8016
    %v8018 = vpop.f32.mrf.mxu0
    %v8019 = vpop.f32.mrf.mxu0
    %v8020 = vadd.f32 0.0, %v8019
    %v8021 = vpop.f32.mrf.mxu0
    %8022 = vdwg.mxu0
    %v8023 = vpack.c.bf16 %v8020, %v8017
    %8024 = vmatprep.subr.bf16.mxu0 0
    %8025 = vmatpush1.bf16.msra.mxu0 0
    %8026 = vmatprep.subr.bf16.mxu0 0
    %8027 = vmatpush1.bf16.msra.mxu0 0
    %8028 = vmatprep.subr.bf16.mxu0 0
    %8029 = vmatpush1.bf16.msra.mxu0 0
    %8030 = vmatprep.subr.bf16.mxu0 0
    %8031 = vmatpush1.bf16.msra.mxu0 0
    %8032 = vmatprep.subr.bf16.mxu0 0
    %8033 = vmatpush1.bf16.msra.mxu0 %v8023
    %8034 = vmatprep.subr.bf16.mxu0 0
    %8035 = vmatpush1.bf16.msra.mxu0 %v7981
    %8036 = vmatprep.subr.bf16.mxu0 0
    %8037 = vmatpush1.bf16.msra.mxu0 %v7939
    %8038 = vmatprep.subr.bf16.mxu0 0
    %8039 = vmatpush1.bf16.msra.mxu0 %v7897
    %8040 = vmatprep.subr.bf16.mxu0 0
    %8041 = vmatpush2.bf16.msra.mxu0 0
    %8042 = vmatprep.subr.bf16.mxu0 0
    %8043 = vmatpush2.bf16.msra.mxu0 0
    %8044 = vmatprep.subr.bf16.mxu0 0
    %8045 = vmatpush2.bf16.msra.mxu0 0
    %8046 = vmatprep.subr.bf16.mxu0 0
    %8047 = vmatpush2.bf16.msra.mxu0 0
    %8048 = vmatprep.subr.bf16.mxu0 0
    %8049 = vmatpush2.bf16.msra.mxu0 0
    %8050 = vmatprep.subr.bf16.mxu0 0
    %8051 = vmatpush2.bf16.msra.mxu0 0
    %8052 = vmatprep.subr.bf16.mxu0 0
    %8053 = vmatpush2.bf16.msra.mxu0 0
    %8054 = vmatprep.subr.bf16.mxu0 0
    %8055 = vmatpush2.bf16.msra.mxu0 0
    %8056 = vmatprep.mubr.bf16.mxu0 0
    %8057 = vmatmul.mubr.bf16.gmra.mxu0 %v7810
    %v8058 = vpop.f32.mrf.mxu0
    %v8059 = vadd.f32 %v7807, %v8058
    %v8060 = vpop.f32.mrf.mxu0
    %v8061 = vpop.f32.mrf.mxu0
    %v8062 = vpop.f32.mrf.mxu0
    %8063 = vdwg.mxu0
    %v8064 = vld [vmem:[%s3 + $0x468] sm:$0x1]
    %v8065 = vld [vmem:[%s2 + $0x1e0] sm:$0xf]
    %v8066 = vld [vmem:[%s2 + $0x1e4] sm:$0xf]
    %v8067 = vld [vmem:[%s2 + $0x1e8] sm:$0xf]
    %v8068 = vld [vmem:[%s2 + $0x1ec] sm:$0xf]
    %v8069 = vld [vmem:[%s2 + $0x1f0] sm:$0xf]
    %v8070 = vld [vmem:[%s2 + $0x1f4] sm:$0xf]
    %v8071 = vld [vmem:[%s2 + $0x1f8] sm:$0xf]
    %v8072 = vld [vmem:[%s2 + $0x1fc] sm:$0xf]
    %v8073 = vld [vmem:[%s2 + $0x200] sm:$0x7]
    %v8074 = vunpack.c.l.bf16 %v8065
    %v8075 = vunpack.c.l.bf16 %v8066
    %v8076 = vunpack.c.l.bf16 %v8067
    %v8077 = vunpack.c.l.bf16 %v8068
    %v8078 = vunpack.c.l.bf16 %v8069
    %v8079 = vunpack.c.l.bf16 %v8070
    %v8080 = vunpack.c.l.bf16 %v8071
    %v8081 = vunpack.c.l.bf16 %v8072
    %v8082 = vunpack.c.l.bf16 %v8073
    %v8083 = vld [vmem:[%s2 + $0x208] sm:$0xf]
    %v8084 = vld [vmem:[%s2 + $0x20c] sm:$0xf]
    %v8085 = vld [vmem:[%s2 + $0x210] sm:$0xf]
    %v8086 = vld [vmem:[%s2 + $0x214] sm:$0xf]
    %v8087 = vld [vmem:[%s2 + $0x218] sm:$0xf]
    %v8088 = vld [vmem:[%s2 + $0x21c] sm:$0xf]
    %v8089 = vld [vmem:[%s2 + $0x220] sm:$0xf]
    %v8090 = vld [vmem:[%s2 + $0x224] sm:$0xf]
    %v8091 = vld [vmem:[%s2 + $0x228] sm:$0x7]
    %v8092 = vunpack.c.l.bf16 %v8083
    %v8093 = vunpack.c.l.bf16 %v8084
    %v8094 = vunpack.c.l.bf16 %v8085
    %v8095 = vunpack.c.l.bf16 %v8086
    %v8096 = vunpack.c.l.bf16 %v8087
    %v8097 = vunpack.c.l.bf16 %v8088
    %v8098 = vunpack.c.l.bf16 %v8089
    %v8099 = vunpack.c.l.bf16 %v8090
    %v8100 = vunpack.c.l.bf16 %v8091
    %v8101 = vld [vmem:[%s2 + $0x230] sm:$0xf]
    %v8102 = vld [vmem:[%s2 + $0x234] sm:$0xf]
    %v8103 = vld [vmem:[%s2 + $0x238] sm:$0xf]
    %v8104 = vld [vmem:[%s2 + $0x23c] sm:$0xf]
    %v8105 = vld [vmem:[%s2 + $0x240] sm:$0xf]
    %v8106 = vld [vmem:[%s2 + $0x244] sm:$0xf]
    %v8107 = vld [vmem:[%s2 + $0x248] sm:$0xf]
    %v8108 = vld [vmem:[%s2 + $0x24c] sm:$0xf]
    %v8109 = vld [vmem:[%s2 + $0x250] sm:$0x7]
    %v8110 = vunpack.c.l.bf16 %v8101
    %v8111 = vunpack.c.l.bf16 %v8102
    %v8112 = vunpack.c.l.bf16 %v8103
    %v8113 = vunpack.c.l.bf16 %v8104
    %v8114 = vunpack.c.l.bf16 %v8105
    %v8115 = vunpack.c.l.bf16 %v8106
    %v8116 = vunpack.c.l.bf16 %v8107
    %v8117 = vunpack.c.l.bf16 %v8108
    %v8118 = vunpack.c.l.bf16 %v8109
    %v8119 = vld [vmem:[%s3 + $0x470] sm:$0x1]
    %v8120 = vld [vmem:[%s3 + $0x478] sm:$0x1]
    %v8121 = vld [vmem:[%s3 + $0x480] sm:$0x1]
    %vm8122 = vcmask 564224
    %v8124 = vsel %vm8122, %v7847, 0
    %vm8126 = vcmask 1044480
    %v8128 = vsel %vm8126, %v8082, 0
    %8130 = vmatprep.subr.mxu0 0.0
    %8131 = vmatpush1.msra.mxu0 0.0
    %8132 = vmatprep.subr.mxu0 0.0
    %8133 = vmatpush1.msra.mxu0 0.0
    %8134 = vmatprep.subr.mxu0 0.0
    %8135 = vmatpush1.msra.mxu0 0.0
    %8136 = vmatprep.subr.mxu0 0.0
    %8137 = vmatpush1.msra.mxu0 0.0
    %8138 = vmatprep.subr.mxu0 0.0
    %8139 = vmatpush1.msra.mxu0 0.0
    %8140 = vmatprep.subr.mxu0 0.0
    %8141 = vmatpush1.msra.mxu0 0.0
    %8142 = vmatprep.subr.mxu0 0.0
    %8143 = vmatpush1.msra.mxu0 0.0
    %8144 = vmatprep.subr.mxu0 0.0
    %8145 = vmatpush1.msra.mxu0 %v8128
    %8146 = vmatprep.subr.mxu0 0.0
    %8147 = vmatpush1.msra.mxu0 %v8081
    %8148 = vmatprep.subr.mxu0 0.0
    %8149 = vmatpush1.msra.mxu0 %v8080
    %8150 = vmatprep.subr.mxu0 0.0
    %8151 = vmatpush1.msra.mxu0 %v8079
    %8152 = vmatprep.subr.mxu0 0.0
    %8153 = vmatpush1.msra.mxu0 %v8078
    %8154 = vmatprep.subr.mxu0 0.0
    %8155 = vmatpush1.msra.mxu0 %v8077
    %8156 = vmatprep.subr.mxu0 0.0
    %8157 = vmatpush1.msra.mxu0 %v8076
    %8158 = vmatprep.subr.mxu0 0.0
    %8159 = vmatpush1.msra.mxu0 %v8075
    %8160 = vmatprep.subr.mxu0 0.0
    %8161 = vmatpush1.msra.mxu0 %v8074
    %8162 = vmatprep.subr.mxu0 0.0
    %8163 = vmatpush2.msra.mxu0 0.0
    %8164 = vmatprep.subr.mxu0 0.0
    %8165 = vmatpush2.msra.mxu0 0.0
    %8166 = vmatprep.subr.mxu0 0.0
    %8167 = vmatpush2.msra.mxu0 0.0
    %8168 = vmatprep.subr.mxu0 0.0
    %8169 = vmatpush2.msra.mxu0 0.0
    %8170 = vmatprep.subr.mxu0 0.0
    %8171 = vmatpush2.msra.mxu0 0.0
    %8172 = vmatprep.subr.mxu0 0.0
    %8173 = vmatpush2.msra.mxu0 0.0
    %8174 = vmatprep.subr.mxu0 0.0
    %8175 = vmatpush2.msra.mxu0 0.0
    %8176 = vmatprep.subr.mxu0 0.0
    %8177 = vmatpush2.msra.mxu0 0.0
    %8178 = vmatprep.subr.mxu0 0.0
    %8179 = vmatpush2.msra.mxu0 0.0
    %8180 = vmatprep.subr.mxu0 0.0
    %8181 = vmatpush2.msra.mxu0 0.0
    %8182 = vmatprep.subr.mxu0 0.0
    %8183 = vmatpush2.msra.mxu0 0.0
    %8184 = vmatprep.subr.mxu0 0.0
    %8185 = vmatpush2.msra.mxu0 0.0
    %8186 = vmatprep.subr.mxu0 0.0
    %8187 = vmatpush2.msra.mxu0 0.0
    %8188 = vmatprep.subr.mxu0 0.0
    %8189 = vmatpush2.msra.mxu0 0.0
    %8190 = vmatprep.subr.mxu0 0.0
    %8191 = vmatpush2.msra.mxu0 0.0
    %8192 = vmatprep.subr.mxu0 0.0
    %8193 = vmatpush2.msra.mxu0 0.0
    %8194 = vmatprep.mubr.f32.mxu0 0.0
    %8195 = vmatmul.mubr.f32.gmra.mxu0 %v8124
    %v8196 = vpop.f32.mrf.mxu0
    %v8197 = vadd.f32 0.0, %v8196
    %v8198 = vpop.f32.mrf.mxu0
    %8199 = vdwg.mxu0
    %8201 = vset.pattern.permute.xlu0 0
    %8202 = vperm.xlu0 %8201, %v8119
    %v8203 = vpop.permute.xlu0 %8202
    %v8205 = vmul.f32 %v8203, %v8197
    %v8207 = vsel %vm8126, %v8100, 0
    %8209 = vmatprep.subr.mxu0 0.0
    %8210 = vmatpush1.msra.mxu0 0.0
    %8211 = vmatprep.subr.mxu0 0.0
    %8212 = vmatpush1.msra.mxu0 0.0
    %8213 = vmatprep.subr.mxu0 0.0
    %8214 = vmatpush1.msra.mxu0 0.0
    %8215 = vmatprep.subr.mxu0 0.0
    %8216 = vmatpush1.msra.mxu0 0.0
    %8217 = vmatprep.subr.mxu0 0.0
    %8218 = vmatpush1.msra.mxu0 0.0
    %8219 = vmatprep.subr.mxu0 0.0
    %8220 = vmatpush1.msra.mxu0 0.0
    %8221 = vmatprep.subr.mxu0 0.0
    %8222 = vmatpush1.msra.mxu0 0.0
    %8223 = vmatprep.subr.mxu0 0.0
    %8224 = vmatpush1.msra.mxu0 %v8207
    %8225 = vmatprep.subr.mxu0 0.0
    %8226 = vmatpush1.msra.mxu0 %v8099
    %8227 = vmatprep.subr.mxu0 0.0
    %8228 = vmatpush1.msra.mxu0 %v8098
    %8229 = vmatprep.subr.mxu0 0.0
    %8230 = vmatpush1.msra.mxu0 %v8097
    %8231 = vmatprep.subr.mxu0 0.0
    %8232 = vmatpush1.msra.mxu0 %v8096
    %8233 = vmatprep.subr.mxu0 0.0
    %8234 = vmatpush1.msra.mxu0 %v8095
    %8235 = vmatprep.subr.mxu0 0.0
    %8236 = vmatpush1.msra.mxu0 %v8094
    %8237 = vmatprep.subr.mxu0 0.0
    %8238 = vmatpush1.msra.mxu0 %v8093
    %8239 = vmatprep.subr.mxu0 0.0
    %8240 = vmatpush1.msra.mxu0 %v8092
    %8241 = vmatprep.subr.mxu0 0.0
    %8242 = vmatpush2.msra.mxu0 0.0
    %8243 = vmatprep.subr.mxu0 0.0
    %8244 = vmatpush2.msra.mxu0 0.0
    %8245 = vmatprep.subr.mxu0 0.0
    %8246 = vmatpush2.msra.mxu0 0.0
    %8247 = vmatprep.subr.mxu0 0.0
    %8248 = vmatpush2.msra.mxu0 0.0
    %8249 = vmatprep.subr.mxu0 0.0
    %8250 = vmatpush2.msra.mxu0 0.0
    %8251 = vmatprep.subr.mxu0 0.0
    %8252 = vmatpush2.msra.mxu0 0.0
    %8253 = vmatprep.subr.mxu0 0.0
    %8254 = vmatpush2.msra.mxu0 0.0
    %8255 = vmatprep.subr.mxu0 0.0
    %8256 = vmatpush2.msra.mxu0 0.0
    %8257 = vmatprep.subr.mxu0 0.0
    %8258 = vmatpush2.msra.mxu0 0.0
    %8259 = vmatprep.subr.mxu0 0.0
    %8260 = vmatpush2.msra.mxu0 0.0
    %8261 = vmatprep.subr.mxu0 0.0
    %8262 = vmatpush2.msra.mxu0 0.0
    %8263 = vmatprep.subr.mxu0 0.0
    %8264 = vmatpush2.msra.mxu0 0.0
    %8265 = vmatprep.subr.mxu0 0.0
    %8266 = vmatpush2.msra.mxu0 0.0
    %8267 = vmatprep.subr.mxu0 0.0
    %8268 = vmatpush2.msra.mxu0 0.0
    %8269 = vmatprep.subr.mxu0 0.0
    %8270 = vmatpush2.msra.mxu0 0.0
    %8271 = vmatprep.subr.mxu0 0.0
    %8272 = vmatpush2.msra.mxu0 0.0
    %8273 = vmatprep.mubr.f32.mxu0 0.0
    %8274 = vmatmul.mubr.f32.gmra.mxu0 %v8124
    %v8275 = vpop.f32.mrf.mxu0
    %v8276 = vadd.f32 0.0, %v8275
    %v8277 = vpop.f32.mrf.mxu0
    %8278 = vdwg.mxu0
    %8280 = vset.pattern.permute.xlu0 0
    %8281 = vperm.xlu0 %8280, %v8120
    %v8282 = vpop.permute.xlu0 %8281
    %v8284 = vmul.f32 %v8282, %v8276
    %v8285 = vadd.f32 %v8205, %v8284
    %v8287 = vsel %vm8126, %v8118, 0
    %8289 = vmatprep.subr.mxu0 0.0
    %8290 = vmatpush1.msra.mxu0 0.0
    %8291 = vmatprep.subr.mxu0 0.0
    %8292 = vmatpush1.msra.mxu0 0.0
    %8293 = vmatprep.subr.mxu0 0.0
    %8294 = vmatpush1.msra.mxu0 0.0
    %8295 = vmatprep.subr.mxu0 0.0
    %8296 = vmatpush1.msra.mxu0 0.0
    %8297 = vmatprep.subr.mxu0 0.0
    %8298 = vmatpush1.msra.mxu0 0.0
    %8299 = vmatprep.subr.mxu0 0.0
    %8300 = vmatpush1.msra.mxu0 0.0
    %8301 = vmatprep.subr.mxu0 0.0
    %8302 = vmatpush1.msra.mxu0 0.0
    %8303 = vmatprep.subr.mxu0 0.0
    %8304 = vmatpush1.msra.mxu0 %v8287
    %8305 = vmatprep.subr.mxu0 0.0
    %8306 = vmatpush1.msra.mxu0 %v8117
    %8307 = vmatprep.subr.mxu0 0.0
    %8308 = vmatpush1.msra.mxu0 %v8116
    %8309 = vmatprep.subr.mxu0 0.0
    %8310 = vmatpush1.msra.mxu0 %v8115
    %8311 = vmatprep.subr.mxu0 0.0
    %8312 = vmatpush1.msra.mxu0 %v8114
    %8313 = vmatprep.subr.mxu0 0.0
    %8314 = vmatpush1.msra.mxu0 %v8113
    %8315 = vmatprep.subr.mxu0 0.0
    %8316 = vmatpush1.msra.mxu0 %v8112
    %8317 = vmatprep.subr.mxu0 0.0
    %8318 = vmatpush1.msra.mxu0 %v8111
    %8319 = vmatprep.subr.mxu0 0.0
    %8320 = vmatpush1.msra.mxu0 %v8110
    %8321 = vmatprep.subr.mxu0 0.0
    %8322 = vmatpush2.msra.mxu0 0.0
    %8323 = vmatprep.subr.mxu0 0.0
    %8324 = vmatpush2.msra.mxu0 0.0
    %8325 = vmatprep.subr.mxu0 0.0
    %8326 = vmatpush2.msra.mxu0 0.0
    %8327 = vmatprep.subr.mxu0 0.0
    %8328 = vmatpush2.msra.mxu0 0.0
    %8329 = vmatprep.subr.mxu0 0.0
    %8330 = vmatpush2.msra.mxu0 0.0
    %8331 = vmatprep.subr.mxu0 0.0
    %8332 = vmatpush2.msra.mxu0 0.0
    %8333 = vmatprep.subr.mxu0 0.0
    %8334 = vmatpush2.msra.mxu0 0.0
    %8335 = vmatprep.subr.mxu0 0.0
    %8336 = vmatpush2.msra.mxu0 0.0
    %8337 = vmatprep.subr.mxu0 0.0
    %8338 = vmatpush2.msra.mxu0 0.0
    %8339 = vmatprep.subr.mxu0 0.0
    %8340 = vmatpush2.msra.mxu0 0.0
    %8341 = vmatprep.subr.mxu0 0.0
    %8342 = vmatpush2.msra.mxu0 0.0
    %8343 = vmatprep.subr.mxu0 0.0
    %8344 = vmatpush2.msra.mxu0 0.0
    %8345 = vmatprep.subr.mxu0 0.0
    %8346 = vmatpush2.msra.mxu0 0.0
    %8347 = vmatprep.subr.mxu0 0.0
    %8348 = vmatpush2.msra.mxu0 0.0
    %8349 = vmatprep.subr.mxu0 0.0
    %8350 = vmatpush2.msra.mxu0 0.0
    %8351 = vmatprep.subr.mxu0 0.0
    %8352 = vmatpush2.msra.mxu0 0.0
    %8353 = vmatprep.mubr.f32.mxu0 0.0
    %8354 = vmatmul.mubr.f32.gmra.mxu0 %v8124
    %v8355 = vpop.f32.mrf.mxu0
    %v8356 = vadd.f32 0.0, %v8355
    %v8357 = vpop.f32.mrf.mxu0
    %8358 = vdwg.mxu0
    %8360 = vset.pattern.permute.xlu0 0
    %8361 = vperm.xlu0 %8360, %v8121
    %v8362 = vpop.permute.xlu0 %8361
    %v8364 = vmul.f32 %v8362, %v8356
    %v8365 = vadd.f32 %v8285, %v8364
    %8367 = vset.pattern.permute.xlu0 0
    %8368 = vperm.xlu0 %8367, %v8064
    %v8369 = vpop.permute.xlu0 %8368
    %v8371 = vadd.f32 %v8365, %v8369
    %v8372 = vxor.u32 %v8371, 2147483648
    %v8373 = vmul.f32 %v8372, 1.442695
    %v8374 = vpow.pop %v8373
    %v8375 = vadd.f32 %v8374, 1.0
    %v8376 = vrcp.pop %v8375
    %v8377 = vmul.f32 1.0, %v8376
    %v8379 = vsel %vm8122, %v8059, 0
    %8381 = vmatprep.subr.mxu0 0.0
    %8382 = vmatpush1.msra.mxu0 0.0
    %8383 = vmatprep.subr.mxu0 0.0
    %8384 = vmatpush1.msra.mxu0 0.0
    %8385 = vmatprep.subr.mxu0 0.0
    %8386 = vmatpush1.msra.mxu0 0.0
    %8387 = vmatprep.subr.mxu0 0.0
    %8388 = vmatpush1.msra.mxu0 0.0
    %8389 = vmatprep.subr.mxu0 0.0
    %8390 = vmatpush1.msra.mxu0 0.0
    %8391 = vmatprep.subr.mxu0 0.0
    %8392 = vmatpush1.msra.mxu0 0.0
    %8393 = vmatprep.subr.mxu0 0.0
    %8394 = vmatpush1.msra.mxu0 0.0
    %8395 = vmatprep.subr.mxu0 0.0
    %8396 = vmatpush1.msra.mxu0 %v8128
    %8397 = vmatprep.subr.mxu0 0.0
    %8398 = vmatpush1.msra.mxu0 %v8081
    %8399 = vmatprep.subr.mxu0 0.0
    %8400 = vmatpush1.msra.mxu0 %v8080
    %8401 = vmatprep.subr.mxu0 0.0
    %8402 = vmatpush1.msra.mxu0 %v8079
    %8403 = vmatprep.subr.mxu0 0.0
    %8404 = vmatpush1.msra.mxu0 %v8078
    %8405 = vmatprep.subr.mxu0 0.0
    %8406 = vmatpush1.msra.mxu0 %v8077
    %8407 = vmatprep.subr.mxu0 0.0
    %8408 = vmatpush1.msra.mxu0 %v8076
    %8409 = vmatprep.subr.mxu0 0.0
    %8410 = vmatpush1.msra.mxu0 %v8075
    %8411 = vmatprep.subr.mxu0 0.0
    %8412 = vmatpush1.msra.mxu0 %v8074
    %8413 = vmatprep.subr.mxu0 0.0
    %8414 = vmatpush2.msra.mxu0 0.0
    %8415 = vmatprep.subr.mxu0 0.0
    %8416 = vmatpush2.msra.mxu0 0.0
    %8417 = vmatprep.subr.mxu0 0.0
    %8418 = vmatpush2.msra.mxu0 0.0
    %8419 = vmatprep.subr.mxu0 0.0
    %8420 = vmatpush2.msra.mxu0 0.0
    %8421 = vmatprep.subr.mxu0 0.0
    %8422 = vmatpush2.msra.mxu0 0.0
    %8423 = vmatprep.subr.mxu0 0.0
    %8424 = vmatpush2.msra.mxu0 0.0
    %8425 = vmatprep.subr.mxu0 0.0
    %8426 = vmatpush2.msra.mxu0 0.0
    %8427 = vmatprep.subr.mxu0 0.0
    %8428 = vmatpush2.msra.mxu0 0.0
    %8429 = vmatprep.subr.mxu0 0.0
    %8430 = vmatpush2.msra.mxu0 0.0
    %8431 = vmatprep.subr.mxu0 0.0
    %8432 = vmatpush2.msra.mxu0 0.0
    %8433 = vmatprep.subr.mxu0 0.0
    %8434 = vmatpush2.msra.mxu0 0.0
    %8435 = vmatprep.subr.mxu0 0.0
    %8436 = vmatpush2.msra.mxu0 0.0
    %8437 = vmatprep.subr.mxu0 0.0
    %8438 = vmatpush2.msra.mxu0 0.0
    %8439 = vmatprep.subr.mxu0 0.0
    %8440 = vmatpush2.msra.mxu0 0.0
    %8441 = vmatprep.subr.mxu0 0.0
    %8442 = vmatpush2.msra.mxu0 0.0
    %8443 = vmatprep.subr.mxu0 0.0
    %8444 = vmatpush2.msra.mxu0 0.0
    %8445 = vmatprep.mubr.f32.mxu0 0.0
    %8446 = vmatmul.mubr.f32.gmra.mxu0 %v8379
    %v8447 = vpop.f32.mrf.mxu0
    %v8448 = vadd.f32 0.0, %v8447
    %v8449 = vpop.f32.mrf.mxu0
    %8450 = vdwg.mxu0
    %v8451 = vmul.f32 %v8203, %v8448
    %8452 = vmatprep.subr.mxu0 0.0
    %8453 = vmatpush1.msra.mxu0 0.0
    %8454 = vmatprep.subr.mxu0 0.0
    %8455 = vmatpush1.msra.mxu0 0.0
    %8456 = vmatprep.subr.mxu0 0.0
    %8457 = vmatpush1.msra.mxu0 0.0
    %8458 = vmatprep.subr.mxu0 0.0
    %8459 = vmatpush1.msra.mxu0 0.0
    %8460 = vmatprep.subr.mxu0 0.0
    %8461 = vmatpush1.msra.mxu0 0.0
    %8462 = vmatprep.subr.mxu0 0.0
    %8463 = vmatpush1.msra.mxu0 0.0
    %8464 = vmatprep.subr.mxu0 0.0
    %8465 = vmatpush1.msra.mxu0 0.0
    %8466 = vmatprep.subr.mxu0 0.0
    %8467 = vmatpush1.msra.mxu0 %v8207
    %8468 = vmatprep.subr.mxu0 0.0
    %8469 = vmatpush1.msra.mxu0 %v8099
    %8470 = vmatprep.subr.mxu0 0.0
    %8471 = vmatpush1.msra.mxu0 %v8098
    %8472 = vmatprep.subr.mxu0 0.0
    %8473 = vmatpush1.msra.mxu0 %v8097
    %8474 = vmatprep.subr.mxu0 0.0
    %8475 = vmatpush1.msra.mxu0 %v8096
    %8476 = vmatprep.subr.mxu0 0.0
    %8477 = vmatpush1.msra.mxu0 %v8095
    %8478 = vmatprep.subr.mxu0 0.0
    %8479 = vmatpush1.msra.mxu0 %v8094
    %8480 = vmatprep.subr.mxu0 0.0
    %8481 = vmatpush1.msra.mxu0 %v8093
    %8482 = vmatprep.subr.mxu0 0.0
    %8483 = vmatpush1.msra.mxu0 %v8092
    %8484 = vmatprep.subr.mxu0 0.0
    %8485 = vmatpush2.msra.mxu0 0.0
    %8486 = vmatprep.subr.mxu0 0.0
    %8487 = vmatpush2.msra.mxu0 0.0
    %8488 = vmatprep.subr.mxu0 0.0
    %8489 = vmatpush2.msra.mxu0 0.0
    %8490 = vmatprep.subr.mxu0 0.0
    %8491 = vmatpush2.msra.mxu0 0.0
    %8492 = vmatprep.subr.mxu0 0.0
    %8493 = vmatpush2.msra.mxu0 0.0
    %8494 = vmatprep.subr.mxu0 0.0
    %8495 = vmatpush2.msra.mxu0 0.0
    %8496 = vmatprep.subr.mxu0 0.0
    %8497 = vmatpush2.msra.mxu0 0.0
    %8498 = vmatprep.subr.mxu0 0.0
    %8499 = vmatpush2.msra.mxu0 0.0
    %8500 = vmatprep.subr.mxu0 0.0
    %8501 = vmatpush2.msra.mxu0 0.0
    %8502 = vmatprep.subr.mxu0 0.0
    %8503 = vmatpush2.msra.mxu0 0.0
    %8504 = vmatprep.subr.mxu0 0.0
    %8505 = vmatpush2.msra.mxu0 0.0
    %8506 = vmatprep.subr.mxu0 0.0
    %8507 = vmatpush2.msra.mxu0 0.0
    %8508 = vmatprep.subr.mxu0 0.0
    %8509 = vmatpush2.msra.mxu0 0.0
    %8510 = vmatprep.subr.mxu0 0.0
    %8511 = vmatpush2.msra.mxu0 0.0
    %8512 = vmatprep.subr.mxu0 0.0
    %8513 = vmatpush2.msra.mxu0 0.0
    %8514 = vmatprep.subr.mxu0 0.0
    %8515 = vmatpush2.msra.mxu0 0.0
    %8516 = vmatprep.mubr.f32.mxu0 0.0
    %8517 = vmatmul.mubr.f32.gmra.mxu0 %v8379
    %v8518 = vpop.f32.mrf.mxu0
    %v8519 = vadd.f32 0.0, %v8518
    %v8520 = vpop.f32.mrf.mxu0
    %8521 = vdwg.mxu0
    %v8522 = vmul.f32 %v8282, %v8519
    %v8523 = vadd.f32 %v8451, %v8522
    %8524 = vmatprep.subr.mxu0 0.0
    %8525 = vmatpush1.msra.mxu0 0.0
    %8526 = vmatprep.subr.mxu0 0.0
    %8527 = vmatpush1.msra.mxu0 0.0
    %8528 = vmatprep.subr.mxu0 0.0
    %8529 = vmatpush1.msra.mxu0 0.0
    %8530 = vmatprep.subr.mxu0 0.0
    %8531 = vmatpush1.msra.mxu0 0.0
    %8532 = vmatprep.subr.mxu0 0.0
    %8533 = vmatpush1.msra.mxu0 0.0
    %8534 = vmatprep.subr.mxu0 0.0
    %8535 = vmatpush1.msra.mxu0 0.0
    %8536 = vmatprep.subr.mxu0 0.0
    %8537 = vmatpush1.msra.mxu0 0.0
    %8538 = vmatprep.subr.mxu0 0.0
    %8539 = vmatpush1.msra.mxu0 %v8287
    %8540 = vmatprep.subr.mxu0 0.0
    %8541 = vmatpush1.msra.mxu0 %v8117
    %8542 = vmatprep.subr.mxu0 0.0
    %8543 = vmatpush1.msra.mxu0 %v8116
    %8544 = vmatprep.subr.mxu0 0.0
    %8545 = vmatpush1.msra.mxu0 %v8115
    %8546 = vmatprep.subr.mxu0 0.0
    %8547 = vmatpush1.msra.mxu0 %v8114
    %8548 = vmatprep.subr.mxu0 0.0
    %8549 = vmatpush1.msra.mxu0 %v8113
    %8550 = vmatprep.subr.mxu0 0.0
    %8551 = vmatpush1.msra.mxu0 %v8112
    %8552 = vmatprep.subr.mxu0 0.0
    %8553 = vmatpush1.msra.mxu0 %v8111
    %8554 = vmatprep.subr.mxu0 0.0
    %8555 = vmatpush1.msra.mxu0 %v8110
    %8556 = vmatprep.subr.mxu0 0.0
    %8557 = vmatpush2.msra.mxu0 0.0
    %8558 = vmatprep.subr.mxu0 0.0
    %8559 = vmatpush2.msra.mxu0 0.0
    %8560 = vmatprep.subr.mxu0 0.0
    %8561 = vmatpush2.msra.mxu0 0.0
    %8562 = vmatprep.subr.mxu0 0.0
    %8563 = vmatpush2.msra.mxu0 0.0
    %8564 = vmatprep.subr.mxu0 0.0
    %8565 = vmatpush2.msra.mxu0 0.0
    %8566 = vmatprep.subr.mxu0 0.0
    %8567 = vmatpush2.msra.mxu0 0.0
    %8568 = vmatprep.subr.mxu0 0.0
    %8569 = vmatpush2.msra.mxu0 0.0
    %8570 = vmatprep.subr.mxu0 0.0
    %8571 = vmatpush2.msra.mxu0 0.0
    %8572 = vmatprep.subr.mxu0 0.0
    %8573 = vmatpush2.msra.mxu0 0.0
    %8574 = vmatprep.subr.mxu0 0.0
    %8575 = vmatpush2.msra.mxu0 0.0
    %8576 = vmatprep.subr.mxu0 0.0
    %8577 = vmatpush2.msra.mxu0 0.0
    %8578 = vmatprep.subr.mxu0 0.0
    %8579 = vmatpush2.msra.mxu0 0.0
    %8580 = vmatprep.subr.mxu0 0.0
    %8581 = vmatpush2.msra.mxu0 0.0
    %8582 = vmatprep.subr.mxu0 0.0
    %8583 = vmatpush2.msra.mxu0 0.0
    %8584 = vmatprep.subr.mxu0 0.0
    %8585 = vmatpush2.msra.mxu0 0.0
    %8586 = vmatprep.subr.mxu0 0.0
    %8587 = vmatpush2.msra.mxu0 0.0
    %8588 = vmatprep.mubr.f32.mxu0 0.0
    %8589 = vmatmul.mubr.f32.gmra.mxu0 %v8379
    %v8590 = vpop.f32.mrf.mxu0
    %v8591 = vadd.f32 0.0, %v8590
    %v8592 = vpop.f32.mrf.mxu0
    %8593 = vdwg.mxu0
    %v8594 = vmul.f32 %v8362, %v8591
    %v8595 = vadd.f32 %v8523, %v8594
    %v8596 = vadd.f32 %v8595, %v8369
    %v8597 = vxor.u32 %v8596, 2147483648
    %v8598 = vmul.f32 %v8597, 1.442695
    %v8599 = vpow.pop %v8598
    %v8600 = vadd.f32 %v8599, 1.0
    %v8601 = vrcp.pop %v8600
    %v8602 = vmul.f32 1.0, %v8601
    %vm8603 = vcmask 557056
    %8604 = vst.msk [vmem:[#allocation2] sm:$0x1] %vm8603, %v8377
    %s8605 = scalar_lea.vmem [#allocation2], 1
    %8606 = vst.msk [vmem:[%s8605] sm:$0x1] %vm8603, %v8602
    // Predicated region
    $region18: #{conv_autoencoder_forward.1} parent=1 // pred_check
      _
    $region19: #{conv_autoencoder_forward.1} parent=1 // pred_check_branch
      %8608 = sbr.rel (0) target = $region21
    $region20: #{conv_autoencoder_forward.1} parent=1 // pred_region
      %s8610 = ssub.s32 32, 32
      %8611 = vsyncadd [#allocation3], %s8610
      %s8612 = sshll.u32 [#allocation2], 4
      %s8613 = int_to_ptr.vmem [resolvable:$true] %s8612
      %8618 = dma.vmem_to_hbm [thread:$0]  %s8613, 32, %s4, [#allocation3], 16, 16, 1
    $region21: #{conv_autoencoder_forward.1} parent=1 // pred_fallthru
      _
    // Predicated region
    $region22: #{conv_autoencoder_forward.1} parent=1 // pred_check
      _
    $region23: #{conv_autoencoder_forward.1} parent=1 // pred_check_branch
      %8620 = sbr.rel (0) target = $region25
    $region24: #{conv_autoencoder_forward.1} parent=1 // pred_region
      %8621 = dma.done [#allocation3], 32
    $region25: #{conv_autoencoder_forward.1} parent=1 // pred_fallthru
      _
    %8622 = vsyncpa [#allocation3], 1

</llo_original>
